<compile_context>
chip_gen: v7x
topology: tpu7x:2x2x1
jax: 0.10.0
libtpu: 0.0.40
codegen_flags: <defaults>
</compile_context>

<pallas_src>
import functools

import jax
import jax.numpy as jnp
from jax import lax
from jax.experimental import pallas as pl
from jax.experimental.pallas import tpu as pltpu


def _round_up(x, m):
    return (x + m - 1) // m * m


def _fused_resblock_kernel(x_ref, xt0_ref, xt1_ref, xb0_ref, xb1_ref,
                           w1_ref, b1_ref, w2_ref, b2_ref,
                           o_ref, xpad_ref, hpad_ref, *, TH, W, Wr, Cp):
    """One (batch, row-tile) step of the fused residual block.

    x_ref  : (1, TH, W, Cp)  input tile (also the residual identity)
    xt0/xt1: (1, 1, W, Cp)   rows r*TH-2 / r*TH-1 (top halo, clamped)
    xb0/xb1: (1, 1, W, Cp)   rows (r+1)*TH / (r+1)*TH+1 (bottom halo, clamped)
    w*_ref : (9*Cp, Cp)      weights, row index = (kh*3+kw)*Cp + cin
    b*_ref : (1, Cp)
    o_ref  : (1, TH, W, Cp)

    scratch:
      xpad_ref: (TH+6, Wr, Cp)  row i holds x tile-row (i-3); cols [W,Wr) are zero and,
                                through the flat row-major view, double as the left/right
                                1-pixel zero halo of the 3x3 taps.
      hpad_ref: (TH+4, Wr, Cp)  row p holds conv1+ReLU output at tile-row (p-2); same
                                column convention.  Never leaves VMEM.
    """
    f32 = jnp.float32
    r = pl.program_id(1)
    R = pl.num_programs(1)

    # ---- assemble the zero-haloed input tile (aligned stores only) ----------
    xpad_ref[:, W:Wr, :] = jnp.zeros((TH + 6, Wr - W, Cp), f32)       # halo columns
    xpad_ref[3:TH + 3, 0:W, :] = x_ref[0].astype(f32)                 # tile body

    @pl.when(r == 0)
    def _():
        xpad_ref[1:3, 0:W, :] = jnp.zeros((2, W, Cp), f32)            # above the image

    @pl.when(r > 0)
    def _():
        xpad_ref[1, 0:W, :] = xt0_ref[0, 0].astype(f32)
        xpad_ref[2, 0:W, :] = xt1_ref[0, 0].astype(f32)

    @pl.when(r == R - 1)
    def _():
        xpad_ref[TH + 3:TH + 5, 0:W, :] = jnp.zeros((2, W, Cp), f32)  # below the image

    @pl.when(r < R - 1)
    def _():
        xpad_ref[TH + 3, 0:W, :] = xb0_ref[0, 0].astype(f32)
        xpad_ref[TH + 4, 0:W, :] = xb1_ref[0, 0].astype(f32)

    def conv3x3(flat, w_ref, M):
        # out[m] += flat[m + (kh+1)*Wr + (kw-1)] @ w[kh,kw]  -- 9 accumulated MXU matmuls
        # straight from the haloed buffer; no im2col matrix is ever materialized.
        acc = None
        for kh in range(3):
            for kw in range(3):
                t = kh * 3 + kw
                d = (kh + 1) * Wr + (kw - 1)
                p = jnp.dot(flat[d:d + M, :], w_ref[t * Cp:(t + 1) * Cp, :],
                            preferred_element_type=jnp.float32)
                acc = p if acc is None else acc + p
        return acc

    # ---- conv1 + bias + ReLU: rows [-1, TH] (1-row halo needed by conv2) ----
    M1 = (TH + 2) * Wr
    xflat = xpad_ref[...].reshape((TH + 6) * Wr, Cp)
    h = jnp.maximum(conv3x3(xflat, w1_ref, M1) + b1_ref[...].astype(f32), 0.0)
    hpad_ref[1:TH + 3, :, :] = h.reshape(TH + 2, Wr, Cp)              # aligned store
    hpad_ref[:, W:Wr, :] = jnp.zeros((TH + 4, Wr - W, Cp), f32)       # re-zero halo cols

    @pl.when(r == 0)
    def _():
        hpad_ref[1, 0:W, :] = jnp.zeros((W, Cp), f32)                 # h row -1 outside image

    @pl.when(r == R - 1)
    def _():
        hpad_ref[TH + 2, 0:W, :] = jnp.zeros((W, Cp), f32)            # h row TH outside image

    # ---- conv2 + bias + residual + ReLU -------------------------------------
    M2 = TH * Wr
    hflat = hpad_ref[...].reshape((TH + 4) * Wr, Cp)
    out = conv3x3(hflat, w2_ref, M2) + b2_ref[...].astype(f32)
    out = out.reshape(TH, Wr, Cp)[:, 0:W, :] + x_ref[0].astype(f32)   # identity add
    o_ref[0] = jnp.maximum(out, 0.0).astype(o_ref.dtype)


def _pick_row_tile(H, W, Cp, requested=None):
    """Largest multiple-of-8 divisor of H (<=64) whose per-step VMEM fits the budget."""
    if requested is not None:
        if H % requested != 0:
            raise ValueError(f"row_tile={requested} must divide H={H}")
        return requested
    Wr = _round_up(W + 2, 8)

    def step_bytes(th):
        pads = ((th + 6) + (th + 4)) * Wr * Cp        # xpad + hpad scratch
        io = 4 * th * W * Cp                          # x & out blocks, double-buffered
        wts = 2 * 9 * Cp * Cp + 2 * Cp                # single-buffered weights/bias
        return 4 * (pads + io + wts)

    budget = 24 * 1024 * 1024
    if H % 8 == 0 and H >= 8:
        cands = [t for t in range(8, min(H, 64) + 1, 8) if H % t == 0]
        fits = [t for t in cands if step_bytes(t) <= budget]
        if fits:
            return max(fits)
        if cands:
            return min(cands)
    # TODO(synk): support ragged row tiles (H not a multiple of 8) and W tiling for wide images.
    return H


def residual_block_forward(x_nchw, w1, b1, w2, b2, *, row_tile=None):
    """Matches PyTorch ResidualBlock.forward (NCHW in/out). Weights are HWIO (3,3,Cin,Cout)."""
    N, C, H, W = x_nchw.shape
    Cin, Cout = w1.shape[2], w1.shape[3]
    assert Cin == C and Cout == C, "residual add requires in_channels == out_channels"
    assert w2.shape[2] == Cout and w2.shape[3] == Cout

    Cp = _round_up(C, 128)            # lane-dense channels (zero-padded lanes stay zero)
    Wr = _round_up(W + 2, 8)          # sublane-aligned padded width
    TH = _pick_row_tile(H, W, Cp, row_tile)
    R = H // TH

    # NCHW -> NHWC + channel pad (one fused XLA copy before the kernel).
    x = jnp.transpose(x_nchw, (0, 2, 3, 1))
    x = jnp.pad(x, ((0, 0), (0, 0), (0, 0), (0, Cp - C)))

    def pack_w(w):
        wp = jnp.pad(w, ((0, 0), (0, 0), (0, Cp - w.shape[2]), (0, Cp - w.shape[3])))
        return wp.reshape(9 * Cp, Cp)                 # row = (kh*3+kw)*Cp + cin

    def pack_b(b):
        return jnp.pad(b, (0, Cp - b.shape[0])).reshape(1, Cp)

    kernel = functools.partial(_fused_resblock_kernel, TH=TH, W=W, Wr=Wr, Cp=Cp)

    body_spec = pl.BlockSpec((1, TH, W, Cp), lambda n, r: (n, r, 0, 0))

    def halo_spec(row_of):
        return pl.BlockSpec((1, 1, W, Cp), lambda n, r: (n, row_of(r), 0, 0))

    def const_spec(shape):
        # Constant block index -> never re-fetched; single-buffer to save VMEM headroom.
        return pl.BlockSpec(shape, lambda n, r: (0, 0), pipeline_mode=pl.Buffered(1))

    out = pl.pallas_call(
        kernel,
        out_shape=jax.ShapeDtypeStruct((N, H, W, Cp), x.dtype),
        grid=(N, R),
        in_specs=[
            body_spec,                                                   # x tile (+identity)
            halo_spec(lambda r: jnp.maximum(r * TH - 2, 0)),             # top halo row -2
            halo_spec(lambda r: jnp.maximum(r * TH - 1, 0)),             # top halo row -1
            halo_spec(lambda r: jnp.minimum((r + 1) * TH, H - 1)),       # bottom halo row TH
            halo_spec(lambda r: jnp.minimum((r + 1) * TH + 1, H - 1)),   # bottom halo row TH+1
            const_spec((9 * Cp, Cp)),                                    # w1
            const_spec((1, Cp)),                                         # b1
            const_spec((9 * Cp, Cp)),                                    # w2
            const_spec((1, Cp)),                                         # b2
        ],
        out_specs=body_spec,
        scratch_shapes=[
            pltpu.VMEM((TH + 6, Wr, Cp), jnp.float32),   # zero-haloed input tile
            pltpu.VMEM((TH + 4, Wr, Cp), jnp.float32),   # zero-haloed conv1+ReLU output
        ],
        compiler_params=pltpu.CompilerParams(
            dimension_semantics=("parallel", "parallel"),
            vmem_limit_bytes=64 * 1024 * 1024,
        ),
    )(x, x, x, x, x, pack_w(w1), pack_b(b1), pack_w(w2), pack_b(b2))

    # Strip channel padding, NHWC -> NCHW (preserves the PyTorch interface).
    return jnp.transpose(out[..., :C], (0, 3, 1, 2))


def _reference_forward(x_nchw, w1, b1, w2, b2):
    dn = ("NCHW", "HWIO", "NCHW")
    h = lax.conv_general_dilated(x_nchw, w1, (1, 1), "SAME", dimension_numbers=dn)
    h = jnp.maximum(h + b1.reshape(1, -1, 1, 1), 0.0)
    o = lax.conv_general_dilated(h, w2, (1, 1), "SAME", dimension_numbers=dn)
    o = o + b2.reshape(1, -1, 1, 1) + x_nchw
    return jnp.maximum(o, 0.0)


if __name__ == "__main__":
    # Residual add requires in_channels == out_channels.
    N, C, H, W = 2, 4, 16, 16

    key = jax.random.PRNGKey(0)
    kx, kw1, kb1, kw2, kb2 = jax.random.split(key, 5)
    x = jax.random.normal(kx, (N, C, H, W), dtype=jnp.float32)
    w1 = 0.1 * jax.random.normal(kw1, (3, 3, C, C), dtype=jnp.float32)
    b1 = 0.1 * jax.random.normal(kb1, (C,), dtype=jnp.float32)
    w2 = 0.1 * jax.random.normal(kw2, (3, 3, C, C), dtype=jnp.float32)
    b2 = 0.1 * jax.random.normal(kb2, (C,), dtype=jnp.float32)

    # row_tile=8 -> 2 row tiles per image: exercises both the boundary (zeroed halo)
    # and interior (copied halo) paths of the H-tiling logic.
    out = jax.block_until_ready(residual_block_forward(x, w1, b1, w2, b2, row_tile=8))
    ref = jax.block_until_ready(_reference_forward(x, w1, b1, w2, b2))

    assert out.shape == (N, C, H, W)
    assert jnp.allclose(out, ref, atol=1e-4, rtol=1e-4), "mismatch vs XLA reference"
    print("KERNEL_OK")
</pallas_src>

<mosaic_0001>
module attributes {stable_mosaic.version = 11 : i64} {
  func.func @_fused_resblock_kernel(%arg0: i32, %arg1: i32, %arg2: memref<1x8x16x128xf32, #tpu.memory_space<vmem>>, %arg3: memref<1x1x16x128xf32, #tpu.memory_space<vmem>>, %arg4: memref<1x1x16x128xf32, #tpu.memory_space<vmem>>, %arg5: memref<1x1x16x128xf32, #tpu.memory_space<vmem>>, %arg6: memref<1x1x16x128xf32, #tpu.memory_space<vmem>>, %arg7: memref<1152x128xf32, #tpu.memory_space<vmem>>, %arg8: memref<1x128xf32, #tpu.memory_space<vmem>>, %arg9: memref<1152x128xf32, #tpu.memory_space<vmem>>, %arg10: memref<1x128xf32, #tpu.memory_space<vmem>>, %arg11: memref<1x8x16x128xf32, #tpu.memory_space<vmem>>, %arg12: memref<14x24x128xf32, #tpu.memory_space<vmem>>, %arg13: memref<12x24x128xf32, #tpu.memory_space<vmem>>) attributes {dimension_semantics = [#tpu.dimension_semantics<parallel>, #tpu.dimension_semantics<parallel>], iteration_bounds = array<i64: 2, 2>, scalar_prefetch = 0 : i64, scratch_operands = 2 : i64, tpu.core_type = #tpu.core_type<tc>, window_params = [{transform_indices = @transform_0, window_bounds = array<i64: 1, 8, 16, 128>}, {transform_indices = @transform_1, window_bounds = array<i64: 1, 1, 16, 128>}, {transform_indices = @transform_2, window_bounds = array<i64: 1, 1, 16, 128>}, {transform_indices = @transform_3, window_bounds = array<i64: 1, 1, 16, 128>}, {transform_indices = @transform_4, window_bounds = array<i64: 1, 1, 16, 128>}, {pipeline_mode = #tpu.pipeline_mode<synchronous>, transform_indices = @transform_5, window_bounds = array<i64: 1152, 128>}, {pipeline_mode = #tpu.pipeline_mode<synchronous>, transform_indices = @transform_6, window_bounds = array<i64: 1, 128>}, {pipeline_mode = #tpu.pipeline_mode<synchronous>, transform_indices = @transform_7, window_bounds = array<i64: 1152, 128>}, {pipeline_mode = #tpu.pipeline_mode<synchronous>, transform_indices = @transform_8, window_bounds = array<i64: 1, 128>}, {transform_indices = @transform_9, window_bounds = array<i64: 1, 8, 16, 128>}]} {
    %cst = arith.constant 0.000000e+00 : f32
    %0 = vector.broadcast %cst : f32 to vector<14x8x128xf32>
    %c0 = arith.constant 0 : index
    %c16 = arith.constant 16 : index
    %c0_0 = arith.constant 0 : index
    %1 = vector.load %arg12[%c0, %c16, %c0_0] : memref<14x24x128xf32, #tpu.memory_space<vmem>>, vector<14x8x128xf32>
    tpu.vector_store %arg12[%c0, %c16, %c0_0], %0 {strides = array<i32>} : memref<14x24x128xf32, #tpu.memory_space<vmem>>, vector<14x8x128xf32>,
    %c0_1 = arith.constant 0 : index
    %c0_2 = arith.constant 0 : index
    %c0_3 = arith.constant 0 : index
    %c0_4 = arith.constant 0 : index
    %2 = vector.load %arg2[%c0_1, %c0_2, %c0_3, %c0_4] : memref<1x8x16x128xf32, #tpu.memory_space<vmem>>, vector<1x8x16x128xf32>
    %3 = vector.shape_cast %2 : vector<1x8x16x128xf32> to vector<8x16x128xf32>
    %c3 = arith.constant 3 : index
    %c0_5 = arith.constant 0 : index
    %c0_6 = arith.constant 0 : index
    %4 = vector.load %arg12[%c3, %c0_5, %c0_6] : memref<14x24x128xf32, #tpu.memory_space<vmem>>, vector<8x16x128xf32>
    tpu.vector_store %arg12[%c3, %c0_5, %c0_6], %3 {strides = array<i32>} : memref<14x24x128xf32, #tpu.memory_space<vmem>>, vector<8x16x128xf32>,
    %c0_i32 = arith.constant 0 : i32
    %5 = arith.cmpi eq, %arg1, %c0_i32 : i32
    %6 = arith.extui %5 : i1 to i32
    %c0_i32_7 = arith.constant 0 : i32
    %7 = arith.cmpi ne, %6, %c0_i32_7 : i32
    scf.if %7 {
      %cst_89 = arith.constant 0.000000e+00 : f32
      %119 = vector.broadcast %cst_89 : f32 to vector<2x16x128xf32>
      %c1_90 = arith.constant 1 : index
      %c0_91 = arith.constant 0 : index
      %c0_92 = arith.constant 0 : index
      %120 = vector.load %arg12[%c1_90, %c0_91, %c0_92] : memref<14x24x128xf32, #tpu.memory_space<vmem>>, vector<2x16x128xf32>
      tpu.vector_store %arg12[%c1_90, %c0_91, %c0_92], %119 {strides = array<i32>} : memref<14x24x128xf32, #tpu.memory_space<vmem>>, vector<2x16x128xf32>,
    } else {
    }
    %c0_i32_8 = arith.constant 0 : i32
    %8 = arith.cmpi sgt, %arg1, %c0_i32_8 : i32
    %9 = arith.extui %8 : i1 to i32
    %c0_i32_9 = arith.constant 0 : i32
    %10 = arith.cmpi ne, %9, %c0_i32_9 : i32
    scf.if %10 {
      %c0_89 = arith.constant 0 : index
      %c0_90 = arith.constant 0 : index
      %c0_91 = arith.constant 0 : index
      %c0_92 = arith.constant 0 : index
      %119 = vector.load %arg3[%c0_89, %c0_90, %c0_91, %c0_92] : memref<1x1x16x128xf32, #tpu.memory_space<vmem>>, vector<1x1x16x128xf32>
      %120 = vector.shape_cast %119 : vector<1x1x16x128xf32> to vector<16x128xf32>
      %c1_93 = arith.constant 1 : index
      %c0_94 = arith.constant 0 : index
      %c0_95 = arith.constant 0 : index
      %121 = vector.load %arg12[%c1_93, %c0_94, %c0_95] : memref<14x24x128xf32, #tpu.memory_space<vmem>>, vector<1x16x128xf32>
      %122 = vector.shape_cast %121 : vector<1x16x128xf32> to vector<16x128xf32>
      %123 = vector.shape_cast %120 : vector<16x128xf32> to vector<1x16x128xf32>
      tpu.vector_store %arg12[%c1_93, %c0_94, %c0_95], %123 {strides = array<i32>} : memref<14x24x128xf32, #tpu.memory_space<vmem>>, vector<1x16x128xf32>,
      %c0_96 = arith.constant 0 : index
      %c0_97 = arith.constant 0 : index
      %c0_98 = arith.constant 0 : index
      %c0_99 = arith.constant 0 : index
      %124 = vector.load %arg4[%c0_96, %c0_97, %c0_98, %c0_99] : memref<1x1x16x128xf32, #tpu.memory_space<vmem>>, vector<1x1x16x128xf32>
      %125 = vector.shape_cast %124 : vector<1x1x16x128xf32> to vector<16x128xf32>
      %c2 = arith.constant 2 : index
      %c0_100 = arith.constant 0 : index
      %c0_101 = arith.constant 0 : index
      %126 = vector.load %arg12[%c2, %c0_100, %c0_101] : memref<14x24x128xf32, #tpu.memory_space<vmem>>, vector<1x16x128xf32>
      %127 = vector.shape_cast %126 : vector<1x16x128xf32> to vector<16x128xf32>
      %128 = vector.shape_cast %125 : vector<16x128xf32> to vector<1x16x128xf32>
      tpu.vector_store %arg12[%c2, %c0_100, %c0_101], %128 {strides = array<i32>} : memref<14x24x128xf32, #tpu.memory_space<vmem>>, vector<1x16x128xf32>,
    } else {
    }
    %c1_i32 = arith.constant 1 : i32
    %11 = arith.cmpi eq, %arg1, %c1_i32 : i32
    %12 = arith.extui %11 : i1 to i32
    %c0_i32_10 = arith.constant 0 : i32
    %13 = arith.cmpi ne, %12, %c0_i32_10 : i32
    scf.if %13 {
      %cst_89 = arith.constant 0.000000e+00 : f32
      %119 = vector.broadcast %cst_89 : f32 to vector<2x16x128xf32>
      %c11 = arith.constant 11 : index
      %c0_90 = arith.constant 0 : index
      %c0_91 = arith.constant 0 : index
      %120 = vector.load %arg12[%c11, %c0_90, %c0_91] : memref<14x24x128xf32, #tpu.memory_space<vmem>>, vector<2x16x128xf32>
      tpu.vector_store %arg12[%c11, %c0_90, %c0_91], %119 {strides = array<i32>} : memref<14x24x128xf32, #tpu.memory_space<vmem>>, vector<2x16x128xf32>,
    } else {
    }
    %c1_i32_11 = arith.constant 1 : i32
    %14 = arith.cmpi slt, %arg1, %c1_i32_11 : i32
    %15 = arith.extui %14 : i1 to i32
    %c0_i32_12 = arith.constant 0 : i32
    %16 = arith.cmpi ne, %15, %c0_i32_12 : i32
    scf.if %16 {
      %c0_89 = arith.constant 0 : index
      %c0_90 = arith.constant 0 : index
      %c0_91 = arith.constant 0 : index
      %c0_92 = arith.constant 0 : index
      %119 = vector.load %arg5[%c0_89, %c0_90, %c0_91, %c0_92] : memref<1x1x16x128xf32, #tpu.memory_space<vmem>>, vector<1x1x16x128xf32>
      %120 = vector.shape_cast %119 : vector<1x1x16x128xf32> to vector<16x128xf32>
      %c11 = arith.constant 11 : index
      %c0_93 = arith.constant 0 : index
      %c0_94 = arith.constant 0 : index
      %121 = vector.load %arg12[%c11, %c0_93, %c0_94] : memref<14x24x128xf32, #tpu.memory_space<vmem>>, vector<1x16x128xf32>
      %122 = vector.shape_cast %121 : vector<1x16x128xf32> to vector<16x128xf32>
      %123 = vector.shape_cast %120 : vector<16x128xf32> to vector<1x16x128xf32>
      tpu.vector_store %arg12[%c11, %c0_93, %c0_94], %123 {strides = array<i32>} : memref<14x24x128xf32, #tpu.memory_space<vmem>>, vector<1x16x128xf32>,
      %c0_95 = arith.constant 0 : index
      %c0_96 = arith.constant 0 : index
      %c0_97 = arith.constant 0 : index
      %c0_98 = arith.constant 0 : index
      %124 = vector.load %arg6[%c0_95, %c0_96, %c0_97, %c0_98] : memref<1x1x16x128xf32, #tpu.memory_space<vmem>>, vector<1x1x16x128xf32>
      %125 = vector.shape_cast %124 : vector<1x1x16x128xf32> to vector<16x128xf32>
      %c12 = arith.constant 12 : index
      %c0_99 = arith.constant 0 : index
      %c0_100 = arith.constant 0 : index
      %126 = vector.load %arg12[%c12, %c0_99, %c0_100] : memref<14x24x128xf32, #tpu.memory_space<vmem>>, vector<1x16x128xf32>
      %127 = vector.shape_cast %126 : vector<1x16x128xf32> to vector<16x128xf32>
      %128 = vector.shape_cast %125 : vector<16x128xf32> to vector<1x16x128xf32>
      tpu.vector_store %arg12[%c12, %c0_99, %c0_100], %128 {strides = array<i32>} : memref<14x24x128xf32, #tpu.memory_space<vmem>>, vector<1x16x128xf32>,
    } else {
    }
    %c0_13 = arith.constant 0 : index
    %c0_14 = arith.constant 0 : index
    %c0_15 = arith.constant 0 : index
    %17 = vector.load %arg12[%c0_13, %c0_14, %c0_15] : memref<14x24x128xf32, #tpu.memory_space<vmem>>, vector<14x24x128xf32>
    %18 = vector.shape_cast %17 : vector<14x24x128xf32> to vector<336x128xf32>
    %19 = vector.extract_strided_slice %18 {offsets = [23, 0], sizes = [240, 128], strides = [1, 1]} : vector<336x128xf32> to vector<240x128xf32>
    %c0_16 = arith.constant 0 : index
    %c0_17 = arith.constant 0 : index
    %20 = vector.load %arg7[%c0_16, %c0_17] : memref<1152x128xf32, #tpu.memory_space<vmem>>, vector<128x128xf32>
    %cst_18 = arith.constant dense<0.000000e+00> : vector<240x128xf32>
    %21 = tpu.matmul %19, %20, %cst_18 {dimension_numbers = #tpu.dot_dimension_numbers<[1], [0], [0], [1], [0, 0, 1, 1], [], []>} : vector<240x128xf32>, vector<128x128xf32>, vector<240x128xf32> -> vector<240x128xf32>
    %22 = vector.extract_strided_slice %18 {offsets = [24, 0], sizes = [240, 128], strides = [1, 1]} : vector<336x128xf32> to vector<240x128xf32>
    %c128 = arith.constant 128 : index
    %c0_19 = arith.constant 0 : index
    %23 = vector.load %arg7[%c128, %c0_19] : memref<1152x128xf32, #tpu.memory_space<vmem>>, vector<128x128xf32>
    %cst_20 = arith.constant dense<0.000000e+00> : vector<240x128xf32>
    %24 = tpu.matmul %22, %23, %cst_20 {dimension_numbers = #tpu.dot_dimension_numbers<[1], [0], [0], [1], [0, 0, 1, 1], [], []>} : vector<240x128xf32>, vector<128x128xf32>, vector<240x128xf32> -> vector<240x128xf32>
    %25 = arith.addf %21, %24 : vector<240x128xf32>
    %26 = vector.extract_strided_slice %18 {offsets = [25, 0], sizes = [240, 128], strides = [1, 1]} : vector<336x128xf32> to vector<240x128xf32>
    %c256 = arith.constant 256 : index
    %c0_21 = arith.constant 0 : index
    %27 = vector.load %arg7[%c256, %c0_21] : memref<1152x128xf32, #tpu.memory_space<vmem>>, vector<128x128xf32>
    %cst_22 = arith.constant dense<0.000000e+00> : vector<240x128xf32>
    %28 = tpu.matmul %26, %27, %cst_22 {dimension_numbers = #tpu.dot_dimension_numbers<[1], [0], [0], [1], [0, 0, 1, 1], [], []>} : vector<240x128xf32>, vector<128x128xf32>, vector<240x128xf32> -> vector<240x128xf32>
    %29 = arith.addf %25, %28 : vector<240x128xf32>
    %30 = vector.extract_strided_slice %18 {offsets = [47, 0], sizes = [240, 128], strides = [1, 1]} : vector<336x128xf32> to vector<240x128xf32>
    %c384 = arith.constant 384 : index
    %c0_23 = arith.constant 0 : index
    %31 = vector.load %arg7[%c384, %c0_23] : memref<1152x128xf32, #tpu.memory_space<vmem>>, vector<128x128xf32>
    %cst_24 = arith.constant dense<0.000000e+00> : vector<240x128xf32>
    %32 = tpu.matmul %30, %31, %cst_24 {dimension_numbers = #tpu.dot_dimension_numbers<[1], [0], [0], [1], [0, 0, 1, 1], [], []>} : vector<240x128xf32>, vector<128x128xf32>, vector<240x128xf32> -> vector<240x128xf32>
    %33 = arith.addf %29, %32 : vector<240x128xf32>
    %34 = vector.extract_strided_slice %18 {offsets = [48, 0], sizes = [240, 128], strides = [1, 1]} : vector<336x128xf32> to vector<240x128xf32>
    %c512 = arith.constant 512 : index
    %c0_25 = arith.constant 0 : index
    %35 = vector.load %arg7[%c512, %c0_25] : memref<1152x128xf32, #tpu.memory_space<vmem>>, vector<128x128xf32>
    %cst_26 = arith.constant dense<0.000000e+00> : vector<240x128xf32>
    %36 = tpu.matmul %34, %35, %cst_26 {dimension_numbers = #tpu.dot_dimension_numbers<[1], [0], [0], [1], [0, 0, 1, 1], [], []>} : vector<240x128xf32>, vector<128x128xf32>, vector<240x128xf32> -> vector<240x128xf32>
    %37 = arith.addf %33, %36 : vector<240x128xf32>
    %38 = vector.extract_strided_slice %18 {offsets = [49, 0], sizes = [240, 128], strides = [1, 1]} : vector<336x128xf32> to vector<240x128xf32>
    %c640 = arith.constant 640 : index
    %c0_27 = arith.constant 0 : index
    %39 = vector.load %arg7[%c640, %c0_27] : memref<1152x128xf32, #tpu.memory_space<vmem>>, vector<128x128xf32>
    %cst_28 = arith.constant dense<0.000000e+00> : vector<240x128xf32>
    %40 = tpu.matmul %38, %39, %cst_28 {dimension_numbers = #tpu.dot_dimension_numbers<[1], [0], [0], [1], [0, 0, 1, 1], [], []>} : vector<240x128xf32>, vector<128x128xf32>, vector<240x128xf32> -> vector<240x128xf32>
    %41 = arith.addf %37, %40 : vector<240x128xf32>
    %42 = vector.extract_strided_slice %18 {offsets = [71, 0], sizes = [240, 128], strides = [1, 1]} : vector<336x128xf32> to vector<240x128xf32>
    %c768 = arith.constant 768 : index
    %c0_29 = arith.constant 0 : index
    %43 = vector.load %arg7[%c768, %c0_29] : memref<1152x128xf32, #tpu.memory_space<vmem>>, vector<128x128xf32>
    %cst_30 = arith.constant dense<0.000000e+00> : vector<240x128xf32>
    %44 = tpu.matmul %42, %43, %cst_30 {dimension_numbers = #tpu.dot_dimension_numbers<[1], [0], [0], [1], [0, 0, 1, 1], [], []>} : vector<240x128xf32>, vector<128x128xf32>, vector<240x128xf32> -> vector<240x128xf32>
    %45 = arith.addf %41, %44 : vector<240x128xf32>
    %46 = vector.extract_strided_slice %18 {offsets = [72, 0], sizes = [240, 128], strides = [1, 1]} : vector<336x128xf32> to vector<240x128xf32>
    %c896 = arith.constant 896 : index
    %c0_31 = arith.constant 0 : index
    %47 = vector.load %arg7[%c896, %c0_31] : memref<1152x128xf32, #tpu.memory_space<vmem>>, vector<128x128xf32>
    %cst_32 = arith.constant dense<0.000000e+00> : vector<240x128xf32>
    %48 = tpu.matmul %46, %47, %cst_32 {dimension_numbers = #tpu.dot_dimension_numbers<[1], [0], [0], [1], [0, 0, 1, 1], [], []>} : vector<240x128xf32>, vector<128x128xf32>, vector<240x128xf32> -> vector<240x128xf32>
    %49 = arith.addf %45, %48 : vector<240x128xf32>
    %50 = vector.extract_strided_slice %18 {offsets = [73, 0], sizes = [240, 128], strides = [1, 1]} : vector<336x128xf32> to vector<240x128xf32>
    %c1024 = arith.constant 1024 : index
    %c0_33 = arith.constant 0 : index
    %51 = vector.load %arg7[%c1024, %c0_33] : memref<1152x128xf32, #tpu.memory_space<vmem>>, vector<128x128xf32>
    %cst_34 = arith.constant dense<0.000000e+00> : vector<240x128xf32>
    %52 = tpu.matmul %50, %51, %cst_34 {dimension_numbers = #tpu.dot_dimension_numbers<[1], [0], [0], [1], [0, 0, 1, 1], [], []>} : vector<240x128xf32>, vector<128x128xf32>, vector<240x128xf32> -> vector<240x128xf32>
    %53 = arith.addf %49, %52 : vector<240x128xf32>
    %c0_35 = arith.constant 0 : index
    %c0_36 = arith.constant 0 : index
    %54 = vector.load %arg8[%c0_35, %c0_36] : memref<1x128xf32, #tpu.memory_space<vmem>>, vector<1x128xf32>
    %55 = vector.broadcast %54 : vector<1x128xf32> to vector<240x128xf32>
    %56 = arith.addf %53, %55 : vector<240x128xf32>
    %cst_37 = arith.constant 0.000000e+00 : f32
    %57 = vector.broadcast %cst_37 : f32 to vector<240x128xf32>
    %58 = arith.maximumf %56, %57 : vector<240x128xf32>
    %59 = vector.shape_cast %58 : vector<240x128xf32> to vector<10x24x128xf32>
    %c1 = arith.constant 1 : index
    %c0_38 = arith.constant 0 : index
    %c0_39 = arith.constant 0 : index
    %60 = vector.load %arg13[%c1, %c0_38, %c0_39] : memref<12x24x128xf32, #tpu.memory_space<vmem>>, vector<10x24x128xf32>
    tpu.vector_store %arg13[%c1, %c0_38, %c0_39], %59 {strides = array<i32>} : memref<12x24x128xf32, #tpu.memory_space<vmem>>, vector<10x24x128xf32>,
    %cst_40 = arith.constant 0.000000e+00 : f32
    %61 = vector.broadcast %cst_40 : f32 to vector<12x8x128xf32>
    %c0_41 = arith.constant 0 : index
    %c16_42 = arith.constant 16 : index
    %c0_43 = arith.constant 0 : index
    %62 = vector.load %arg13[%c0_41, %c16_42, %c0_43] : memref<12x24x128xf32, #tpu.memory_space<vmem>>, vector<12x8x128xf32>
    tpu.vector_store %arg13[%c0_41, %c16_42, %c0_43], %61 {strides = array<i32>} : memref<12x24x128xf32, #tpu.memory_space<vmem>>, vector<12x8x128xf32>,
    %c0_i32_44 = arith.constant 0 : i32
    %63 = arith.cmpi eq, %arg1, %c0_i32_44 : i32
    %64 = arith.extui %63 : i1 to i32
    %c0_i32_45 = arith.constant 0 : i32
    %65 = arith.cmpi ne, %64, %c0_i32_45 : i32
    scf.if %65 {
      %cst_89 = arith.constant 0.000000e+00 : f32
      %119 = vector.broadcast %cst_89 : f32 to vector<16x128xf32>
      %c1_90 = arith.constant 1 : index
      %c0_91 = arith.constant 0 : index
      %c0_92 = arith.constant 0 : index
      %120 = vector.load %arg13[%c1_90, %c0_91, %c0_92] : memref<12x24x128xf32, #tpu.memory_space<vmem>>, vector<1x16x128xf32>
      %121 = vector.shape_cast %120 : vector<1x16x128xf32> to vector<16x128xf32>
      %122 = vector.shape_cast %119 : vector<16x128xf32> to vector<1x16x128xf32>
      tpu.vector_store %arg13[%c1_90, %c0_91, %c0_92], %122 {strides = array<i32>} : memref<12x24x128xf32, #tpu.memory_space<vmem>>, vector<1x16x128xf32>,
    } else {
    }
    %c1_i32_46 = arith.constant 1 : i32
    %66 = arith.cmpi eq, %arg1, %c1_i32_46 : i32
    %67 = arith.extui %66 : i1 to i32
    %c0_i32_47 = arith.constant 0 : i32
    %68 = arith.cmpi ne, %67, %c0_i32_47 : i32
    scf.if %68 {
      %cst_89 = arith.constant 0.000000e+00 : f32
      %119 = vector.broadcast %cst_89 : f32 to vector<16x128xf32>
      %c10 = arith.constant 10 : index
      %c0_90 = arith.constant 0 : index
      %c0_91 = arith.constant 0 : index
      %120 = vector.load %arg13[%c10, %c0_90, %c0_91] : memref<12x24x128xf32, #tpu.memory_space<vmem>>, vector<1x16x128xf32>
      %121 = vector.shape_cast %120 : vector<1x16x128xf32> to vector<16x128xf32>
      %122 = vector.shape_cast %119 : vector<16x128xf32> to vector<1x16x128xf32>
      tpu.vector_store %arg13[%c10, %c0_90, %c0_91], %122 {strides = array<i32>} : memref<12x24x128xf32, #tpu.memory_space<vmem>>, vector<1x16x128xf32>,
    } else {
    }
    %c0_48 = arith.constant 0 : index
    %c0_49 = arith.constant 0 : index
    %c0_50 = arith.constant 0 : index
    %69 = vector.load %arg13[%c0_48, %c0_49, %c0_50] : memref<12x24x128xf32, #tpu.memory_space<vmem>>, vector<12x24x128xf32>
    %70 = vector.shape_cast %69 : vector<12x24x128xf32> to vector<288x128xf32>
    %71 = vector.extract_strided_slice %70 {offsets = [23, 0], sizes = [192, 128], strides = [1, 1]} : vector<288x128xf32> to vector<192x128xf32>
    %c0_51 = arith.constant 0 : index
    %c0_52 = arith.constant 0 : index
    %72 = vector.load %arg9[%c0_51, %c0_52] : memref<1152x128xf32, #tpu.memory_space<vmem>>, vector<128x128xf32>
    %cst_53 = arith.constant dense<0.000000e+00> : vector<192x128xf32>
    %73 = tpu.matmul %71, %72, %cst_53 {dimension_numbers = #tpu.dot_dimension_numbers<[1], [0], [0], [1], [0, 0, 1, 1], [], []>} : vector<192x128xf32>, vector<128x128xf32>, vector<192x128xf32> -> vector<192x128xf32>
    %74 = vector.extract_strided_slice %70 {offsets = [24, 0], sizes = [192, 128], strides = [1, 1]} : vector<288x128xf32> to vector<192x128xf32>
    %c128_54 = arith.constant 128 : index
    %c0_55 = arith.constant 0 : index
    %75 = vector.load %arg9[%c128_54, %c0_55] : memref<1152x128xf32, #tpu.memory_space<vmem>>, vector<128x128xf32>
    %cst_56 = arith.constant dense<0.000000e+00> : vector<192x128xf32>
    %76 = tpu.matmul %74, %75, %cst_56 {dimension_numbers = #tpu.dot_dimension_numbers<[1], [0], [0], [1], [0, 0, 1, 1], [], []>} : vector<192x128xf32>, vector<128x128xf32>, vector<192x128xf32> -> vector<192x128xf32>
    %77 = arith.addf %73, %76 : vector<192x128xf32>
    %78 = vector.extract_strided_slice %70 {offsets = [25, 0], sizes = [192, 128], strides = [1, 1]} : vector<288x128xf32> to vector<192x128xf32>
    %c256_57 = arith.constant 256 : index
    %c0_58 = arith.constant 0 : index
    %79 = vector.load %arg9[%c256_57, %c0_58] : memref<1152x128xf32, #tpu.memory_space<vmem>>, vector<128x128xf32>
    %cst_59 = arith.constant dense<0.000000e+00> : vector<192x128xf32>
    %80 = tpu.matmul %78, %79, %cst_59 {dimension_numbers = #tpu.dot_dimension_numbers<[1], [0], [0], [1], [0, 0, 1, 1], [], []>} : vector<192x128xf32>, vector<128x128xf32>, vector<192x128xf32> -> vector<192x128xf32>
    %81 = arith.addf %77, %80 : vector<192x128xf32>
    %82 = vector.extract_strided_slice %70 {offsets = [47, 0], sizes = [192, 128], strides = [1, 1]} : vector<288x128xf32> to vector<192x128xf32>
    %c384_60 = arith.constant 384 : index
    %c0_61 = arith.constant 0 : index
    %83 = vector.load %arg9[%c384_60, %c0_61] : memref<1152x128xf32, #tpu.memory_space<vmem>>, vector<128x128xf32>
    %cst_62 = arith.constant dense<0.000000e+00> : vector<192x128xf32>
    %84 = tpu.matmul %82, %83, %cst_62 {dimension_numbers = #tpu.dot_dimension_numbers<[1], [0], [0], [1], [0, 0, 1, 1], [], []>} : vector<192x128xf32>, vector<128x128xf32>, vector<192x128xf32> -> vector<192x128xf32>
    %85 = arith.addf %81, %84 : vector<192x128xf32>
    %86 = vector.extract_strided_slice %70 {offsets = [48, 0], sizes = [192, 128], strides = [1, 1]} : vector<288x128xf32> to vector<192x128xf32>
    %c512_63 = arith.constant 512 : index
    %c0_64 = arith.constant 0 : index
    %87 = vector.load %arg9[%c512_63, %c0_64] : memref<1152x128xf32, #tpu.memory_space<vmem>>, vector<128x128xf32>
    %cst_65 = arith.constant dense<0.000000e+00> : vector<192x128xf32>
    %88 = tpu.matmul %86, %87, %cst_65 {dimension_numbers = #tpu.dot_dimension_numbers<[1], [0], [0], [1], [0, 0, 1, 1], [], []>} : vector<192x128xf32>, vector<128x128xf32>, vector<192x128xf32> -> vector<192x128xf32>
    %89 = arith.addf %85, %88 : vector<192x128xf32>
    %90 = vector.extract_strided_slice %70 {offsets = [49, 0], sizes = [192, 128], strides = [1, 1]} : vector<288x128xf32> to vector<192x128xf32>
    %c640_66 = arith.constant 640 : index
    %c0_67 = arith.constant 0 : index
    %91 = vector.load %arg9[%c640_66, %c0_67] : memref<1152x128xf32, #tpu.memory_space<vmem>>, vector<128x128xf32>
    %cst_68 = arith.constant dense<0.000000e+00> : vector<192x128xf32>
    %92 = tpu.matmul %90, %91, %cst_68 {dimension_numbers = #tpu.dot_dimension_numbers<[1], [0], [0], [1], [0, 0, 1, 1], [], []>} : vector<192x128xf32>, vector<128x128xf32>, vector<192x128xf32> -> vector<192x128xf32>
    %93 = arith.addf %89, %92 : vector<192x128xf32>
    %94 = vector.extract_strided_slice %70 {offsets = [71, 0], sizes = [192, 128], strides = [1, 1]} : vector<288x128xf32> to vector<192x128xf32>
    %c768_69 = arith.constant 768 : index
    %c0_70 = arith.constant 0 : index
    %95 = vector.load %arg9[%c768_69, %c0_70] : memref<1152x128xf32, #tpu.memory_space<vmem>>, vector<128x128xf32>
    %cst_71 = arith.constant dense<0.000000e+00> : vector<192x128xf32>
    %96 = tpu.matmul %94, %95, %cst_71 {dimension_numbers = #tpu.dot_dimension_numbers<[1], [0], [0], [1], [0, 0, 1, 1], [], []>} : vector<192x128xf32>, vector<128x128xf32>, vector<192x128xf32> -> vector<192x128xf32>
    %97 = arith.addf %93, %96 : vector<192x128xf32>
    %98 = vector.extract_strided_slice %70 {offsets = [72, 0], sizes = [192, 128], strides = [1, 1]} : vector<288x128xf32> to vector<192x128xf32>
    %c896_72 = arith.constant 896 : index
    %c0_73 = arith.constant 0 : index
    %99 = vector.load %arg9[%c896_72, %c0_73] : memref<1152x128xf32, #tpu.memory_space<vmem>>, vector<128x128xf32>
    %cst_74 = arith.constant dense<0.000000e+00> : vector<192x128xf32>
    %100 = tpu.matmul %98, %99, %cst_74 {dimension_numbers = #tpu.dot_dimension_numbers<[1], [0], [0], [1], [0, 0, 1, 1], [], []>} : vector<192x128xf32>, vector<128x128xf32>, vector<192x128xf32> -> vector<192x128xf32>
    %101 = arith.addf %97, %100 : vector<192x128xf32>
    %102 = vector.extract_strided_slice %70 {offsets = [73, 0], sizes = [192, 128], strides = [1, 1]} : vector<288x128xf32> to vector<192x128xf32>
    %c1024_75 = arith.constant 1024 : index
    %c0_76 = arith.constant 0 : index
    %103 = vector.load %arg9[%c1024_75, %c0_76] : memref<1152x128xf32, #tpu.memory_space<vmem>>, vector<128x128xf32>
    %cst_77 = arith.constant dense<0.000000e+00> : vector<192x128xf32>
    %104 = tpu.matmul %102, %103, %cst_77 {dimension_numbers = #tpu.dot_dimension_numbers<[1], [0], [0], [1], [0, 0, 1, 1], [], []>} : vector<192x128xf32>, vector<128x128xf32>, vector<192x128xf32> -> vector<192x128xf32>
    %105 = arith.addf %101, %104 : vector<192x128xf32>
    %c0_78 = arith.constant 0 : index
    %c0_79 = arith.constant 0 : index
    %106 = vector.load %arg10[%c0_78, %c0_79] : memref<1x128xf32, #tpu.memory_space<vmem>>, vector<1x128xf32>
    %107 = vector.broadcast %106 : vector<1x128xf32> to vector<192x128xf32>
    %108 = arith.addf %105, %107 : vector<192x128xf32>
    %109 = vector.shape_cast %108 : vector<192x128xf32> to vector<8x24x128xf32>
    %110 = vector.extract_strided_slice %109 {offsets = [0, 0, 0], sizes = [8, 16, 128], strides = [1, 1, 1]} : vector<8x24x128xf32> to vector<8x16x128xf32>
    %c0_80 = arith.constant 0 : index
    %c0_81 = arith.constant 0 : index
    %c0_82 = arith.constant 0 : index
    %c0_83 = arith.constant 0 : index
    %111 = vector.load %arg2[%c0_80, %c0_81, %c0_82, %c0_83] : memref<1x8x16x128xf32, #tpu.memory_space<vmem>>, vector<1x8x16x128xf32>
    %112 = vector.shape_cast %111 : vector<1x8x16x128xf32> to vector<8x16x128xf32>
    %113 = arith.addf %110, %112 : vector<8x16x128xf32>
    %cst_84 = arith.constant 0.000000e+00 : f32
    %114 = vector.broadcast %cst_84 : f32 to vector<8x16x128xf32>
    %115 = arith.maximumf %113, %114 : vector<8x16x128xf32>
    %c0_85 = arith.constant 0 : index
    %c0_86 = arith.constant 0 : index
    %c0_87 = arith.constant 0 : index
    %c0_88 = arith.constant 0 : index
    %116 = vector.load %arg11[%c0_85, %c0_86, %c0_87, %c0_88] : memref<1x8x16x128xf32, #tpu.memory_space<vmem>>, vector<1x8x16x128xf32>
    %117 = vector.shape_cast %116 : vector<1x8x16x128xf32> to vector<8x16x128xf32>
    %118 = vector.shape_cast %115 : vector<8x16x128xf32> to vector<1x8x16x128xf32>
    tpu.vector_store %arg11[%c0_85, %c0_86, %c0_87, %c0_88], %118 {strides = array<i32>} : memref<1x8x16x128xf32, #tpu.memory_space<vmem>>, vector<1x8x16x128xf32>,
    return
  }
  func.func @transform_0(%arg0: i32, %arg1: i32) -> (i32, i32, i32, i32) {
    %c0_i32 = arith.constant 0 : i32
    %c0_i32_0 = arith.constant 0 : i32
    %c0_i32_1 = arith.constant 0 : i32
    return %arg0, %arg1, %c0_i32, %c0_i32_0 : i32, i32, i32, i32
  }
  func.func @transform_1(%arg0: i32, %arg1: i32) -> (i32, i32, i32, i32) {
    %c8_i32 = arith.constant 8 : i32
    %0 = arith.muli %arg1, %c8_i32 : i32
    %c2_i32 = arith.constant 2 : i32
    %1 = arith.subi %0, %c2_i32 : i32
    %c0_i32 = arith.constant 0 : i32
    %2 = arith.maxsi %1, %c0_i32 : i32
    %c0_i32_0 = arith.constant 0 : i32
    %c0_i32_1 = arith.constant 0 : i32
    %c0_i32_2 = arith.constant 0 : i32
    return %arg0, %2, %c0_i32_0, %c0_i32_1 : i32, i32, i32, i32
  }
  func.func @transform_2(%arg0: i32, %arg1: i32) -> (i32, i32, i32, i32) {
    %c8_i32 = arith.constant 8 : i32
    %0 = arith.muli %arg1, %c8_i32 : i32
    %c1_i32 = arith.constant 1 : i32
    %1 = arith.subi %0, %c1_i32 : i32
    %c0_i32 = arith.constant 0 : i32
    %2 = arith.maxsi %1, %c0_i32 : i32
    %c0_i32_0 = arith.constant 0 : i32
    %c0_i32_1 = arith.constant 0 : i32
    %c0_i32_2 = arith.constant 0 : i32
    return %arg0, %2, %c0_i32_0, %c0_i32_1 : i32, i32, i32, i32
  }
  func.func @transform_3(%arg0: i32, %arg1: i32) -> (i32, i32, i32, i32) {
    %c1_i32 = arith.constant 1 : i32
    %0 = arith.addi %arg1, %c1_i32 : i32
    %c8_i32 = arith.constant 8 : i32
    %1 = arith.muli %0, %c8_i32 : i32
    %c15_i32 = arith.constant 15 : i32
    %2 = arith.minsi %1, %c15_i32 : i32
    %c0_i32 = arith.constant 0 : i32
    %c0_i32_0 = arith.constant 0 : i32
    %c0_i32_1 = arith.constant 0 : i32
    return %arg0, %2, %c0_i32, %c0_i32_0 : i32, i32, i32, i32
  }
  func.func @transform_4(%arg0: i32, %arg1: i32) -> (i32, i32, i32, i32) {
    %c1_i32 = arith.constant 1 : i32
    %0 = arith.addi %arg1, %c1_i32 : i32
    %c8_i32 = arith.constant 8 : i32
    %1 = arith.muli %0, %c8_i32 : i32
    %c1_i32_0 = arith.constant 1 : i32
    %2 = arith.addi %1, %c1_i32_0 : i32
    %c15_i32 = arith.constant 15 : i32
    %3 = arith.minsi %2, %c15_i32 : i32
    %c0_i32 = arith.constant 0 : i32
    %c0_i32_1 = arith.constant 0 : i32
    %c0_i32_2 = arith.constant 0 : i32
    return %arg0, %3, %c0_i32, %c0_i32_1 : i32, i32, i32, i32
  }
  func.func @transform_5(%arg0: i32, %arg1: i32) -> (i32, i32) {
    %c0_i32 = arith.constant 0 : i32
    %c0_i32_0 = arith.constant 0 : i32
    %c0_i32_1 = arith.constant 0 : i32
    return %c0_i32, %c0_i32_0 : i32, i32
  }
  func.func @transform_6(%arg0: i32, %arg1: i32) -> (i32, i32) {
    %c0_i32 = arith.constant 0 : i32
    %c0_i32_0 = arith.constant 0 : i32
    %c0_i32_1 = arith.constant 0 : i32
    return %c0_i32, %c0_i32_0 : i32, i32
  }
  func.func @transform_7(%arg0: i32, %arg1: i32) -> (i32, i32) {
    %c0_i32 = arith.constant 0 : i32
    %c0_i32_0 = arith.constant 0 : i32
    %c0_i32_1 = arith.constant 0 : i32
    return %c0_i32, %c0_i32_0 : i32, i32
  }
  func.func @transform_8(%arg0: i32, %arg1: i32) -> (i32, i32) {
    %c0_i32 = arith.constant 0 : i32
    %c0_i32_0 = arith.constant 0 : i32
    %c0_i32_1 = arith.constant 0 : i32
    return %c0_i32, %c0_i32_0 : i32, i32
  }
  func.func @transform_9(%arg0: i32, %arg1: i32) -> (i32, i32, i32, i32) {
    %c0_i32 = arith.constant 0 : i32
    %c0_i32_0 = arith.constant 0 : i32
    %c0_i32_1 = arith.constant 0 : i32
    return %arg0, %arg1, %c0_i32, %c0_i32_0 : i32, i32, i32, i32
  }
}

</mosaic_0001>

<llo_original>
// kernel: tpu_custom_call.1
$region0: #{tpu_custom_call.1}
  #allocation0 [shape = 'u32[]', space=smem, size = 0x4, offset = 0x4, fixed_abs, tag = 'smem constant byte address 0x4 - core index']
  #allocation1 [shape = 'u32[144,128]{1,0:T(1,128)}', space=vmem, size = 0x12000, scoped, tag = 'internal scratch']
  #allocation2 [shape = 'f32[14,24,128]{2,1,0:T(8,128)}', space=vmem, size = 0x2a000, scoped, tag = 'scratch operand']
  #allocation3 [shape = 'f32[12,24,128]{2,1,0:T(8,128)}', space=vmem, size = 0x24000, scoped, tag = 'scratch operand']
  %s0 = inlined_call_operand.hbm [shape: f32[2,16,16,128], index: 0, kind: input, shape index: {}]
  %s1 = inlined_call_operand.hbm [shape: f32[2,16,16,128], index: 1, kind: input, shape index: {}]
  %s2 = inlined_call_operand.hbm [shape: f32[2,16,16,128], index: 2, kind: input, shape index: {}]
  %s3 = inlined_call_operand.hbm [shape: f32[2,16,16,128], index: 3, kind: input, shape index: {}]
  %s4 = inlined_call_operand.hbm [shape: f32[2,16,16,128], index: 4, kind: input, shape index: {}]
  %s5 = inlined_call_operand.hbm [shape: f32[1152,128], index: 5, kind: input, shape index: {}]
  %s6 = inlined_call_operand.hbm [shape: f32[1,128], index: 6, kind: input, shape index: {}]
  %s7 = inlined_call_operand.hbm [shape: f32[1152,128], index: 7, kind: input, shape index: {}]
  %s8 = inlined_call_operand.hbm [shape: f32[1,128], index: 8, kind: input, shape index: {}]
  %s9 = inlined_call_operand.hbm [shape: f32[2,16,16,128], index: 9, kind: output, shape index: {}]
  %s10 = sld [smem:[#allocation0]]
  $region129: #{tpu_custom_call.1} parent=0
    _
  %s12 = ssub.s32 1, %s10
  %s13 = scalar_select 0, %s12, %s10
  $region1: #{tpu_custom_call.1} parent=0
    #allocation4 [shape = 'u8[131072]{0}', space=vmem, size = 0x20000, scoped, tag = 'input window, operand 0']
    #allocation5 [shape = 's32[2]{0}', space=sflag, size = 0x8, scoped, tag = 'scoped memory for tpu_custom_call.1']
    #allocation6 [shape = 's32[2]{0}', space=sflag, size = 0x8, scoped, tag = 'scoped memory for tpu_custom_call.1']
    #allocation7 [shape = 'u8[16384]{0}', space=vmem, size = 0x4000, scoped, tag = 'input window, operand 1']
    #allocation8 [shape = 's32[2]{0}', space=sflag, size = 0x8, scoped, tag = 'scoped memory for tpu_custom_call.1']
    #allocation9 [shape = 'u8[16384]{0}', space=vmem, size = 0x4000, scoped, tag = 'input window, operand 2']
    #allocation10 [shape = 'u8[16384]{0}', space=vmem, size = 0x4000, scoped, tag = 'input window, operand 3']
    #allocation11 [shape = 's32[2]{0}', space=sflag, size = 0x8, scoped, tag = 'scoped memory for tpu_custom_call.1']
    #allocation12 [shape = 'u8[16384]{0}', space=vmem, size = 0x4000, scoped, tag = 'input window, operand 4']
    #allocation13 [shape = 'u8[589824]{0}', space=vmem, size = 0x90000, scoped, tag = 'input window, operand 5, single buffered']
    #allocation14 [shape = 's32[1]{0}', space=sflag, size = 0x4, scoped, tag = 'scoped memory for tpu_custom_call.1']
    #allocation15 [shape = 'u8[512]{0}', space=vmem, size = 0x400, scoped, tag = 'input window, operand 6, single buffered']
    #allocation16 [shape = 'u8[589824]{0}', space=vmem, size = 0x90000, scoped, tag = 'input window, operand 7, single buffered']
    #allocation17 [shape = 's32[1]{0}', space=sflag, size = 0x4, scoped, tag = 'scoped memory for tpu_custom_call.1']
    #allocation18 [shape = 'u8[512]{0}', space=vmem, size = 0x400, scoped, tag = 'input window, operand 8, single buffered']
    #allocation19 [shape = 'u8[131072]{0}', space=vmem, size = 0x20000, scoped, tag = 'output window, operand 0']
    %14 = vsyncpa [#allocation5], 0
    %s15 = scalar_lea.sflag [#allocation5], 1
    %16 = vsyncpa %s15, 0
    %17 = vsyncpa [#allocation8], 0
    %s18 = scalar_lea.sflag [#allocation8], 1
    %19 = vsyncpa %s18, 0
    %20 = vsyncpa [#allocation11], 0
    %s21 = scalar_lea.sflag [#allocation11], 1
    %22 = vsyncpa %s21, 0
    %23 = vsyncpa [#allocation14], 0
    %24 = vsyncpa [#allocation17], 0
    %25 = vsyncpa [#allocation6], 0
    %s26 = scalar_lea.sflag [#allocation6], 1
    %27 = vsyncpa %s26, 0
    loop: start=0, step=1, limit=6
    $region2: #{tpu_custom_call.1} parent=1 // loop_pre_header
      _
    $region3: #{tpu_custom_call.1} parent=1 // loop_header
      %s29 = sphi 0, %s33
      %p30 = scmp.ge.s32.totalorder %s29, 6
      %s36 = sphi 0, %s48
      %s37 = sphi 0, %s44
      %s38 = sphi 0, %s36
      %s39 = sphi 0, %s37
      %s40 = sphi 0, %s38
      %s41 = sphi 0, %s39
      %s53 = sphi 0, %s55
      %s56 = sphi 0, %s53
      %s57 = sphi 0, %s56
      %s73 = sphi 0, %s57
      %s89 = sphi 0, %s91
      %s92 = sphi 0, %s89
      %s93 = sphi 0, %s92
      %s109 = sphi 0, %s93
      %s125 = sphi 0, %s127
      %s128 = sphi 0, %s125
      %s129 = sphi 0, %s128
      %s145 = sphi 0, %s129
      %s161 = sphi 0, %s163
      %s164 = sphi 0, %s161
      %s165 = sphi 0, %s164
      %s181 = sphi 0, %s165
      %s199 = sphi 0, %s201
      %s202 = sphi 0, %s199
      %s203 = sphi 0, %s202
      %s219 = sphi 0, %s203
      %s223 = sphi 0, %s223
      %s225 = sphi 0, %s223
      %s226 = sphi 0, %s225
      %s240 = sphi 0, %s226
      %s244 = sphi 0, %s244
      %s246 = sphi 0, %s244
      %s247 = sphi 0, %s246
      %s261 = sphi 0, %s247
      %s265 = sphi 0, %s265
      %s267 = sphi 0, %s265
      %s268 = sphi 0, %s267
      %s282 = sphi 0, %s268
      %s286 = sphi 0, %s286
      %s288 = sphi 0, %s286
      %s289 = sphi 0, %s288
      %s303 = sphi 0, %s289
      %s311 = sphi 0, %s313
      %s314 = sphi 0, %s311
      %s315 = sphi 0, %s314
      %s331 = sphi 0, %s315
    $region4: #{tpu_custom_call.1} parent=1 // loop_header_branch
      %32 = sbr.rel (%p30) target = $region8
    $region5: #{tpu_custom_call.1} parent=1 // loop_body
      %s34 = ssub.s32 %s29, 1
      %s35 = ssub.s32 %s29, 2
      %s42 = sadd.s32 1, %s37
      %p43 = scmp.ge.s32.totalorder %s42, 2
      %s44 = scalar_select %p43, 0, %s42
      %s45 = sadd.s32 1, %s36
      %s46 = scalar_select %p43, %s45, %s36
      %p47 = scmp.ge.s32.totalorder %s46, 2
      %s48 = scalar_select %p47, 0, %s46
      %s49 = ssub.s32 %s36, %s48
      %s50 = ssub.s32 %s37, %s44
      %s51 = sor.u32 %s49, %s50
      %p52 = scmp.eq.s32.totalorder %s51, 0
      %s54 = sadd.s32 %s53, 1
      %s55 = scalar_select %p52, %s53, %s54
      %p58 = pneg %p52
      %p59 = scmp.eq.s32.totalorder %s29, 3
      %p60 = por %p58, %p59
      %p61 = scmp.ne.s32.totalorder %s53, %s56
      %p62 = scmp.eq.s32.totalorder %s29, 0
      %p63 = por %p61, %p62
      %p64 = scmp.ne.s32.totalorder %s53, %s56
      %p65 = scmp.eq.s32.totalorder %s34, 3
      %p66 = por %p64, %p65
      %p67 = scmp.ne.s32.totalorder %s56, %s57
      %p68 = scmp.eq.s32.totalorder %s34, 0
      %p69 = por %p67, %p68
      %p70 = scmp.ne.s32.totalorder %s56, %s57
      %p71 = scmp.eq.s32.totalorder %s35, 3
      %p72 = por %p70, %p71
      %p74 = scmp.ne.s32.totalorder %s57, %s73
      %p75 = scmp.eq.s32.totalorder %s35, 0
      %p76 = por %p74, %p75
      %s77 = smul.u32 %s37, 8
      %s78 = ssub.s32 %s77, 2
      %p79 = scmp.gt.s32.totalorder %s78, 0
      %s80 = scalar_select %p79, %s78, 0
      %s81 = smul.u32 %s44, 8
      %s82 = ssub.s32 %s81, 2
      %p83 = scmp.gt.s32.totalorder %s82, 0
      %s84 = scalar_select %p83, %s82, 0
      %s85 = ssub.s32 %s36, %s48
      %s86 = ssub.s32 %s80, %s84
      %s87 = sor.u32 %s85, %s86
      %p88 = scmp.eq.s32.totalorder %s87, 0
      %s90 = sadd.s32 %s89, 1
      %s91 = scalar_select %p88, %s89, %s90
      %p94 = pneg %p88
      %p95 = scmp.eq.s32.totalorder %s29, 3
      %p96 = por %p94, %p95
      %p97 = scmp.ne.s32.totalorder %s89, %s92
      %p98 = scmp.eq.s32.totalorder %s29, 0
      %p99 = por %p97, %p98
      %p100 = scmp.ne.s32.totalorder %s89, %s92
      %p101 = scmp.eq.s32.totalorder %s34, 3
      %p102 = por %p100, %p101
      %p103 = scmp.ne.s32.totalorder %s92, %s93
      %p104 = scmp.eq.s32.totalorder %s34, 0
      %p105 = por %p103, %p104
      %p106 = scmp.ne.s32.totalorder %s92, %s93
      %p107 = scmp.eq.s32.totalorder %s35, 3
      %p108 = por %p106, %p107
      %p110 = scmp.ne.s32.totalorder %s93, %s109
      %p111 = scmp.eq.s32.totalorder %s35, 0
      %p112 = por %p110, %p111
      %s113 = smul.u32 %s37, 8
      %s114 = ssub.s32 %s113, 1
      %p115 = scmp.gt.s32.totalorder %s114, 0
      %s116 = scalar_select %p115, %s114, 0
      %s117 = smul.u32 %s44, 8
      %s118 = ssub.s32 %s117, 1
      %p119 = scmp.gt.s32.totalorder %s118, 0
      %s120 = scalar_select %p119, %s118, 0
      %s121 = ssub.s32 %s36, %s48
      %s122 = ssub.s32 %s116, %s120
      %s123 = sor.u32 %s121, %s122
      %p124 = scmp.eq.s32.totalorder %s123, 0
      %s126 = sadd.s32 %s125, 1
      %s127 = scalar_select %p124, %s125, %s126
      %p130 = pneg %p124
      %p131 = scmp.eq.s32.totalorder %s29, 3
      %p132 = por %p130, %p131
      %p133 = scmp.ne.s32.totalorder %s125, %s128
      %p134 = scmp.eq.s32.totalorder %s29, 0
      %p135 = por %p133, %p134
      %p136 = scmp.ne.s32.totalorder %s125, %s128
      %p137 = scmp.eq.s32.totalorder %s34, 3
      %p138 = por %p136, %p137
      %p139 = scmp.ne.s32.totalorder %s128, %s129
      %p140 = scmp.eq.s32.totalorder %s34, 0
      %p141 = por %p139, %p140
      %p142 = scmp.ne.s32.totalorder %s128, %s129
      %p143 = scmp.eq.s32.totalorder %s35, 3
      %p144 = por %p142, %p143
      %p146 = scmp.ne.s32.totalorder %s129, %s145
      %p147 = scmp.eq.s32.totalorder %s35, 0
      %p148 = por %p146, %p147
      %s149 = sadd.s32 %s37, 1
      %s150 = smul.u32 %s149, 8
      %p151 = scmp.lt.s32.totalorder %s150, 15
      %s152 = scalar_select %p151, %s150, 15
      %s153 = sadd.s32 %s44, 1
      %s154 = smul.u32 %s153, 8
      %p155 = scmp.lt.s32.totalorder %s154, 15
      %s156 = scalar_select %p155, %s154, 15
      %s157 = ssub.s32 %s36, %s48
      %s158 = ssub.s32 %s152, %s156
      %s159 = sor.u32 %s157, %s158
      %p160 = scmp.eq.s32.totalorder %s159, 0
      %s162 = sadd.s32 %s161, 1
      %s163 = scalar_select %p160, %s161, %s162
      %p166 = pneg %p160
      %p167 = scmp.eq.s32.totalorder %s29, 3
      %p168 = por %p166, %p167
      %p169 = scmp.ne.s32.totalorder %s161, %s164
      %p170 = scmp.eq.s32.totalorder %s29, 0
      %p171 = por %p169, %p170
      %p172 = scmp.ne.s32.totalorder %s161, %s164
      %p173 = scmp.eq.s32.totalorder %s34, 3
      %p174 = por %p172, %p173
      %p175 = scmp.ne.s32.totalorder %s164, %s165
      %p176 = scmp.eq.s32.totalorder %s34, 0
      %p177 = por %p175, %p176
      %p178 = scmp.ne.s32.totalorder %s164, %s165
      %p179 = scmp.eq.s32.totalorder %s35, 3
      %p180 = por %p178, %p179
      %p182 = scmp.ne.s32.totalorder %s165, %s181
      %p183 = scmp.eq.s32.totalorder %s35, 0
      %p184 = por %p182, %p183
      %s185 = sadd.s32 %s37, 1
      %s186 = smul.u32 %s185, 8
      %s187 = sadd.s32 %s186, 1
      %p188 = scmp.lt.s32.totalorder %s187, 15
      %s189 = scalar_select %p188, %s187, 15
      %s190 = sadd.s32 %s44, 1
      %s191 = smul.u32 %s190, 8
      %s192 = sadd.s32 %s191, 1
      %p193 = scmp.lt.s32.totalorder %s192, 15
      %s194 = scalar_select %p193, %s192, 15
      %s195 = ssub.s32 %s36, %s48
      %s196 = ssub.s32 %s189, %s194
      %s197 = sor.u32 %s195, %s196
      %p198 = scmp.eq.s32.totalorder %s197, 0
      %s200 = sadd.s32 %s199, 1
      %s201 = scalar_select %p198, %s199, %s200
      %p204 = pneg %p198
      %p205 = scmp.eq.s32.totalorder %s29, 3
      %p206 = por %p204, %p205
      %p207 = scmp.ne.s32.totalorder %s199, %s202
      %p208 = scmp.eq.s32.totalorder %s29, 0
      %p209 = por %p207, %p208
      %p210 = scmp.ne.s32.totalorder %s199, %s202
      %p211 = scmp.eq.s32.totalorder %s34, 3
      %p212 = por %p210, %p211
      %p213 = scmp.ne.s32.totalorder %s202, %s203
      %p214 = scmp.eq.s32.totalorder %s34, 0
      %p215 = por %p213, %p214
      %p216 = scmp.ne.s32.totalorder %s202, %s203
      %p217 = scmp.eq.s32.totalorder %s35, 3
      %p218 = por %p216, %p217
      %p220 = scmp.ne.s32.totalorder %s203, %s219
      %p221 = scmp.eq.s32.totalorder %s35, 0
      %p222 = por %p220, %p221
      %s224 = sadd.s32 %s223, 1
      %p227 = scmp.eq.s32.totalorder %s29, 3
      %p228 = scmp.ne.s32.totalorder %s223, %s225
      %p229 = scmp.eq.s32.totalorder %s29, 0
      %p230 = por %p228, %p229
      %p231 = scmp.ne.s32.totalorder %s223, %s225
      %p232 = scmp.eq.s32.totalorder %s34, 3
      %p233 = por %p231, %p232
      %p234 = scmp.ne.s32.totalorder %s225, %s226
      %p235 = scmp.eq.s32.totalorder %s34, 0
      %p236 = por %p234, %p235
      %p237 = scmp.ne.s32.totalorder %s225, %s226
      %p238 = scmp.eq.s32.totalorder %s35, 3
      %p239 = por %p237, %p238
      %p241 = scmp.ne.s32.totalorder %s226, %s240
      %p242 = scmp.eq.s32.totalorder %s35, 0
      %p243 = por %p241, %p242
      %s245 = sadd.s32 %s244, 1
      %p248 = scmp.eq.s32.totalorder %s29, 3
      %p249 = scmp.ne.s32.totalorder %s244, %s246
      %p250 = scmp.eq.s32.totalorder %s29, 0
      %p251 = por %p249, %p250
      %p252 = scmp.ne.s32.totalorder %s244, %s246
      %p253 = scmp.eq.s32.totalorder %s34, 3
      %p254 = por %p252, %p253
      %p255 = scmp.ne.s32.totalorder %s246, %s247
      %p256 = scmp.eq.s32.totalorder %s34, 0
      %p257 = por %p255, %p256
      %p258 = scmp.ne.s32.totalorder %s246, %s247
      %p259 = scmp.eq.s32.totalorder %s35, 3
      %p260 = por %p258, %p259
      %p262 = scmp.ne.s32.totalorder %s247, %s261
      %p263 = scmp.eq.s32.totalorder %s35, 0
      %p264 = por %p262, %p263
      %s266 = sadd.s32 %s265, 1
      %p269 = scmp.eq.s32.totalorder %s29, 3
      %p270 = scmp.ne.s32.totalorder %s265, %s267
      %p271 = scmp.eq.s32.totalorder %s29, 0
      %p272 = por %p270, %p271
      %p273 = scmp.ne.s32.totalorder %s265, %s267
      %p274 = scmp.eq.s32.totalorder %s34, 3
      %p275 = por %p273, %p274
      %p276 = scmp.ne.s32.totalorder %s267, %s268
      %p277 = scmp.eq.s32.totalorder %s34, 0
      %p278 = por %p276, %p277
      %p279 = scmp.ne.s32.totalorder %s267, %s268
      %p280 = scmp.eq.s32.totalorder %s35, 3
      %p281 = por %p279, %p280
      %p283 = scmp.ne.s32.totalorder %s268, %s282
      %p284 = scmp.eq.s32.totalorder %s35, 0
      %p285 = por %p283, %p284
      %s287 = sadd.s32 %s286, 1
      %p290 = scmp.eq.s32.totalorder %s29, 3
      %p291 = scmp.ne.s32.totalorder %s286, %s288
      %p292 = scmp.eq.s32.totalorder %s29, 0
      %p293 = por %p291, %p292
      %p294 = scmp.ne.s32.totalorder %s286, %s288
      %p295 = scmp.eq.s32.totalorder %s34, 3
      %p296 = por %p294, %p295
      %p297 = scmp.ne.s32.totalorder %s288, %s289
      %p298 = scmp.eq.s32.totalorder %s34, 0
      %p299 = por %p297, %p298
      %p300 = scmp.ne.s32.totalorder %s288, %s289
      %p301 = scmp.eq.s32.totalorder %s35, 3
      %p302 = por %p300, %p301
      %p304 = scmp.ne.s32.totalorder %s289, %s303
      %p305 = scmp.eq.s32.totalorder %s35, 0
      %p306 = por %p304, %p305
      %s307 = ssub.s32 %s36, %s48
      %s308 = ssub.s32 %s37, %s44
      %s309 = sor.u32 %s307, %s308
      %p310 = scmp.eq.s32.totalorder %s309, 0
      %s312 = sadd.s32 %s311, 1
      %s313 = scalar_select %p310, %s311, %s312
      %p316 = pneg %p310
      %p317 = scmp.eq.s32.totalorder %s29, 3
      %p318 = por %p316, %p317
      %p319 = scmp.ne.s32.totalorder %s311, %s314
      %p320 = scmp.eq.s32.totalorder %s29, 0
      %p321 = por %p319, %p320
      %p322 = scmp.ne.s32.totalorder %s311, %s314
      %p323 = scmp.eq.s32.totalorder %s34, 3
      %p324 = por %p322, %p323
      %p325 = scmp.ne.s32.totalorder %s314, %s315
      %p326 = scmp.eq.s32.totalorder %s34, 0
      %p327 = por %p325, %p326
      %p328 = scmp.ne.s32.totalorder %s314, %s315
      %p329 = scmp.eq.s32.totalorder %s35, 3
      %p330 = por %p328, %p329
      %p332 = scmp.ne.s32.totalorder %s315, %s331
      %p333 = scmp.eq.s32.totalorder %s35, 0
      %p334 = por %p332, %p333
      %p335 = scmp.le.s32.totalorder 1, %s29
      %p336 = scmp.lt.s32.totalorder %s29, 5
      %p337 = pnand %p335, %p336
      %p338 = pneg %p337
      // Predicated region
      $region9: #{tpu_custom_call.1} parent=5 // pred_check
        _
      $region10: #{tpu_custom_call.1} parent=5 // pred_check_branch
        %340 = sbr.rel (%p337) target = $region12
      $region11: #{tpu_custom_call.1} parent=5 // pred_region
        %s341 = ssub.s32 %s29, 1
        // Predicated region
        $region13: #{tpu_custom_call.1} parent=11 // pred_check
          %p342 = pneg %p236
        $region14: #{tpu_custom_call.1} parent=11 // pred_check_branch
          %344 = sbr.rel (%p342) target = $region16
        $region15: #{tpu_custom_call.1} parent=11 // pred_region
          %s346 = ssub.s32 18432, 18432
          %347 = vsyncadd [#allocation14], %s346
          %s348 = sshll.u32 [#allocation13], 4
          %s349 = int_to_ptr.vmem [resolvable:$true] %s348
          %354 = dma.hbm_to_vmem [thread:$0]  %s5, 18432, %s349, [#allocation14], 128, 128, 8
        $region16: #{tpu_custom_call.1} parent=11 // pred_fallthru
          _
        // Predicated region
        $region17: #{tpu_custom_call.1} parent=11 // pred_check
          %p355 = pneg %p257
        $region18: #{tpu_custom_call.1} parent=11 // pred_check_branch
          %357 = sbr.rel (%p355) target = $region20
        $region19: #{tpu_custom_call.1} parent=11 // pred_region
          %s359 = ssub.s32 16, 16
          %360 = vsyncadd [#allocation14], %s359
          %s362 = sshll.u32 [#allocation15], 4
          %s363 = int_to_ptr.vmem [resolvable:$true] %s362
          %365 = dma.hbm_to_vmem [thread:$0]  %s6, 16, %s363, [#allocation14]
        $region20: #{tpu_custom_call.1} parent=11 // pred_fallthru
          _
        // Predicated region
        $region21: #{tpu_custom_call.1} parent=11 // pred_check
          %p366 = pneg %p278
        $region22: #{tpu_custom_call.1} parent=11 // pred_check_branch
          %368 = sbr.rel (%p366) target = $region24
        $region23: #{tpu_custom_call.1} parent=11 // pred_region
          %s370 = ssub.s32 18432, 18432
          %371 = vsyncadd [#allocation17], %s370
          %s372 = sshll.u32 [#allocation16], 4
          %s373 = int_to_ptr.vmem [resolvable:$true] %s372
          %378 = dma.hbm_to_vmem [thread:$0]  %s7, 18432, %s373, [#allocation17], 128, 128, 8
        $region24: #{tpu_custom_call.1} parent=11 // pred_fallthru
          _
        // Predicated region
        $region25: #{tpu_custom_call.1} parent=11 // pred_check
          %p379 = pneg %p299
        $region26: #{tpu_custom_call.1} parent=11 // pred_check_branch
          %381 = sbr.rel (%p379) target = $region28
        $region27: #{tpu_custom_call.1} parent=11 // pred_region
          %s383 = ssub.s32 16, 16
          %384 = vsyncadd [#allocation17], %s383
          %s386 = sshll.u32 [#allocation18], 4
          %s387 = int_to_ptr.vmem [resolvable:$true] %s386
          %389 = dma.hbm_to_vmem [thread:$0]  %s8, 16, %s387, [#allocation17]
        $region28: #{tpu_custom_call.1} parent=11 // pred_fallthru
          _
      $region12: #{tpu_custom_call.1} parent=5 // pred_fallthru
        _
      %p390 = scmp.lt.s32.totalorder %s29, 4
      // Predicated region
      $region29: #{tpu_custom_call.1} parent=5 // pred_check
        %p391 = pneg %p390
      $region30: #{tpu_custom_call.1} parent=5 // pred_check_branch
        %393 = sbr.rel (%p391) target = $region32
      $region31: #{tpu_custom_call.1} parent=5 // pred_region
        // Predicated region
        $region33: #{tpu_custom_call.1} parent=31 // pred_check
          %p394 = pneg %p63
        $region34: #{tpu_custom_call.1} parent=31 // pred_check_branch
          %396 = sbr.rel (%p394) target = $region36
        $region35: #{tpu_custom_call.1} parent=31 // pred_region
          %s397 = sand.u32 %s53, 1
          %s398 = scalar_lea.sflag [#allocation5], %s397
          %s399 = sand.u32 %s53, 1
          %s400 = smul.addr %s399, 128
          %s401 = scalar_lea.vmem [#allocation4], %s400
          %s402 = smul.u32 8, %s37
          %s404 = ssub.s32 2048, 2048
          %405 = vsyncadd %s398, %s404
          %s406 = smul.addr %s402, 2
          %s407 = smul.addr %s36, 32
          %s408 = sadd.s32 %s406, %s407
          %s409 = smul.addr %s408, 128
          %s410 = scalar_lea.hbm %s0, %s409
          %s411 = sshll.u32 %s401, 4
          %s412 = int_to_ptr.vmem [resolvable:$true] %s411
          %417 = dma.hbm_to_vmem [thread:$0]  %s410, 2048, %s412, %s398, 128, 128, 8
        $region36: #{tpu_custom_call.1} parent=31 // pred_fallthru
          _
        // Predicated region
        $region37: #{tpu_custom_call.1} parent=31 // pred_check
          %p418 = pneg %p99
        $region38: #{tpu_custom_call.1} parent=31 // pred_check_branch
          %420 = sbr.rel (%p418) target = $region40
        $region39: #{tpu_custom_call.1} parent=31 // pred_region
          %s421 = sand.u32 %s29, 1
          %s422 = scalar_lea.sflag [#allocation8], %s421
          %s423 = sand.u32 %s89, 1
          %s424 = smul.addr %s423, 16
          %s425 = scalar_lea.vmem [#allocation7], %s424
          %s426 = smul.u32 %s37, 8
          %s427 = ssub.s32 %s426, 2
          %p428 = scmp.gt.s32.totalorder %s427, 0
          %s429 = scalar_select %p428, %s427, 0
          %s431 = ssub.s32 256, 256
          %432 = vsyncadd %s422, %s431
          %s433 = smul.addr %s429, 2
          %s434 = smul.addr %s36, 32
          %s435 = sadd.s32 %s433, %s434
          %s436 = smul.addr %s435, 128
          %s437 = scalar_lea.hbm %s1, %s436
          %s438 = sshll.u32 %s425, 4
          %s439 = int_to_ptr.vmem [resolvable:$true] %s438
          %444 = dma.hbm_to_vmem [thread:$0]  %s437, 256, %s439, %s422, 128, 128, 8
        $region40: #{tpu_custom_call.1} parent=31 // pred_fallthru
          _
        // Predicated region
        $region41: #{tpu_custom_call.1} parent=31 // pred_check
          %p445 = pneg %p135
        $region42: #{tpu_custom_call.1} parent=31 // pred_check_branch
          %447 = sbr.rel (%p445) target = $region44
        $region43: #{tpu_custom_call.1} parent=31 // pred_region
          %s448 = sand.u32 %s29, 1
          %s449 = scalar_lea.sflag [#allocation8], %s448
          %s450 = sand.u32 %s125, 1
          %s451 = smul.addr %s450, 16
          %s452 = scalar_lea.vmem [#allocation9], %s451
          %s453 = smul.u32 %s37, 8
          %s454 = ssub.s32 %s453, 1
          %p455 = scmp.gt.s32.totalorder %s454, 0
          %s456 = scalar_select %p455, %s454, 0
          %s458 = ssub.s32 256, 256
          %459 = vsyncadd %s449, %s458
          %s460 = smul.addr %s456, 2
          %s461 = smul.addr %s36, 32
          %s462 = sadd.s32 %s460, %s461
          %s463 = smul.addr %s462, 128
          %s464 = scalar_lea.hbm %s2, %s463
          %s465 = sshll.u32 %s452, 4
          %s466 = int_to_ptr.vmem [resolvable:$true] %s465
          %471 = dma.hbm_to_vmem [thread:$0]  %s464, 256, %s466, %s449, 128, 128, 8
        $region44: #{tpu_custom_call.1} parent=31 // pred_fallthru
          _
        // Predicated region
        $region45: #{tpu_custom_call.1} parent=31 // pred_check
          %p472 = pneg %p171
        $region46: #{tpu_custom_call.1} parent=31 // pred_check_branch
          %474 = sbr.rel (%p472) target = $region48
        $region47: #{tpu_custom_call.1} parent=31 // pred_region
          %s475 = sand.u32 %s29, 1
          %s476 = scalar_lea.sflag [#allocation11], %s475
          %s477 = sand.u32 %s161, 1
          %s478 = smul.addr %s477, 16
          %s479 = scalar_lea.vmem [#allocation10], %s478
          %s480 = sadd.s32 %s37, 1
          %s481 = smul.u32 %s480, 8
          %p482 = scmp.lt.s32.totalorder %s481, 15
          %s483 = scalar_select %p482, %s481, 15
          %s485 = ssub.s32 256, 256
          %486 = vsyncadd %s476, %s485
          %s487 = smul.addr %s483, 2
          %s488 = smul.addr %s36, 32
          %s489 = sadd.s32 %s487, %s488
          %s490 = smul.addr %s489, 128
          %s491 = scalar_lea.hbm %s3, %s490
          %s492 = sshll.u32 %s479, 4
          %s493 = int_to_ptr.vmem [resolvable:$true] %s492
          %498 = dma.hbm_to_vmem [thread:$0]  %s491, 256, %s493, %s476, 128, 128, 8
        $region48: #{tpu_custom_call.1} parent=31 // pred_fallthru
          _
        // Predicated region
        $region49: #{tpu_custom_call.1} parent=31 // pred_check
          %p499 = pneg %p209
        $region50: #{tpu_custom_call.1} parent=31 // pred_check_branch
          %501 = sbr.rel (%p499) target = $region52
        $region51: #{tpu_custom_call.1} parent=31 // pred_region
          %s502 = sand.u32 %s29, 1
          %s503 = scalar_lea.sflag [#allocation11], %s502
          %s504 = sand.u32 %s199, 1
          %s505 = smul.addr %s504, 16
          %s506 = scalar_lea.vmem [#allocation12], %s505
          %s507 = sadd.s32 %s37, 1
          %s508 = smul.u32 %s507, 8
          %s509 = sadd.s32 %s508, 1
          %p510 = scmp.lt.s32.totalorder %s509, 15
          %s511 = scalar_select %p510, %s509, 15
          %s513 = ssub.s32 256, 256
          %514 = vsyncadd %s503, %s513
          %s515 = smul.addr %s511, 2
          %s516 = smul.addr %s36, 32
          %s517 = sadd.s32 %s515, %s516
          %s518 = smul.addr %s517, 128
          %s519 = scalar_lea.hbm %s4, %s518
          %s520 = sshll.u32 %s506, 4
          %s521 = int_to_ptr.vmem [resolvable:$true] %s520
          %526 = dma.hbm_to_vmem [thread:$0]  %s519, 256, %s521, %s503, 128, 128, 8
        $region52: #{tpu_custom_call.1} parent=31 // pred_fallthru
          _
      $region32: #{tpu_custom_call.1} parent=5 // pred_fallthru
        _
      %p527 = scmp.le.s32.totalorder 1, %s29
      %p528 = scmp.lt.s32.totalorder %s29, 5
      %p529 = pnand %p527, %p528
      %p530 = pneg %p529
      // Predicated region
      $region53: #{tpu_custom_call.1} parent=5 // pred_check
        _
      $region54: #{tpu_custom_call.1} parent=5 // pred_check_branch
        %532 = sbr.rel (%p529) target = $region56
      $region55: #{tpu_custom_call.1} parent=5 // pred_region
        %s533 = ssub.s32 %s29, 1
        %s534 = sand.u32 %s56, 1
        %s535 = scalar_lea.sflag [#allocation5], %s534
        %s536 = sand.u32 %s56, 1
        %s537 = smul.addr %s536, 128
        %s538 = scalar_lea.vmem [#allocation4], %s537
        // Predicated region
        $region57: #{tpu_custom_call.1} parent=55 // pred_check
          %p539 = pneg %p69
        $region58: #{tpu_custom_call.1} parent=55 // pred_check_branch
          %541 = sbr.rel (%p539) target = $region60
        $region59: #{tpu_custom_call.1} parent=55 // pred_region
          %542 = dma.done %s535, 2048
        $region60: #{tpu_custom_call.1} parent=55 // pred_fallthru
          _
        %s543 = sand.u32 %s34, 1
        %s544 = scalar_lea.sflag [#allocation8], %s543
        %s545 = sand.u32 %s92, 1
        %s546 = smul.addr %s545, 16
        %s547 = scalar_lea.vmem [#allocation7], %s546
        // Predicated region
        $region61: #{tpu_custom_call.1} parent=55 // pred_check
          %p548 = pneg %p105
        $region62: #{tpu_custom_call.1} parent=55 // pred_check_branch
          %550 = sbr.rel (%p548) target = $region64
        $region63: #{tpu_custom_call.1} parent=55 // pred_region
          %551 = dma.done %s544, 256
        $region64: #{tpu_custom_call.1} parent=55 // pred_fallthru
          _
        %s552 = sand.u32 %s34, 1
        %s553 = scalar_lea.sflag [#allocation8], %s552
        %s554 = sand.u32 %s128, 1
        %s555 = smul.addr %s554, 16
        %s556 = scalar_lea.vmem [#allocation9], %s555
        // Predicated region
        $region65: #{tpu_custom_call.1} parent=55 // pred_check
          %p557 = pneg %p141
        $region66: #{tpu_custom_call.1} parent=55 // pred_check_branch
          %559 = sbr.rel (%p557) target = $region68
        $region67: #{tpu_custom_call.1} parent=55 // pred_region
          %560 = dma.done %s553, 256
        $region68: #{tpu_custom_call.1} parent=55 // pred_fallthru
          _
        %s561 = sand.u32 %s34, 1
        %s562 = scalar_lea.sflag [#allocation11], %s561
        %s563 = sand.u32 %s164, 1
        %s564 = smul.addr %s563, 16
        %s565 = scalar_lea.vmem [#allocation10], %s564
        // Predicated region
        $region69: #{tpu_custom_call.1} parent=55 // pred_check
          %p566 = pneg %p177
        $region70: #{tpu_custom_call.1} parent=55 // pred_check_branch
          %568 = sbr.rel (%p566) target = $region72
        $region71: #{tpu_custom_call.1} parent=55 // pred_region
          %569 = dma.done %s562, 256
        $region72: #{tpu_custom_call.1} parent=55 // pred_fallthru
          _
        %s570 = sand.u32 %s34, 1
        %s571 = scalar_lea.sflag [#allocation11], %s570
        %s572 = sand.u32 %s202, 1
        %s573 = smul.addr %s572, 16
        %s574 = scalar_lea.vmem [#allocation12], %s573
        // Predicated region
        $region73: #{tpu_custom_call.1} parent=55 // pred_check
          %p575 = pneg %p215
        $region74: #{tpu_custom_call.1} parent=55 // pred_check_branch
          %577 = sbr.rel (%p575) target = $region76
        $region75: #{tpu_custom_call.1} parent=55 // pred_region
          %578 = dma.done %s571, 256
        $region76: #{tpu_custom_call.1} parent=55 // pred_fallthru
          _
        // Predicated region
        $region77: #{tpu_custom_call.1} parent=55 // pred_check
          %p579 = pneg %p236
        $region78: #{tpu_custom_call.1} parent=55 // pred_check_branch
          %581 = sbr.rel (%p579) target = $region80
        $region79: #{tpu_custom_call.1} parent=55 // pred_region
          %582 = dma.done [#allocation14], 18432
        $region80: #{tpu_custom_call.1} parent=55 // pred_fallthru
          _
        // Predicated region
        $region81: #{tpu_custom_call.1} parent=55 // pred_check
          %p583 = pneg %p257
        $region82: #{tpu_custom_call.1} parent=55 // pred_check_branch
          %585 = sbr.rel (%p583) target = $region84
        $region83: #{tpu_custom_call.1} parent=55 // pred_region
          %586 = dma.done [#allocation14], 16
        $region84: #{tpu_custom_call.1} parent=55 // pred_fallthru
          _
        // Predicated region
        $region85: #{tpu_custom_call.1} parent=55 // pred_check
          %p587 = pneg %p278
        $region86: #{tpu_custom_call.1} parent=55 // pred_check_branch
          %589 = sbr.rel (%p587) target = $region88
        $region87: #{tpu_custom_call.1} parent=55 // pred_region
          %590 = dma.done [#allocation17], 18432
        $region88: #{tpu_custom_call.1} parent=55 // pred_fallthru
          _
        // Predicated region
        $region89: #{tpu_custom_call.1} parent=55 // pred_check
          %p591 = pneg %p299
        $region90: #{tpu_custom_call.1} parent=55 // pred_check_branch
          %593 = sbr.rel (%p591) target = $region92
        $region91: #{tpu_custom_call.1} parent=55 // pred_region
          %594 = dma.done [#allocation17], 16
        $region92: #{tpu_custom_call.1} parent=55 // pred_fallthru
          _
        %s595 = sand.u32 %s56, 1
        %s596 = scalar_lea.sflag [#allocation5], %s595
        %s597 = sand.u32 %s56, 1
        %s598 = smul.addr %s597, 128
        %s599 = scalar_lea.vmem [#allocation4], %s598
        %p600 = pneg %p69
        %p601 = pneg %p66
        %s602 = sand.u32 %s34, 1
        %s603 = scalar_lea.sflag [#allocation8], %s602
        %s604 = sand.u32 %s92, 1
        %s605 = smul.addr %s604, 16
        %s606 = scalar_lea.vmem [#allocation7], %s605
        %p607 = pneg %p105
        %p608 = pneg %p102
        %s609 = sand.u32 %s34, 1
        %s610 = scalar_lea.sflag [#allocation8], %s609
        %s611 = sand.u32 %s128, 1
        %s612 = smul.addr %s611, 16
        %s613 = scalar_lea.vmem [#allocation9], %s612
        %p614 = pneg %p141
        %p615 = pneg %p138
        %s616 = sand.u32 %s34, 1
        %s617 = scalar_lea.sflag [#allocation11], %s616
        %s618 = sand.u32 %s164, 1
        %s619 = smul.addr %s618, 16
        %s620 = scalar_lea.vmem [#allocation10], %s619
        %p621 = pneg %p177
        %p622 = pneg %p174
        %s623 = sand.u32 %s34, 1
        %s624 = scalar_lea.sflag [#allocation11], %s623
        %s625 = sand.u32 %s202, 1
        %s626 = smul.addr %s625, 16
        %s627 = scalar_lea.vmem [#allocation12], %s626
        %p628 = pneg %p215
        %p629 = pneg %p212
        %p630 = pneg %p236
        %p631 = pneg %p233
        %p632 = pneg %p257
        %p633 = pneg %p254
        %p634 = pneg %p278
        %p635 = pneg %p275
        %p636 = pneg %p299
        %p637 = pneg %p296
        %p638 = pneg %p327
        %p639 = pneg %p324
        %s640 = sand.u32 %s314, 1
        %s641 = scalar_lea.sflag [#allocation6], %s640
        %s642 = sand.u32 %s314, 1
        %s643 = smul.addr %s642, 128
        %s644 = scalar_lea.vmem [#allocation19], %s643
        %s645 = smul.u32 8, %s39
        %s646 = smul.u32 %s39, 8
        %s647 = ssub.s32 %s646, 2
        %p648 = scmp.gt.s32.totalorder %s647, 0
        %s649 = scalar_select %p648, %s647, 0
        %s650 = smul.u32 %s39, 8
        %s651 = ssub.s32 %s650, 1
        %p652 = scmp.gt.s32.totalorder %s651, 0
        %s653 = scalar_select %p652, %s651, 0
        %s654 = sadd.s32 %s39, 1
        %s655 = smul.u32 %s654, 8
        %p656 = scmp.lt.s32.totalorder %s655, 15
        %s657 = scalar_select %p656, %s655, 15
        %s658 = sadd.s32 %s39, 1
        %s659 = smul.u32 %s658, 8
        %s660 = sadd.s32 %s659, 1
        %p661 = scmp.lt.s32.totalorder %s660, 15
        %s662 = scalar_select %p661, %s660, 15
        %s663 = smul.u32 8, %s39
        %664 = vst [vmem:[#allocation2 + $0x10] sm:$0xff] 0.0
        %665 = vst [vmem:[#allocation2 + $0x28] sm:$0xff] 0.0
        %666 = vst [vmem:[#allocation2 + $0x40] sm:$0xff] 0.0
        %667 = vst [vmem:[#allocation2 + $0x58] sm:$0xff] 0.0
        %668 = vst [vmem:[#allocation2 + $0x70] sm:$0xff] 0.0
        %669 = vst [vmem:[#allocation2 + $0x88] sm:$0xff] 0.0
        %670 = vst [vmem:[#allocation2 + $0xa0] sm:$0xff] 0.0
        %671 = vst [vmem:[#allocation2 + $0xb8] sm:$0xff] 0.0
        %672 = vst [vmem:[#allocation2 + $0xd0] sm:$0xff] 0.0
        %673 = vst [vmem:[#allocation2 + $0xe8] sm:$0xff] 0.0
        %674 = vst [vmem:[#allocation2 + $0x100] sm:$0xff] 0.0
        %675 = vst [vmem:[#allocation2 + $0x118] sm:$0xff] 0.0
        %676 = vst [vmem:[#allocation2 + $0x130] sm:$0xff] 0.0
        %677 = vst [vmem:[#allocation2 + $0x148] sm:$0xff] 0.0
        %v678 = vld [vmem:[%s538] sm:$0xff]
        %v679 = vld [vmem:[%s538 + $0x8] sm:$0xff]
        %v680 = vld [vmem:[%s538 + $0x10] sm:$0xff]
        %v681 = vld [vmem:[%s538 + $0x18] sm:$0xff]
        %v682 = vld [vmem:[%s538 + $0x20] sm:$0xff]
        %v683 = vld [vmem:[%s538 + $0x28] sm:$0xff]
        %v684 = vld [vmem:[%s538 + $0x30] sm:$0xff]
        %v685 = vld [vmem:[%s538 + $0x38] sm:$0xff]
        %v686 = vld [vmem:[%s538 + $0x40] sm:$0xff]
        %v687 = vld [vmem:[%s538 + $0x48] sm:$0xff]
        %v688 = vld [vmem:[%s538 + $0x50] sm:$0xff]
        %v689 = vld [vmem:[%s538 + $0x58] sm:$0xff]
        %v690 = vld [vmem:[%s538 + $0x60] sm:$0xff]
        %v691 = vld [vmem:[%s538 + $0x68] sm:$0xff]
        %v692 = vld [vmem:[%s538 + $0x70] sm:$0xff]
        %v693 = vld [vmem:[%s538 + $0x78] sm:$0xff]
        %s694 = scalar_lea.vmem [#allocation2], 72
        %695 = vst [vmem:[%s694] sm:$0xff] %v678
        %696 = vst [vmem:[%s694 + $0x8] sm:$0xff] %v679
        %697 = vst [vmem:[%s694 + $0x18] sm:$0xff] %v680
        %698 = vst [vmem:[%s694 + $0x20] sm:$0xff] %v681
        %699 = vst [vmem:[%s694 + $0x30] sm:$0xff] %v682
        %700 = vst [vmem:[%s694 + $0x38] sm:$0xff] %v683
        %701 = vst [vmem:[%s694 + $0x48] sm:$0xff] %v684
        %702 = vst [vmem:[%s694 + $0x50] sm:$0xff] %v685
        %703 = vst [vmem:[%s694 + $0x60] sm:$0xff] %v686
        %704 = vst [vmem:[%s694 + $0x68] sm:$0xff] %v687
        %705 = vst [vmem:[%s694 + $0x78] sm:$0xff] %v688
        %706 = vst [vmem:[%s694 + $0x80] sm:$0xff] %v689
        %707 = vst [vmem:[%s694 + $0x90] sm:$0xff] %v690
        %708 = vst [vmem:[%s694 + $0x98] sm:$0xff] %v691
        %709 = vst [vmem:[%s694 + $0xa8] sm:$0xff] %v692
        %710 = vst [vmem:[%s694 + $0xb0] sm:$0xff] %v693
        %p711 = scmp.eq.s32.totalorder %s39, 0
        // Predicated region
        $region93: #{tpu_custom_call.1} parent=55 // pred_check
          %p712 = pneg %p711
        $region94: #{tpu_custom_call.1} parent=55 // pred_check_branch
          %714 = sbr.rel (%p712) target = $region96
        $region95: #{tpu_custom_call.1} parent=55 // pred_region
          %s715 = scalar_lea.vmem [#allocation2], 24
          %716 = vst [vmem:[%s715] sm:$0xff] 0.0
          %717 = vst [vmem:[%s715 + $0x8] sm:$0xff] 0.0
          %718 = vst [vmem:[%s715 + $0x18] sm:$0xff] 0.0
          %719 = vst [vmem:[%s715 + $0x20] sm:$0xff] 0.0
        $region96: #{tpu_custom_call.1} parent=55 // pred_fallthru
          _
        %p720 = scmp.gt.s32.totalorder %s39, 0
        // Predicated region
        $region97: #{tpu_custom_call.1} parent=55 // pred_check
          %p721 = pneg %p720
        $region98: #{tpu_custom_call.1} parent=55 // pred_check_branch
          %723 = sbr.rel (%p721) target = $region100
        $region99: #{tpu_custom_call.1} parent=55 // pred_region
          %v724 = vld [vmem:[%s547] sm:$0xff]
          %v725 = vld [vmem:[%s547 + $0x8] sm:$0xff]
          %s726 = scalar_lea.vmem [#allocation2], 24
          %727 = vst [vmem:[%s726] sm:$0xff] %v724
          %728 = vst [vmem:[%s726 + $0x8] sm:$0xff] %v725
          %v729 = vld [vmem:[%s556] sm:$0xff]
          %v730 = vld [vmem:[%s556 + $0x8] sm:$0xff]
          %s731 = scalar_lea.vmem [#allocation2], 48
          %732 = vst [vmem:[%s731] sm:$0xff] %v729
          %733 = vst [vmem:[%s731 + $0x8] sm:$0xff] %v730
        $region100: #{tpu_custom_call.1} parent=55 // pred_fallthru
          _
        %p734 = scmp.eq.s32.totalorder %s39, 1
        // Predicated region
        $region101: #{tpu_custom_call.1} parent=55 // pred_check
          %p735 = pneg %p734
        $region102: #{tpu_custom_call.1} parent=55 // pred_check_branch
          %737 = sbr.rel (%p735) target = $region104
        $region103: #{tpu_custom_call.1} parent=55 // pred_region
          %s738 = scalar_lea.vmem [#allocation2], 264
          %739 = vst [vmem:[%s738] sm:$0xff] 0.0
          %740 = vst [vmem:[%s738 + $0x8] sm:$0xff] 0.0
          %741 = vst [vmem:[%s738 + $0x18] sm:$0xff] 0.0
          %742 = vst [vmem:[%s738 + $0x20] sm:$0xff] 0.0
        $region104: #{tpu_custom_call.1} parent=55 // pred_fallthru
          _
        %p743 = scmp.lt.s32.totalorder %s39, 1
        // Predicated region
        $region105: #{tpu_custom_call.1} parent=55 // pred_check
          %p744 = pneg %p743
        $region106: #{tpu_custom_call.1} parent=55 // pred_check_branch
          %746 = sbr.rel (%p744) target = $region108
        $region107: #{tpu_custom_call.1} parent=55 // pred_region
          %v747 = vld [vmem:[%s565] sm:$0xff]
          %v748 = vld [vmem:[%s565 + $0x8] sm:$0xff]
          %s749 = scalar_lea.vmem [#allocation2], 264
          %750 = vst [vmem:[%s749] sm:$0xff] %v747
          %751 = vst [vmem:[%s749 + $0x8] sm:$0xff] %v748
          %v752 = vld [vmem:[%s574] sm:$0xff]
          %v753 = vld [vmem:[%s574 + $0x8] sm:$0xff]
          %s754 = scalar_lea.vmem [#allocation2], 288
          %755 = vst [vmem:[%s754] sm:$0xff] %v752
          %756 = vst [vmem:[%s754 + $0x8] sm:$0xff] %v753
        $region108: #{tpu_custom_call.1} parent=55 // pred_fallthru
          _
        %v757 = vld [vmem:[#allocation2 + $0x10] sm:$0xff]
        %v758 = vld [vmem:[#allocation2 + $0x18] sm:$0xff]
        %v759 = vld [vmem:[#allocation2 + $0x20] sm:$0xff]
        %v760 = vld [vmem:[#allocation2 + $0x28] sm:$0xff]
        %v761 = vld [vmem:[#allocation2 + $0x30] sm:$0xff]
        %v762 = vld [vmem:[#allocation2 + $0x38] sm:$0xff]
        %v763 = vld [vmem:[#allocation2 + $0x40] sm:$0xff]
        %v764 = vld [vmem:[#allocation2 + $0x48] sm:$0xff]
        %v765 = vld [vmem:[#allocation2 + $0x50] sm:$0xff]
        %v766 = vld [vmem:[#allocation2 + $0x58] sm:$0xff]
        %v767 = vld [vmem:[#allocation2 + $0x60] sm:$0xff]
        %v768 = vld [vmem:[#allocation2 + $0x68] sm:$0xff]
        %v769 = vld [vmem:[#allocation2 + $0x70] sm:$0xff]
        %v770 = vld [vmem:[#allocation2 + $0x78] sm:$0xff]
        %v771 = vld [vmem:[#allocation2 + $0x80] sm:$0xff]
        %v772 = vld [vmem:[#allocation2 + $0x88] sm:$0xff]
        %v773 = vld [vmem:[#allocation2 + $0x90] sm:$0xff]
        %v774 = vld [vmem:[#allocation2 + $0x98] sm:$0xff]
        %v775 = vld [vmem:[#allocation2 + $0xa0] sm:$0xff]
        %v776 = vld [vmem:[#allocation2 + $0xa8] sm:$0xff]
        %v777 = vld [vmem:[#allocation2 + $0xb0] sm:$0xff]
        %v778 = vld [vmem:[#allocation2 + $0xb8] sm:$0xff]
        %v779 = vld [vmem:[#allocation2 + $0xc0] sm:$0xff]
        %v780 = vld [vmem:[#allocation2 + $0xc8] sm:$0xff]
        %v781 = vld [vmem:[#allocation2 + $0xd0] sm:$0xff]
        %v782 = vld [vmem:[#allocation2 + $0xd8] sm:$0xff]
        %v783 = vld [vmem:[#allocation2 + $0xe0] sm:$0xff]
        %v784 = vld [vmem:[#allocation2 + $0xe8] sm:$0xff]
        %v785 = vld [vmem:[#allocation2 + $0xf0] sm:$0xff]
        %v786 = vld [vmem:[#allocation2 + $0xf8] sm:$0xff]
        %v787 = vld [vmem:[#allocation2 + $0x100] sm:$0xff]
        %v788 = vld [vmem:[#allocation2 + $0x108] sm:$0xff]
        %v789 = vld [vmem:[#allocation2 + $0x110] sm:$0xff]
        %v790 = vld [vmem:[#allocation2 + $0x118] sm:$0xff]
        %v791 = vld [vmem:[#allocation2 + $0x120] sm:$0xff]
        %v792 = vld [vmem:[#allocation2 + $0x128] sm:$0xff]
        %v793 = vld [vmem:[#allocation2 + $0x130] sm:$0xff]
        %v794 = vld [vmem:[#allocation2 + $0x138] sm:$0xff]
        %v795 = vld [vmem:[#allocation13] sm:$0xff]
        %v796 = vld [vmem:[#allocation13 + $0x8] sm:$0xff]
        %v797 = vld [vmem:[#allocation13 + $0x10] sm:$0xff]
        %v798 = vld [vmem:[#allocation13 + $0x18] sm:$0xff]
        %v799 = vld [vmem:[#allocation13 + $0x20] sm:$0xff]
        %v800 = vld [vmem:[#allocation13 + $0x28] sm:$0xff]
        %v801 = vld [vmem:[#allocation13 + $0x30] sm:$0xff]
        %v802 = vld [vmem:[#allocation13 + $0x38] sm:$0xff]
        %v803 = vld [vmem:[#allocation13 + $0x40] sm:$0xff]
        %v804 = vld [vmem:[#allocation13 + $0x48] sm:$0xff]
        %v805 = vld [vmem:[#allocation13 + $0x50] sm:$0xff]
        %v806 = vld [vmem:[#allocation13 + $0x58] sm:$0xff]
        %v807 = vld [vmem:[#allocation13 + $0x60] sm:$0xff]
        %v808 = vld [vmem:[#allocation13 + $0x68] sm:$0xff]
        %v809 = vld [vmem:[#allocation13 + $0x70] sm:$0xff]
        %v810 = vld [vmem:[#allocation13 + $0x78] sm:$0xff]
        %v811 = vld [vmem:[#allocation13 + $0x80] sm:$0xff]
        %v812 = vld [vmem:[#allocation13 + $0x88] sm:$0xff]
        %v813 = vld [vmem:[#allocation13 + $0x90] sm:$0xff]
        %v814 = vld [vmem:[#allocation13 + $0x98] sm:$0xff]
        %v815 = vld [vmem:[#allocation13 + $0xa0] sm:$0xff]
        %v816 = vld [vmem:[#allocation13 + $0xa8] sm:$0xff]
        %v817 = vld [vmem:[#allocation13 + $0xb0] sm:$0xff]
        %v818 = vld [vmem:[#allocation13 + $0xb8] sm:$0xff]
        %v819 = vld [vmem:[#allocation13 + $0xc0] sm:$0xff]
        %v820 = vld [vmem:[#allocation13 + $0xc8] sm:$0xff]
        %v821 = vld [vmem:[#allocation13 + $0xd0] sm:$0xff]
        %v822 = vld [vmem:[#allocation13 + $0xd8] sm:$0xff]
        %v823 = vld [vmem:[#allocation13 + $0xe0] sm:$0xff]
        %v824 = vld [vmem:[#allocation13 + $0xe8] sm:$0xff]
        %v825 = vld [vmem:[#allocation13 + $0xf0] sm:$0xff]
        %v826 = vld [vmem:[#allocation13 + $0xf8] sm:$0xff]
        %827 = vmatprep.subr.mxu0 0.0
        %828 = vmatpush1.msra.mxu0 %v811
        %829 = vmatprep.subr.mxu0 0.0
        %830 = vmatpush1.msra.mxu0 %v812
        %831 = vmatprep.subr.mxu0 0.0
        %832 = vmatpush1.msra.mxu0 %v813
        %833 = vmatprep.subr.mxu0 0.0
        %834 = vmatpush1.msra.mxu0 %v814
        %835 = vmatprep.subr.mxu0 0.0
        %836 = vmatpush1.msra.mxu0 %v815
        %837 = vmatprep.subr.mxu0 0.0
        %838 = vmatpush1.msra.mxu0 %v816
        %839 = vmatprep.subr.mxu0 0.0
        %840 = vmatpush1.msra.mxu0 %v817
        %841 = vmatprep.subr.mxu0 0.0
        %842 = vmatpush1.msra.mxu0 %v818
        %843 = vmatprep.subr.mxu0 0.0
        %844 = vmatpush1.msra.mxu0 %v819
        %845 = vmatprep.subr.mxu0 0.0
        %846 = vmatpush1.msra.mxu0 %v820
        %847 = vmatprep.subr.mxu0 0.0
        %848 = vmatpush1.msra.mxu0 %v821
        %849 = vmatprep.subr.mxu0 0.0
        %850 = vmatpush1.msra.mxu0 %v822
        %851 = vmatprep.subr.mxu0 0.0
        %852 = vmatpush1.msra.mxu0 %v823
        %853 = vmatprep.subr.mxu0 0.0
        %854 = vmatpush1.msra.mxu0 %v824
        %855 = vmatprep.subr.mxu0 0.0
        %856 = vmatpush1.msra.mxu0 %v825
        %857 = vmatprep.subr.mxu0 0.0
        %858 = vmatpush1.msra.mxu0 %v826
        %859 = vmatprep.subr.mxu0 0.0
        %860 = vmatpush1.msra.mxu0 0.0
        %861 = vmatprep.subr.mxu0 0.0
        %862 = vmatpush1.msra.mxu0 0.0
        %863 = vmatprep.subr.mxu0 0.0
        %864 = vmatpush1.msra.mxu0 0.0
        %865 = vmatprep.subr.mxu0 0.0
        %866 = vmatpush1.msra.mxu0 0.0
        %867 = vmatprep.subr.mxu0 0.0
        %868 = vmatpush1.msra.mxu0 0.0
        %869 = vmatprep.subr.mxu0 0.0
        %870 = vmatpush1.msra.mxu0 0.0
        %871 = vmatprep.subr.mxu0 0.0
        %872 = vmatpush1.msra.mxu0 0.0
        %873 = vmatprep.subr.mxu0 0.0
        %874 = vmatpush1.msra.mxu0 0.0
        %875 = vmatprep.subr.mxu0 0.0
        %876 = vmatpush1.msra.mxu0 0.0
        %877 = vmatprep.subr.mxu0 0.0
        %878 = vmatpush1.msra.mxu0 0.0
        %879 = vmatprep.subr.mxu0 0.0
        %880 = vmatpush1.msra.mxu0 0.0
        %881 = vmatprep.subr.mxu0 0.0
        %882 = vmatpush1.msra.mxu0 0.0
        %883 = vmatprep.subr.mxu0 0.0
        %884 = vmatpush1.msra.mxu0 0.0
        %885 = vmatprep.subr.mxu0 0.0
        %886 = vmatpush1.msra.mxu0 0.0
        %887 = vmatprep.subr.mxu0 0.0
        %888 = vmatpush1.msra.mxu0 0.0
        %889 = vmatprep.subr.mxu0 0.0
        %890 = vmatpush1.msra.mxu0 0.0
        %891 = vmatprep.mubr.f32.mxu0 0.0
        %892 = vmatmul.mubr.f32.gmra.mrb[0].mxu0 %v758
        %v893 = vpop.f32.mrb[0].mxu0
        %v894 = vadd.f32 0.0, %v893
        %v895 = vpop.f32.mrb[0].mxu0
        %896 = vmatprep.mubr.f32.mxu0 0.0
        %897 = vmatmul.mubr.f32.gmra.mrb[0].mxu0 %v759
        %v898 = vpop.f32.mrb[0].mxu0
        %v899 = vadd.f32 0.0, %v898
        %v900 = vpop.f32.mrb[0].mxu0
        %901 = vmatprep.mubr.f32.mxu0 0.0
        %902 = vmatmul.mubr.f32.gmra.mrb[0].mxu0 %v760
        %v903 = vpop.f32.mrb[0].mxu0
        %v904 = vadd.f32 0.0, %v903
        %v905 = vpop.f32.mrb[0].mxu0
        %906 = vmatprep.mubr.f32.mxu0 0.0
        %907 = vmatmul.mubr.f32.gmra.mrb[0].mxu0 %v761
        %v908 = vpop.f32.mrb[0].mxu0
        %v909 = vadd.f32 0.0, %v908
        %v910 = vpop.f32.mrb[0].mxu0
        %911 = vmatprep.mubr.f32.mxu0 0.0
        %912 = vmatmul.mubr.f32.gmra.mrb[0].mxu0 %v762
        %v913 = vpop.f32.mrb[0].mxu0
        %v914 = vadd.f32 0.0, %v913
        %v915 = vpop.f32.mrb[0].mxu0
        %916 = vmatprep.mubr.f32.mxu0 0.0
        %917 = vmatmul.mubr.f32.gmra.mrb[0].mxu0 %v763
        %v918 = vpop.f32.mrb[0].mxu0
        %v919 = vadd.f32 0.0, %v918
        %v920 = vpop.f32.mrb[0].mxu0
        %921 = vmatprep.mubr.f32.mxu0 0.0
        %922 = vmatmul.mubr.f32.gmra.mrb[0].mxu0 %v764
        %v923 = vpop.f32.mrb[0].mxu0
        %v924 = vadd.f32 0.0, %v923
        %v925 = vpop.f32.mrb[0].mxu0
        %926 = vmatprep.mubr.f32.mxu0 0.0
        %927 = vmatmul.mubr.f32.gmra.mrb[0].mxu0 %v765
        %v928 = vpop.f32.mrb[0].mxu0
        %v929 = vadd.f32 0.0, %v928
        %v930 = vpop.f32.mrb[0].mxu0
        %931 = vmatprep.mubr.f32.mxu0 0.0
        %932 = vmatmul.mubr.f32.gmra.mrb[0].mxu0 %v766
        %v933 = vpop.f32.mrb[0].mxu0
        %v934 = vadd.f32 0.0, %v933
        %v935 = vpop.f32.mrb[0].mxu0
        %936 = vmatprep.mubr.f32.mxu0 0.0
        %937 = vmatmul.mubr.f32.gmra.mrb[0].mxu0 %v767
        %v938 = vpop.f32.mrb[0].mxu0
        %v939 = vadd.f32 0.0, %v938
        %v940 = vpop.f32.mrb[0].mxu0
        %941 = vmatprep.mubr.f32.mxu0 0.0
        %942 = vmatmul.mubr.f32.gmra.mrb[0].mxu0 %v768
        %v943 = vpop.f32.mrb[0].mxu0
        %v944 = vadd.f32 0.0, %v943
        %v945 = vpop.f32.mrb[0].mxu0
        %946 = vmatprep.mubr.f32.mxu0 0.0
        %947 = vmatmul.mubr.f32.gmra.mrb[0].mxu0 %v769
        %v948 = vpop.f32.mrb[0].mxu0
        %v949 = vadd.f32 0.0, %v948
        %v950 = vpop.f32.mrb[0].mxu0
        %951 = vmatprep.mubr.f32.mxu0 0.0
        %952 = vmatmul.mubr.f32.gmra.mrb[0].mxu0 %v770
        %v953 = vpop.f32.mrb[0].mxu0
        %v954 = vadd.f32 0.0, %v953
        %v955 = vpop.f32.mrb[0].mxu0
        %956 = vmatprep.mubr.f32.mxu0 0.0
        %957 = vmatmul.mubr.f32.gmra.mrb[0].mxu0 %v771
        %v958 = vpop.f32.mrb[0].mxu0
        %v959 = vadd.f32 0.0, %v958
        %v960 = vpop.f32.mrb[0].mxu0
        %961 = vmatprep.mubr.f32.mxu0 0.0
        %962 = vmatmul.mubr.f32.gmra.mrb[0].mxu0 %v772
        %v963 = vpop.f32.mrb[0].mxu0
        %v964 = vadd.f32 0.0, %v963
        %v965 = vpop.f32.mrb[0].mxu0
        %966 = vmatprep.mubr.f32.mxu0 0.0
        %967 = vmatmul.mubr.f32.gmra.mrb[0].mxu0 %v773
        %v968 = vpop.f32.mrb[0].mxu0
        %v969 = vadd.f32 0.0, %v968
        %v970 = vpop.f32.mrb[0].mxu0
        %971 = vmatprep.mubr.f32.mxu0 0.0
        %972 = vmatmul.mubr.f32.gmra.mrb[0].mxu0 %v774
        %v973 = vpop.f32.mrb[0].mxu0
        %v974 = vadd.f32 0.0, %v973
        %v975 = vpop.f32.mrb[0].mxu0
        %976 = vmatprep.mubr.f32.mxu0 0.0
        %977 = vmatmul.mubr.f32.gmra.mrb[0].mxu0 %v775
        %v978 = vpop.f32.mrb[0].mxu0
        %v979 = vadd.f32 0.0, %v978
        %v980 = vpop.f32.mrb[0].mxu0
        %981 = vmatprep.mubr.f32.mxu0 0.0
        %982 = vmatmul.mubr.f32.gmra.mrb[0].mxu0 %v776
        %v983 = vpop.f32.mrb[0].mxu0
        %v984 = vadd.f32 0.0, %v983
        %v985 = vpop.f32.mrb[0].mxu0
        %986 = vmatprep.mubr.f32.mxu0 0.0
        %987 = vmatmul.mubr.f32.gmra.mrb[0].mxu0 %v777
        %v988 = vpop.f32.mrb[0].mxu0
        %v989 = vadd.f32 0.0, %v988
        %v990 = vpop.f32.mrb[0].mxu0
        %991 = vmatprep.mubr.f32.mxu0 0.0
        %992 = vmatmul.mubr.f32.gmra.mrb[0].mxu0 %v778
        %v993 = vpop.f32.mrb[0].mxu0
        %v994 = vadd.f32 0.0, %v993
        %v995 = vpop.f32.mrb[0].mxu0
        %996 = vmatprep.mubr.f32.mxu0 0.0
        %997 = vmatmul.mubr.f32.gmra.mrb[0].mxu0 %v779
        %v998 = vpop.f32.mrb[0].mxu0
        %v999 = vadd.f32 0.0, %v998
        %v1000 = vpop.f32.mrb[0].mxu0
        %1001 = vmatprep.mubr.f32.mxu0 0.0
        %1002 = vmatmul.mubr.f32.gmra.mrb[0].mxu0 %v780
        %v1003 = vpop.f32.mrb[0].mxu0
        %v1004 = vadd.f32 0.0, %v1003
        %v1005 = vpop.f32.mrb[0].mxu0
        %1006 = vmatprep.mubr.f32.mxu0 0.0
        %1007 = vmatmul.mubr.f32.gmra.mrb[0].mxu0 %v781
        %v1008 = vpop.f32.mrb[0].mxu0
        %v1009 = vadd.f32 0.0, %v1008
        %v1010 = vpop.f32.mrb[0].mxu0
        %1011 = vmatprep.mubr.f32.mxu0 0.0
        %1012 = vmatmul.mubr.f32.gmra.mrb[0].mxu0 %v782
        %v1013 = vpop.f32.mrb[0].mxu0
        %v1014 = vadd.f32 0.0, %v1013
        %v1015 = vpop.f32.mrb[0].mxu0
        %1016 = vmatprep.mubr.f32.mxu0 0.0
        %1017 = vmatmul.mubr.f32.gmra.mrb[0].mxu0 %v783
        %v1018 = vpop.f32.mrb[0].mxu0
        %v1019 = vadd.f32 0.0, %v1018
        %v1020 = vpop.f32.mrb[0].mxu0
        %1021 = vmatprep.mubr.f32.mxu0 0.0
        %1022 = vmatmul.mubr.f32.gmra.mrb[0].mxu0 %v784
        %v1023 = vpop.f32.mrb[0].mxu0
        %v1024 = vadd.f32 0.0, %v1023
        %v1025 = vpop.f32.mrb[0].mxu0
        %1026 = vmatprep.mubr.f32.mxu0 0.0
        %1027 = vmatmul.mubr.f32.gmra.mrb[0].mxu0 %v785
        %v1028 = vpop.f32.mrb[0].mxu0
        %v1029 = vadd.f32 0.0, %v1028
        %v1030 = vpop.f32.mrb[0].mxu0
        %1031 = vmatprep.mubr.f32.mxu0 0.0
        %1032 = vmatmul.mubr.f32.gmra.mrb[0].mxu0 %v786
        %v1033 = vpop.f32.mrb[0].mxu0
        %v1034 = vadd.f32 0.0, %v1033
        %v1035 = vpop.f32.mrb[0].mxu0
        %1036 = vmatprep.mubr.f32.mxu0 0.0
        %1037 = vmatmul.mubr.f32.gmra.mrb[0].mxu0 %v787
        %v1038 = vpop.f32.mrb[0].mxu0
        %v1039 = vadd.f32 0.0, %v1038
        %v1040 = vpop.f32.mrb[0].mxu0
        %1041 = vdwg.mxu0
        %vm1073 = vcmask 1040384
        %v1074 = vrot.slane %v757, 7
        %v1075 = vrot.slane %v758, 7
        %v1076 = vsel %vm1073, %v1074, %v1075
        %v1077 = vrot.slane %v759, 7
        %v1078 = vsel %vm1073, %v1075, %v1077
        %v1079 = vrot.slane %v760, 7
        %v1080 = vsel %vm1073, %v1077, %v1079
        %v1081 = vrot.slane %v761, 7
        %v1082 = vsel %vm1073, %v1079, %v1081
        %v1083 = vrot.slane %v762, 7
        %v1084 = vsel %vm1073, %v1081, %v1083
        %v1085 = vrot.slane %v763, 7
        %v1086 = vsel %vm1073, %v1083, %v1085
        %v1087 = vrot.slane %v764, 7
        %v1088 = vsel %vm1073, %v1085, %v1087
        %v1089 = vrot.slane %v765, 7
        %v1090 = vsel %vm1073, %v1087, %v1089
        %v1091 = vrot.slane %v766, 7
        %v1092 = vsel %vm1073, %v1089, %v1091
        %v1093 = vrot.slane %v767, 7
        %v1094 = vsel %vm1073, %v1091, %v1093
        %v1095 = vrot.slane %v768, 7
        %v1096 = vsel %vm1073, %v1093, %v1095
        %v1097 = vrot.slane %v769, 7
        %v1098 = vsel %vm1073, %v1095, %v1097
        %v1099 = vrot.slane %v770, 7
        %v1100 = vsel %vm1073, %v1097, %v1099
        %v1101 = vrot.slane %v771, 7
        %v1102 = vsel %vm1073, %v1099, %v1101
        %v1103 = vrot.slane %v772, 7
        %v1104 = vsel %vm1073, %v1101, %v1103
        %v1105 = vrot.slane %v773, 7
        %v1106 = vsel %vm1073, %v1103, %v1105
        %v1107 = vrot.slane %v774, 7
        %v1108 = vsel %vm1073, %v1105, %v1107
        %v1109 = vrot.slane %v775, 7
        %v1110 = vsel %vm1073, %v1107, %v1109
        %v1111 = vrot.slane %v776, 7
        %v1112 = vsel %vm1073, %v1109, %v1111
        %v1113 = vrot.slane %v777, 7
        %v1114 = vsel %vm1073, %v1111, %v1113
        %v1115 = vrot.slane %v778, 7
        %v1116 = vsel %vm1073, %v1113, %v1115
        %v1117 = vrot.slane %v779, 7
        %v1118 = vsel %vm1073, %v1115, %v1117
        %v1119 = vrot.slane %v780, 7
        %v1120 = vsel %vm1073, %v1117, %v1119
        %v1121 = vrot.slane %v781, 7
        %v1122 = vsel %vm1073, %v1119, %v1121
        %v1123 = vrot.slane %v782, 7
        %v1124 = vsel %vm1073, %v1121, %v1123
        %v1125 = vrot.slane %v783, 7
        %v1126 = vsel %vm1073, %v1123, %v1125
        %v1127 = vrot.slane %v784, 7
        %v1128 = vsel %vm1073, %v1125, %v1127
        %v1129 = vrot.slane %v785, 7
        %v1130 = vsel %vm1073, %v1127, %v1129
        %v1131 = vrot.slane %v786, 7
        %v1132 = vsel %vm1073, %v1129, %v1131
        %v1133 = vrot.slane %v787, 7
        %v1134 = vsel %vm1073, %v1131, %v1133
        %1165 = vmatprep.subr.mxu0 0.0
        %1166 = vmatpush1.msra.mxu0 %v795
        %1167 = vmatprep.subr.mxu0 0.0
        %1168 = vmatpush1.msra.mxu0 %v796
        %1169 = vmatprep.subr.mxu0 0.0
        %1170 = vmatpush1.msra.mxu0 %v797
        %1171 = vmatprep.subr.mxu0 0.0
        %1172 = vmatpush1.msra.mxu0 %v798
        %1173 = vmatprep.subr.mxu0 0.0
        %1174 = vmatpush1.msra.mxu0 %v799
        %1175 = vmatprep.subr.mxu0 0.0
        %1176 = vmatpush1.msra.mxu0 %v800
        %1177 = vmatprep.subr.mxu0 0.0
        %1178 = vmatpush1.msra.mxu0 %v801
        %1179 = vmatprep.subr.mxu0 0.0
        %1180 = vmatpush1.msra.mxu0 %v802
        %1181 = vmatprep.subr.mxu0 0.0
        %1182 = vmatpush1.msra.mxu0 %v803
        %1183 = vmatprep.subr.mxu0 0.0
        %1184 = vmatpush1.msra.mxu0 %v804
        %1185 = vmatprep.subr.mxu0 0.0
        %1186 = vmatpush1.msra.mxu0 %v805
        %1187 = vmatprep.subr.mxu0 0.0
        %1188 = vmatpush1.msra.mxu0 %v806
        %1189 = vmatprep.subr.mxu0 0.0
        %1190 = vmatpush1.msra.mxu0 %v807
        %1191 = vmatprep.subr.mxu0 0.0
        %1192 = vmatpush1.msra.mxu0 %v808
        %1193 = vmatprep.subr.mxu0 0.0
        %1194 = vmatpush1.msra.mxu0 %v809
        %1195 = vmatprep.subr.mxu0 0.0
        %1196 = vmatpush1.msra.mxu0 %v810
        %1197 = vmatprep.subr.mxu0 0.0
        %1198 = vmatpush1.msra.mxu0 0.0
        %1199 = vmatprep.subr.mxu0 0.0
        %1200 = vmatpush1.msra.mxu0 0.0
        %1201 = vmatprep.subr.mxu0 0.0
        %1202 = vmatpush1.msra.mxu0 0.0
        %1203 = vmatprep.subr.mxu0 0.0
        %1204 = vmatpush1.msra.mxu0 0.0
        %1205 = vmatprep.subr.mxu0 0.0
        %1206 = vmatpush1.msra.mxu0 0.0
        %1207 = vmatprep.subr.mxu0 0.0
        %1208 = vmatpush1.msra.mxu0 0.0
        %1209 = vmatprep.subr.mxu0 0.0
        %1210 = vmatpush1.msra.mxu0 0.0
        %1211 = vmatprep.subr.mxu0 0.0
        %1212 = vmatpush1.msra.mxu0 0.0
        %1213 = vmatprep.subr.mxu0 0.0
        %1214 = vmatpush1.msra.mxu0 0.0
        %1215 = vmatprep.subr.mxu0 0.0
        %1216 = vmatpush1.msra.mxu0 0.0
        %1217 = vmatprep.subr.mxu0 0.0
        %1218 = vmatpush1.msra.mxu0 0.0
        %1219 = vmatprep.subr.mxu0 0.0
        %1220 = vmatpush1.msra.mxu0 0.0
        %1221 = vmatprep.subr.mxu0 0.0
        %1222 = vmatpush1.msra.mxu0 0.0
        %1223 = vmatprep.subr.mxu0 0.0
        %1224 = vmatpush1.msra.mxu0 0.0
        %1225 = vmatprep.subr.mxu0 0.0
        %1226 = vmatpush1.msra.mxu0 0.0
        %1227 = vmatprep.subr.mxu0 0.0
        %1228 = vmatpush1.msra.mxu0 0.0
        %1229 = vmatprep.mubr.f32.mxu0 0.0
        %1230 = vmatmul.mubr.f32.gmra.mrb[0].mxu0 %v1076
        %v1231 = vpop.f32.mrb[0].mxu0
        %v1232 = vadd.f32 %v894, %v1231
        %v1233 = vpop.f32.mrb[0].mxu0
        %1234 = vmatprep.mubr.f32.mxu0 0.0
        %1235 = vmatmul.mubr.f32.gmra.mrb[0].mxu0 %v1078
        %v1236 = vpop.f32.mrb[0].mxu0
        %v1237 = vadd.f32 %v899, %v1236
        %v1238 = vpop.f32.mrb[0].mxu0
        %1239 = vmatprep.mubr.f32.mxu0 0.0
        %1240 = vmatmul.mubr.f32.gmra.mrb[0].mxu0 %v1080
        %v1241 = vpop.f32.mrb[0].mxu0
        %v1242 = vadd.f32 %v904, %v1241
        %v1243 = vpop.f32.mrb[0].mxu0
        %1244 = vmatprep.mubr.f32.mxu0 0.0
        %1245 = vmatmul.mubr.f32.gmra.mrb[0].mxu0 %v1082
        %v1246 = vpop.f32.mrb[0].mxu0
        %v1247 = vadd.f32 %v909, %v1246
        %v1248 = vpop.f32.mrb[0].mxu0
        %1249 = vmatprep.mubr.f32.mxu0 0.0
        %1250 = vmatmul.mubr.f32.gmra.mrb[0].mxu0 %v1084
        %v1251 = vpop.f32.mrb[0].mxu0
        %v1252 = vadd.f32 %v914, %v1251
        %v1253 = vpop.f32.mrb[0].mxu0
        %1254 = vmatprep.mubr.f32.mxu0 0.0
        %1255 = vmatmul.mubr.f32.gmra.mrb[0].mxu0 %v1086
        %v1256 = vpop.f32.mrb[0].mxu0
        %v1257 = vadd.f32 %v919, %v1256
        %v1258 = vpop.f32.mrb[0].mxu0
        %1259 = vmatprep.mubr.f32.mxu0 0.0
        %1260 = vmatmul.mubr.f32.gmra.mrb[0].mxu0 %v1088
        %v1261 = vpop.f32.mrb[0].mxu0
        %v1262 = vadd.f32 %v924, %v1261
        %v1263 = vpop.f32.mrb[0].mxu0
        %1264 = vmatprep.mubr.f32.mxu0 0.0
        %1265 = vmatmul.mubr.f32.gmra.mrb[0].mxu0 %v1090
        %v1266 = vpop.f32.mrb[0].mxu0
        %v1267 = vadd.f32 %v929, %v1266
        %v1268 = vpop.f32.mrb[0].mxu0
        %1269 = vmatprep.mubr.f32.mxu0 0.0
        %1270 = vmatmul.mubr.f32.gmra.mrb[0].mxu0 %v1092
        %v1271 = vpop.f32.mrb[0].mxu0
        %v1272 = vadd.f32 %v934, %v1271
        %v1273 = vpop.f32.mrb[0].mxu0
        %1274 = vmatprep.mubr.f32.mxu0 0.0
        %1275 = vmatmul.mubr.f32.gmra.mrb[0].mxu0 %v1094
        %v1276 = vpop.f32.mrb[0].mxu0
        %v1277 = vadd.f32 %v939, %v1276
        %v1278 = vpop.f32.mrb[0].mxu0
        %1279 = vmatprep.mubr.f32.mxu0 0.0
        %1280 = vmatmul.mubr.f32.gmra.mrb[0].mxu0 %v1096
        %v1281 = vpop.f32.mrb[0].mxu0
        %v1282 = vadd.f32 %v944, %v1281
        %v1283 = vpop.f32.mrb[0].mxu0
        %1284 = vmatprep.mubr.f32.mxu0 0.0
        %1285 = vmatmul.mubr.f32.gmra.mrb[0].mxu0 %v1098
        %v1286 = vpop.f32.mrb[0].mxu0
        %v1287 = vadd.f32 %v949, %v1286
        %v1288 = vpop.f32.mrb[0].mxu0
        %1289 = vmatprep.mubr.f32.mxu0 0.0
        %1290 = vmatmul.mubr.f32.gmra.mrb[0].mxu0 %v1100
        %v1291 = vpop.f32.mrb[0].mxu0
        %v1292 = vadd.f32 %v954, %v1291
        %v1293 = vpop.f32.mrb[0].mxu0
        %1294 = vmatprep.mubr.f32.mxu0 0.0
        %1295 = vmatmul.mubr.f32.gmra.mrb[0].mxu0 %v1102
        %v1296 = vpop.f32.mrb[0].mxu0
        %v1297 = vadd.f32 %v959, %v1296
        %v1298 = vpop.f32.mrb[0].mxu0
        %1299 = vmatprep.mubr.f32.mxu0 0.0
        %1300 = vmatmul.mubr.f32.gmra.mrb[0].mxu0 %v1104
        %v1301 = vpop.f32.mrb[0].mxu0
        %v1302 = vadd.f32 %v964, %v1301
        %v1303 = vpop.f32.mrb[0].mxu0
        %1304 = vmatprep.mubr.f32.mxu0 0.0
        %1305 = vmatmul.mubr.f32.gmra.mrb[0].mxu0 %v1106
        %v1306 = vpop.f32.mrb[0].mxu0
        %v1307 = vadd.f32 %v969, %v1306
        %v1308 = vpop.f32.mrb[0].mxu0
        %1309 = vmatprep.mubr.f32.mxu0 0.0
        %1310 = vmatmul.mubr.f32.gmra.mrb[0].mxu0 %v1108
        %v1311 = vpop.f32.mrb[0].mxu0
        %v1312 = vadd.f32 %v974, %v1311
        %v1313 = vpop.f32.mrb[0].mxu0
        %1314 = vmatprep.mubr.f32.mxu0 0.0
        %1315 = vmatmul.mubr.f32.gmra.mrb[0].mxu0 %v1110
        %v1316 = vpop.f32.mrb[0].mxu0
        %v1317 = vadd.f32 %v979, %v1316
        %v1318 = vpop.f32.mrb[0].mxu0
        %1319 = vmatprep.mubr.f32.mxu0 0.0
        %1320 = vmatmul.mubr.f32.gmra.mrb[0].mxu0 %v1112
        %v1321 = vpop.f32.mrb[0].mxu0
        %v1322 = vadd.f32 %v984, %v1321
        %v1323 = vpop.f32.mrb[0].mxu0
        %1324 = vmatprep.mubr.f32.mxu0 0.0
        %1325 = vmatmul.mubr.f32.gmra.mrb[0].mxu0 %v1114
        %v1326 = vpop.f32.mrb[0].mxu0
        %v1327 = vadd.f32 %v989, %v1326
        %v1328 = vpop.f32.mrb[0].mxu0
        %1329 = vmatprep.mubr.f32.mxu0 0.0
        %1330 = vmatmul.mubr.f32.gmra.mrb[0].mxu0 %v1116
        %v1331 = vpop.f32.mrb[0].mxu0
        %v1332 = vadd.f32 %v994, %v1331
        %v1333 = vpop.f32.mrb[0].mxu0
        %1334 = vmatprep.mubr.f32.mxu0 0.0
        %1335 = vmatmul.mubr.f32.gmra.mrb[0].mxu0 %v1118
        %v1336 = vpop.f32.mrb[0].mxu0
        %v1337 = vadd.f32 %v999, %v1336
        %v1338 = vpop.f32.mrb[0].mxu0
        %1339 = vmatprep.mubr.f32.mxu0 0.0
        %1340 = vmatmul.mubr.f32.gmra.mrb[0].mxu0 %v1120
        %v1341 = vpop.f32.mrb[0].mxu0
        %v1342 = vadd.f32 %v1004, %v1341
        %v1343 = vpop.f32.mrb[0].mxu0
        %1344 = vmatprep.mubr.f32.mxu0 0.0
        %1345 = vmatmul.mubr.f32.gmra.mrb[0].mxu0 %v1122
        %v1346 = vpop.f32.mrb[0].mxu0
        %v1347 = vadd.f32 %v1009, %v1346
        %v1348 = vpop.f32.mrb[0].mxu0
        %1349 = vmatprep.mubr.f32.mxu0 0.0
        %1350 = vmatmul.mubr.f32.gmra.mrb[0].mxu0 %v1124
        %v1351 = vpop.f32.mrb[0].mxu0
        %v1352 = vadd.f32 %v1014, %v1351
        %v1353 = vpop.f32.mrb[0].mxu0
        %1354 = vmatprep.mubr.f32.mxu0 0.0
        %1355 = vmatmul.mubr.f32.gmra.mrb[0].mxu0 %v1126
        %v1356 = vpop.f32.mrb[0].mxu0
        %v1357 = vadd.f32 %v1019, %v1356
        %v1358 = vpop.f32.mrb[0].mxu0
        %1359 = vmatprep.mubr.f32.mxu0 0.0
        %1360 = vmatmul.mubr.f32.gmra.mrb[0].mxu0 %v1128
        %v1361 = vpop.f32.mrb[0].mxu0
        %v1362 = vadd.f32 %v1024, %v1361
        %v1363 = vpop.f32.mrb[0].mxu0
        %1364 = vmatprep.mubr.f32.mxu0 0.0
        %1365 = vmatmul.mubr.f32.gmra.mrb[0].mxu0 %v1130
        %v1366 = vpop.f32.mrb[0].mxu0
        %v1367 = vadd.f32 %v1029, %v1366
        %v1368 = vpop.f32.mrb[0].mxu0
        %1369 = vmatprep.mubr.f32.mxu0 0.0
        %1370 = vmatmul.mubr.f32.gmra.mrb[0].mxu0 %v1132
        %v1371 = vpop.f32.mrb[0].mxu0
        %v1372 = vadd.f32 %v1034, %v1371
        %v1373 = vpop.f32.mrb[0].mxu0
        %1374 = vmatprep.mubr.f32.mxu0 0.0
        %1375 = vmatmul.mubr.f32.gmra.mrb[0].mxu0 %v1134
        %v1376 = vpop.f32.mrb[0].mxu0
        %v1377 = vadd.f32 %v1039, %v1376
        %v1378 = vpop.f32.mrb[0].mxu0
        %1379 = vdwg.mxu0
        %v1380 = vld [vmem:[#allocation13 + $0x100] sm:$0xff]
        %v1381 = vld [vmem:[#allocation13 + $0x108] sm:$0xff]
        %v1382 = vld [vmem:[#allocation13 + $0x110] sm:$0xff]
        %v1383 = vld [vmem:[#allocation13 + $0x118] sm:$0xff]
        %v1384 = vld [vmem:[#allocation13 + $0x120] sm:$0xff]
        %v1385 = vld [vmem:[#allocation13 + $0x128] sm:$0xff]
        %v1386 = vld [vmem:[#allocation13 + $0x130] sm:$0xff]
        %v1387 = vld [vmem:[#allocation13 + $0x138] sm:$0xff]
        %v1388 = vld [vmem:[#allocation13 + $0x140] sm:$0xff]
        %v1389 = vld [vmem:[#allocation13 + $0x148] sm:$0xff]
        %v1390 = vld [vmem:[#allocation13 + $0x150] sm:$0xff]
        %v1391 = vld [vmem:[#allocation13 + $0x158] sm:$0xff]
        %v1392 = vld [vmem:[#allocation13 + $0x160] sm:$0xff]
        %v1393 = vld [vmem:[#allocation13 + $0x168] sm:$0xff]
        %v1394 = vld [vmem:[#allocation13 + $0x170] sm:$0xff]
        %v1395 = vld [vmem:[#allocation13 + $0x178] sm:$0xff]
        %vm1397 = vcmask 1046528
        %v1398 = vrot.slane %v758, 1
        %v1399 = vrot.slane %v759, 1
        %v1400 = vsel %vm1397, %v1398, %v1399
        %v1401 = vrot.slane %v760, 1
        %v1402 = vsel %vm1397, %v1399, %v1401
        %v1403 = vrot.slane %v761, 1
        %v1404 = vsel %vm1397, %v1401, %v1403
        %v1405 = vrot.slane %v762, 1
        %v1406 = vsel %vm1397, %v1403, %v1405
        %v1407 = vrot.slane %v763, 1
        %v1408 = vsel %vm1397, %v1405, %v1407
        %v1409 = vrot.slane %v764, 1
        %v1410 = vsel %vm1397, %v1407, %v1409
        %v1411 = vrot.slane %v765, 1
        %v1412 = vsel %vm1397, %v1409, %v1411
        %v1413 = vrot.slane %v766, 1
        %v1414 = vsel %vm1397, %v1411, %v1413
        %v1415 = vrot.slane %v767, 1
        %v1416 = vsel %vm1397, %v1413, %v1415
        %v1417 = vrot.slane %v768, 1
        %v1418 = vsel %vm1397, %v1415, %v1417
        %v1419 = vrot.slane %v769, 1
        %v1420 = vsel %vm1397, %v1417, %v1419
        %v1421 = vrot.slane %v770, 1
        %v1422 = vsel %vm1397, %v1419, %v1421
        %v1423 = vrot.slane %v771, 1
        %v1424 = vsel %vm1397, %v1421, %v1423
        %v1425 = vrot.slane %v772, 1
        %v1426 = vsel %vm1397, %v1423, %v1425
        %v1427 = vrot.slane %v773, 1
        %v1428 = vsel %vm1397, %v1425, %v1427
        %v1429 = vrot.slane %v774, 1
        %v1430 = vsel %vm1397, %v1427, %v1429
        %v1431 = vrot.slane %v775, 1
        %v1432 = vsel %vm1397, %v1429, %v1431
        %v1433 = vrot.slane %v776, 1
        %v1434 = vsel %vm1397, %v1431, %v1433
        %v1435 = vrot.slane %v777, 1
        %v1436 = vsel %vm1397, %v1433, %v1435
        %v1437 = vrot.slane %v778, 1
        %v1438 = vsel %vm1397, %v1435, %v1437
        %v1439 = vrot.slane %v779, 1
        %v1440 = vsel %vm1397, %v1437, %v1439
        %v1441 = vrot.slane %v780, 1
        %v1442 = vsel %vm1397, %v1439, %v1441
        %v1443 = vrot.slane %v781, 1
        %v1444 = vsel %vm1397, %v1441, %v1443
        %v1445 = vrot.slane %v782, 1
        %v1446 = vsel %vm1397, %v1443, %v1445
        %v1447 = vrot.slane %v783, 1
        %v1448 = vsel %vm1397, %v1445, %v1447
        %v1449 = vrot.slane %v784, 1
        %v1450 = vsel %vm1397, %v1447, %v1449
        %v1451 = vrot.slane %v785, 1
        %v1452 = vsel %vm1397, %v1449, %v1451
        %v1453 = vrot.slane %v786, 1
        %v1454 = vsel %vm1397, %v1451, %v1453
        %v1455 = vrot.slane %v787, 1
        %v1456 = vsel %vm1397, %v1453, %v1455
        %v1457 = vrot.slane %v788, 1
        %v1458 = vsel %vm1397, %v1455, %v1457
        %1489 = vmatprep.subr.mxu0 0.0
        %1490 = vmatpush1.msra.mxu0 %v1380
        %1491 = vmatprep.subr.mxu0 0.0
        %1492 = vmatpush1.msra.mxu0 %v1381
        %1493 = vmatprep.subr.mxu0 0.0
        %1494 = vmatpush1.msra.mxu0 %v1382
        %1495 = vmatprep.subr.mxu0 0.0
        %1496 = vmatpush1.msra.mxu0 %v1383
        %1497 = vmatprep.subr.mxu0 0.0
        %1498 = vmatpush1.msra.mxu0 %v1384
        %1499 = vmatprep.subr.mxu0 0.0
        %1500 = vmatpush1.msra.mxu0 %v1385
        %1501 = vmatprep.subr.mxu0 0.0
        %1502 = vmatpush1.msra.mxu0 %v1386
        %1503 = vmatprep.subr.mxu0 0.0
        %1504 = vmatpush1.msra.mxu0 %v1387
        %1505 = vmatprep.subr.mxu0 0.0
        %1506 = vmatpush1.msra.mxu0 %v1388
        %1507 = vmatprep.subr.mxu0 0.0
        %1508 = vmatpush1.msra.mxu0 %v1389
        %1509 = vmatprep.subr.mxu0 0.0
        %1510 = vmatpush1.msra.mxu0 %v1390
        %1511 = vmatprep.subr.mxu0 0.0
        %1512 = vmatpush1.msra.mxu0 %v1391
        %1513 = vmatprep.subr.mxu0 0.0
        %1514 = vmatpush1.msra.mxu0 %v1392
        %1515 = vmatprep.subr.mxu0 0.0
        %1516 = vmatpush1.msra.mxu0 %v1393
        %1517 = vmatprep.subr.mxu0 0.0
        %1518 = vmatpush1.msra.mxu0 %v1394
        %1519 = vmatprep.subr.mxu0 0.0
        %1520 = vmatpush1.msra.mxu0 %v1395
        %1521 = vmatprep.subr.mxu0 0.0
        %1522 = vmatpush1.msra.mxu0 0.0
        %1523 = vmatprep.subr.mxu0 0.0
        %1524 = vmatpush1.msra.mxu0 0.0
        %1525 = vmatprep.subr.mxu0 0.0
        %1526 = vmatpush1.msra.mxu0 0.0
        %1527 = vmatprep.subr.mxu0 0.0
        %1528 = vmatpush1.msra.mxu0 0.0
        %1529 = vmatprep.subr.mxu0 0.0
        %1530 = vmatpush1.msra.mxu0 0.0
        %1531 = vmatprep.subr.mxu0 0.0
        %1532 = vmatpush1.msra.mxu0 0.0
        %1533 = vmatprep.subr.mxu0 0.0
        %1534 = vmatpush1.msra.mxu0 0.0
        %1535 = vmatprep.subr.mxu0 0.0
        %1536 = vmatpush1.msra.mxu0 0.0
        %1537 = vmatprep.subr.mxu0 0.0
        %1538 = vmatpush1.msra.mxu0 0.0
        %1539 = vmatprep.subr.mxu0 0.0
        %1540 = vmatpush1.msra.mxu0 0.0
        %1541 = vmatprep.subr.mxu0 0.0
        %1542 = vmatpush1.msra.mxu0 0.0
        %1543 = vmatprep.subr.mxu0 0.0
        %1544 = vmatpush1.msra.mxu0 0.0
        %1545 = vmatprep.subr.mxu0 0.0
        %1546 = vmatpush1.msra.mxu0 0.0
        %1547 = vmatprep.subr.mxu0 0.0
        %1548 = vmatpush1.msra.mxu0 0.0
        %1549 = vmatprep.subr.mxu0 0.0
        %1550 = vmatpush1.msra.mxu0 0.0
        %1551 = vmatprep.subr.mxu0 0.0
        %1552 = vmatpush1.msra.mxu0 0.0
        %1553 = vmatprep.mubr.f32.mxu0 0.0
        %1554 = vmatmul.mubr.f32.gmra.mrb[0].mxu0 %v1400
        %v1555 = vpop.f32.mrb[0].mxu0
        %v1556 = vadd.f32 0.0, %v1555
        %v1557 = vpop.f32.mrb[0].mxu0
        %1558 = vmatprep.mubr.f32.mxu0 0.0
        %1559 = vmatmul.mubr.f32.gmra.mrb[0].mxu0 %v1402
        %v1560 = vpop.f32.mrb[0].mxu0
        %v1561 = vadd.f32 0.0, %v1560
        %v1562 = vpop.f32.mrb[0].mxu0
        %1563 = vmatprep.mubr.f32.mxu0 0.0
        %1564 = vmatmul.mubr.f32.gmra.mrb[0].mxu0 %v1404
        %v1565 = vpop.f32.mrb[0].mxu0
        %v1566 = vadd.f32 0.0, %v1565
        %v1567 = vpop.f32.mrb[0].mxu0
        %1568 = vmatprep.mubr.f32.mxu0 0.0
        %1569 = vmatmul.mubr.f32.gmra.mrb[0].mxu0 %v1406
        %v1570 = vpop.f32.mrb[0].mxu0
        %v1571 = vadd.f32 0.0, %v1570
        %v1572 = vpop.f32.mrb[0].mxu0
        %1573 = vmatprep.mubr.f32.mxu0 0.0
        %1574 = vmatmul.mubr.f32.gmra.mrb[0].mxu0 %v1408
        %v1575 = vpop.f32.mrb[0].mxu0
        %v1576 = vadd.f32 0.0, %v1575
        %v1577 = vpop.f32.mrb[0].mxu0
        %1578 = vmatprep.mubr.f32.mxu0 0.0
        %1579 = vmatmul.mubr.f32.gmra.mrb[0].mxu0 %v1410
        %v1580 = vpop.f32.mrb[0].mxu0
        %v1581 = vadd.f32 0.0, %v1580
        %v1582 = vpop.f32.mrb[0].mxu0
        %1583 = vmatprep.mubr.f32.mxu0 0.0
        %1584 = vmatmul.mubr.f32.gmra.mrb[0].mxu0 %v1412
        %v1585 = vpop.f32.mrb[0].mxu0
        %v1586 = vadd.f32 0.0, %v1585
        %v1587 = vpop.f32.mrb[0].mxu0
        %1588 = vmatprep.mubr.f32.mxu0 0.0
        %1589 = vmatmul.mubr.f32.gmra.mrb[0].mxu0 %v1414
        %v1590 = vpop.f32.mrb[0].mxu0
        %v1591 = vadd.f32 0.0, %v1590
        %v1592 = vpop.f32.mrb[0].mxu0
        %1593 = vmatprep.mubr.f32.mxu0 0.0
        %1594 = vmatmul.mubr.f32.gmra.mrb[0].mxu0 %v1416
        %v1595 = vpop.f32.mrb[0].mxu0
        %v1596 = vadd.f32 0.0, %v1595
        %v1597 = vpop.f32.mrb[0].mxu0
        %1598 = vmatprep.mubr.f32.mxu0 0.0
        %1599 = vmatmul.mubr.f32.gmra.mrb[0].mxu0 %v1418
        %v1600 = vpop.f32.mrb[0].mxu0
        %v1601 = vadd.f32 0.0, %v1600
        %v1602 = vpop.f32.mrb[0].mxu0
        %1603 = vmatprep.mubr.f32.mxu0 0.0
        %1604 = vmatmul.mubr.f32.gmra.mrb[0].mxu0 %v1420
        %v1605 = vpop.f32.mrb[0].mxu0
        %v1606 = vadd.f32 0.0, %v1605
        %v1607 = vpop.f32.mrb[0].mxu0
        %1608 = vmatprep.mubr.f32.mxu0 0.0
        %1609 = vmatmul.mubr.f32.gmra.mrb[0].mxu0 %v1422
        %v1610 = vpop.f32.mrb[0].mxu0
        %v1611 = vadd.f32 0.0, %v1610
        %v1612 = vpop.f32.mrb[0].mxu0
        %1613 = vmatprep.mubr.f32.mxu0 0.0
        %1614 = vmatmul.mubr.f32.gmra.mrb[0].mxu0 %v1424
        %v1615 = vpop.f32.mrb[0].mxu0
        %v1616 = vadd.f32 0.0, %v1615
        %v1617 = vpop.f32.mrb[0].mxu0
        %1618 = vmatprep.mubr.f32.mxu0 0.0
        %1619 = vmatmul.mubr.f32.gmra.mrb[0].mxu0 %v1426
        %v1620 = vpop.f32.mrb[0].mxu0
        %v1621 = vadd.f32 0.0, %v1620
        %v1622 = vpop.f32.mrb[0].mxu0
        %1623 = vmatprep.mubr.f32.mxu0 0.0
        %1624 = vmatmul.mubr.f32.gmra.mrb[0].mxu0 %v1428
        %v1625 = vpop.f32.mrb[0].mxu0
        %v1626 = vadd.f32 0.0, %v1625
        %v1627 = vpop.f32.mrb[0].mxu0
        %1628 = vmatprep.mubr.f32.mxu0 0.0
        %1629 = vmatmul.mubr.f32.gmra.mrb[0].mxu0 %v1430
        %v1630 = vpop.f32.mrb[0].mxu0
        %v1631 = vadd.f32 0.0, %v1630
        %v1632 = vpop.f32.mrb[0].mxu0
        %1633 = vmatprep.mubr.f32.mxu0 0.0
        %1634 = vmatmul.mubr.f32.gmra.mrb[0].mxu0 %v1432
        %v1635 = vpop.f32.mrb[0].mxu0
        %v1636 = vadd.f32 0.0, %v1635
        %v1637 = vpop.f32.mrb[0].mxu0
        %1638 = vmatprep.mubr.f32.mxu0 0.0
        %1639 = vmatmul.mubr.f32.gmra.mrb[0].mxu0 %v1434
        %v1640 = vpop.f32.mrb[0].mxu0
        %v1641 = vadd.f32 0.0, %v1640
        %v1642 = vpop.f32.mrb[0].mxu0
        %1643 = vmatprep.mubr.f32.mxu0 0.0
        %1644 = vmatmul.mubr.f32.gmra.mrb[0].mxu0 %v1436
        %v1645 = vpop.f32.mrb[0].mxu0
        %v1646 = vadd.f32 0.0, %v1645
        %v1647 = vpop.f32.mrb[0].mxu0
        %1648 = vmatprep.mubr.f32.mxu0 0.0
        %1649 = vmatmul.mubr.f32.gmra.mrb[0].mxu0 %v1438
        %v1650 = vpop.f32.mrb[0].mxu0
        %v1651 = vadd.f32 0.0, %v1650
        %v1652 = vpop.f32.mrb[0].mxu0
        %1653 = vmatprep.mubr.f32.mxu0 0.0
        %1654 = vmatmul.mubr.f32.gmra.mrb[0].mxu0 %v1440
        %v1655 = vpop.f32.mrb[0].mxu0
        %v1656 = vadd.f32 0.0, %v1655
        %v1657 = vpop.f32.mrb[0].mxu0
        %1658 = vmatprep.mubr.f32.mxu0 0.0
        %1659 = vmatmul.mubr.f32.gmra.mrb[0].mxu0 %v1442
        %v1660 = vpop.f32.mrb[0].mxu0
        %v1661 = vadd.f32 0.0, %v1660
        %v1662 = vpop.f32.mrb[0].mxu0
        %1663 = vmatprep.mubr.f32.mxu0 0.0
        %1664 = vmatmul.mubr.f32.gmra.mrb[0].mxu0 %v1444
        %v1665 = vpop.f32.mrb[0].mxu0
        %v1666 = vadd.f32 0.0, %v1665
        %v1667 = vpop.f32.mrb[0].mxu0
        %1668 = vmatprep.mubr.f32.mxu0 0.0
        %1669 = vmatmul.mubr.f32.gmra.mrb[0].mxu0 %v1446
        %v1670 = vpop.f32.mrb[0].mxu0
        %v1671 = vadd.f32 0.0, %v1670
        %v1672 = vpop.f32.mrb[0].mxu0
        %1673 = vmatprep.mubr.f32.mxu0 0.0
        %1674 = vmatmul.mubr.f32.gmra.mrb[0].mxu0 %v1448
        %v1675 = vpop.f32.mrb[0].mxu0
        %v1676 = vadd.f32 0.0, %v1675
        %v1677 = vpop.f32.mrb[0].mxu0
        %1678 = vmatprep.mubr.f32.mxu0 0.0
        %1679 = vmatmul.mubr.f32.gmra.mrb[0].mxu0 %v1450
        %v1680 = vpop.f32.mrb[0].mxu0
        %v1681 = vadd.f32 0.0, %v1680
        %v1682 = vpop.f32.mrb[0].mxu0
        %1683 = vmatprep.mubr.f32.mxu0 0.0
        %1684 = vmatmul.mubr.f32.gmra.mrb[0].mxu0 %v1452
        %v1685 = vpop.f32.mrb[0].mxu0
        %v1686 = vadd.f32 0.0, %v1685
        %v1687 = vpop.f32.mrb[0].mxu0
        %1688 = vmatprep.mubr.f32.mxu0 0.0
        %1689 = vmatmul.mubr.f32.gmra.mrb[0].mxu0 %v1454
        %v1690 = vpop.f32.mrb[0].mxu0
        %v1691 = vadd.f32 0.0, %v1690
        %v1692 = vpop.f32.mrb[0].mxu0
        %1693 = vmatprep.mubr.f32.mxu0 0.0
        %1694 = vmatmul.mubr.f32.gmra.mrb[0].mxu0 %v1456
        %v1695 = vpop.f32.mrb[0].mxu0
        %v1696 = vadd.f32 0.0, %v1695
        %v1697 = vpop.f32.mrb[0].mxu0
        %1698 = vmatprep.mubr.f32.mxu0 0.0
        %1699 = vmatmul.mubr.f32.gmra.mrb[0].mxu0 %v1458
        %v1700 = vpop.f32.mrb[0].mxu0
        %v1701 = vadd.f32 0.0, %v1700
        %v1702 = vpop.f32.mrb[0].mxu0
        %1703 = vdwg.mxu0
        %v1704 = vadd.f32 %v1232, %v1556
        %v1705 = vadd.f32 %v1237, %v1561
        %v1706 = vadd.f32 %v1242, %v1566
        %v1707 = vadd.f32 %v1247, %v1571
        %v1708 = vadd.f32 %v1252, %v1576
        %v1709 = vadd.f32 %v1257, %v1581
        %v1710 = vadd.f32 %v1262, %v1586
        %v1711 = vadd.f32 %v1267, %v1591
        %v1712 = vadd.f32 %v1272, %v1596
        %v1713 = vadd.f32 %v1277, %v1601
        %v1714 = vadd.f32 %v1282, %v1606
        %v1715 = vadd.f32 %v1287, %v1611
        %v1716 = vadd.f32 %v1292, %v1616
        %v1717 = vadd.f32 %v1297, %v1621
        %v1718 = vadd.f32 %v1302, %v1626
        %v1719 = vadd.f32 %v1307, %v1631
        %v1720 = vadd.f32 %v1312, %v1636
        %v1721 = vadd.f32 %v1317, %v1641
        %v1722 = vadd.f32 %v1322, %v1646
        %v1723 = vadd.f32 %v1327, %v1651
        %v1724 = vadd.f32 %v1332, %v1656
        %v1725 = vadd.f32 %v1337, %v1661
        %v1726 = vadd.f32 %v1342, %v1666
        %v1727 = vadd.f32 %v1347, %v1671
        %v1728 = vadd.f32 %v1352, %v1676
        %v1729 = vadd.f32 %v1357, %v1681
        %v1730 = vadd.f32 %v1362, %v1686
        %v1731 = vadd.f32 %v1367, %v1691
        %v1732 = vadd.f32 %v1372, %v1696
        %v1733 = vadd.f32 %v1377, %v1701
        %v1734 = vld [vmem:[#allocation13 + $0x180] sm:$0xff]
        %v1735 = vld [vmem:[#allocation13 + $0x188] sm:$0xff]
        %v1736 = vld [vmem:[#allocation13 + $0x190] sm:$0xff]
        %v1737 = vld [vmem:[#allocation13 + $0x198] sm:$0xff]
        %v1738 = vld [vmem:[#allocation13 + $0x1a0] sm:$0xff]
        %v1739 = vld [vmem:[#allocation13 + $0x1a8] sm:$0xff]
        %v1740 = vld [vmem:[#allocation13 + $0x1b0] sm:$0xff]
        %v1741 = vld [vmem:[#allocation13 + $0x1b8] sm:$0xff]
        %v1742 = vld [vmem:[#allocation13 + $0x1c0] sm:$0xff]
        %v1743 = vld [vmem:[#allocation13 + $0x1c8] sm:$0xff]
        %v1744 = vld [vmem:[#allocation13 + $0x1d0] sm:$0xff]
        %v1745 = vld [vmem:[#allocation13 + $0x1d8] sm:$0xff]
        %v1746 = vld [vmem:[#allocation13 + $0x1e0] sm:$0xff]
        %v1747 = vld [vmem:[#allocation13 + $0x1e8] sm:$0xff]
        %v1748 = vld [vmem:[#allocation13 + $0x1f0] sm:$0xff]
        %v1749 = vld [vmem:[#allocation13 + $0x1f8] sm:$0xff]
        %v1752 = vrot.slane %v788, 7
        %v1753 = vsel %vm1073, %v1133, %v1752
        %v1754 = vrot.slane %v789, 7
        %v1755 = vsel %vm1073, %v1752, %v1754
        %v1756 = vrot.slane %v790, 7
        %v1757 = vsel %vm1073, %v1754, %v1756
        %1761 = vmatprep.subr.mxu0 0.0
        %1762 = vmatpush1.msra.mxu0 %v1734
        %1763 = vmatprep.subr.mxu0 0.0
        %1764 = vmatpush1.msra.mxu0 %v1735
        %1765 = vmatprep.subr.mxu0 0.0
        %1766 = vmatpush1.msra.mxu0 %v1736
        %1767 = vmatprep.subr.mxu0 0.0
        %1768 = vmatpush1.msra.mxu0 %v1737
        %1769 = vmatprep.subr.mxu0 0.0
        %1770 = vmatpush1.msra.mxu0 %v1738
        %1771 = vmatprep.subr.mxu0 0.0
        %1772 = vmatpush1.msra.mxu0 %v1739
        %1773 = vmatprep.subr.mxu0 0.0
        %1774 = vmatpush1.msra.mxu0 %v1740
        %1775 = vmatprep.subr.mxu0 0.0
        %1776 = vmatpush1.msra.mxu0 %v1741
        %1777 = vmatprep.subr.mxu0 0.0
        %1778 = vmatpush1.msra.mxu0 %v1742
        %1779 = vmatprep.subr.mxu0 0.0
        %1780 = vmatpush1.msra.mxu0 %v1743
        %1781 = vmatprep.subr.mxu0 0.0
        %1782 = vmatpush1.msra.mxu0 %v1744
        %1783 = vmatprep.subr.mxu0 0.0
        %1784 = vmatpush1.msra.mxu0 %v1745
        %1785 = vmatprep.subr.mxu0 0.0
        %1786 = vmatpush1.msra.mxu0 %v1746
        %1787 = vmatprep.subr.mxu0 0.0
        %1788 = vmatpush1.msra.mxu0 %v1747
        %1789 = vmatprep.subr.mxu0 0.0
        %1790 = vmatpush1.msra.mxu0 %v1748
        %1791 = vmatprep.subr.mxu0 0.0
        %1792 = vmatpush1.msra.mxu0 %v1749
        %1793 = vmatprep.subr.mxu0 0.0
        %1794 = vmatpush1.msra.mxu0 0.0
        %1795 = vmatprep.subr.mxu0 0.0
        %1796 = vmatpush1.msra.mxu0 0.0
        %1797 = vmatprep.subr.mxu0 0.0
        %1798 = vmatpush1.msra.mxu0 0.0
        %1799 = vmatprep.subr.mxu0 0.0
        %1800 = vmatpush1.msra.mxu0 0.0
        %1801 = vmatprep.subr.mxu0 0.0
        %1802 = vmatpush1.msra.mxu0 0.0
        %1803 = vmatprep.subr.mxu0 0.0
        %1804 = vmatpush1.msra.mxu0 0.0
        %1805 = vmatprep.subr.mxu0 0.0
        %1806 = vmatpush1.msra.mxu0 0.0
        %1807 = vmatprep.subr.mxu0 0.0
        %1808 = vmatpush1.msra.mxu0 0.0
        %1809 = vmatprep.subr.mxu0 0.0
        %1810 = vmatpush1.msra.mxu0 0.0
        %1811 = vmatprep.subr.mxu0 0.0
        %1812 = vmatpush1.msra.mxu0 0.0
        %1813 = vmatprep.subr.mxu0 0.0
        %1814 = vmatpush1.msra.mxu0 0.0
        %1815 = vmatprep.subr.mxu0 0.0
        %1816 = vmatpush1.msra.mxu0 0.0
        %1817 = vmatprep.subr.mxu0 0.0
        %1818 = vmatpush1.msra.mxu0 0.0
        %1819 = vmatprep.subr.mxu0 0.0
        %1820 = vmatpush1.msra.mxu0 0.0
        %1821 = vmatprep.subr.mxu0 0.0
        %1822 = vmatpush1.msra.mxu0 0.0
        %1823 = vmatprep.subr.mxu0 0.0
        %1824 = vmatpush1.msra.mxu0 0.0
        %1825 = vmatprep.mubr.f32.mxu0 0.0
        %1826 = vmatmul.mubr.f32.gmra.mrb[0].mxu0 %v1082
        %v1827 = vpop.f32.mrb[0].mxu0
        %v1828 = vadd.f32 0.0, %v1827
        %v1829 = vpop.f32.mrb[0].mxu0
        %1830 = vmatprep.mubr.f32.mxu0 0.0
        %1831 = vmatmul.mubr.f32.gmra.mrb[0].mxu0 %v1084
        %v1832 = vpop.f32.mrb[0].mxu0
        %v1833 = vadd.f32 0.0, %v1832
        %v1834 = vpop.f32.mrb[0].mxu0
        %1835 = vmatprep.mubr.f32.mxu0 0.0
        %1836 = vmatmul.mubr.f32.gmra.mrb[0].mxu0 %v1086
        %v1837 = vpop.f32.mrb[0].mxu0
        %v1838 = vadd.f32 0.0, %v1837
        %v1839 = vpop.f32.mrb[0].mxu0
        %1840 = vmatprep.mubr.f32.mxu0 0.0
        %1841 = vmatmul.mubr.f32.gmra.mrb[0].mxu0 %v1088
        %v1842 = vpop.f32.mrb[0].mxu0
        %v1843 = vadd.f32 0.0, %v1842
        %v1844 = vpop.f32.mrb[0].mxu0
        %1845 = vmatprep.mubr.f32.mxu0 0.0
        %1846 = vmatmul.mubr.f32.gmra.mrb[0].mxu0 %v1090
        %v1847 = vpop.f32.mrb[0].mxu0
        %v1848 = vadd.f32 0.0, %v1847
        %v1849 = vpop.f32.mrb[0].mxu0
        %1850 = vmatprep.mubr.f32.mxu0 0.0
        %1851 = vmatmul.mubr.f32.gmra.mrb[0].mxu0 %v1092
        %v1852 = vpop.f32.mrb[0].mxu0
        %v1853 = vadd.f32 0.0, %v1852
        %v1854 = vpop.f32.mrb[0].mxu0
        %1855 = vmatprep.mubr.f32.mxu0 0.0
        %1856 = vmatmul.mubr.f32.gmra.mrb[0].mxu0 %v1094
        %v1857 = vpop.f32.mrb[0].mxu0
        %v1858 = vadd.f32 0.0, %v1857
        %v1859 = vpop.f32.mrb[0].mxu0
        %1860 = vmatprep.mubr.f32.mxu0 0.0
        %1861 = vmatmul.mubr.f32.gmra.mrb[0].mxu0 %v1096
        %v1862 = vpop.f32.mrb[0].mxu0
        %v1863 = vadd.f32 0.0, %v1862
        %v1864 = vpop.f32.mrb[0].mxu0
        %1865 = vmatprep.mubr.f32.mxu0 0.0
        %1866 = vmatmul.mubr.f32.gmra.mrb[0].mxu0 %v1098
        %v1867 = vpop.f32.mrb[0].mxu0
        %v1868 = vadd.f32 0.0, %v1867
        %v1869 = vpop.f32.mrb[0].mxu0
        %1870 = vmatprep.mubr.f32.mxu0 0.0
        %1871 = vmatmul.mubr.f32.gmra.mrb[0].mxu0 %v1100
        %v1872 = vpop.f32.mrb[0].mxu0
        %v1873 = vadd.f32 0.0, %v1872
        %v1874 = vpop.f32.mrb[0].mxu0
        %1875 = vmatprep.mubr.f32.mxu0 0.0
        %1876 = vmatmul.mubr.f32.gmra.mrb[0].mxu0 %v1102
        %v1877 = vpop.f32.mrb[0].mxu0
        %v1878 = vadd.f32 0.0, %v1877
        %v1879 = vpop.f32.mrb[0].mxu0
        %1880 = vmatprep.mubr.f32.mxu0 0.0
        %1881 = vmatmul.mubr.f32.gmra.mrb[0].mxu0 %v1104
        %v1882 = vpop.f32.mrb[0].mxu0
        %v1883 = vadd.f32 0.0, %v1882
        %v1884 = vpop.f32.mrb[0].mxu0
        %1885 = vmatprep.mubr.f32.mxu0 0.0
        %1886 = vmatmul.mubr.f32.gmra.mrb[0].mxu0 %v1106
        %v1887 = vpop.f32.mrb[0].mxu0
        %v1888 = vadd.f32 0.0, %v1887
        %v1889 = vpop.f32.mrb[0].mxu0
        %1890 = vmatprep.mubr.f32.mxu0 0.0
        %1891 = vmatmul.mubr.f32.gmra.mrb[0].mxu0 %v1108
        %v1892 = vpop.f32.mrb[0].mxu0
        %v1893 = vadd.f32 0.0, %v1892
        %v1894 = vpop.f32.mrb[0].mxu0
        %1895 = vmatprep.mubr.f32.mxu0 0.0
        %1896 = vmatmul.mubr.f32.gmra.mrb[0].mxu0 %v1110
        %v1897 = vpop.f32.mrb[0].mxu0
        %v1898 = vadd.f32 0.0, %v1897
        %v1899 = vpop.f32.mrb[0].mxu0
        %1900 = vmatprep.mubr.f32.mxu0 0.0
        %1901 = vmatmul.mubr.f32.gmra.mrb[0].mxu0 %v1112
        %v1902 = vpop.f32.mrb[0].mxu0
        %v1903 = vadd.f32 0.0, %v1902
        %v1904 = vpop.f32.mrb[0].mxu0
        %1905 = vmatprep.mubr.f32.mxu0 0.0
        %1906 = vmatmul.mubr.f32.gmra.mrb[0].mxu0 %v1114
        %v1907 = vpop.f32.mrb[0].mxu0
        %v1908 = vadd.f32 0.0, %v1907
        %v1909 = vpop.f32.mrb[0].mxu0
        %1910 = vmatprep.mubr.f32.mxu0 0.0
        %1911 = vmatmul.mubr.f32.gmra.mrb[0].mxu0 %v1116
        %v1912 = vpop.f32.mrb[0].mxu0
        %v1913 = vadd.f32 0.0, %v1912
        %v1914 = vpop.f32.mrb[0].mxu0
        %1915 = vmatprep.mubr.f32.mxu0 0.0
        %1916 = vmatmul.mubr.f32.gmra.mrb[0].mxu0 %v1118
        %v1917 = vpop.f32.mrb[0].mxu0
        %v1918 = vadd.f32 0.0, %v1917
        %v1919 = vpop.f32.mrb[0].mxu0
        %1920 = vmatprep.mubr.f32.mxu0 0.0
        %1921 = vmatmul.mubr.f32.gmra.mrb[0].mxu0 %v1120
        %v1922 = vpop.f32.mrb[0].mxu0
        %v1923 = vadd.f32 0.0, %v1922
        %v1924 = vpop.f32.mrb[0].mxu0
        %1925 = vmatprep.mubr.f32.mxu0 0.0
        %1926 = vmatmul.mubr.f32.gmra.mrb[0].mxu0 %v1122
        %v1927 = vpop.f32.mrb[0].mxu0
        %v1928 = vadd.f32 0.0, %v1927
        %v1929 = vpop.f32.mrb[0].mxu0
        %1930 = vmatprep.mubr.f32.mxu0 0.0
        %1931 = vmatmul.mubr.f32.gmra.mrb[0].mxu0 %v1124
        %v1932 = vpop.f32.mrb[0].mxu0
        %v1933 = vadd.f32 0.0, %v1932
        %v1934 = vpop.f32.mrb[0].mxu0
        %1935 = vmatprep.mubr.f32.mxu0 0.0
        %1936 = vmatmul.mubr.f32.gmra.mrb[0].mxu0 %v1126
        %v1937 = vpop.f32.mrb[0].mxu0
        %v1938 = vadd.f32 0.0, %v1937
        %v1939 = vpop.f32.mrb[0].mxu0
        %1940 = vmatprep.mubr.f32.mxu0 0.0
        %1941 = vmatmul.mubr.f32.gmra.mrb[0].mxu0 %v1128
        %v1942 = vpop.f32.mrb[0].mxu0
        %v1943 = vadd.f32 0.0, %v1942
        %v1944 = vpop.f32.mrb[0].mxu0
        %1945 = vmatprep.mubr.f32.mxu0 0.0
        %1946 = vmatmul.mubr.f32.gmra.mrb[0].mxu0 %v1130
        %v1947 = vpop.f32.mrb[0].mxu0
        %v1948 = vadd.f32 0.0, %v1947
        %v1949 = vpop.f32.mrb[0].mxu0
        %1950 = vmatprep.mubr.f32.mxu0 0.0
        %1951 = vmatmul.mubr.f32.gmra.mrb[0].mxu0 %v1132
        %v1952 = vpop.f32.mrb[0].mxu0
        %v1953 = vadd.f32 0.0, %v1952
        %v1954 = vpop.f32.mrb[0].mxu0
        %1955 = vmatprep.mubr.f32.mxu0 0.0
        %1956 = vmatmul.mubr.f32.gmra.mrb[0].mxu0 %v1134
        %v1957 = vpop.f32.mrb[0].mxu0
        %v1958 = vadd.f32 0.0, %v1957
        %v1959 = vpop.f32.mrb[0].mxu0
        %1960 = vmatprep.mubr.f32.mxu0 0.0
        %1961 = vmatmul.mubr.f32.gmra.mrb[0].mxu0 %v1753
        %v1962 = vpop.f32.mrb[0].mxu0
        %v1963 = vadd.f32 0.0, %v1962
        %v1964 = vpop.f32.mrb[0].mxu0
        %1965 = vmatprep.mubr.f32.mxu0 0.0
        %1966 = vmatmul.mubr.f32.gmra.mrb[0].mxu0 %v1755
        %v1967 = vpop.f32.mrb[0].mxu0
        %v1968 = vadd.f32 0.0, %v1967
        %v1969 = vpop.f32.mrb[0].mxu0
        %1970 = vmatprep.mubr.f32.mxu0 0.0
        %1971 = vmatmul.mubr.f32.gmra.mrb[0].mxu0 %v1757
        %v1972 = vpop.f32.mrb[0].mxu0
        %v1973 = vadd.f32 0.0, %v1972
        %v1974 = vpop.f32.mrb[0].mxu0
        %1975 = vdwg.mxu0
        %v1976 = vadd.f32 %v1704, %v1828
        %v1977 = vadd.f32 %v1705, %v1833
        %v1978 = vadd.f32 %v1706, %v1838
        %v1979 = vadd.f32 %v1707, %v1843
        %v1980 = vadd.f32 %v1708, %v1848
        %v1981 = vadd.f32 %v1709, %v1853
        %v1982 = vadd.f32 %v1710, %v1858
        %v1983 = vadd.f32 %v1711, %v1863
        %v1984 = vadd.f32 %v1712, %v1868
        %v1985 = vadd.f32 %v1713, %v1873
        %v1986 = vadd.f32 %v1714, %v1878
        %v1987 = vadd.f32 %v1715, %v1883
        %v1988 = vadd.f32 %v1716, %v1888
        %v1989 = vadd.f32 %v1717, %v1893
        %v1990 = vadd.f32 %v1718, %v1898
        %v1991 = vadd.f32 %v1719, %v1903
        %v1992 = vadd.f32 %v1720, %v1908
        %v1993 = vadd.f32 %v1721, %v1913
        %v1994 = vadd.f32 %v1722, %v1918
        %v1995 = vadd.f32 %v1723, %v1923
        %v1996 = vadd.f32 %v1724, %v1928
        %v1997 = vadd.f32 %v1725, %v1933
        %v1998 = vadd.f32 %v1726, %v1938
        %v1999 = vadd.f32 %v1727, %v1943
        %v2000 = vadd.f32 %v1728, %v1948
        %v2001 = vadd.f32 %v1729, %v1953
        %v2002 = vadd.f32 %v1730, %v1958
        %v2003 = vadd.f32 %v1731, %v1963
        %v2004 = vadd.f32 %v1732, %v1968
        %v2005 = vadd.f32 %v1733, %v1973
        %v2006 = vld [vmem:[#allocation13 + $0x200] sm:$0xff]
        %v2007 = vld [vmem:[#allocation13 + $0x208] sm:$0xff]
        %v2008 = vld [vmem:[#allocation13 + $0x210] sm:$0xff]
        %v2009 = vld [vmem:[#allocation13 + $0x218] sm:$0xff]
        %v2010 = vld [vmem:[#allocation13 + $0x220] sm:$0xff]
        %v2011 = vld [vmem:[#allocation13 + $0x228] sm:$0xff]
        %v2012 = vld [vmem:[#allocation13 + $0x230] sm:$0xff]
        %v2013 = vld [vmem:[#allocation13 + $0x238] sm:$0xff]
        %v2014 = vld [vmem:[#allocation13 + $0x240] sm:$0xff]
        %v2015 = vld [vmem:[#allocation13 + $0x248] sm:$0xff]
        %v2016 = vld [vmem:[#allocation13 + $0x250] sm:$0xff]
        %v2017 = vld [vmem:[#allocation13 + $0x258] sm:$0xff]
        %v2018 = vld [vmem:[#allocation13 + $0x260] sm:$0xff]
        %v2019 = vld [vmem:[#allocation13 + $0x268] sm:$0xff]
        %v2020 = vld [vmem:[#allocation13 + $0x270] sm:$0xff]
        %v2021 = vld [vmem:[#allocation13 + $0x278] sm:$0xff]
        %2022 = vmatprep.subr.mxu0 0.0
        %2023 = vmatpush1.msra.mxu0 %v2006
        %2024 = vmatprep.subr.mxu0 0.0
        %2025 = vmatpush1.msra.mxu0 %v2007
        %2026 = vmatprep.subr.mxu0 0.0
        %2027 = vmatpush1.msra.mxu0 %v2008
        %2028 = vmatprep.subr.mxu0 0.0
        %2029 = vmatpush1.msra.mxu0 %v2009
        %2030 = vmatprep.subr.mxu0 0.0
        %2031 = vmatpush1.msra.mxu0 %v2010
        %2032 = vmatprep.subr.mxu0 0.0
        %2033 = vmatpush1.msra.mxu0 %v2011
        %2034 = vmatprep.subr.mxu0 0.0
        %2035 = vmatpush1.msra.mxu0 %v2012
        %2036 = vmatprep.subr.mxu0 0.0
        %2037 = vmatpush1.msra.mxu0 %v2013
        %2038 = vmatprep.subr.mxu0 0.0
        %2039 = vmatpush1.msra.mxu0 %v2014
        %2040 = vmatprep.subr.mxu0 0.0
        %2041 = vmatpush1.msra.mxu0 %v2015
        %2042 = vmatprep.subr.mxu0 0.0
        %2043 = vmatpush1.msra.mxu0 %v2016
        %2044 = vmatprep.subr.mxu0 0.0
        %2045 = vmatpush1.msra.mxu0 %v2017
        %2046 = vmatprep.subr.mxu0 0.0
        %2047 = vmatpush1.msra.mxu0 %v2018
        %2048 = vmatprep.subr.mxu0 0.0
        %2049 = vmatpush1.msra.mxu0 %v2019
        %2050 = vmatprep.subr.mxu0 0.0
        %2051 = vmatpush1.msra.mxu0 %v2020
        %2052 = vmatprep.subr.mxu0 0.0
        %2053 = vmatpush1.msra.mxu0 %v2021
        %2054 = vmatprep.subr.mxu0 0.0
        %2055 = vmatpush1.msra.mxu0 0.0
        %2056 = vmatprep.subr.mxu0 0.0
        %2057 = vmatpush1.msra.mxu0 0.0
        %2058 = vmatprep.subr.mxu0 0.0
        %2059 = vmatpush1.msra.mxu0 0.0
        %2060 = vmatprep.subr.mxu0 0.0
        %2061 = vmatpush1.msra.mxu0 0.0
        %2062 = vmatprep.subr.mxu0 0.0
        %2063 = vmatpush1.msra.mxu0 0.0
        %2064 = vmatprep.subr.mxu0 0.0
        %2065 = vmatpush1.msra.mxu0 0.0
        %2066 = vmatprep.subr.mxu0 0.0
        %2067 = vmatpush1.msra.mxu0 0.0
        %2068 = vmatprep.subr.mxu0 0.0
        %2069 = vmatpush1.msra.mxu0 0.0
        %2070 = vmatprep.subr.mxu0 0.0
        %2071 = vmatpush1.msra.mxu0 0.0
        %2072 = vmatprep.subr.mxu0 0.0
        %2073 = vmatpush1.msra.mxu0 0.0
        %2074 = vmatprep.subr.mxu0 0.0
        %2075 = vmatpush1.msra.mxu0 0.0
        %2076 = vmatprep.subr.mxu0 0.0
        %2077 = vmatpush1.msra.mxu0 0.0
        %2078 = vmatprep.subr.mxu0 0.0
        %2079 = vmatpush1.msra.mxu0 0.0
        %2080 = vmatprep.subr.mxu0 0.0
        %2081 = vmatpush1.msra.mxu0 0.0
        %2082 = vmatprep.subr.mxu0 0.0
        %2083 = vmatpush1.msra.mxu0 0.0
        %2084 = vmatprep.subr.mxu0 0.0
        %2085 = vmatpush1.msra.mxu0 0.0
        %2086 = vmatprep.mubr.f32.mxu0 0.0
        %2087 = vmatmul.mubr.f32.gmra.mrb[0].mxu0 %v761
        %v2088 = vpop.f32.mrb[0].mxu0
        %v2089 = vadd.f32 0.0, %v2088
        %v2090 = vpop.f32.mrb[0].mxu0
        %2091 = vmatprep.mubr.f32.mxu0 0.0
        %2092 = vmatmul.mubr.f32.gmra.mrb[0].mxu0 %v762
        %v2093 = vpop.f32.mrb[0].mxu0
        %v2094 = vadd.f32 0.0, %v2093
        %v2095 = vpop.f32.mrb[0].mxu0
        %2096 = vmatprep.mubr.f32.mxu0 0.0
        %2097 = vmatmul.mubr.f32.gmra.mrb[0].mxu0 %v763
        %v2098 = vpop.f32.mrb[0].mxu0
        %v2099 = vadd.f32 0.0, %v2098
        %v2100 = vpop.f32.mrb[0].mxu0
        %2101 = vmatprep.mubr.f32.mxu0 0.0
        %2102 = vmatmul.mubr.f32.gmra.mrb[0].mxu0 %v764
        %v2103 = vpop.f32.mrb[0].mxu0
        %v2104 = vadd.f32 0.0, %v2103
        %v2105 = vpop.f32.mrb[0].mxu0
        %2106 = vmatprep.mubr.f32.mxu0 0.0
        %2107 = vmatmul.mubr.f32.gmra.mrb[0].mxu0 %v765
        %v2108 = vpop.f32.mrb[0].mxu0
        %v2109 = vadd.f32 0.0, %v2108
        %v2110 = vpop.f32.mrb[0].mxu0
        %2111 = vmatprep.mubr.f32.mxu0 0.0
        %2112 = vmatmul.mubr.f32.gmra.mrb[0].mxu0 %v766
        %v2113 = vpop.f32.mrb[0].mxu0
        %v2114 = vadd.f32 0.0, %v2113
        %v2115 = vpop.f32.mrb[0].mxu0
        %2116 = vmatprep.mubr.f32.mxu0 0.0
        %2117 = vmatmul.mubr.f32.gmra.mrb[0].mxu0 %v767
        %v2118 = vpop.f32.mrb[0].mxu0
        %v2119 = vadd.f32 0.0, %v2118
        %v2120 = vpop.f32.mrb[0].mxu0
        %2121 = vmatprep.mubr.f32.mxu0 0.0
        %2122 = vmatmul.mubr.f32.gmra.mrb[0].mxu0 %v768
        %v2123 = vpop.f32.mrb[0].mxu0
        %v2124 = vadd.f32 0.0, %v2123
        %v2125 = vpop.f32.mrb[0].mxu0
        %2126 = vmatprep.mubr.f32.mxu0 0.0
        %2127 = vmatmul.mubr.f32.gmra.mrb[0].mxu0 %v769
        %v2128 = vpop.f32.mrb[0].mxu0
        %v2129 = vadd.f32 0.0, %v2128
        %v2130 = vpop.f32.mrb[0].mxu0
        %2131 = vmatprep.mubr.f32.mxu0 0.0
        %2132 = vmatmul.mubr.f32.gmra.mrb[0].mxu0 %v770
        %v2133 = vpop.f32.mrb[0].mxu0
        %v2134 = vadd.f32 0.0, %v2133
        %v2135 = vpop.f32.mrb[0].mxu0
        %2136 = vmatprep.mubr.f32.mxu0 0.0
        %2137 = vmatmul.mubr.f32.gmra.mrb[0].mxu0 %v771
        %v2138 = vpop.f32.mrb[0].mxu0
        %v2139 = vadd.f32 0.0, %v2138
        %v2140 = vpop.f32.mrb[0].mxu0
        %2141 = vmatprep.mubr.f32.mxu0 0.0
        %2142 = vmatmul.mubr.f32.gmra.mrb[0].mxu0 %v772
        %v2143 = vpop.f32.mrb[0].mxu0
        %v2144 = vadd.f32 0.0, %v2143
        %v2145 = vpop.f32.mrb[0].mxu0
        %2146 = vmatprep.mubr.f32.mxu0 0.0
        %2147 = vmatmul.mubr.f32.gmra.mrb[0].mxu0 %v773
        %v2148 = vpop.f32.mrb[0].mxu0
        %v2149 = vadd.f32 0.0, %v2148
        %v2150 = vpop.f32.mrb[0].mxu0
        %2151 = vmatprep.mubr.f32.mxu0 0.0
        %2152 = vmatmul.mubr.f32.gmra.mrb[0].mxu0 %v774
        %v2153 = vpop.f32.mrb[0].mxu0
        %v2154 = vadd.f32 0.0, %v2153
        %v2155 = vpop.f32.mrb[0].mxu0
        %2156 = vmatprep.mubr.f32.mxu0 0.0
        %2157 = vmatmul.mubr.f32.gmra.mrb[0].mxu0 %v775
        %v2158 = vpop.f32.mrb[0].mxu0
        %v2159 = vadd.f32 0.0, %v2158
        %v2160 = vpop.f32.mrb[0].mxu0
        %2161 = vmatprep.mubr.f32.mxu0 0.0
        %2162 = vmatmul.mubr.f32.gmra.mrb[0].mxu0 %v776
        %v2163 = vpop.f32.mrb[0].mxu0
        %v2164 = vadd.f32 0.0, %v2163
        %v2165 = vpop.f32.mrb[0].mxu0
        %2166 = vmatprep.mubr.f32.mxu0 0.0
        %2167 = vmatmul.mubr.f32.gmra.mrb[0].mxu0 %v777
        %v2168 = vpop.f32.mrb[0].mxu0
        %v2169 = vadd.f32 0.0, %v2168
        %v2170 = vpop.f32.mrb[0].mxu0
        %2171 = vmatprep.mubr.f32.mxu0 0.0
        %2172 = vmatmul.mubr.f32.gmra.mrb[0].mxu0 %v778
        %v2173 = vpop.f32.mrb[0].mxu0
        %v2174 = vadd.f32 0.0, %v2173
        %v2175 = vpop.f32.mrb[0].mxu0
        %2176 = vmatprep.mubr.f32.mxu0 0.0
        %2177 = vmatmul.mubr.f32.gmra.mrb[0].mxu0 %v779
        %v2178 = vpop.f32.mrb[0].mxu0
        %v2179 = vadd.f32 0.0, %v2178
        %v2180 = vpop.f32.mrb[0].mxu0
        %2181 = vmatprep.mubr.f32.mxu0 0.0
        %2182 = vmatmul.mubr.f32.gmra.mrb[0].mxu0 %v780
        %v2183 = vpop.f32.mrb[0].mxu0
        %v2184 = vadd.f32 0.0, %v2183
        %v2185 = vpop.f32.mrb[0].mxu0
        %2186 = vmatprep.mubr.f32.mxu0 0.0
        %2187 = vmatmul.mubr.f32.gmra.mrb[0].mxu0 %v781
        %v2188 = vpop.f32.mrb[0].mxu0
        %v2189 = vadd.f32 0.0, %v2188
        %v2190 = vpop.f32.mrb[0].mxu0
        %2191 = vmatprep.mubr.f32.mxu0 0.0
        %2192 = vmatmul.mubr.f32.gmra.mrb[0].mxu0 %v782
        %v2193 = vpop.f32.mrb[0].mxu0
        %v2194 = vadd.f32 0.0, %v2193
        %v2195 = vpop.f32.mrb[0].mxu0
        %2196 = vmatprep.mubr.f32.mxu0 0.0
        %2197 = vmatmul.mubr.f32.gmra.mrb[0].mxu0 %v783
        %v2198 = vpop.f32.mrb[0].mxu0
        %v2199 = vadd.f32 0.0, %v2198
        %v2200 = vpop.f32.mrb[0].mxu0
        %2201 = vmatprep.mubr.f32.mxu0 0.0
        %2202 = vmatmul.mubr.f32.gmra.mrb[0].mxu0 %v784
        %v2203 = vpop.f32.mrb[0].mxu0
        %v2204 = vadd.f32 0.0, %v2203
        %v2205 = vpop.f32.mrb[0].mxu0
        %2206 = vmatprep.mubr.f32.mxu0 0.0
        %2207 = vmatmul.mubr.f32.gmra.mrb[0].mxu0 %v785
        %v2208 = vpop.f32.mrb[0].mxu0
        %v2209 = vadd.f32 0.0, %v2208
        %v2210 = vpop.f32.mrb[0].mxu0
        %2211 = vmatprep.mubr.f32.mxu0 0.0
        %2212 = vmatmul.mubr.f32.gmra.mrb[0].mxu0 %v786
        %v2213 = vpop.f32.mrb[0].mxu0
        %v2214 = vadd.f32 0.0, %v2213
        %v2215 = vpop.f32.mrb[0].mxu0
        %2216 = vmatprep.mubr.f32.mxu0 0.0
        %2217 = vmatmul.mubr.f32.gmra.mrb[0].mxu0 %v787
        %v2218 = vpop.f32.mrb[0].mxu0
        %v2219 = vadd.f32 0.0, %v2218
        %v2220 = vpop.f32.mrb[0].mxu0
        %2221 = vmatprep.mubr.f32.mxu0 0.0
        %2222 = vmatmul.mubr.f32.gmra.mrb[0].mxu0 %v788
        %v2223 = vpop.f32.mrb[0].mxu0
        %v2224 = vadd.f32 0.0, %v2223
        %v2225 = vpop.f32.mrb[0].mxu0
        %2226 = vmatprep.mubr.f32.mxu0 0.0
        %2227 = vmatmul.mubr.f32.gmra.mrb[0].mxu0 %v789
        %v2228 = vpop.f32.mrb[0].mxu0
        %v2229 = vadd.f32 0.0, %v2228
        %v2230 = vpop.f32.mrb[0].mxu0
        %2231 = vmatprep.mubr.f32.mxu0 0.0
        %2232 = vmatmul.mubr.f32.gmra.mrb[0].mxu0 %v790
        %v2233 = vpop.f32.mrb[0].mxu0
        %v2234 = vadd.f32 0.0, %v2233
        %v2235 = vpop.f32.mrb[0].mxu0
        %2236 = vdwg.mxu0
        %v2237 = vadd.f32 %v1976, %v2089
        %v2238 = vadd.f32 %v1977, %v2094
        %v2239 = vadd.f32 %v1978, %v2099
        %v2240 = vadd.f32 %v1979, %v2104
        %v2241 = vadd.f32 %v1980, %v2109
        %v2242 = vadd.f32 %v1981, %v2114
        %v2243 = vadd.f32 %v1982, %v2119
        %v2244 = vadd.f32 %v1983, %v2124
        %v2245 = vadd.f32 %v1984, %v2129
        %v2246 = vadd.f32 %v1985, %v2134
        %v2247 = vadd.f32 %v1986, %v2139
        %v2248 = vadd.f32 %v1987, %v2144
        %v2249 = vadd.f32 %v1988, %v2149
        %v2250 = vadd.f32 %v1989, %v2154
        %v2251 = vadd.f32 %v1990, %v2159
        %v2252 = vadd.f32 %v1991, %v2164
        %v2253 = vadd.f32 %v1992, %v2169
        %v2254 = vadd.f32 %v1993, %v2174
        %v2255 = vadd.f32 %v1994, %v2179
        %v2256 = vadd.f32 %v1995, %v2184
        %v2257 = vadd.f32 %v1996, %v2189
        %v2258 = vadd.f32 %v1997, %v2194
        %v2259 = vadd.f32 %v1998, %v2199
        %v2260 = vadd.f32 %v1999, %v2204
        %v2261 = vadd.f32 %v2000, %v2209
        %v2262 = vadd.f32 %v2001, %v2214
        %v2263 = vadd.f32 %v2002, %v2219
        %v2264 = vadd.f32 %v2003, %v2224
        %v2265 = vadd.f32 %v2004, %v2229
        %v2266 = vadd.f32 %v2005, %v2234
        %v2267 = vld [vmem:[#allocation13 + $0x280] sm:$0xff]
        %v2268 = vld [vmem:[#allocation13 + $0x288] sm:$0xff]
        %v2269 = vld [vmem:[#allocation13 + $0x290] sm:$0xff]
        %v2270 = vld [vmem:[#allocation13 + $0x298] sm:$0xff]
        %v2271 = vld [vmem:[#allocation13 + $0x2a0] sm:$0xff]
        %v2272 = vld [vmem:[#allocation13 + $0x2a8] sm:$0xff]
        %v2273 = vld [vmem:[#allocation13 + $0x2b0] sm:$0xff]
        %v2274 = vld [vmem:[#allocation13 + $0x2b8] sm:$0xff]
        %v2275 = vld [vmem:[#allocation13 + $0x2c0] sm:$0xff]
        %v2276 = vld [vmem:[#allocation13 + $0x2c8] sm:$0xff]
        %v2277 = vld [vmem:[#allocation13 + $0x2d0] sm:$0xff]
        %v2278 = vld [vmem:[#allocation13 + $0x2d8] sm:$0xff]
        %v2279 = vld [vmem:[#allocation13 + $0x2e0] sm:$0xff]
        %v2280 = vld [vmem:[#allocation13 + $0x2e8] sm:$0xff]
        %v2281 = vld [vmem:[#allocation13 + $0x2f0] sm:$0xff]
        %v2282 = vld [vmem:[#allocation13 + $0x2f8] sm:$0xff]
        %v2284 = vrot.slane %v789, 1
        %v2285 = vsel %vm1397, %v1457, %v2284
        %v2286 = vrot.slane %v790, 1
        %v2287 = vsel %vm1397, %v2284, %v2286
        %v2288 = vrot.slane %v791, 1
        %v2289 = vsel %vm1397, %v2286, %v2288
        %2293 = vmatprep.subr.mxu0 0.0
        %2294 = vmatpush1.msra.mxu0 %v2267
        %2295 = vmatprep.subr.mxu0 0.0
        %2296 = vmatpush1.msra.mxu0 %v2268
        %2297 = vmatprep.subr.mxu0 0.0
        %2298 = vmatpush1.msra.mxu0 %v2269
        %2299 = vmatprep.subr.mxu0 0.0
        %2300 = vmatpush1.msra.mxu0 %v2270
        %2301 = vmatprep.subr.mxu0 0.0
        %2302 = vmatpush1.msra.mxu0 %v2271
        %2303 = vmatprep.subr.mxu0 0.0
        %2304 = vmatpush1.msra.mxu0 %v2272
        %2305 = vmatprep.subr.mxu0 0.0
        %2306 = vmatpush1.msra.mxu0 %v2273
        %2307 = vmatprep.subr.mxu0 0.0
        %2308 = vmatpush1.msra.mxu0 %v2274
        %2309 = vmatprep.subr.mxu0 0.0
        %2310 = vmatpush1.msra.mxu0 %v2275
        %2311 = vmatprep.subr.mxu0 0.0
        %2312 = vmatpush1.msra.mxu0 %v2276
        %2313 = vmatprep.subr.mxu0 0.0
        %2314 = vmatpush1.msra.mxu0 %v2277
        %2315 = vmatprep.subr.mxu0 0.0
        %2316 = vmatpush1.msra.mxu0 %v2278
        %2317 = vmatprep.subr.mxu0 0.0
        %2318 = vmatpush1.msra.mxu0 %v2279
        %2319 = vmatprep.subr.mxu0 0.0
        %2320 = vmatpush1.msra.mxu0 %v2280
        %2321 = vmatprep.subr.mxu0 0.0
        %2322 = vmatpush1.msra.mxu0 %v2281
        %2323 = vmatprep.subr.mxu0 0.0
        %2324 = vmatpush1.msra.mxu0 %v2282
        %2325 = vmatprep.subr.mxu0 0.0
        %2326 = vmatpush1.msra.mxu0 0.0
        %2327 = vmatprep.subr.mxu0 0.0
        %2328 = vmatpush1.msra.mxu0 0.0
        %2329 = vmatprep.subr.mxu0 0.0
        %2330 = vmatpush1.msra.mxu0 0.0
        %2331 = vmatprep.subr.mxu0 0.0
        %2332 = vmatpush1.msra.mxu0 0.0
        %2333 = vmatprep.subr.mxu0 0.0
        %2334 = vmatpush1.msra.mxu0 0.0
        %2335 = vmatprep.subr.mxu0 0.0
        %2336 = vmatpush1.msra.mxu0 0.0
        %2337 = vmatprep.subr.mxu0 0.0
        %2338 = vmatpush1.msra.mxu0 0.0
        %2339 = vmatprep.subr.mxu0 0.0
        %2340 = vmatpush1.msra.mxu0 0.0
        %2341 = vmatprep.subr.mxu0 0.0
        %2342 = vmatpush1.msra.mxu0 0.0
        %2343 = vmatprep.subr.mxu0 0.0
        %2344 = vmatpush1.msra.mxu0 0.0
        %2345 = vmatprep.subr.mxu0 0.0
        %2346 = vmatpush1.msra.mxu0 0.0
        %2347 = vmatprep.subr.mxu0 0.0
        %2348 = vmatpush1.msra.mxu0 0.0
        %2349 = vmatprep.subr.mxu0 0.0
        %2350 = vmatpush1.msra.mxu0 0.0
        %2351 = vmatprep.subr.mxu0 0.0
        %2352 = vmatpush1.msra.mxu0 0.0
        %2353 = vmatprep.subr.mxu0 0.0
        %2354 = vmatpush1.msra.mxu0 0.0
        %2355 = vmatprep.subr.mxu0 0.0
        %2356 = vmatpush1.msra.mxu0 0.0
        %2357 = vmatprep.mubr.f32.mxu0 0.0
        %2358 = vmatmul.mubr.f32.gmra.mrb[0].mxu0 %v1406
        %v2359 = vpop.f32.mrb[0].mxu0
        %v2360 = vadd.f32 0.0, %v2359
        %v2361 = vpop.f32.mrb[0].mxu0
        %2362 = vmatprep.mubr.f32.mxu0 0.0
        %2363 = vmatmul.mubr.f32.gmra.mrb[0].mxu0 %v1408
        %v2364 = vpop.f32.mrb[0].mxu0
        %v2365 = vadd.f32 0.0, %v2364
        %v2366 = vpop.f32.mrb[0].mxu0
        %2367 = vmatprep.mubr.f32.mxu0 0.0
        %2368 = vmatmul.mubr.f32.gmra.mrb[0].mxu0 %v1410
        %v2369 = vpop.f32.mrb[0].mxu0
        %v2370 = vadd.f32 0.0, %v2369
        %v2371 = vpop.f32.mrb[0].mxu0
        %2372 = vmatprep.mubr.f32.mxu0 0.0
        %2373 = vmatmul.mubr.f32.gmra.mrb[0].mxu0 %v1412
        %v2374 = vpop.f32.mrb[0].mxu0
        %v2375 = vadd.f32 0.0, %v2374
        %v2376 = vpop.f32.mrb[0].mxu0
        %2377 = vmatprep.mubr.f32.mxu0 0.0
        %2378 = vmatmul.mubr.f32.gmra.mrb[0].mxu0 %v1414
        %v2379 = vpop.f32.mrb[0].mxu0
        %v2380 = vadd.f32 0.0, %v2379
        %v2381 = vpop.f32.mrb[0].mxu0
        %2382 = vmatprep.mubr.f32.mxu0 0.0
        %2383 = vmatmul.mubr.f32.gmra.mrb[0].mxu0 %v1416
        %v2384 = vpop.f32.mrb[0].mxu0
        %v2385 = vadd.f32 0.0, %v2384
        %v2386 = vpop.f32.mrb[0].mxu0
        %2387 = vmatprep.mubr.f32.mxu0 0.0
        %2388 = vmatmul.mubr.f32.gmra.mrb[0].mxu0 %v1418
        %v2389 = vpop.f32.mrb[0].mxu0
        %v2390 = vadd.f32 0.0, %v2389
        %v2391 = vpop.f32.mrb[0].mxu0
        %2392 = vmatprep.mubr.f32.mxu0 0.0
        %2393 = vmatmul.mubr.f32.gmra.mrb[0].mxu0 %v1420
        %v2394 = vpop.f32.mrb[0].mxu0
        %v2395 = vadd.f32 0.0, %v2394
        %v2396 = vpop.f32.mrb[0].mxu0
        %2397 = vmatprep.mubr.f32.mxu0 0.0
        %2398 = vmatmul.mubr.f32.gmra.mrb[0].mxu0 %v1422
        %v2399 = vpop.f32.mrb[0].mxu0
        %v2400 = vadd.f32 0.0, %v2399
        %v2401 = vpop.f32.mrb[0].mxu0
        %2402 = vmatprep.mubr.f32.mxu0 0.0
        %2403 = vmatmul.mubr.f32.gmra.mrb[0].mxu0 %v1424
        %v2404 = vpop.f32.mrb[0].mxu0
        %v2405 = vadd.f32 0.0, %v2404
        %v2406 = vpop.f32.mrb[0].mxu0
        %2407 = vmatprep.mubr.f32.mxu0 0.0
        %2408 = vmatmul.mubr.f32.gmra.mrb[0].mxu0 %v1426
        %v2409 = vpop.f32.mrb[0].mxu0
        %v2410 = vadd.f32 0.0, %v2409
        %v2411 = vpop.f32.mrb[0].mxu0
        %2412 = vmatprep.mubr.f32.mxu0 0.0
        %2413 = vmatmul.mubr.f32.gmra.mrb[0].mxu0 %v1428
        %v2414 = vpop.f32.mrb[0].mxu0
        %v2415 = vadd.f32 0.0, %v2414
        %v2416 = vpop.f32.mrb[0].mxu0
        %2417 = vmatprep.mubr.f32.mxu0 0.0
        %2418 = vmatmul.mubr.f32.gmra.mrb[0].mxu0 %v1430
        %v2419 = vpop.f32.mrb[0].mxu0
        %v2420 = vadd.f32 0.0, %v2419
        %v2421 = vpop.f32.mrb[0].mxu0
        %2422 = vmatprep.mubr.f32.mxu0 0.0
        %2423 = vmatmul.mubr.f32.gmra.mrb[0].mxu0 %v1432
        %v2424 = vpop.f32.mrb[0].mxu0
        %v2425 = vadd.f32 0.0, %v2424
        %v2426 = vpop.f32.mrb[0].mxu0
        %2427 = vmatprep.mubr.f32.mxu0 0.0
        %2428 = vmatmul.mubr.f32.gmra.mrb[0].mxu0 %v1434
        %v2429 = vpop.f32.mrb[0].mxu0
        %v2430 = vadd.f32 0.0, %v2429
        %v2431 = vpop.f32.mrb[0].mxu0
        %2432 = vmatprep.mubr.f32.mxu0 0.0
        %2433 = vmatmul.mubr.f32.gmra.mrb[0].mxu0 %v1436
        %v2434 = vpop.f32.mrb[0].mxu0
        %v2435 = vadd.f32 0.0, %v2434
        %v2436 = vpop.f32.mrb[0].mxu0
        %2437 = vmatprep.mubr.f32.mxu0 0.0
        %2438 = vmatmul.mubr.f32.gmra.mrb[0].mxu0 %v1438
        %v2439 = vpop.f32.mrb[0].mxu0
        %v2440 = vadd.f32 0.0, %v2439
        %v2441 = vpop.f32.mrb[0].mxu0
        %2442 = vmatprep.mubr.f32.mxu0 0.0
        %2443 = vmatmul.mubr.f32.gmra.mrb[0].mxu0 %v1440
        %v2444 = vpop.f32.mrb[0].mxu0
        %v2445 = vadd.f32 0.0, %v2444
        %v2446 = vpop.f32.mrb[0].mxu0
        %2447 = vmatprep.mubr.f32.mxu0 0.0
        %2448 = vmatmul.mubr.f32.gmra.mrb[0].mxu0 %v1442
        %v2449 = vpop.f32.mrb[0].mxu0
        %v2450 = vadd.f32 0.0, %v2449
        %v2451 = vpop.f32.mrb[0].mxu0
        %2452 = vmatprep.mubr.f32.mxu0 0.0
        %2453 = vmatmul.mubr.f32.gmra.mrb[0].mxu0 %v1444
        %v2454 = vpop.f32.mrb[0].mxu0
        %v2455 = vadd.f32 0.0, %v2454
        %v2456 = vpop.f32.mrb[0].mxu0
        %2457 = vmatprep.mubr.f32.mxu0 0.0
        %2458 = vmatmul.mubr.f32.gmra.mrb[0].mxu0 %v1446
        %v2459 = vpop.f32.mrb[0].mxu0
        %v2460 = vadd.f32 0.0, %v2459
        %v2461 = vpop.f32.mrb[0].mxu0
        %2462 = vmatprep.mubr.f32.mxu0 0.0
        %2463 = vmatmul.mubr.f32.gmra.mrb[0].mxu0 %v1448
        %v2464 = vpop.f32.mrb[0].mxu0
        %v2465 = vadd.f32 0.0, %v2464
        %v2466 = vpop.f32.mrb[0].mxu0
        %2467 = vmatprep.mubr.f32.mxu0 0.0
        %2468 = vmatmul.mubr.f32.gmra.mrb[0].mxu0 %v1450
        %v2469 = vpop.f32.mrb[0].mxu0
        %v2470 = vadd.f32 0.0, %v2469
        %v2471 = vpop.f32.mrb[0].mxu0
        %2472 = vmatprep.mubr.f32.mxu0 0.0
        %2473 = vmatmul.mubr.f32.gmra.mrb[0].mxu0 %v1452
        %v2474 = vpop.f32.mrb[0].mxu0
        %v2475 = vadd.f32 0.0, %v2474
        %v2476 = vpop.f32.mrb[0].mxu0
        %2477 = vmatprep.mubr.f32.mxu0 0.0
        %2478 = vmatmul.mubr.f32.gmra.mrb[0].mxu0 %v1454
        %v2479 = vpop.f32.mrb[0].mxu0
        %v2480 = vadd.f32 0.0, %v2479
        %v2481 = vpop.f32.mrb[0].mxu0
        %2482 = vmatprep.mubr.f32.mxu0 0.0
        %2483 = vmatmul.mubr.f32.gmra.mrb[0].mxu0 %v1456
        %v2484 = vpop.f32.mrb[0].mxu0
        %v2485 = vadd.f32 0.0, %v2484
        %v2486 = vpop.f32.mrb[0].mxu0
        %2487 = vmatprep.mubr.f32.mxu0 0.0
        %2488 = vmatmul.mubr.f32.gmra.mrb[0].mxu0 %v1458
        %v2489 = vpop.f32.mrb[0].mxu0
        %v2490 = vadd.f32 0.0, %v2489
        %v2491 = vpop.f32.mrb[0].mxu0
        %2492 = vmatprep.mubr.f32.mxu0 0.0
        %2493 = vmatmul.mubr.f32.gmra.mrb[0].mxu0 %v2285
        %v2494 = vpop.f32.mrb[0].mxu0
        %v2495 = vadd.f32 0.0, %v2494
        %v2496 = vpop.f32.mrb[0].mxu0
        %2497 = vmatprep.mubr.f32.mxu0 0.0
        %2498 = vmatmul.mubr.f32.gmra.mrb[0].mxu0 %v2287
        %v2499 = vpop.f32.mrb[0].mxu0
        %v2500 = vadd.f32 0.0, %v2499
        %v2501 = vpop.f32.mrb[0].mxu0
        %2502 = vmatprep.mubr.f32.mxu0 0.0
        %2503 = vmatmul.mubr.f32.gmra.mrb[0].mxu0 %v2289
        %v2504 = vpop.f32.mrb[0].mxu0
        %v2505 = vadd.f32 0.0, %v2504
        %v2506 = vpop.f32.mrb[0].mxu0
        %2507 = vdwg.mxu0
        %v2508 = vadd.f32 %v2237, %v2360
        %v2509 = vadd.f32 %v2238, %v2365
        %v2510 = vadd.f32 %v2239, %v2370
        %v2511 = vadd.f32 %v2240, %v2375
        %v2512 = vadd.f32 %v2241, %v2380
        %v2513 = vadd.f32 %v2242, %v2385
        %v2514 = vadd.f32 %v2243, %v2390
        %v2515 = vadd.f32 %v2244, %v2395
        %v2516 = vadd.f32 %v2245, %v2400
        %v2517 = vadd.f32 %v2246, %v2405
        %v2518 = vadd.f32 %v2247, %v2410
        %v2519 = vadd.f32 %v2248, %v2415
        %v2520 = vadd.f32 %v2249, %v2420
        %v2521 = vadd.f32 %v2250, %v2425
        %v2522 = vadd.f32 %v2251, %v2430
        %v2523 = vadd.f32 %v2252, %v2435
        %v2524 = vadd.f32 %v2253, %v2440
        %v2525 = vadd.f32 %v2254, %v2445
        %v2526 = vadd.f32 %v2255, %v2450
        %v2527 = vadd.f32 %v2256, %v2455
        %v2528 = vadd.f32 %v2257, %v2460
        %v2529 = vadd.f32 %v2258, %v2465
        %v2530 = vadd.f32 %v2259, %v2470
        %v2531 = vadd.f32 %v2260, %v2475
        %v2532 = vadd.f32 %v2261, %v2480
        %v2533 = vadd.f32 %v2262, %v2485
        %v2534 = vadd.f32 %v2263, %v2490
        %v2535 = vadd.f32 %v2264, %v2495
        %v2536 = vadd.f32 %v2265, %v2500
        %v2537 = vadd.f32 %v2266, %v2505
        %v2538 = vld [vmem:[#allocation13 + $0x300] sm:$0xff]
        %v2539 = vld [vmem:[#allocation13 + $0x308] sm:$0xff]
        %v2540 = vld [vmem:[#allocation13 + $0x310] sm:$0xff]
        %v2541 = vld [vmem:[#allocation13 + $0x318] sm:$0xff]
        %v2542 = vld [vmem:[#allocation13 + $0x320] sm:$0xff]
        %v2543 = vld [vmem:[#allocation13 + $0x328] sm:$0xff]
        %v2544 = vld [vmem:[#allocation13 + $0x330] sm:$0xff]
        %v2545 = vld [vmem:[#allocation13 + $0x338] sm:$0xff]
        %v2546 = vld [vmem:[#allocation13 + $0x340] sm:$0xff]
        %v2547 = vld [vmem:[#allocation13 + $0x348] sm:$0xff]
        %v2548 = vld [vmem:[#allocation13 + $0x350] sm:$0xff]
        %v2549 = vld [vmem:[#allocation13 + $0x358] sm:$0xff]
        %v2550 = vld [vmem:[#allocation13 + $0x360] sm:$0xff]
        %v2551 = vld [vmem:[#allocation13 + $0x368] sm:$0xff]
        %v2552 = vld [vmem:[#allocation13 + $0x370] sm:$0xff]
        %v2553 = vld [vmem:[#allocation13 + $0x378] sm:$0xff]
        %v2556 = vrot.slane %v791, 7
        %v2557 = vsel %vm1073, %v1756, %v2556
        %v2558 = vrot.slane %v792, 7
        %v2559 = vsel %vm1073, %v2556, %v2558
        %v2560 = vrot.slane %v793, 7
        %v2561 = vsel %vm1073, %v2558, %v2560
        %2565 = vmatprep.subr.mxu0 0.0
        %2566 = vmatpush1.msra.mxu0 %v2538
        %2567 = vmatprep.subr.mxu0 0.0
        %2568 = vmatpush1.msra.mxu0 %v2539
        %2569 = vmatprep.subr.mxu0 0.0
        %2570 = vmatpush1.msra.mxu0 %v2540
        %2571 = vmatprep.subr.mxu0 0.0
        %2572 = vmatpush1.msra.mxu0 %v2541
        %2573 = vmatprep.subr.mxu0 0.0
        %2574 = vmatpush1.msra.mxu0 %v2542
        %2575 = vmatprep.subr.mxu0 0.0
        %2576 = vmatpush1.msra.mxu0 %v2543
        %2577 = vmatprep.subr.mxu0 0.0
        %2578 = vmatpush1.msra.mxu0 %v2544
        %2579 = vmatprep.subr.mxu0 0.0
        %2580 = vmatpush1.msra.mxu0 %v2545
        %2581 = vmatprep.subr.mxu0 0.0
        %2582 = vmatpush1.msra.mxu0 %v2546
        %2583 = vmatprep.subr.mxu0 0.0
        %2584 = vmatpush1.msra.mxu0 %v2547
        %2585 = vmatprep.subr.mxu0 0.0
        %2586 = vmatpush1.msra.mxu0 %v2548
        %2587 = vmatprep.subr.mxu0 0.0
        %2588 = vmatpush1.msra.mxu0 %v2549
        %2589 = vmatprep.subr.mxu0 0.0
        %2590 = vmatpush1.msra.mxu0 %v2550
        %2591 = vmatprep.subr.mxu0 0.0
        %2592 = vmatpush1.msra.mxu0 %v2551
        %2593 = vmatprep.subr.mxu0 0.0
        %2594 = vmatpush1.msra.mxu0 %v2552
        %2595 = vmatprep.subr.mxu0 0.0
        %2596 = vmatpush1.msra.mxu0 %v2553
        %2597 = vmatprep.subr.mxu0 0.0
        %2598 = vmatpush1.msra.mxu0 0.0
        %2599 = vmatprep.subr.mxu0 0.0
        %2600 = vmatpush1.msra.mxu0 0.0
        %2601 = vmatprep.subr.mxu0 0.0
        %2602 = vmatpush1.msra.mxu0 0.0
        %2603 = vmatprep.subr.mxu0 0.0
        %2604 = vmatpush1.msra.mxu0 0.0
        %2605 = vmatprep.subr.mxu0 0.0
        %2606 = vmatpush1.msra.mxu0 0.0
        %2607 = vmatprep.subr.mxu0 0.0
        %2608 = vmatpush1.msra.mxu0 0.0
        %2609 = vmatprep.subr.mxu0 0.0
        %2610 = vmatpush1.msra.mxu0 0.0
        %2611 = vmatprep.subr.mxu0 0.0
        %2612 = vmatpush1.msra.mxu0 0.0
        %2613 = vmatprep.subr.mxu0 0.0
        %2614 = vmatpush1.msra.mxu0 0.0
        %2615 = vmatprep.subr.mxu0 0.0
        %2616 = vmatpush1.msra.mxu0 0.0
        %2617 = vmatprep.subr.mxu0 0.0
        %2618 = vmatpush1.msra.mxu0 0.0
        %2619 = vmatprep.subr.mxu0 0.0
        %2620 = vmatpush1.msra.mxu0 0.0
        %2621 = vmatprep.subr.mxu0 0.0
        %2622 = vmatpush1.msra.mxu0 0.0
        %2623 = vmatprep.subr.mxu0 0.0
        %2624 = vmatpush1.msra.mxu0 0.0
        %2625 = vmatprep.subr.mxu0 0.0
        %2626 = vmatpush1.msra.mxu0 0.0
        %2627 = vmatprep.subr.mxu0 0.0
        %2628 = vmatpush1.msra.mxu0 0.0
        %2629 = vmatprep.mubr.f32.mxu0 0.0
        %2630 = vmatmul.mubr.f32.gmra.mrb[0].mxu0 %v1088
        %v2631 = vpop.f32.mrb[0].mxu0
        %v2632 = vadd.f32 0.0, %v2631
        %v2633 = vpop.f32.mrb[0].mxu0
        %2634 = vmatprep.mubr.f32.mxu0 0.0
        %2635 = vmatmul.mubr.f32.gmra.mrb[0].mxu0 %v1090
        %v2636 = vpop.f32.mrb[0].mxu0
        %v2637 = vadd.f32 0.0, %v2636
        %v2638 = vpop.f32.mrb[0].mxu0
        %2639 = vmatprep.mubr.f32.mxu0 0.0
        %2640 = vmatmul.mubr.f32.gmra.mrb[0].mxu0 %v1092
        %v2641 = vpop.f32.mrb[0].mxu0
        %v2642 = vadd.f32 0.0, %v2641
        %v2643 = vpop.f32.mrb[0].mxu0
        %2644 = vmatprep.mubr.f32.mxu0 0.0
        %2645 = vmatmul.mubr.f32.gmra.mrb[0].mxu0 %v1094
        %v2646 = vpop.f32.mrb[0].mxu0
        %v2647 = vadd.f32 0.0, %v2646
        %v2648 = vpop.f32.mrb[0].mxu0
        %2649 = vmatprep.mubr.f32.mxu0 0.0
        %2650 = vmatmul.mubr.f32.gmra.mrb[0].mxu0 %v1096
        %v2651 = vpop.f32.mrb[0].mxu0
        %v2652 = vadd.f32 0.0, %v2651
        %v2653 = vpop.f32.mrb[0].mxu0
        %2654 = vmatprep.mubr.f32.mxu0 0.0
        %2655 = vmatmul.mubr.f32.gmra.mrb[0].mxu0 %v1098
        %v2656 = vpop.f32.mrb[0].mxu0
        %v2657 = vadd.f32 0.0, %v2656
        %v2658 = vpop.f32.mrb[0].mxu0
        %2659 = vmatprep.mubr.f32.mxu0 0.0
        %2660 = vmatmul.mubr.f32.gmra.mrb[0].mxu0 %v1100
        %v2661 = vpop.f32.mrb[0].mxu0
        %v2662 = vadd.f32 0.0, %v2661
        %v2663 = vpop.f32.mrb[0].mxu0
        %2664 = vmatprep.mubr.f32.mxu0 0.0
        %2665 = vmatmul.mubr.f32.gmra.mrb[0].mxu0 %v1102
        %v2666 = vpop.f32.mrb[0].mxu0
        %v2667 = vadd.f32 0.0, %v2666
        %v2668 = vpop.f32.mrb[0].mxu0
        %2669 = vmatprep.mubr.f32.mxu0 0.0
        %2670 = vmatmul.mubr.f32.gmra.mrb[0].mxu0 %v1104
        %v2671 = vpop.f32.mrb[0].mxu0
        %v2672 = vadd.f32 0.0, %v2671
        %v2673 = vpop.f32.mrb[0].mxu0
        %2674 = vmatprep.mubr.f32.mxu0 0.0
        %2675 = vmatmul.mubr.f32.gmra.mrb[0].mxu0 %v1106
        %v2676 = vpop.f32.mrb[0].mxu0
        %v2677 = vadd.f32 0.0, %v2676
        %v2678 = vpop.f32.mrb[0].mxu0
        %2679 = vmatprep.mubr.f32.mxu0 0.0
        %2680 = vmatmul.mubr.f32.gmra.mrb[0].mxu0 %v1108
        %v2681 = vpop.f32.mrb[0].mxu0
        %v2682 = vadd.f32 0.0, %v2681
        %v2683 = vpop.f32.mrb[0].mxu0
        %2684 = vmatprep.mubr.f32.mxu0 0.0
        %2685 = vmatmul.mubr.f32.gmra.mrb[0].mxu0 %v1110
        %v2686 = vpop.f32.mrb[0].mxu0
        %v2687 = vadd.f32 0.0, %v2686
        %v2688 = vpop.f32.mrb[0].mxu0
        %2689 = vmatprep.mubr.f32.mxu0 0.0
        %2690 = vmatmul.mubr.f32.gmra.mrb[0].mxu0 %v1112
        %v2691 = vpop.f32.mrb[0].mxu0
        %v2692 = vadd.f32 0.0, %v2691
        %v2693 = vpop.f32.mrb[0].mxu0
        %2694 = vmatprep.mubr.f32.mxu0 0.0
        %2695 = vmatmul.mubr.f32.gmra.mrb[0].mxu0 %v1114
        %v2696 = vpop.f32.mrb[0].mxu0
        %v2697 = vadd.f32 0.0, %v2696
        %v2698 = vpop.f32.mrb[0].mxu0
        %2699 = vmatprep.mubr.f32.mxu0 0.0
        %2700 = vmatmul.mubr.f32.gmra.mrb[0].mxu0 %v1116
        %v2701 = vpop.f32.mrb[0].mxu0
        %v2702 = vadd.f32 0.0, %v2701
        %v2703 = vpop.f32.mrb[0].mxu0
        %2704 = vmatprep.mubr.f32.mxu0 0.0
        %2705 = vmatmul.mubr.f32.gmra.mrb[0].mxu0 %v1118
        %v2706 = vpop.f32.mrb[0].mxu0
        %v2707 = vadd.f32 0.0, %v2706
        %v2708 = vpop.f32.mrb[0].mxu0
        %2709 = vmatprep.mubr.f32.mxu0 0.0
        %2710 = vmatmul.mubr.f32.gmra.mrb[0].mxu0 %v1120
        %v2711 = vpop.f32.mrb[0].mxu0
        %v2712 = vadd.f32 0.0, %v2711
        %v2713 = vpop.f32.mrb[0].mxu0
        %2714 = vmatprep.mubr.f32.mxu0 0.0
        %2715 = vmatmul.mubr.f32.gmra.mrb[0].mxu0 %v1122
        %v2716 = vpop.f32.mrb[0].mxu0
        %v2717 = vadd.f32 0.0, %v2716
        %v2718 = vpop.f32.mrb[0].mxu0
        %2719 = vmatprep.mubr.f32.mxu0 0.0
        %2720 = vmatmul.mubr.f32.gmra.mrb[0].mxu0 %v1124
        %v2721 = vpop.f32.mrb[0].mxu0
        %v2722 = vadd.f32 0.0, %v2721
        %v2723 = vpop.f32.mrb[0].mxu0
        %2724 = vmatprep.mubr.f32.mxu0 0.0
        %2725 = vmatmul.mubr.f32.gmra.mrb[0].mxu0 %v1126
        %v2726 = vpop.f32.mrb[0].mxu0
        %v2727 = vadd.f32 0.0, %v2726
        %v2728 = vpop.f32.mrb[0].mxu0
        %2729 = vmatprep.mubr.f32.mxu0 0.0
        %2730 = vmatmul.mubr.f32.gmra.mrb[0].mxu0 %v1128
        %v2731 = vpop.f32.mrb[0].mxu0
        %v2732 = vadd.f32 0.0, %v2731
        %v2733 = vpop.f32.mrb[0].mxu0
        %2734 = vmatprep.mubr.f32.mxu0 0.0
        %2735 = vmatmul.mubr.f32.gmra.mrb[0].mxu0 %v1130
        %v2736 = vpop.f32.mrb[0].mxu0
        %v2737 = vadd.f32 0.0, %v2736
        %v2738 = vpop.f32.mrb[0].mxu0
        %2739 = vmatprep.mubr.f32.mxu0 0.0
        %2740 = vmatmul.mubr.f32.gmra.mrb[0].mxu0 %v1132
        %v2741 = vpop.f32.mrb[0].mxu0
        %v2742 = vadd.f32 0.0, %v2741
        %v2743 = vpop.f32.mrb[0].mxu0
        %2744 = vmatprep.mubr.f32.mxu0 0.0
        %2745 = vmatmul.mubr.f32.gmra.mrb[0].mxu0 %v1134
        %v2746 = vpop.f32.mrb[0].mxu0
        %v2747 = vadd.f32 0.0, %v2746
        %v2748 = vpop.f32.mrb[0].mxu0
        %2749 = vmatprep.mubr.f32.mxu0 0.0
        %2750 = vmatmul.mubr.f32.gmra.mrb[0].mxu0 %v1753
        %v2751 = vpop.f32.mrb[0].mxu0
        %v2752 = vadd.f32 0.0, %v2751
        %v2753 = vpop.f32.mrb[0].mxu0
        %2754 = vmatprep.mubr.f32.mxu0 0.0
        %2755 = vmatmul.mubr.f32.gmra.mrb[0].mxu0 %v1755
        %v2756 = vpop.f32.mrb[0].mxu0
        %v2757 = vadd.f32 0.0, %v2756
        %v2758 = vpop.f32.mrb[0].mxu0
        %2759 = vmatprep.mubr.f32.mxu0 0.0
        %2760 = vmatmul.mubr.f32.gmra.mrb[0].mxu0 %v1757
        %v2761 = vpop.f32.mrb[0].mxu0
        %v2762 = vadd.f32 0.0, %v2761
        %v2763 = vpop.f32.mrb[0].mxu0
        %2764 = vmatprep.mubr.f32.mxu0 0.0
        %2765 = vmatmul.mubr.f32.gmra.mrb[0].mxu0 %v2557
        %v2766 = vpop.f32.mrb[0].mxu0
        %v2767 = vadd.f32 0.0, %v2766
        %v2768 = vpop.f32.mrb[0].mxu0
        %2769 = vmatprep.mubr.f32.mxu0 0.0
        %2770 = vmatmul.mubr.f32.gmra.mrb[0].mxu0 %v2559
        %v2771 = vpop.f32.mrb[0].mxu0
        %v2772 = vadd.f32 0.0, %v2771
        %v2773 = vpop.f32.mrb[0].mxu0
        %2774 = vmatprep.mubr.f32.mxu0 0.0
        %2775 = vmatmul.mubr.f32.gmra.mrb[0].mxu0 %v2561
        %v2776 = vpop.f32.mrb[0].mxu0
        %v2777 = vadd.f32 0.0, %v2776
        %v2778 = vpop.f32.mrb[0].mxu0
        %2779 = vdwg.mxu0
        %v2780 = vadd.f32 %v2508, %v2632
        %v2781 = vadd.f32 %v2509, %v2637
        %v2782 = vadd.f32 %v2510, %v2642
        %v2783 = vadd.f32 %v2511, %v2647
        %v2784 = vadd.f32 %v2512, %v2652
        %v2785 = vadd.f32 %v2513, %v2657
        %v2786 = vadd.f32 %v2514, %v2662
        %v2787 = vadd.f32 %v2515, %v2667
        %v2788 = vadd.f32 %v2516, %v2672
        %v2789 = vadd.f32 %v2517, %v2677
        %v2790 = vadd.f32 %v2518, %v2682
        %v2791 = vadd.f32 %v2519, %v2687
        %v2792 = vadd.f32 %v2520, %v2692
        %v2793 = vadd.f32 %v2521, %v2697
        %v2794 = vadd.f32 %v2522, %v2702
        %v2795 = vadd.f32 %v2523, %v2707
        %v2796 = vadd.f32 %v2524, %v2712
        %v2797 = vadd.f32 %v2525, %v2717
        %v2798 = vadd.f32 %v2526, %v2722
        %v2799 = vadd.f32 %v2527, %v2727
        %v2800 = vadd.f32 %v2528, %v2732
        %v2801 = vadd.f32 %v2529, %v2737
        %v2802 = vadd.f32 %v2530, %v2742
        %v2803 = vadd.f32 %v2531, %v2747
        %v2804 = vadd.f32 %v2532, %v2752
        %v2805 = vadd.f32 %v2533, %v2757
        %v2806 = vadd.f32 %v2534, %v2762
        %v2807 = vadd.f32 %v2535, %v2767
        %v2808 = vadd.f32 %v2536, %v2772
        %v2809 = vadd.f32 %v2537, %v2777
        %v2810 = vld [vmem:[#allocation13 + $0x380] sm:$0xff]
        %v2811 = vld [vmem:[#allocation13 + $0x388] sm:$0xff]
        %v2812 = vld [vmem:[#allocation13 + $0x390] sm:$0xff]
        %v2813 = vld [vmem:[#allocation13 + $0x398] sm:$0xff]
        %v2814 = vld [vmem:[#allocation13 + $0x3a0] sm:$0xff]
        %v2815 = vld [vmem:[#allocation13 + $0x3a8] sm:$0xff]
        %v2816 = vld [vmem:[#allocation13 + $0x3b0] sm:$0xff]
        %v2817 = vld [vmem:[#allocation13 + $0x3b8] sm:$0xff]
        %v2818 = vld [vmem:[#allocation13 + $0x3c0] sm:$0xff]
        %v2819 = vld [vmem:[#allocation13 + $0x3c8] sm:$0xff]
        %v2820 = vld [vmem:[#allocation13 + $0x3d0] sm:$0xff]
        %v2821 = vld [vmem:[#allocation13 + $0x3d8] sm:$0xff]
        %v2822 = vld [vmem:[#allocation13 + $0x3e0] sm:$0xff]
        %v2823 = vld [vmem:[#allocation13 + $0x3e8] sm:$0xff]
        %v2824 = vld [vmem:[#allocation13 + $0x3f0] sm:$0xff]
        %v2825 = vld [vmem:[#allocation13 + $0x3f8] sm:$0xff]
        %2826 = vmatprep.subr.mxu0 0.0
        %2827 = vmatpush1.msra.mxu0 %v2810
        %2828 = vmatprep.subr.mxu0 0.0
        %2829 = vmatpush1.msra.mxu0 %v2811
        %2830 = vmatprep.subr.mxu0 0.0
        %2831 = vmatpush1.msra.mxu0 %v2812
        %2832 = vmatprep.subr.mxu0 0.0
        %2833 = vmatpush1.msra.mxu0 %v2813
        %2834 = vmatprep.subr.mxu0 0.0
        %2835 = vmatpush1.msra.mxu0 %v2814
        %2836 = vmatprep.subr.mxu0 0.0
        %2837 = vmatpush1.msra.mxu0 %v2815
        %2838 = vmatprep.subr.mxu0 0.0
        %2839 = vmatpush1.msra.mxu0 %v2816
        %2840 = vmatprep.subr.mxu0 0.0
        %2841 = vmatpush1.msra.mxu0 %v2817
        %2842 = vmatprep.subr.mxu0 0.0
        %2843 = vmatpush1.msra.mxu0 %v2818
        %2844 = vmatprep.subr.mxu0 0.0
        %2845 = vmatpush1.msra.mxu0 %v2819
        %2846 = vmatprep.subr.mxu0 0.0
        %2847 = vmatpush1.msra.mxu0 %v2820
        %2848 = vmatprep.subr.mxu0 0.0
        %2849 = vmatpush1.msra.mxu0 %v2821
        %2850 = vmatprep.subr.mxu0 0.0
        %2851 = vmatpush1.msra.mxu0 %v2822
        %2852 = vmatprep.subr.mxu0 0.0
        %2853 = vmatpush1.msra.mxu0 %v2823
        %2854 = vmatprep.subr.mxu0 0.0
        %2855 = vmatpush1.msra.mxu0 %v2824
        %2856 = vmatprep.subr.mxu0 0.0
        %2857 = vmatpush1.msra.mxu0 %v2825
        %2858 = vmatprep.subr.mxu0 0.0
        %2859 = vmatpush1.msra.mxu0 0.0
        %2860 = vmatprep.subr.mxu0 0.0
        %2861 = vmatpush1.msra.mxu0 0.0
        %2862 = vmatprep.subr.mxu0 0.0
        %2863 = vmatpush1.msra.mxu0 0.0
        %2864 = vmatprep.subr.mxu0 0.0
        %2865 = vmatpush1.msra.mxu0 0.0
        %2866 = vmatprep.subr.mxu0 0.0
        %2867 = vmatpush1.msra.mxu0 0.0
        %2868 = vmatprep.subr.mxu0 0.0
        %2869 = vmatpush1.msra.mxu0 0.0
        %2870 = vmatprep.subr.mxu0 0.0
        %2871 = vmatpush1.msra.mxu0 0.0
        %2872 = vmatprep.subr.mxu0 0.0
        %2873 = vmatpush1.msra.mxu0 0.0
        %2874 = vmatprep.subr.mxu0 0.0
        %2875 = vmatpush1.msra.mxu0 0.0
        %2876 = vmatprep.subr.mxu0 0.0
        %2877 = vmatpush1.msra.mxu0 0.0
        %2878 = vmatprep.subr.mxu0 0.0
        %2879 = vmatpush1.msra.mxu0 0.0
        %2880 = vmatprep.subr.mxu0 0.0
        %2881 = vmatpush1.msra.mxu0 0.0
        %2882 = vmatprep.subr.mxu0 0.0
        %2883 = vmatpush1.msra.mxu0 0.0
        %2884 = vmatprep.subr.mxu0 0.0
        %2885 = vmatpush1.msra.mxu0 0.0
        %2886 = vmatprep.subr.mxu0 0.0
        %2887 = vmatpush1.msra.mxu0 0.0
        %2888 = vmatprep.subr.mxu0 0.0
        %2889 = vmatpush1.msra.mxu0 0.0
        %2890 = vmatprep.mubr.f32.mxu0 0.0
        %2891 = vmatmul.mubr.f32.gmra.mrb[0].mxu0 %v764
        %v2892 = vpop.f32.mrb[0].mxu0
        %v2893 = vadd.f32 0.0, %v2892
        %v2894 = vpop.f32.mrb[0].mxu0
        %2895 = vmatprep.mubr.f32.mxu0 0.0
        %2896 = vmatmul.mubr.f32.gmra.mrb[0].mxu0 %v765
        %v2897 = vpop.f32.mrb[0].mxu0
        %v2898 = vadd.f32 0.0, %v2897
        %v2899 = vpop.f32.mrb[0].mxu0
        %2900 = vmatprep.mubr.f32.mxu0 0.0
        %2901 = vmatmul.mubr.f32.gmra.mrb[0].mxu0 %v766
        %v2902 = vpop.f32.mrb[0].mxu0
        %v2903 = vadd.f32 0.0, %v2902
        %v2904 = vpop.f32.mrb[0].mxu0
        %2905 = vmatprep.mubr.f32.mxu0 0.0
        %2906 = vmatmul.mubr.f32.gmra.mrb[0].mxu0 %v767
        %v2907 = vpop.f32.mrb[0].mxu0
        %v2908 = vadd.f32 0.0, %v2907
        %v2909 = vpop.f32.mrb[0].mxu0
        %2910 = vmatprep.mubr.f32.mxu0 0.0
        %2911 = vmatmul.mubr.f32.gmra.mrb[0].mxu0 %v768
        %v2912 = vpop.f32.mrb[0].mxu0
        %v2913 = vadd.f32 0.0, %v2912
        %v2914 = vpop.f32.mrb[0].mxu0
        %2915 = vmatprep.mubr.f32.mxu0 0.0
        %2916 = vmatmul.mubr.f32.gmra.mrb[0].mxu0 %v769
        %v2917 = vpop.f32.mrb[0].mxu0
        %v2918 = vadd.f32 0.0, %v2917
        %v2919 = vpop.f32.mrb[0].mxu0
        %2920 = vmatprep.mubr.f32.mxu0 0.0
        %2921 = vmatmul.mubr.f32.gmra.mrb[0].mxu0 %v770
        %v2922 = vpop.f32.mrb[0].mxu0
        %v2923 = vadd.f32 0.0, %v2922
        %v2924 = vpop.f32.mrb[0].mxu0
        %2925 = vmatprep.mubr.f32.mxu0 0.0
        %2926 = vmatmul.mubr.f32.gmra.mrb[0].mxu0 %v771
        %v2927 = vpop.f32.mrb[0].mxu0
        %v2928 = vadd.f32 0.0, %v2927
        %v2929 = vpop.f32.mrb[0].mxu0
        %2930 = vmatprep.mubr.f32.mxu0 0.0
        %2931 = vmatmul.mubr.f32.gmra.mrb[0].mxu0 %v772
        %v2932 = vpop.f32.mrb[0].mxu0
        %v2933 = vadd.f32 0.0, %v2932
        %v2934 = vpop.f32.mrb[0].mxu0
        %2935 = vmatprep.mubr.f32.mxu0 0.0
        %2936 = vmatmul.mubr.f32.gmra.mrb[0].mxu0 %v773
        %v2937 = vpop.f32.mrb[0].mxu0
        %v2938 = vadd.f32 0.0, %v2937
        %v2939 = vpop.f32.mrb[0].mxu0
        %2940 = vmatprep.mubr.f32.mxu0 0.0
        %2941 = vmatmul.mubr.f32.gmra.mrb[0].mxu0 %v774
        %v2942 = vpop.f32.mrb[0].mxu0
        %v2943 = vadd.f32 0.0, %v2942
        %v2944 = vpop.f32.mrb[0].mxu0
        %2945 = vmatprep.mubr.f32.mxu0 0.0
        %2946 = vmatmul.mubr.f32.gmra.mrb[0].mxu0 %v775
        %v2947 = vpop.f32.mrb[0].mxu0
        %v2948 = vadd.f32 0.0, %v2947
        %v2949 = vpop.f32.mrb[0].mxu0
        %2950 = vmatprep.mubr.f32.mxu0 0.0
        %2951 = vmatmul.mubr.f32.gmra.mrb[0].mxu0 %v776
        %v2952 = vpop.f32.mrb[0].mxu0
        %v2953 = vadd.f32 0.0, %v2952
        %v2954 = vpop.f32.mrb[0].mxu0
        %2955 = vmatprep.mubr.f32.mxu0 0.0
        %2956 = vmatmul.mubr.f32.gmra.mrb[0].mxu0 %v777
        %v2957 = vpop.f32.mrb[0].mxu0
        %v2958 = vadd.f32 0.0, %v2957
        %v2959 = vpop.f32.mrb[0].mxu0
        %2960 = vmatprep.mubr.f32.mxu0 0.0
        %2961 = vmatmul.mubr.f32.gmra.mrb[0].mxu0 %v778
        %v2962 = vpop.f32.mrb[0].mxu0
        %v2963 = vadd.f32 0.0, %v2962
        %v2964 = vpop.f32.mrb[0].mxu0
        %2965 = vmatprep.mubr.f32.mxu0 0.0
        %2966 = vmatmul.mubr.f32.gmra.mrb[0].mxu0 %v779
        %v2967 = vpop.f32.mrb[0].mxu0
        %v2968 = vadd.f32 0.0, %v2967
        %v2969 = vpop.f32.mrb[0].mxu0
        %2970 = vmatprep.mubr.f32.mxu0 0.0
        %2971 = vmatmul.mubr.f32.gmra.mrb[0].mxu0 %v780
        %v2972 = vpop.f32.mrb[0].mxu0
        %v2973 = vadd.f32 0.0, %v2972
        %v2974 = vpop.f32.mrb[0].mxu0
        %2975 = vmatprep.mubr.f32.mxu0 0.0
        %2976 = vmatmul.mubr.f32.gmra.mrb[0].mxu0 %v781
        %v2977 = vpop.f32.mrb[0].mxu0
        %v2978 = vadd.f32 0.0, %v2977
        %v2979 = vpop.f32.mrb[0].mxu0
        %2980 = vmatprep.mubr.f32.mxu0 0.0
        %2981 = vmatmul.mubr.f32.gmra.mrb[0].mxu0 %v782
        %v2982 = vpop.f32.mrb[0].mxu0
        %v2983 = vadd.f32 0.0, %v2982
        %v2984 = vpop.f32.mrb[0].mxu0
        %2985 = vmatprep.mubr.f32.mxu0 0.0
        %2986 = vmatmul.mubr.f32.gmra.mrb[0].mxu0 %v783
        %v2987 = vpop.f32.mrb[0].mxu0
        %v2988 = vadd.f32 0.0, %v2987
        %v2989 = vpop.f32.mrb[0].mxu0
        %2990 = vmatprep.mubr.f32.mxu0 0.0
        %2991 = vmatmul.mubr.f32.gmra.mrb[0].mxu0 %v784
        %v2992 = vpop.f32.mrb[0].mxu0
        %v2993 = vadd.f32 0.0, %v2992
        %v2994 = vpop.f32.mrb[0].mxu0
        %2995 = vmatprep.mubr.f32.mxu0 0.0
        %2996 = vmatmul.mubr.f32.gmra.mrb[0].mxu0 %v785
        %v2997 = vpop.f32.mrb[0].mxu0
        %v2998 = vadd.f32 0.0, %v2997
        %v2999 = vpop.f32.mrb[0].mxu0
        %3000 = vmatprep.mubr.f32.mxu0 0.0
        %3001 = vmatmul.mubr.f32.gmra.mrb[0].mxu0 %v786
        %v3002 = vpop.f32.mrb[0].mxu0
        %v3003 = vadd.f32 0.0, %v3002
        %v3004 = vpop.f32.mrb[0].mxu0
        %3005 = vmatprep.mubr.f32.mxu0 0.0
        %3006 = vmatmul.mubr.f32.gmra.mrb[0].mxu0 %v787
        %v3007 = vpop.f32.mrb[0].mxu0
        %v3008 = vadd.f32 0.0, %v3007
        %v3009 = vpop.f32.mrb[0].mxu0
        %3010 = vmatprep.mubr.f32.mxu0 0.0
        %3011 = vmatmul.mubr.f32.gmra.mrb[0].mxu0 %v788
        %v3012 = vpop.f32.mrb[0].mxu0
        %v3013 = vadd.f32 0.0, %v3012
        %v3014 = vpop.f32.mrb[0].mxu0
        %3015 = vmatprep.mubr.f32.mxu0 0.0
        %3016 = vmatmul.mubr.f32.gmra.mrb[0].mxu0 %v789
        %v3017 = vpop.f32.mrb[0].mxu0
        %v3018 = vadd.f32 0.0, %v3017
        %v3019 = vpop.f32.mrb[0].mxu0
        %3020 = vmatprep.mubr.f32.mxu0 0.0
        %3021 = vmatmul.mubr.f32.gmra.mrb[0].mxu0 %v790
        %v3022 = vpop.f32.mrb[0].mxu0
        %v3023 = vadd.f32 0.0, %v3022
        %v3024 = vpop.f32.mrb[0].mxu0
        %3025 = vmatprep.mubr.f32.mxu0 0.0
        %3026 = vmatmul.mubr.f32.gmra.mrb[0].mxu0 %v791
        %v3027 = vpop.f32.mrb[0].mxu0
        %v3028 = vadd.f32 0.0, %v3027
        %v3029 = vpop.f32.mrb[0].mxu0
        %3030 = vmatprep.mubr.f32.mxu0 0.0
        %3031 = vmatmul.mubr.f32.gmra.mrb[0].mxu0 %v792
        %v3032 = vpop.f32.mrb[0].mxu0
        %v3033 = vadd.f32 0.0, %v3032
        %v3034 = vpop.f32.mrb[0].mxu0
        %3035 = vmatprep.mubr.f32.mxu0 0.0
        %3036 = vmatmul.mubr.f32.gmra.mrb[0].mxu0 %v793
        %v3037 = vpop.f32.mrb[0].mxu0
        %v3038 = vadd.f32 0.0, %v3037
        %v3039 = vpop.f32.mrb[0].mxu0
        %3040 = vdwg.mxu0
        %v3041 = vadd.f32 %v2780, %v2893
        %v3042 = vadd.f32 %v2781, %v2898
        %v3043 = vadd.f32 %v2782, %v2903
        %v3044 = vadd.f32 %v2783, %v2908
        %v3045 = vadd.f32 %v2784, %v2913
        %v3046 = vadd.f32 %v2785, %v2918
        %v3047 = vadd.f32 %v2786, %v2923
        %v3048 = vadd.f32 %v2787, %v2928
        %v3049 = vadd.f32 %v2788, %v2933
        %v3050 = vadd.f32 %v2789, %v2938
        %v3051 = vadd.f32 %v2790, %v2943
        %v3052 = vadd.f32 %v2791, %v2948
        %v3053 = vadd.f32 %v2792, %v2953
        %v3054 = vadd.f32 %v2793, %v2958
        %v3055 = vadd.f32 %v2794, %v2963
        %v3056 = vadd.f32 %v2795, %v2968
        %v3057 = vadd.f32 %v2796, %v2973
        %v3058 = vadd.f32 %v2797, %v2978
        %v3059 = vadd.f32 %v2798, %v2983
        %v3060 = vadd.f32 %v2799, %v2988
        %v3061 = vadd.f32 %v2800, %v2993
        %v3062 = vadd.f32 %v2801, %v2998
        %v3063 = vadd.f32 %v2802, %v3003
        %v3064 = vadd.f32 %v2803, %v3008
        %v3065 = vadd.f32 %v2804, %v3013
        %v3066 = vadd.f32 %v2805, %v3018
        %v3067 = vadd.f32 %v2806, %v3023
        %v3068 = vadd.f32 %v2807, %v3028
        %v3069 = vadd.f32 %v2808, %v3033
        %v3070 = vadd.f32 %v2809, %v3038
        %v3071 = vld [vmem:[#allocation13 + $0x400] sm:$0xff]
        %v3072 = vld [vmem:[#allocation13 + $0x408] sm:$0xff]
        %v3073 = vld [vmem:[#allocation13 + $0x410] sm:$0xff]
        %v3074 = vld [vmem:[#allocation13 + $0x418] sm:$0xff]
        %v3075 = vld [vmem:[#allocation13 + $0x420] sm:$0xff]
        %v3076 = vld [vmem:[#allocation13 + $0x428] sm:$0xff]
        %v3077 = vld [vmem:[#allocation13 + $0x430] sm:$0xff]
        %v3078 = vld [vmem:[#allocation13 + $0x438] sm:$0xff]
        %v3079 = vld [vmem:[#allocation13 + $0x440] sm:$0xff]
        %v3080 = vld [vmem:[#allocation13 + $0x448] sm:$0xff]
        %v3081 = vld [vmem:[#allocation13 + $0x450] sm:$0xff]
        %v3082 = vld [vmem:[#allocation13 + $0x458] sm:$0xff]
        %v3083 = vld [vmem:[#allocation13 + $0x460] sm:$0xff]
        %v3084 = vld [vmem:[#allocation13 + $0x468] sm:$0xff]
        %v3085 = vld [vmem:[#allocation13 + $0x470] sm:$0xff]
        %v3086 = vld [vmem:[#allocation13 + $0x478] sm:$0xff]
        %v3088 = vrot.slane %v792, 1
        %v3089 = vsel %vm1397, %v2288, %v3088
        %v3090 = vrot.slane %v793, 1
        %v3091 = vsel %vm1397, %v3088, %v3090
        %v3092 = vrot.slane %v794, 1
        %v3093 = vsel %vm1397, %v3090, %v3092
        %3097 = vmatprep.subr.mxu0 0.0
        %3098 = vmatpush1.msra.mxu0 %v3071
        %3099 = vmatprep.subr.mxu0 0.0
        %3100 = vmatpush1.msra.mxu0 %v3072
        %3101 = vmatprep.subr.mxu0 0.0
        %3102 = vmatpush1.msra.mxu0 %v3073
        %3103 = vmatprep.subr.mxu0 0.0
        %3104 = vmatpush1.msra.mxu0 %v3074
        %3105 = vmatprep.subr.mxu0 0.0
        %3106 = vmatpush1.msra.mxu0 %v3075
        %3107 = vmatprep.subr.mxu0 0.0
        %3108 = vmatpush1.msra.mxu0 %v3076
        %3109 = vmatprep.subr.mxu0 0.0
        %3110 = vmatpush1.msra.mxu0 %v3077
        %3111 = vmatprep.subr.mxu0 0.0
        %3112 = vmatpush1.msra.mxu0 %v3078
        %3113 = vmatprep.subr.mxu0 0.0
        %3114 = vmatpush1.msra.mxu0 %v3079
        %3115 = vmatprep.subr.mxu0 0.0
        %3116 = vmatpush1.msra.mxu0 %v3080
        %3117 = vmatprep.subr.mxu0 0.0
        %3118 = vmatpush1.msra.mxu0 %v3081
        %3119 = vmatprep.subr.mxu0 0.0
        %3120 = vmatpush1.msra.mxu0 %v3082
        %3121 = vmatprep.subr.mxu0 0.0
        %3122 = vmatpush1.msra.mxu0 %v3083
        %3123 = vmatprep.subr.mxu0 0.0
        %3124 = vmatpush1.msra.mxu0 %v3084
        %3125 = vmatprep.subr.mxu0 0.0
        %3126 = vmatpush1.msra.mxu0 %v3085
        %3127 = vmatprep.subr.mxu0 0.0
        %3128 = vmatpush1.msra.mxu0 %v3086
        %3129 = vmatprep.subr.mxu0 0.0
        %3130 = vmatpush1.msra.mxu0 0.0
        %3131 = vmatprep.subr.mxu0 0.0
        %3132 = vmatpush1.msra.mxu0 0.0
        %3133 = vmatprep.subr.mxu0 0.0
        %3134 = vmatpush1.msra.mxu0 0.0
        %3135 = vmatprep.subr.mxu0 0.0
        %3136 = vmatpush1.msra.mxu0 0.0
        %3137 = vmatprep.subr.mxu0 0.0
        %3138 = vmatpush1.msra.mxu0 0.0
        %3139 = vmatprep.subr.mxu0 0.0
        %3140 = vmatpush1.msra.mxu0 0.0
        %3141 = vmatprep.subr.mxu0 0.0
        %3142 = vmatpush1.msra.mxu0 0.0
        %3143 = vmatprep.subr.mxu0 0.0
        %3144 = vmatpush1.msra.mxu0 0.0
        %3145 = vmatprep.subr.mxu0 0.0
        %3146 = vmatpush1.msra.mxu0 0.0
        %3147 = vmatprep.subr.mxu0 0.0
        %3148 = vmatpush1.msra.mxu0 0.0
        %3149 = vmatprep.subr.mxu0 0.0
        %3150 = vmatpush1.msra.mxu0 0.0
        %3151 = vmatprep.subr.mxu0 0.0
        %3152 = vmatpush1.msra.mxu0 0.0
        %3153 = vmatprep.subr.mxu0 0.0
        %3154 = vmatpush1.msra.mxu0 0.0
        %3155 = vmatprep.subr.mxu0 0.0
        %3156 = vmatpush1.msra.mxu0 0.0
        %3157 = vmatprep.subr.mxu0 0.0
        %3158 = vmatpush1.msra.mxu0 0.0
        %3159 = vmatprep.subr.mxu0 0.0
        %3160 = vmatpush1.msra.mxu0 0.0
        %3161 = vmatprep.mubr.f32.mxu0 0.0
        %3162 = vmatmul.mubr.f32.gmra.mrb[0].mxu0 %v1412
        %v3163 = vpop.f32.mrb[0].mxu0
        %v3164 = vadd.f32 0.0, %v3163
        %v3165 = vpop.f32.mrb[0].mxu0
        %3166 = vmatprep.mubr.f32.mxu0 0.0
        %3167 = vmatmul.mubr.f32.gmra.mrb[0].mxu0 %v1414
        %v3168 = vpop.f32.mrb[0].mxu0
        %v3169 = vadd.f32 0.0, %v3168
        %v3170 = vpop.f32.mrb[0].mxu0
        %3171 = vmatprep.mubr.f32.mxu0 0.0
        %3172 = vmatmul.mubr.f32.gmra.mrb[0].mxu0 %v1416
        %v3173 = vpop.f32.mrb[0].mxu0
        %v3174 = vadd.f32 0.0, %v3173
        %v3175 = vpop.f32.mrb[0].mxu0
        %3176 = vmatprep.mubr.f32.mxu0 0.0
        %3177 = vmatmul.mubr.f32.gmra.mrb[0].mxu0 %v1418
        %v3178 = vpop.f32.mrb[0].mxu0
        %v3179 = vadd.f32 0.0, %v3178
        %v3180 = vpop.f32.mrb[0].mxu0
        %3181 = vmatprep.mubr.f32.mxu0 0.0
        %3182 = vmatmul.mubr.f32.gmra.mrb[0].mxu0 %v1420
        %v3183 = vpop.f32.mrb[0].mxu0
        %v3184 = vadd.f32 0.0, %v3183
        %v3185 = vpop.f32.mrb[0].mxu0
        %3186 = vmatprep.mubr.f32.mxu0 0.0
        %3187 = vmatmul.mubr.f32.gmra.mrb[0].mxu0 %v1422
        %v3188 = vpop.f32.mrb[0].mxu0
        %v3189 = vadd.f32 0.0, %v3188
        %v3190 = vpop.f32.mrb[0].mxu0
        %3191 = vmatprep.mubr.f32.mxu0 0.0
        %3192 = vmatmul.mubr.f32.gmra.mrb[0].mxu0 %v1424
        %v3193 = vpop.f32.mrb[0].mxu0
        %v3194 = vadd.f32 0.0, %v3193
        %v3195 = vpop.f32.mrb[0].mxu0
        %3196 = vmatprep.mubr.f32.mxu0 0.0
        %3197 = vmatmul.mubr.f32.gmra.mrb[0].mxu0 %v1426
        %v3198 = vpop.f32.mrb[0].mxu0
        %v3199 = vadd.f32 0.0, %v3198
        %v3200 = vpop.f32.mrb[0].mxu0
        %3201 = vmatprep.mubr.f32.mxu0 0.0
        %3202 = vmatmul.mubr.f32.gmra.mrb[0].mxu0 %v1428
        %v3203 = vpop.f32.mrb[0].mxu0
        %v3204 = vadd.f32 0.0, %v3203
        %v3205 = vpop.f32.mrb[0].mxu0
        %3206 = vmatprep.mubr.f32.mxu0 0.0
        %3207 = vmatmul.mubr.f32.gmra.mrb[0].mxu0 %v1430
        %v3208 = vpop.f32.mrb[0].mxu0
        %v3209 = vadd.f32 0.0, %v3208
        %v3210 = vpop.f32.mrb[0].mxu0
        %3211 = vmatprep.mubr.f32.mxu0 0.0
        %3212 = vmatmul.mubr.f32.gmra.mrb[0].mxu0 %v1432
        %v3213 = vpop.f32.mrb[0].mxu0
        %v3214 = vadd.f32 0.0, %v3213
        %v3215 = vpop.f32.mrb[0].mxu0
        %3216 = vmatprep.mubr.f32.mxu0 0.0
        %3217 = vmatmul.mubr.f32.gmra.mrb[0].mxu0 %v1434
        %v3218 = vpop.f32.mrb[0].mxu0
        %v3219 = vadd.f32 0.0, %v3218
        %v3220 = vpop.f32.mrb[0].mxu0
        %3221 = vmatprep.mubr.f32.mxu0 0.0
        %3222 = vmatmul.mubr.f32.gmra.mrb[0].mxu0 %v1436
        %v3223 = vpop.f32.mrb[0].mxu0
        %v3224 = vadd.f32 0.0, %v3223
        %v3225 = vpop.f32.mrb[0].mxu0
        %3226 = vmatprep.mubr.f32.mxu0 0.0
        %3227 = vmatmul.mubr.f32.gmra.mrb[0].mxu0 %v1438
        %v3228 = vpop.f32.mrb[0].mxu0
        %v3229 = vadd.f32 0.0, %v3228
        %v3230 = vpop.f32.mrb[0].mxu0
        %3231 = vmatprep.mubr.f32.mxu0 0.0
        %3232 = vmatmul.mubr.f32.gmra.mrb[0].mxu0 %v1440
        %v3233 = vpop.f32.mrb[0].mxu0
        %v3234 = vadd.f32 0.0, %v3233
        %v3235 = vpop.f32.mrb[0].mxu0
        %3236 = vmatprep.mubr.f32.mxu0 0.0
        %3237 = vmatmul.mubr.f32.gmra.mrb[0].mxu0 %v1442
        %v3238 = vpop.f32.mrb[0].mxu0
        %v3239 = vadd.f32 0.0, %v3238
        %v3240 = vpop.f32.mrb[0].mxu0
        %3241 = vmatprep.mubr.f32.mxu0 0.0
        %3242 = vmatmul.mubr.f32.gmra.mrb[0].mxu0 %v1444
        %v3243 = vpop.f32.mrb[0].mxu0
        %v3244 = vadd.f32 0.0, %v3243
        %v3245 = vpop.f32.mrb[0].mxu0
        %3246 = vmatprep.mubr.f32.mxu0 0.0
        %3247 = vmatmul.mubr.f32.gmra.mrb[0].mxu0 %v1446
        %v3248 = vpop.f32.mrb[0].mxu0
        %v3249 = vadd.f32 0.0, %v3248
        %v3250 = vpop.f32.mrb[0].mxu0
        %3251 = vmatprep.mubr.f32.mxu0 0.0
        %3252 = vmatmul.mubr.f32.gmra.mrb[0].mxu0 %v1448
        %v3253 = vpop.f32.mrb[0].mxu0
        %v3254 = vadd.f32 0.0, %v3253
        %v3255 = vpop.f32.mrb[0].mxu0
        %3256 = vmatprep.mubr.f32.mxu0 0.0
        %3257 = vmatmul.mubr.f32.gmra.mrb[0].mxu0 %v1450
        %v3258 = vpop.f32.mrb[0].mxu0
        %v3259 = vadd.f32 0.0, %v3258
        %v3260 = vpop.f32.mrb[0].mxu0
        %3261 = vmatprep.mubr.f32.mxu0 0.0
        %3262 = vmatmul.mubr.f32.gmra.mrb[0].mxu0 %v1452
        %v3263 = vpop.f32.mrb[0].mxu0
        %v3264 = vadd.f32 0.0, %v3263
        %v3265 = vpop.f32.mrb[0].mxu0
        %3266 = vmatprep.mubr.f32.mxu0 0.0
        %3267 = vmatmul.mubr.f32.gmra.mrb[0].mxu0 %v1454
        %v3268 = vpop.f32.mrb[0].mxu0
        %v3269 = vadd.f32 0.0, %v3268
        %v3270 = vpop.f32.mrb[0].mxu0
        %3271 = vmatprep.mubr.f32.mxu0 0.0
        %3272 = vmatmul.mubr.f32.gmra.mrb[0].mxu0 %v1456
        %v3273 = vpop.f32.mrb[0].mxu0
        %v3274 = vadd.f32 0.0, %v3273
        %v3275 = vpop.f32.mrb[0].mxu0
        %3276 = vmatprep.mubr.f32.mxu0 0.0
        %3277 = vmatmul.mubr.f32.gmra.mrb[0].mxu0 %v1458
        %v3278 = vpop.f32.mrb[0].mxu0
        %v3279 = vadd.f32 0.0, %v3278
        %v3280 = vpop.f32.mrb[0].mxu0
        %3281 = vmatprep.mubr.f32.mxu0 0.0
        %3282 = vmatmul.mubr.f32.gmra.mrb[0].mxu0 %v2285
        %v3283 = vpop.f32.mrb[0].mxu0
        %v3284 = vadd.f32 0.0, %v3283
        %v3285 = vpop.f32.mrb[0].mxu0
        %3286 = vmatprep.mubr.f32.mxu0 0.0
        %3287 = vmatmul.mubr.f32.gmra.mrb[0].mxu0 %v2287
        %v3288 = vpop.f32.mrb[0].mxu0
        %v3289 = vadd.f32 0.0, %v3288
        %v3290 = vpop.f32.mrb[0].mxu0
        %3291 = vmatprep.mubr.f32.mxu0 0.0
        %3292 = vmatmul.mubr.f32.gmra.mrb[0].mxu0 %v2289
        %v3293 = vpop.f32.mrb[0].mxu0
        %v3294 = vadd.f32 0.0, %v3293
        %v3295 = vpop.f32.mrb[0].mxu0
        %3296 = vmatprep.mubr.f32.mxu0 0.0
        %3297 = vmatmul.mubr.f32.gmra.mrb[0].mxu0 %v3089
        %v3298 = vpop.f32.mrb[0].mxu0
        %v3299 = vadd.f32 0.0, %v3298
        %v3300 = vpop.f32.mrb[0].mxu0
        %3301 = vmatprep.mubr.f32.mxu0 0.0
        %3302 = vmatmul.mubr.f32.gmra.mrb[0].mxu0 %v3091
        %v3303 = vpop.f32.mrb[0].mxu0
        %v3304 = vadd.f32 0.0, %v3303
        %v3305 = vpop.f32.mrb[0].mxu0
        %3306 = vmatprep.mubr.f32.mxu0 0.0
        %3307 = vmatmul.mubr.f32.gmra.mrb[0].mxu0 %v3093
        %v3308 = vpop.f32.mrb[0].mxu0
        %v3309 = vadd.f32 0.0, %v3308
        %v3310 = vpop.f32.mrb[0].mxu0
        %3311 = vdwg.mxu0
        %v3312 = vadd.f32 %v3041, %v3164
        %v3313 = vadd.f32 %v3042, %v3169
        %v3314 = vadd.f32 %v3043, %v3174
        %v3315 = vadd.f32 %v3044, %v3179
        %v3316 = vadd.f32 %v3045, %v3184
        %v3317 = vadd.f32 %v3046, %v3189
        %v3318 = vadd.f32 %v3047, %v3194
        %v3319 = vadd.f32 %v3048, %v3199
        %v3320 = vadd.f32 %v3049, %v3204
        %v3321 = vadd.f32 %v3050, %v3209
        %v3322 = vadd.f32 %v3051, %v3214
        %v3323 = vadd.f32 %v3052, %v3219
        %v3324 = vadd.f32 %v3053, %v3224
        %v3325 = vadd.f32 %v3054, %v3229
        %v3326 = vadd.f32 %v3055, %v3234
        %v3327 = vadd.f32 %v3056, %v3239
        %v3328 = vadd.f32 %v3057, %v3244
        %v3329 = vadd.f32 %v3058, %v3249
        %v3330 = vadd.f32 %v3059, %v3254
        %v3331 = vadd.f32 %v3060, %v3259
        %v3332 = vadd.f32 %v3061, %v3264
        %v3333 = vadd.f32 %v3062, %v3269
        %v3334 = vadd.f32 %v3063, %v3274
        %v3335 = vadd.f32 %v3064, %v3279
        %v3336 = vadd.f32 %v3065, %v3284
        %v3337 = vadd.f32 %v3066, %v3289
        %v3338 = vadd.f32 %v3067, %v3294
        %v3339 = vadd.f32 %v3068, %v3299
        %v3340 = vadd.f32 %v3069, %v3304
        %v3341 = vadd.f32 %v3070, %v3309
        %v3342 = vld [vmem:[#allocation15] sm:$0x1]
        %v3344 = vlaneseq
        %v3345 = vshrl.u32 %v3344, 7
        %v3346 = vsub.s32 0, %v3345
        %v3347 = vrot.slane %v3342, %v3346
        %v3349 = vadd.f32 %v3312, %v3347
        %v3350 = vadd.f32 %v3313, %v3347
        %v3351 = vadd.f32 %v3314, %v3347
        %v3352 = vadd.f32 %v3315, %v3347
        %v3353 = vadd.f32 %v3316, %v3347
        %v3354 = vadd.f32 %v3317, %v3347
        %v3355 = vadd.f32 %v3318, %v3347
        %v3356 = vadd.f32 %v3319, %v3347
        %v3357 = vadd.f32 %v3320, %v3347
        %v3358 = vadd.f32 %v3321, %v3347
        %v3359 = vadd.f32 %v3322, %v3347
        %v3360 = vadd.f32 %v3323, %v3347
        %v3361 = vadd.f32 %v3324, %v3347
        %v3362 = vadd.f32 %v3325, %v3347
        %v3363 = vadd.f32 %v3326, %v3347
        %v3364 = vadd.f32 %v3327, %v3347
        %v3365 = vadd.f32 %v3328, %v3347
        %v3366 = vadd.f32 %v3329, %v3347
        %v3367 = vadd.f32 %v3330, %v3347
        %v3368 = vadd.f32 %v3331, %v3347
        %v3369 = vadd.f32 %v3332, %v3347
        %v3370 = vadd.f32 %v3333, %v3347
        %v3371 = vadd.f32 %v3334, %v3347
        %v3372 = vadd.f32 %v3335, %v3347
        %v3373 = vadd.f32 %v3336, %v3347
        %v3374 = vadd.f32 %v3337, %v3347
        %v3375 = vadd.f32 %v3338, %v3347
        %v3376 = vadd.f32 %v3339, %v3347
        %v3377 = vadd.f32 %v3340, %v3347
        %v3378 = vadd.f32 %v3341, %v3347
        %v3379 = vmax.f32 %v3349, 0.0
        %v3380 = vmax.f32 %v3350, 0.0
        %v3381 = vmax.f32 %v3351, 0.0
        %v3382 = vmax.f32 %v3352, 0.0
        %v3383 = vmax.f32 %v3353, 0.0
        %v3384 = vmax.f32 %v3354, 0.0
        %v3385 = vmax.f32 %v3355, 0.0
        %v3386 = vmax.f32 %v3356, 0.0
        %v3387 = vmax.f32 %v3357, 0.0
        %v3388 = vmax.f32 %v3358, 0.0
        %v3389 = vmax.f32 %v3359, 0.0
        %v3390 = vmax.f32 %v3360, 0.0
        %v3391 = vmax.f32 %v3361, 0.0
        %v3392 = vmax.f32 %v3362, 0.0
        %v3393 = vmax.f32 %v3363, 0.0
        %v3394 = vmax.f32 %v3364, 0.0
        %v3395 = vmax.f32 %v3365, 0.0
        %v3396 = vmax.f32 %v3366, 0.0
        %v3397 = vmax.f32 %v3367, 0.0
        %v3398 = vmax.f32 %v3368, 0.0
        %v3399 = vmax.f32 %v3369, 0.0
        %v3400 = vmax.f32 %v3370, 0.0
        %v3401 = vmax.f32 %v3371, 0.0
        %v3402 = vmax.f32 %v3372, 0.0
        %v3403 = vmax.f32 %v3373, 0.0
        %v3404 = vmax.f32 %v3374, 0.0
        %v3405 = vmax.f32 %v3375, 0.0
        %v3406 = vmax.f32 %v3376, 0.0
        %v3407 = vmax.f32 %v3377, 0.0
        %v3408 = vmax.f32 %v3378, 0.0
        %s3409 = scalar_lea.vmem [#allocation3], 24
        %3410 = vst [vmem:[%s3409] sm:$0xff] %v3379
        %3411 = vst [vmem:[%s3409 + $0x8] sm:$0xff] %v3380
        %3412 = vst [vmem:[%s3409 + $0x10] sm:$0xff] %v3381
        %3413 = vst [vmem:[%s3409 + $0x18] sm:$0xff] %v3382
        %3414 = vst [vmem:[%s3409 + $0x20] sm:$0xff] %v3383
        %3415 = vst [vmem:[%s3409 + $0x28] sm:$0xff] %v3384
        %3416 = vst [vmem:[%s3409 + $0x30] sm:$0xff] %v3385
        %3417 = vst [vmem:[%s3409 + $0x38] sm:$0xff] %v3386
        %3418 = vst [vmem:[%s3409 + $0x40] sm:$0xff] %v3387
        %3419 = vst [vmem:[%s3409 + $0x48] sm:$0xff] %v3388
        %3420 = vst [vmem:[%s3409 + $0x50] sm:$0xff] %v3389
        %3421 = vst [vmem:[%s3409 + $0x58] sm:$0xff] %v3390
        %3422 = vst [vmem:[%s3409 + $0x60] sm:$0xff] %v3391
        %3423 = vst [vmem:[%s3409 + $0x68] sm:$0xff] %v3392
        %3424 = vst [vmem:[%s3409 + $0x70] sm:$0xff] %v3393
        %3425 = vst [vmem:[%s3409 + $0x78] sm:$0xff] %v3394
        %3426 = vst [vmem:[%s3409 + $0x80] sm:$0xff] %v3395
        %3427 = vst [vmem:[%s3409 + $0x88] sm:$0xff] %v3396
        %3428 = vst [vmem:[%s3409 + $0x90] sm:$0xff] %v3397
        %3429 = vst [vmem:[%s3409 + $0x98] sm:$0xff] %v3398
        %3430 = vst [vmem:[%s3409 + $0xa0] sm:$0xff] %v3399
        %3431 = vst [vmem:[%s3409 + $0xa8] sm:$0xff] %v3400
        %3432 = vst [vmem:[%s3409 + $0xb0] sm:$0xff] %v3401
        %3433 = vst [vmem:[%s3409 + $0xb8] sm:$0xff] %v3402
        %3434 = vst [vmem:[%s3409 + $0xc0] sm:$0xff] %v3403
        %3435 = vst [vmem:[%s3409 + $0xc8] sm:$0xff] %v3404
        %3436 = vst [vmem:[%s3409 + $0xd0] sm:$0xff] %v3405
        %3437 = vst [vmem:[%s3409 + $0xd8] sm:$0xff] %v3406
        %3438 = vst [vmem:[%s3409 + $0xe0] sm:$0xff] %v3407
        %3439 = vst [vmem:[%s3409 + $0xe8] sm:$0xff] %v3408
        %3440 = vst [vmem:[#allocation3 + $0x10] sm:$0xff] 0.0
        %3441 = vst [vmem:[#allocation3 + $0x28] sm:$0xff] 0.0
        %3442 = vst [vmem:[#allocation3 + $0x40] sm:$0xff] 0.0
        %3443 = vst [vmem:[#allocation3 + $0x58] sm:$0xff] 0.0
        %3444 = vst [vmem:[#allocation3 + $0x70] sm:$0xff] 0.0
        %3445 = vst [vmem:[#allocation3 + $0x88] sm:$0xff] 0.0
        %3446 = vst [vmem:[#allocation3 + $0xa0] sm:$0xff] 0.0
        %3447 = vst [vmem:[#allocation3 + $0xb8] sm:$0xff] 0.0
        %3448 = vst [vmem:[#allocation3 + $0xd0] sm:$0xff] 0.0
        %3449 = vst [vmem:[#allocation3 + $0xe8] sm:$0xff] 0.0
        %3450 = vst [vmem:[#allocation3 + $0x100] sm:$0xff] 0.0
        %3451 = vst [vmem:[#allocation3 + $0x118] sm:$0xff] 0.0
        // Predicated region
        $region109: #{tpu_custom_call.1} parent=55 // pred_check
          %p3452 = pneg %p711
        $region110: #{tpu_custom_call.1} parent=55 // pred_check_branch
          %3454 = sbr.rel (%p3452) target = $region112
        $region111: #{tpu_custom_call.1} parent=55 // pred_region
          %3455 = vst [vmem:[%s3409] sm:$0xff] 0.0
          %3456 = vst [vmem:[%s3409 + $0x8] sm:$0xff] 0.0
        $region112: #{tpu_custom_call.1} parent=55 // pred_fallthru
          _
        // Predicated region
        $region113: #{tpu_custom_call.1} parent=55 // pred_check
          %p3457 = pneg %p734
        $region114: #{tpu_custom_call.1} parent=55 // pred_check_branch
          %3459 = sbr.rel (%p3457) target = $region116
        $region115: #{tpu_custom_call.1} parent=55 // pred_region
          %s3460 = scalar_lea.vmem [#allocation3], 240
          %3461 = vst [vmem:[%s3460] sm:$0xff] 0.0
          %3462 = vst [vmem:[%s3460 + $0x8] sm:$0xff] 0.0
        $region116: #{tpu_custom_call.1} parent=55 // pred_fallthru
          _
        %v3463 = vld [vmem:[#allocation3 + $0x10] sm:$0xff]
        %v3464 = vld [vmem:[#allocation3 + $0x18] sm:$0xff]
        %v3465 = vld [vmem:[#allocation3 + $0x20] sm:$0xff]
        %v3466 = vld [vmem:[#allocation3 + $0x28] sm:$0xff]
        %v3467 = vld [vmem:[#allocation3 + $0x30] sm:$0xff]
        %v3468 = vld [vmem:[#allocation3 + $0x38] sm:$0xff]
        %v3469 = vld [vmem:[#allocation3 + $0x40] sm:$0xff]
        %v3470 = vld [vmem:[#allocation3 + $0x48] sm:$0xff]
        %v3471 = vld [vmem:[#allocation3 + $0x50] sm:$0xff]
        %v3472 = vld [vmem:[#allocation3 + $0x58] sm:$0xff]
        %v3473 = vld [vmem:[#allocation3 + $0x60] sm:$0xff]
        %v3474 = vld [vmem:[#allocation3 + $0x68] sm:$0xff]
        %v3475 = vld [vmem:[#allocation3 + $0x70] sm:$0xff]
        %v3476 = vld [vmem:[#allocation3 + $0x78] sm:$0xff]
        %v3477 = vld [vmem:[#allocation3 + $0x80] sm:$0xff]
        %v3478 = vld [vmem:[#allocation3 + $0x88] sm:$0xff]
        %v3479 = vld [vmem:[#allocation3 + $0x90] sm:$0xff]
        %v3480 = vld [vmem:[#allocation3 + $0x98] sm:$0xff]
        %v3481 = vld [vmem:[#allocation3 + $0xa0] sm:$0xff]
        %v3482 = vld [vmem:[#allocation3 + $0xa8] sm:$0xff]
        %v3483 = vld [vmem:[#allocation3 + $0xb0] sm:$0xff]
        %v3484 = vld [vmem:[#allocation3 + $0xb8] sm:$0xff]
        %v3485 = vld [vmem:[#allocation3 + $0xc0] sm:$0xff]
        %v3486 = vld [vmem:[#allocation3 + $0xc8] sm:$0xff]
        %v3487 = vld [vmem:[#allocation3 + $0xd0] sm:$0xff]
        %v3488 = vld [vmem:[#allocation3 + $0xd8] sm:$0xff]
        %v3489 = vld [vmem:[#allocation3 + $0xe0] sm:$0xff]
        %v3490 = vld [vmem:[#allocation3 + $0xe8] sm:$0xff]
        %v3491 = vld [vmem:[#allocation3 + $0xf0] sm:$0xff]
        %v3492 = vld [vmem:[#allocation3 + $0xf8] sm:$0xff]
        %v3493 = vld [vmem:[#allocation3 + $0x100] sm:$0xff]
        %v3494 = vld [vmem:[#allocation3 + $0x108] sm:$0xff]
        %v3495 = vld [vmem:[#allocation16] sm:$0xff]
        %v3496 = vld [vmem:[#allocation16 + $0x8] sm:$0xff]
        %v3497 = vld [vmem:[#allocation16 + $0x10] sm:$0xff]
        %v3498 = vld [vmem:[#allocation16 + $0x18] sm:$0xff]
        %v3499 = vld [vmem:[#allocation16 + $0x20] sm:$0xff]
        %v3500 = vld [vmem:[#allocation16 + $0x28] sm:$0xff]
        %v3501 = vld [vmem:[#allocation16 + $0x30] sm:$0xff]
        %v3502 = vld [vmem:[#allocation16 + $0x38] sm:$0xff]
        %v3503 = vld [vmem:[#allocation16 + $0x40] sm:$0xff]
        %v3504 = vld [vmem:[#allocation16 + $0x48] sm:$0xff]
        %v3505 = vld [vmem:[#allocation16 + $0x50] sm:$0xff]
        %v3506 = vld [vmem:[#allocation16 + $0x58] sm:$0xff]
        %v3507 = vld [vmem:[#allocation16 + $0x60] sm:$0xff]
        %v3508 = vld [vmem:[#allocation16 + $0x68] sm:$0xff]
        %v3509 = vld [vmem:[#allocation16 + $0x70] sm:$0xff]
        %v3510 = vld [vmem:[#allocation16 + $0x78] sm:$0xff]
        %v3511 = vld [vmem:[#allocation16 + $0x80] sm:$0xff]
        %v3512 = vld [vmem:[#allocation16 + $0x88] sm:$0xff]
        %v3513 = vld [vmem:[#allocation16 + $0x90] sm:$0xff]
        %v3514 = vld [vmem:[#allocation16 + $0x98] sm:$0xff]
        %v3515 = vld [vmem:[#allocation16 + $0xa0] sm:$0xff]
        %v3516 = vld [vmem:[#allocation16 + $0xa8] sm:$0xff]
        %v3517 = vld [vmem:[#allocation16 + $0xb0] sm:$0xff]
        %v3518 = vld [vmem:[#allocation16 + $0xb8] sm:$0xff]
        %v3519 = vld [vmem:[#allocation16 + $0xc0] sm:$0xff]
        %v3520 = vld [vmem:[#allocation16 + $0xc8] sm:$0xff]
        %v3521 = vld [vmem:[#allocation16 + $0xd0] sm:$0xff]
        %v3522 = vld [vmem:[#allocation16 + $0xd8] sm:$0xff]
        %v3523 = vld [vmem:[#allocation16 + $0xe0] sm:$0xff]
        %v3524 = vld [vmem:[#allocation16 + $0xe8] sm:$0xff]
        %v3525 = vld [vmem:[#allocation16 + $0xf0] sm:$0xff]
        %v3526 = vld [vmem:[#allocation16 + $0xf8] sm:$0xff]
        %3527 = vmatprep.subr.mxu0 0.0
        %3528 = vmatpush1.msra.mxu0 %v3511
        %3529 = vmatprep.subr.mxu0 0.0
        %3530 = vmatpush1.msra.mxu0 %v3512
        %3531 = vmatprep.subr.mxu0 0.0
        %3532 = vmatpush1.msra.mxu0 %v3513
        %3533 = vmatprep.subr.mxu0 0.0
        %3534 = vmatpush1.msra.mxu0 %v3514
        %3535 = vmatprep.subr.mxu0 0.0
        %3536 = vmatpush1.msra.mxu0 %v3515
        %3537 = vmatprep.subr.mxu0 0.0
        %3538 = vmatpush1.msra.mxu0 %v3516
        %3539 = vmatprep.subr.mxu0 0.0
        %3540 = vmatpush1.msra.mxu0 %v3517
        %3541 = vmatprep.subr.mxu0 0.0
        %3542 = vmatpush1.msra.mxu0 %v3518
        %3543 = vmatprep.subr.mxu0 0.0
        %3544 = vmatpush1.msra.mxu0 %v3519
        %3545 = vmatprep.subr.mxu0 0.0
        %3546 = vmatpush1.msra.mxu0 %v3520
        %3547 = vmatprep.subr.mxu0 0.0
        %3548 = vmatpush1.msra.mxu0 %v3521
        %3549 = vmatprep.subr.mxu0 0.0
        %3550 = vmatpush1.msra.mxu0 %v3522
        %3551 = vmatprep.subr.mxu0 0.0
        %3552 = vmatpush1.msra.mxu0 %v3523
        %3553 = vmatprep.subr.mxu0 0.0
        %3554 = vmatpush1.msra.mxu0 %v3524
        %3555 = vmatprep.subr.mxu0 0.0
        %3556 = vmatpush1.msra.mxu0 %v3525
        %3557 = vmatprep.subr.mxu0 0.0
        %3558 = vmatpush1.msra.mxu0 %v3526
        %3559 = vmatprep.subr.mxu0 0.0
        %3560 = vmatpush1.msra.mxu0 0.0
        %3561 = vmatprep.subr.mxu0 0.0
        %3562 = vmatpush1.msra.mxu0 0.0
        %3563 = vmatprep.subr.mxu0 0.0
        %3564 = vmatpush1.msra.mxu0 0.0
        %3565 = vmatprep.subr.mxu0 0.0
        %3566 = vmatpush1.msra.mxu0 0.0
        %3567 = vmatprep.subr.mxu0 0.0
        %3568 = vmatpush1.msra.mxu0 0.0
        %3569 = vmatprep.subr.mxu0 0.0
        %3570 = vmatpush1.msra.mxu0 0.0
        %3571 = vmatprep.subr.mxu0 0.0
        %3572 = vmatpush1.msra.mxu0 0.0
        %3573 = vmatprep.subr.mxu0 0.0
        %3574 = vmatpush1.msra.mxu0 0.0
        %3575 = vmatprep.subr.mxu0 0.0
        %3576 = vmatpush1.msra.mxu0 0.0
        %3577 = vmatprep.subr.mxu0 0.0
        %3578 = vmatpush1.msra.mxu0 0.0
        %3579 = vmatprep.subr.mxu0 0.0
        %3580 = vmatpush1.msra.mxu0 0.0
        %3581 = vmatprep.subr.mxu0 0.0
        %3582 = vmatpush1.msra.mxu0 0.0
        %3583 = vmatprep.subr.mxu0 0.0
        %3584 = vmatpush1.msra.mxu0 0.0
        %3585 = vmatprep.subr.mxu0 0.0
        %3586 = vmatpush1.msra.mxu0 0.0
        %3587 = vmatprep.subr.mxu0 0.0
        %3588 = vmatpush1.msra.mxu0 0.0
        %3589 = vmatprep.subr.mxu0 0.0
        %3590 = vmatpush1.msra.mxu0 0.0
        %3591 = vmatprep.mubr.f32.mxu0 0.0
        %3592 = vmatmul.mubr.f32.gmra.mrb[0].mxu0 %v3464
        %v3593 = vpop.f32.mrb[0].mxu0
        %v3594 = vadd.f32 0.0, %v3593
        %v3595 = vpop.f32.mrb[0].mxu0
        %3596 = vmatprep.mubr.f32.mxu0 0.0
        %3597 = vmatmul.mubr.f32.gmra.mrb[0].mxu0 %v3465
        %v3598 = vpop.f32.mrb[0].mxu0
        %v3599 = vadd.f32 0.0, %v3598
        %v3600 = vpop.f32.mrb[0].mxu0
        %3601 = vmatprep.mubr.f32.mxu0 0.0
        %3602 = vmatmul.mubr.f32.gmra.mrb[0].mxu0 %v3466
        %v3603 = vpop.f32.mrb[0].mxu0
        %v3604 = vpop.f32.mrb[0].mxu0
        %3605 = vmatprep.mubr.f32.mxu0 0.0
        %3606 = vmatmul.mubr.f32.gmra.mrb[0].mxu0 %v3467
        %v3607 = vpop.f32.mrb[0].mxu0
        %v3608 = vadd.f32 0.0, %v3607
        %v3609 = vpop.f32.mrb[0].mxu0
        %3610 = vmatprep.mubr.f32.mxu0 0.0
        %3611 = vmatmul.mubr.f32.gmra.mrb[0].mxu0 %v3468
        %v3612 = vpop.f32.mrb[0].mxu0
        %v3613 = vadd.f32 0.0, %v3612
        %v3614 = vpop.f32.mrb[0].mxu0
        %3615 = vmatprep.mubr.f32.mxu0 0.0
        %3616 = vmatmul.mubr.f32.gmra.mrb[0].mxu0 %v3469
        %v3617 = vpop.f32.mrb[0].mxu0
        %v3618 = vpop.f32.mrb[0].mxu0
        %3619 = vmatprep.mubr.f32.mxu0 0.0
        %3620 = vmatmul.mubr.f32.gmra.mrb[0].mxu0 %v3470
        %v3621 = vpop.f32.mrb[0].mxu0
        %v3622 = vadd.f32 0.0, %v3621
        %v3623 = vpop.f32.mrb[0].mxu0
        %3624 = vmatprep.mubr.f32.mxu0 0.0
        %3625 = vmatmul.mubr.f32.gmra.mrb[0].mxu0 %v3471
        %v3626 = vpop.f32.mrb[0].mxu0
        %v3627 = vadd.f32 0.0, %v3626
        %v3628 = vpop.f32.mrb[0].mxu0
        %3629 = vmatprep.mubr.f32.mxu0 0.0
        %3630 = vmatmul.mubr.f32.gmra.mrb[0].mxu0 %v3472
        %v3631 = vpop.f32.mrb[0].mxu0
        %v3632 = vpop.f32.mrb[0].mxu0
        %3633 = vmatprep.mubr.f32.mxu0 0.0
        %3634 = vmatmul.mubr.f32.gmra.mrb[0].mxu0 %v3473
        %v3635 = vpop.f32.mrb[0].mxu0
        %v3636 = vadd.f32 0.0, %v3635
        %v3637 = vpop.f32.mrb[0].mxu0
        %3638 = vmatprep.mubr.f32.mxu0 0.0
        %3639 = vmatmul.mubr.f32.gmra.mrb[0].mxu0 %v3474
        %v3640 = vpop.f32.mrb[0].mxu0
        %v3641 = vadd.f32 0.0, %v3640
        %v3642 = vpop.f32.mrb[0].mxu0
        %3643 = vmatprep.mubr.f32.mxu0 0.0
        %3644 = vmatmul.mubr.f32.gmra.mrb[0].mxu0 %v3475
        %v3645 = vpop.f32.mrb[0].mxu0
        %v3646 = vpop.f32.mrb[0].mxu0
        %3647 = vmatprep.mubr.f32.mxu0 0.0
        %3648 = vmatmul.mubr.f32.gmra.mrb[0].mxu0 %v3476
        %v3649 = vpop.f32.mrb[0].mxu0
        %v3650 = vadd.f32 0.0, %v3649
        %v3651 = vpop.f32.mrb[0].mxu0
        %3652 = vmatprep.mubr.f32.mxu0 0.0
        %3653 = vmatmul.mubr.f32.gmra.mrb[0].mxu0 %v3477
        %v3654 = vpop.f32.mrb[0].mxu0
        %v3655 = vadd.f32 0.0, %v3654
        %v3656 = vpop.f32.mrb[0].mxu0
        %3657 = vmatprep.mubr.f32.mxu0 0.0
        %3658 = vmatmul.mubr.f32.gmra.mrb[0].mxu0 %v3478
        %v3659 = vpop.f32.mrb[0].mxu0
        %v3660 = vpop.f32.mrb[0].mxu0
        %3661 = vmatprep.mubr.f32.mxu0 0.0
        %3662 = vmatmul.mubr.f32.gmra.mrb[0].mxu0 %v3479
        %v3663 = vpop.f32.mrb[0].mxu0
        %v3664 = vadd.f32 0.0, %v3663
        %v3665 = vpop.f32.mrb[0].mxu0
        %3666 = vmatprep.mubr.f32.mxu0 0.0
        %3667 = vmatmul.mubr.f32.gmra.mrb[0].mxu0 %v3480
        %v3668 = vpop.f32.mrb[0].mxu0
        %v3669 = vadd.f32 0.0, %v3668
        %v3670 = vpop.f32.mrb[0].mxu0
        %3671 = vmatprep.mubr.f32.mxu0 0.0
        %3672 = vmatmul.mubr.f32.gmra.mrb[0].mxu0 %v3481
        %v3673 = vpop.f32.mrb[0].mxu0
        %v3674 = vpop.f32.mrb[0].mxu0
        %3675 = vmatprep.mubr.f32.mxu0 0.0
        %3676 = vmatmul.mubr.f32.gmra.mrb[0].mxu0 %v3482
        %v3677 = vpop.f32.mrb[0].mxu0
        %v3678 = vadd.f32 0.0, %v3677
        %v3679 = vpop.f32.mrb[0].mxu0
        %3680 = vmatprep.mubr.f32.mxu0 0.0
        %3681 = vmatmul.mubr.f32.gmra.mrb[0].mxu0 %v3483
        %v3682 = vpop.f32.mrb[0].mxu0
        %v3683 = vadd.f32 0.0, %v3682
        %v3684 = vpop.f32.mrb[0].mxu0
        %3685 = vmatprep.mubr.f32.mxu0 0.0
        %3686 = vmatmul.mubr.f32.gmra.mrb[0].mxu0 %v3484
        %v3687 = vpop.f32.mrb[0].mxu0
        %v3688 = vpop.f32.mrb[0].mxu0
        %3689 = vmatprep.mubr.f32.mxu0 0.0
        %3690 = vmatmul.mubr.f32.gmra.mrb[0].mxu0 %v3485
        %v3691 = vpop.f32.mrb[0].mxu0
        %v3692 = vadd.f32 0.0, %v3691
        %v3693 = vpop.f32.mrb[0].mxu0
        %3694 = vmatprep.mubr.f32.mxu0 0.0
        %3695 = vmatmul.mubr.f32.gmra.mrb[0].mxu0 %v3486
        %v3696 = vpop.f32.mrb[0].mxu0
        %v3697 = vadd.f32 0.0, %v3696
        %v3698 = vpop.f32.mrb[0].mxu0
        %3699 = vmatprep.mubr.f32.mxu0 0.0
        %3700 = vmatmul.mubr.f32.gmra.mrb[0].mxu0 %v3487
        %v3701 = vpop.f32.mrb[0].mxu0
        %v3702 = vpop.f32.mrb[0].mxu0
        %3703 = vdwg.mxu0
        %v3729 = vrot.slane %v3463, 7
        %v3730 = vrot.slane %v3464, 7
        %v3731 = vsel %vm1073, %v3729, %v3730
        %v3732 = vrot.slane %v3465, 7
        %v3733 = vsel %vm1073, %v3730, %v3732
        %v3734 = vrot.slane %v3466, 7
        %v3735 = vsel %vm1073, %v3732, %v3734
        %v3736 = vrot.slane %v3467, 7
        %v3737 = vsel %vm1073, %v3734, %v3736
        %v3738 = vrot.slane %v3468, 7
        %v3739 = vsel %vm1073, %v3736, %v3738
        %v3740 = vrot.slane %v3469, 7
        %v3741 = vsel %vm1073, %v3738, %v3740
        %v3742 = vrot.slane %v3470, 7
        %v3743 = vsel %vm1073, %v3740, %v3742
        %v3744 = vrot.slane %v3471, 7
        %v3745 = vsel %vm1073, %v3742, %v3744
        %v3746 = vrot.slane %v3472, 7
        %v3747 = vsel %vm1073, %v3744, %v3746
        %v3748 = vrot.slane %v3473, 7
        %v3749 = vsel %vm1073, %v3746, %v3748
        %v3750 = vrot.slane %v3474, 7
        %v3751 = vsel %vm1073, %v3748, %v3750
        %v3752 = vrot.slane %v3475, 7
        %v3753 = vsel %vm1073, %v3750, %v3752
        %v3754 = vrot.slane %v3476, 7
        %v3755 = vsel %vm1073, %v3752, %v3754
        %v3756 = vrot.slane %v3477, 7
        %v3757 = vsel %vm1073, %v3754, %v3756
        %v3758 = vrot.slane %v3478, 7
        %v3759 = vsel %vm1073, %v3756, %v3758
        %v3760 = vrot.slane %v3479, 7
        %v3761 = vsel %vm1073, %v3758, %v3760
        %v3762 = vrot.slane %v3480, 7
        %v3763 = vsel %vm1073, %v3760, %v3762
        %v3764 = vrot.slane %v3481, 7
        %v3765 = vsel %vm1073, %v3762, %v3764
        %v3766 = vrot.slane %v3482, 7
        %v3767 = vsel %vm1073, %v3764, %v3766
        %v3768 = vrot.slane %v3483, 7
        %v3769 = vsel %vm1073, %v3766, %v3768
        %v3770 = vrot.slane %v3484, 7
        %v3771 = vsel %vm1073, %v3768, %v3770
        %v3772 = vrot.slane %v3485, 7
        %v3773 = vsel %vm1073, %v3770, %v3772
        %v3774 = vrot.slane %v3486, 7
        %v3775 = vsel %vm1073, %v3772, %v3774
        %v3776 = vrot.slane %v3487, 7
        %v3777 = vsel %vm1073, %v3774, %v3776
        %3802 = vmatprep.subr.mxu0 0.0
        %3803 = vmatpush1.msra.mxu0 %v3495
        %3804 = vmatprep.subr.mxu0 0.0
        %3805 = vmatpush1.msra.mxu0 %v3496
        %3806 = vmatprep.subr.mxu0 0.0
        %3807 = vmatpush1.msra.mxu0 %v3497
        %3808 = vmatprep.subr.mxu0 0.0
        %3809 = vmatpush1.msra.mxu0 %v3498
        %3810 = vmatprep.subr.mxu0 0.0
        %3811 = vmatpush1.msra.mxu0 %v3499
        %3812 = vmatprep.subr.mxu0 0.0
        %3813 = vmatpush1.msra.mxu0 %v3500
        %3814 = vmatprep.subr.mxu0 0.0
        %3815 = vmatpush1.msra.mxu0 %v3501
        %3816 = vmatprep.subr.mxu0 0.0
        %3817 = vmatpush1.msra.mxu0 %v3502
        %3818 = vmatprep.subr.mxu0 0.0
        %3819 = vmatpush1.msra.mxu0 %v3503
        %3820 = vmatprep.subr.mxu0 0.0
        %3821 = vmatpush1.msra.mxu0 %v3504
        %3822 = vmatprep.subr.mxu0 0.0
        %3823 = vmatpush1.msra.mxu0 %v3505
        %3824 = vmatprep.subr.mxu0 0.0
        %3825 = vmatpush1.msra.mxu0 %v3506
        %3826 = vmatprep.subr.mxu0 0.0
        %3827 = vmatpush1.msra.mxu0 %v3507
        %3828 = vmatprep.subr.mxu0 0.0
        %3829 = vmatpush1.msra.mxu0 %v3508
        %3830 = vmatprep.subr.mxu0 0.0
        %3831 = vmatpush1.msra.mxu0 %v3509
        %3832 = vmatprep.subr.mxu0 0.0
        %3833 = vmatpush1.msra.mxu0 %v3510
        %3834 = vmatprep.subr.mxu0 0.0
        %3835 = vmatpush1.msra.mxu0 0.0
        %3836 = vmatprep.subr.mxu0 0.0
        %3837 = vmatpush1.msra.mxu0 0.0
        %3838 = vmatprep.subr.mxu0 0.0
        %3839 = vmatpush1.msra.mxu0 0.0
        %3840 = vmatprep.subr.mxu0 0.0
        %3841 = vmatpush1.msra.mxu0 0.0
        %3842 = vmatprep.subr.mxu0 0.0
        %3843 = vmatpush1.msra.mxu0 0.0
        %3844 = vmatprep.subr.mxu0 0.0
        %3845 = vmatpush1.msra.mxu0 0.0
        %3846 = vmatprep.subr.mxu0 0.0
        %3847 = vmatpush1.msra.mxu0 0.0
        %3848 = vmatprep.subr.mxu0 0.0
        %3849 = vmatpush1.msra.mxu0 0.0
        %3850 = vmatprep.subr.mxu0 0.0
        %3851 = vmatpush1.msra.mxu0 0.0
        %3852 = vmatprep.subr.mxu0 0.0
        %3853 = vmatpush1.msra.mxu0 0.0
        %3854 = vmatprep.subr.mxu0 0.0
        %3855 = vmatpush1.msra.mxu0 0.0
        %3856 = vmatprep.subr.mxu0 0.0
        %3857 = vmatpush1.msra.mxu0 0.0
        %3858 = vmatprep.subr.mxu0 0.0
        %3859 = vmatpush1.msra.mxu0 0.0
        %3860 = vmatprep.subr.mxu0 0.0
        %3861 = vmatpush1.msra.mxu0 0.0
        %3862 = vmatprep.subr.mxu0 0.0
        %3863 = vmatpush1.msra.mxu0 0.0
        %3864 = vmatprep.subr.mxu0 0.0
        %3865 = vmatpush1.msra.mxu0 0.0
        %3866 = vmatprep.mubr.f32.mxu0 0.0
        %3867 = vmatmul.mubr.f32.gmra.mrb[0].mxu0 %v3731
        %v3868 = vpop.f32.mrb[0].mxu0
        %v3869 = vadd.f32 %v3594, %v3868
        %v3870 = vpop.f32.mrb[0].mxu0
        %3871 = vmatprep.mubr.f32.mxu0 0.0
        %3872 = vmatmul.mubr.f32.gmra.mrb[0].mxu0 %v3733
        %v3873 = vpop.f32.mrb[0].mxu0
        %v3874 = vadd.f32 %v3599, %v3873
        %v3875 = vpop.f32.mrb[0].mxu0
        %3876 = vmatprep.mubr.f32.mxu0 0.0
        %3877 = vmatmul.mubr.f32.gmra.mrb[0].mxu0 %v3735
        %v3878 = vpop.f32.mrb[0].mxu0
        %v3879 = vpop.f32.mrb[0].mxu0
        %3880 = vmatprep.mubr.f32.mxu0 0.0
        %3881 = vmatmul.mubr.f32.gmra.mrb[0].mxu0 %v3737
        %v3882 = vpop.f32.mrb[0].mxu0
        %v3883 = vadd.f32 %v3608, %v3882
        %v3884 = vpop.f32.mrb[0].mxu0
        %3885 = vmatprep.mubr.f32.mxu0 0.0
        %3886 = vmatmul.mubr.f32.gmra.mrb[0].mxu0 %v3739
        %v3887 = vpop.f32.mrb[0].mxu0
        %v3888 = vadd.f32 %v3613, %v3887
        %v3889 = vpop.f32.mrb[0].mxu0
        %3890 = vmatprep.mubr.f32.mxu0 0.0
        %3891 = vmatmul.mubr.f32.gmra.mrb[0].mxu0 %v3741
        %v3892 = vpop.f32.mrb[0].mxu0
        %v3893 = vpop.f32.mrb[0].mxu0
        %3894 = vmatprep.mubr.f32.mxu0 0.0
        %3895 = vmatmul.mubr.f32.gmra.mrb[0].mxu0 %v3743
        %v3896 = vpop.f32.mrb[0].mxu0
        %v3897 = vadd.f32 %v3622, %v3896
        %v3898 = vpop.f32.mrb[0].mxu0
        %3899 = vmatprep.mubr.f32.mxu0 0.0
        %3900 = vmatmul.mubr.f32.gmra.mrb[0].mxu0 %v3745
        %v3901 = vpop.f32.mrb[0].mxu0
        %v3902 = vadd.f32 %v3627, %v3901
        %v3903 = vpop.f32.mrb[0].mxu0
        %3904 = vmatprep.mubr.f32.mxu0 0.0
        %3905 = vmatmul.mubr.f32.gmra.mrb[0].mxu0 %v3747
        %v3906 = vpop.f32.mrb[0].mxu0
        %v3907 = vpop.f32.mrb[0].mxu0
        %3908 = vmatprep.mubr.f32.mxu0 0.0
        %3909 = vmatmul.mubr.f32.gmra.mrb[0].mxu0 %v3749
        %v3910 = vpop.f32.mrb[0].mxu0
        %v3911 = vadd.f32 %v3636, %v3910
        %v3912 = vpop.f32.mrb[0].mxu0
        %3913 = vmatprep.mubr.f32.mxu0 0.0
        %3914 = vmatmul.mubr.f32.gmra.mrb[0].mxu0 %v3751
        %v3915 = vpop.f32.mrb[0].mxu0
        %v3916 = vadd.f32 %v3641, %v3915
        %v3917 = vpop.f32.mrb[0].mxu0
        %3918 = vmatprep.mubr.f32.mxu0 0.0
        %3919 = vmatmul.mubr.f32.gmra.mrb[0].mxu0 %v3753
        %v3920 = vpop.f32.mrb[0].mxu0
        %v3921 = vpop.f32.mrb[0].mxu0
        %3922 = vmatprep.mubr.f32.mxu0 0.0
        %3923 = vmatmul.mubr.f32.gmra.mrb[0].mxu0 %v3755
        %v3924 = vpop.f32.mrb[0].mxu0
        %v3925 = vadd.f32 %v3650, %v3924
        %v3926 = vpop.f32.mrb[0].mxu0
        %3927 = vmatprep.mubr.f32.mxu0 0.0
        %3928 = vmatmul.mubr.f32.gmra.mrb[0].mxu0 %v3757
        %v3929 = vpop.f32.mrb[0].mxu0
        %v3930 = vadd.f32 %v3655, %v3929
        %v3931 = vpop.f32.mrb[0].mxu0
        %3932 = vmatprep.mubr.f32.mxu0 0.0
        %3933 = vmatmul.mubr.f32.gmra.mrb[0].mxu0 %v3759
        %v3934 = vpop.f32.mrb[0].mxu0
        %v3935 = vpop.f32.mrb[0].mxu0
        %3936 = vmatprep.mubr.f32.mxu0 0.0
        %3937 = vmatmul.mubr.f32.gmra.mrb[0].mxu0 %v3761
        %v3938 = vpop.f32.mrb[0].mxu0
        %v3939 = vadd.f32 %v3664, %v3938
        %v3940 = vpop.f32.mrb[0].mxu0
        %3941 = vmatprep.mubr.f32.mxu0 0.0
        %3942 = vmatmul.mubr.f32.gmra.mrb[0].mxu0 %v3763
        %v3943 = vpop.f32.mrb[0].mxu0
        %v3944 = vadd.f32 %v3669, %v3943
        %v3945 = vpop.f32.mrb[0].mxu0
        %3946 = vmatprep.mubr.f32.mxu0 0.0
        %3947 = vmatmul.mubr.f32.gmra.mrb[0].mxu0 %v3765
        %v3948 = vpop.f32.mrb[0].mxu0
        %v3949 = vpop.f32.mrb[0].mxu0
        %3950 = vmatprep.mubr.f32.mxu0 0.0
        %3951 = vmatmul.mubr.f32.gmra.mrb[0].mxu0 %v3767
        %v3952 = vpop.f32.mrb[0].mxu0
        %v3953 = vadd.f32 %v3678, %v3952
        %v3954 = vpop.f32.mrb[0].mxu0
        %3955 = vmatprep.mubr.f32.mxu0 0.0
        %3956 = vmatmul.mubr.f32.gmra.mrb[0].mxu0 %v3769
        %v3957 = vpop.f32.mrb[0].mxu0
        %v3958 = vadd.f32 %v3683, %v3957
        %v3959 = vpop.f32.mrb[0].mxu0
        %3960 = vmatprep.mubr.f32.mxu0 0.0
        %3961 = vmatmul.mubr.f32.gmra.mrb[0].mxu0 %v3771
        %v3962 = vpop.f32.mrb[0].mxu0
        %v3963 = vpop.f32.mrb[0].mxu0
        %3964 = vmatprep.mubr.f32.mxu0 0.0
        %3965 = vmatmul.mubr.f32.gmra.mrb[0].mxu0 %v3773
        %v3966 = vpop.f32.mrb[0].mxu0
        %v3967 = vadd.f32 %v3692, %v3966
        %v3968 = vpop.f32.mrb[0].mxu0
        %3969 = vmatprep.mubr.f32.mxu0 0.0
        %3970 = vmatmul.mubr.f32.gmra.mrb[0].mxu0 %v3775
        %v3971 = vpop.f32.mrb[0].mxu0
        %v3972 = vadd.f32 %v3697, %v3971
        %v3973 = vpop.f32.mrb[0].mxu0
        %3974 = vmatprep.mubr.f32.mxu0 0.0
        %3975 = vmatmul.mubr.f32.gmra.mrb[0].mxu0 %v3777
        %v3976 = vpop.f32.mrb[0].mxu0
        %v3977 = vpop.f32.mrb[0].mxu0
        %3978 = vdwg.mxu0
        %v3979 = vld [vmem:[#allocation16 + $0x100] sm:$0xff]
        %v3980 = vld [vmem:[#allocation16 + $0x108] sm:$0xff]
        %v3981 = vld [vmem:[#allocation16 + $0x110] sm:$0xff]
        %v3982 = vld [vmem:[#allocation16 + $0x118] sm:$0xff]
        %v3983 = vld [vmem:[#allocation16 + $0x120] sm:$0xff]
        %v3984 = vld [vmem:[#allocation16 + $0x128] sm:$0xff]
        %v3985 = vld [vmem:[#allocation16 + $0x130] sm:$0xff]
        %v3986 = vld [vmem:[#allocation16 + $0x138] sm:$0xff]
        %v3987 = vld [vmem:[#allocation16 + $0x140] sm:$0xff]
        %v3988 = vld [vmem:[#allocation16 + $0x148] sm:$0xff]
        %v3989 = vld [vmem:[#allocation16 + $0x150] sm:$0xff]
        %v3990 = vld [vmem:[#allocation16 + $0x158] sm:$0xff]
        %v3991 = vld [vmem:[#allocation16 + $0x160] sm:$0xff]
        %v3992 = vld [vmem:[#allocation16 + $0x168] sm:$0xff]
        %v3993 = vld [vmem:[#allocation16 + $0x170] sm:$0xff]
        %v3994 = vld [vmem:[#allocation16 + $0x178] sm:$0xff]
        %v3996 = vrot.slane %v3464, 1
        %v3997 = vrot.slane %v3465, 1
        %v3998 = vsel %vm1397, %v3996, %v3997
        %v3999 = vrot.slane %v3466, 1
        %v4000 = vsel %vm1397, %v3997, %v3999
        %v4001 = vrot.slane %v3467, 1
        %v4002 = vsel %vm1397, %v3999, %v4001
        %v4003 = vrot.slane %v3468, 1
        %v4004 = vsel %vm1397, %v4001, %v4003
        %v4005 = vrot.slane %v3469, 1
        %v4006 = vsel %vm1397, %v4003, %v4005
        %v4007 = vrot.slane %v3470, 1
        %v4008 = vsel %vm1397, %v4005, %v4007
        %v4009 = vrot.slane %v3471, 1
        %v4010 = vsel %vm1397, %v4007, %v4009
        %v4011 = vrot.slane %v3472, 1
        %v4012 = vsel %vm1397, %v4009, %v4011
        %v4013 = vrot.slane %v3473, 1
        %v4014 = vsel %vm1397, %v4011, %v4013
        %v4015 = vrot.slane %v3474, 1
        %v4016 = vsel %vm1397, %v4013, %v4015
        %v4017 = vrot.slane %v3475, 1
        %v4018 = vsel %vm1397, %v4015, %v4017
        %v4019 = vrot.slane %v3476, 1
        %v4020 = vsel %vm1397, %v4017, %v4019
        %v4021 = vrot.slane %v3477, 1
        %v4022 = vsel %vm1397, %v4019, %v4021
        %v4023 = vrot.slane %v3478, 1
        %v4024 = vsel %vm1397, %v4021, %v4023
        %v4025 = vrot.slane %v3479, 1
        %v4026 = vsel %vm1397, %v4023, %v4025
        %v4027 = vrot.slane %v3480, 1
        %v4028 = vsel %vm1397, %v4025, %v4027
        %v4029 = vrot.slane %v3481, 1
        %v4030 = vsel %vm1397, %v4027, %v4029
        %v4031 = vrot.slane %v3482, 1
        %v4032 = vsel %vm1397, %v4029, %v4031
        %v4033 = vrot.slane %v3483, 1
        %v4034 = vsel %vm1397, %v4031, %v4033
        %v4035 = vrot.slane %v3484, 1
        %v4036 = vsel %vm1397, %v4033, %v4035
        %v4037 = vrot.slane %v3485, 1
        %v4038 = vsel %vm1397, %v4035, %v4037
        %v4039 = vrot.slane %v3486, 1
        %v4040 = vsel %vm1397, %v4037, %v4039
        %v4041 = vrot.slane %v3487, 1
        %v4042 = vsel %vm1397, %v4039, %v4041
        %v4043 = vrot.slane %v3488, 1
        %v4044 = vsel %vm1397, %v4041, %v4043
        %4069 = vmatprep.subr.mxu0 0.0
        %4070 = vmatpush1.msra.mxu0 %v3979
        %4071 = vmatprep.subr.mxu0 0.0
        %4072 = vmatpush1.msra.mxu0 %v3980
        %4073 = vmatprep.subr.mxu0 0.0
        %4074 = vmatpush1.msra.mxu0 %v3981
        %4075 = vmatprep.subr.mxu0 0.0
        %4076 = vmatpush1.msra.mxu0 %v3982
        %4077 = vmatprep.subr.mxu0 0.0
        %4078 = vmatpush1.msra.mxu0 %v3983
        %4079 = vmatprep.subr.mxu0 0.0
        %4080 = vmatpush1.msra.mxu0 %v3984
        %4081 = vmatprep.subr.mxu0 0.0
        %4082 = vmatpush1.msra.mxu0 %v3985
        %4083 = vmatprep.subr.mxu0 0.0
        %4084 = vmatpush1.msra.mxu0 %v3986
        %4085 = vmatprep.subr.mxu0 0.0
        %4086 = vmatpush1.msra.mxu0 %v3987
        %4087 = vmatprep.subr.mxu0 0.0
        %4088 = vmatpush1.msra.mxu0 %v3988
        %4089 = vmatprep.subr.mxu0 0.0
        %4090 = vmatpush1.msra.mxu0 %v3989
        %4091 = vmatprep.subr.mxu0 0.0
        %4092 = vmatpush1.msra.mxu0 %v3990
        %4093 = vmatprep.subr.mxu0 0.0
        %4094 = vmatpush1.msra.mxu0 %v3991
        %4095 = vmatprep.subr.mxu0 0.0
        %4096 = vmatpush1.msra.mxu0 %v3992
        %4097 = vmatprep.subr.mxu0 0.0
        %4098 = vmatpush1.msra.mxu0 %v3993
        %4099 = vmatprep.subr.mxu0 0.0
        %4100 = vmatpush1.msra.mxu0 %v3994
        %4101 = vmatprep.subr.mxu0 0.0
        %4102 = vmatpush1.msra.mxu0 0.0
        %4103 = vmatprep.subr.mxu0 0.0
        %4104 = vmatpush1.msra.mxu0 0.0
        %4105 = vmatprep.subr.mxu0 0.0
        %4106 = vmatpush1.msra.mxu0 0.0
        %4107 = vmatprep.subr.mxu0 0.0
        %4108 = vmatpush1.msra.mxu0 0.0
        %4109 = vmatprep.subr.mxu0 0.0
        %4110 = vmatpush1.msra.mxu0 0.0
        %4111 = vmatprep.subr.mxu0 0.0
        %4112 = vmatpush1.msra.mxu0 0.0
        %4113 = vmatprep.subr.mxu0 0.0
        %4114 = vmatpush1.msra.mxu0 0.0
        %4115 = vmatprep.subr.mxu0 0.0
        %4116 = vmatpush1.msra.mxu0 0.0
        %4117 = vmatprep.subr.mxu0 0.0
        %4118 = vmatpush1.msra.mxu0 0.0
        %4119 = vmatprep.subr.mxu0 0.0
        %4120 = vmatpush1.msra.mxu0 0.0
        %4121 = vmatprep.subr.mxu0 0.0
        %4122 = vmatpush1.msra.mxu0 0.0
        %4123 = vmatprep.subr.mxu0 0.0
        %4124 = vmatpush1.msra.mxu0 0.0
        %4125 = vmatprep.subr.mxu0 0.0
        %4126 = vmatpush1.msra.mxu0 0.0
        %4127 = vmatprep.subr.mxu0 0.0
        %4128 = vmatpush1.msra.mxu0 0.0
        %4129 = vmatprep.subr.mxu0 0.0
        %4130 = vmatpush1.msra.mxu0 0.0
        %4131 = vmatprep.subr.mxu0 0.0
        %4132 = vmatpush1.msra.mxu0 0.0
        %4133 = vmatprep.mubr.f32.mxu0 0.0
        %4134 = vmatmul.mubr.f32.gmra.mrb[0].mxu0 %v3998
        %v4135 = vpop.f32.mrb[0].mxu0
        %v4136 = vadd.f32 0.0, %v4135
        %v4137 = vpop.f32.mrb[0].mxu0
        %4138 = vmatprep.mubr.f32.mxu0 0.0
        %4139 = vmatmul.mubr.f32.gmra.mrb[0].mxu0 %v4000
        %v4140 = vpop.f32.mrb[0].mxu0
        %v4141 = vadd.f32 0.0, %v4140
        %v4142 = vpop.f32.mrb[0].mxu0
        %4143 = vmatprep.mubr.f32.mxu0 0.0
        %4144 = vmatmul.mubr.f32.gmra.mrb[0].mxu0 %v4002
        %v4145 = vpop.f32.mrb[0].mxu0
        %v4146 = vpop.f32.mrb[0].mxu0
        %4147 = vmatprep.mubr.f32.mxu0 0.0
        %4148 = vmatmul.mubr.f32.gmra.mrb[0].mxu0 %v4004
        %v4149 = vpop.f32.mrb[0].mxu0
        %v4150 = vadd.f32 0.0, %v4149
        %v4151 = vpop.f32.mrb[0].mxu0
        %4152 = vmatprep.mubr.f32.mxu0 0.0
        %4153 = vmatmul.mubr.f32.gmra.mrb[0].mxu0 %v4006
        %v4154 = vpop.f32.mrb[0].mxu0
        %v4155 = vadd.f32 0.0, %v4154
        %v4156 = vpop.f32.mrb[0].mxu0
        %4157 = vmatprep.mubr.f32.mxu0 0.0
        %4158 = vmatmul.mubr.f32.gmra.mrb[0].mxu0 %v4008
        %v4159 = vpop.f32.mrb[0].mxu0
        %v4160 = vpop.f32.mrb[0].mxu0
        %4161 = vmatprep.mubr.f32.mxu0 0.0
        %4162 = vmatmul.mubr.f32.gmra.mrb[0].mxu0 %v4010
        %v4163 = vpop.f32.mrb[0].mxu0
        %v4164 = vadd.f32 0.0, %v4163
        %v4165 = vpop.f32.mrb[0].mxu0
        %4166 = vmatprep.mubr.f32.mxu0 0.0
        %4167 = vmatmul.mubr.f32.gmra.mrb[0].mxu0 %v4012
        %v4168 = vpop.f32.mrb[0].mxu0
        %v4169 = vadd.f32 0.0, %v4168
        %v4170 = vpop.f32.mrb[0].mxu0
        %4171 = vmatprep.mubr.f32.mxu0 0.0
        %4172 = vmatmul.mubr.f32.gmra.mrb[0].mxu0 %v4014
        %v4173 = vpop.f32.mrb[0].mxu0
        %v4174 = vpop.f32.mrb[0].mxu0
        %4175 = vmatprep.mubr.f32.mxu0 0.0
        %4176 = vmatmul.mubr.f32.gmra.mrb[0].mxu0 %v4016
        %v4177 = vpop.f32.mrb[0].mxu0
        %v4178 = vadd.f32 0.0, %v4177
        %v4179 = vpop.f32.mrb[0].mxu0
        %4180 = vmatprep.mubr.f32.mxu0 0.0
        %4181 = vmatmul.mubr.f32.gmra.mrb[0].mxu0 %v4018
        %v4182 = vpop.f32.mrb[0].mxu0
        %v4183 = vadd.f32 0.0, %v4182
        %v4184 = vpop.f32.mrb[0].mxu0
        %4185 = vmatprep.mubr.f32.mxu0 0.0
        %4186 = vmatmul.mubr.f32.gmra.mrb[0].mxu0 %v4020
        %v4187 = vpop.f32.mrb[0].mxu0
        %v4188 = vpop.f32.mrb[0].mxu0
        %4189 = vmatprep.mubr.f32.mxu0 0.0
        %4190 = vmatmul.mubr.f32.gmra.mrb[0].mxu0 %v4022
        %v4191 = vpop.f32.mrb[0].mxu0
        %v4192 = vadd.f32 0.0, %v4191
        %v4193 = vpop.f32.mrb[0].mxu0
        %4194 = vmatprep.mubr.f32.mxu0 0.0
        %4195 = vmatmul.mubr.f32.gmra.mrb[0].mxu0 %v4024
        %v4196 = vpop.f32.mrb[0].mxu0
        %v4197 = vadd.f32 0.0, %v4196
        %v4198 = vpop.f32.mrb[0].mxu0
        %4199 = vmatprep.mubr.f32.mxu0 0.0
        %4200 = vmatmul.mubr.f32.gmra.mrb[0].mxu0 %v4026
        %v4201 = vpop.f32.mrb[0].mxu0
        %v4202 = vpop.f32.mrb[0].mxu0
        %4203 = vmatprep.mubr.f32.mxu0 0.0
        %4204 = vmatmul.mubr.f32.gmra.mrb[0].mxu0 %v4028
        %v4205 = vpop.f32.mrb[0].mxu0
        %v4206 = vadd.f32 0.0, %v4205
        %v4207 = vpop.f32.mrb[0].mxu0
        %4208 = vmatprep.mubr.f32.mxu0 0.0
        %4209 = vmatmul.mubr.f32.gmra.mrb[0].mxu0 %v4030
        %v4210 = vpop.f32.mrb[0].mxu0
        %v4211 = vadd.f32 0.0, %v4210
        %v4212 = vpop.f32.mrb[0].mxu0
        %4213 = vmatprep.mubr.f32.mxu0 0.0
        %4214 = vmatmul.mubr.f32.gmra.mrb[0].mxu0 %v4032
        %v4215 = vpop.f32.mrb[0].mxu0
        %v4216 = vpop.f32.mrb[0].mxu0
        %4217 = vmatprep.mubr.f32.mxu0 0.0
        %4218 = vmatmul.mubr.f32.gmra.mrb[0].mxu0 %v4034
        %v4219 = vpop.f32.mrb[0].mxu0
        %v4220 = vadd.f32 0.0, %v4219
        %v4221 = vpop.f32.mrb[0].mxu0
        %4222 = vmatprep.mubr.f32.mxu0 0.0
        %4223 = vmatmul.mubr.f32.gmra.mrb[0].mxu0 %v4036
        %v4224 = vpop.f32.mrb[0].mxu0
        %v4225 = vadd.f32 0.0, %v4224
        %v4226 = vpop.f32.mrb[0].mxu0
        %4227 = vmatprep.mubr.f32.mxu0 0.0
        %4228 = vmatmul.mubr.f32.gmra.mrb[0].mxu0 %v4038
        %v4229 = vpop.f32.mrb[0].mxu0
        %v4230 = vpop.f32.mrb[0].mxu0
        %4231 = vmatprep.mubr.f32.mxu0 0.0
        %4232 = vmatmul.mubr.f32.gmra.mrb[0].mxu0 %v4040
        %v4233 = vpop.f32.mrb[0].mxu0
        %v4234 = vadd.f32 0.0, %v4233
        %v4235 = vpop.f32.mrb[0].mxu0
        %4236 = vmatprep.mubr.f32.mxu0 0.0
        %4237 = vmatmul.mubr.f32.gmra.mrb[0].mxu0 %v4042
        %v4238 = vpop.f32.mrb[0].mxu0
        %v4239 = vadd.f32 0.0, %v4238
        %v4240 = vpop.f32.mrb[0].mxu0
        %4241 = vmatprep.mubr.f32.mxu0 0.0
        %4242 = vmatmul.mubr.f32.gmra.mrb[0].mxu0 %v4044
        %v4243 = vpop.f32.mrb[0].mxu0
        %v4244 = vpop.f32.mrb[0].mxu0
        %4245 = vdwg.mxu0
        %v4246 = vadd.f32 %v3869, %v4136
        %v4247 = vadd.f32 %v3874, %v4141
        %v4248 = vadd.f32 %v3883, %v4150
        %v4249 = vadd.f32 %v3888, %v4155
        %v4250 = vadd.f32 %v3897, %v4164
        %v4251 = vadd.f32 %v3902, %v4169
        %v4252 = vadd.f32 %v3911, %v4178
        %v4253 = vadd.f32 %v3916, %v4183
        %v4254 = vadd.f32 %v3925, %v4192
        %v4255 = vadd.f32 %v3930, %v4197
        %v4256 = vadd.f32 %v3939, %v4206
        %v4257 = vadd.f32 %v3944, %v4211
        %v4258 = vadd.f32 %v3953, %v4220
        %v4259 = vadd.f32 %v3958, %v4225
        %v4260 = vadd.f32 %v3967, %v4234
        %v4261 = vadd.f32 %v3972, %v4239
        %v4262 = vld [vmem:[#allocation16 + $0x180] sm:$0xff]
        %v4263 = vld [vmem:[#allocation16 + $0x188] sm:$0xff]
        %v4264 = vld [vmem:[#allocation16 + $0x190] sm:$0xff]
        %v4265 = vld [vmem:[#allocation16 + $0x198] sm:$0xff]
        %v4266 = vld [vmem:[#allocation16 + $0x1a0] sm:$0xff]
        %v4267 = vld [vmem:[#allocation16 + $0x1a8] sm:$0xff]
        %v4268 = vld [vmem:[#allocation16 + $0x1b0] sm:$0xff]
        %v4269 = vld [vmem:[#allocation16 + $0x1b8] sm:$0xff]
        %v4270 = vld [vmem:[#allocation16 + $0x1c0] sm:$0xff]
        %v4271 = vld [vmem:[#allocation16 + $0x1c8] sm:$0xff]
        %v4272 = vld [vmem:[#allocation16 + $0x1d0] sm:$0xff]
        %v4273 = vld [vmem:[#allocation16 + $0x1d8] sm:$0xff]
        %v4274 = vld [vmem:[#allocation16 + $0x1e0] sm:$0xff]
        %v4275 = vld [vmem:[#allocation16 + $0x1e8] sm:$0xff]
        %v4276 = vld [vmem:[#allocation16 + $0x1f0] sm:$0xff]
        %v4277 = vld [vmem:[#allocation16 + $0x1f8] sm:$0xff]
        %v4280 = vrot.slane %v3488, 7
        %v4281 = vsel %vm1073, %v3776, %v4280
        %v4282 = vrot.slane %v3489, 7
        %v4283 = vsel %vm1073, %v4280, %v4282
        %v4284 = vrot.slane %v3490, 7
        %v4285 = vsel %vm1073, %v4282, %v4284
        %4289 = vmatprep.subr.mxu0 0.0
        %4290 = vmatpush1.msra.mxu0 %v4262
        %4291 = vmatprep.subr.mxu0 0.0
        %4292 = vmatpush1.msra.mxu0 %v4263
        %4293 = vmatprep.subr.mxu0 0.0
        %4294 = vmatpush1.msra.mxu0 %v4264
        %4295 = vmatprep.subr.mxu0 0.0
        %4296 = vmatpush1.msra.mxu0 %v4265
        %4297 = vmatprep.subr.mxu0 0.0
        %4298 = vmatpush1.msra.mxu0 %v4266
        %4299 = vmatprep.subr.mxu0 0.0
        %4300 = vmatpush1.msra.mxu0 %v4267
        %4301 = vmatprep.subr.mxu0 0.0
        %4302 = vmatpush1.msra.mxu0 %v4268
        %4303 = vmatprep.subr.mxu0 0.0
        %4304 = vmatpush1.msra.mxu0 %v4269
        %4305 = vmatprep.subr.mxu0 0.0
        %4306 = vmatpush1.msra.mxu0 %v4270
        %4307 = vmatprep.subr.mxu0 0.0
        %4308 = vmatpush1.msra.mxu0 %v4271
        %4309 = vmatprep.subr.mxu0 0.0
        %4310 = vmatpush1.msra.mxu0 %v4272
        %4311 = vmatprep.subr.mxu0 0.0
        %4312 = vmatpush1.msra.mxu0 %v4273
        %4313 = vmatprep.subr.mxu0 0.0
        %4314 = vmatpush1.msra.mxu0 %v4274
        %4315 = vmatprep.subr.mxu0 0.0
        %4316 = vmatpush1.msra.mxu0 %v4275
        %4317 = vmatprep.subr.mxu0 0.0
        %4318 = vmatpush1.msra.mxu0 %v4276
        %4319 = vmatprep.subr.mxu0 0.0
        %4320 = vmatpush1.msra.mxu0 %v4277
        %4321 = vmatprep.subr.mxu0 0.0
        %4322 = vmatpush1.msra.mxu0 0.0
        %4323 = vmatprep.subr.mxu0 0.0
        %4324 = vmatpush1.msra.mxu0 0.0
        %4325 = vmatprep.subr.mxu0 0.0
        %4326 = vmatpush1.msra.mxu0 0.0
        %4327 = vmatprep.subr.mxu0 0.0
        %4328 = vmatpush1.msra.mxu0 0.0
        %4329 = vmatprep.subr.mxu0 0.0
        %4330 = vmatpush1.msra.mxu0 0.0
        %4331 = vmatprep.subr.mxu0 0.0
        %4332 = vmatpush1.msra.mxu0 0.0
        %4333 = vmatprep.subr.mxu0 0.0
        %4334 = vmatpush1.msra.mxu0 0.0
        %4335 = vmatprep.subr.mxu0 0.0
        %4336 = vmatpush1.msra.mxu0 0.0
        %4337 = vmatprep.subr.mxu0 0.0
        %4338 = vmatpush1.msra.mxu0 0.0
        %4339 = vmatprep.subr.mxu0 0.0
        %4340 = vmatpush1.msra.mxu0 0.0
        %4341 = vmatprep.subr.mxu0 0.0
        %4342 = vmatpush1.msra.mxu0 0.0
        %4343 = vmatprep.subr.mxu0 0.0
        %4344 = vmatpush1.msra.mxu0 0.0
        %4345 = vmatprep.subr.mxu0 0.0
        %4346 = vmatpush1.msra.mxu0 0.0
        %4347 = vmatprep.subr.mxu0 0.0
        %4348 = vmatpush1.msra.mxu0 0.0
        %4349 = vmatprep.subr.mxu0 0.0
        %4350 = vmatpush1.msra.mxu0 0.0
        %4351 = vmatprep.subr.mxu0 0.0
        %4352 = vmatpush1.msra.mxu0 0.0
        %4353 = vmatprep.mubr.f32.mxu0 0.0
        %4354 = vmatmul.mubr.f32.gmra.mrb[0].mxu0 %v3737
        %v4355 = vpop.f32.mrb[0].mxu0
        %v4356 = vadd.f32 0.0, %v4355
        %v4357 = vpop.f32.mrb[0].mxu0
        %4358 = vmatprep.mubr.f32.mxu0 0.0
        %4359 = vmatmul.mubr.f32.gmra.mrb[0].mxu0 %v3739
        %v4360 = vpop.f32.mrb[0].mxu0
        %v4361 = vadd.f32 0.0, %v4360
        %v4362 = vpop.f32.mrb[0].mxu0
        %4363 = vmatprep.mubr.f32.mxu0 0.0
        %4364 = vmatmul.mubr.f32.gmra.mrb[0].mxu0 %v3741
        %v4365 = vpop.f32.mrb[0].mxu0
        %v4366 = vpop.f32.mrb[0].mxu0
        %4367 = vmatprep.mubr.f32.mxu0 0.0
        %4368 = vmatmul.mubr.f32.gmra.mrb[0].mxu0 %v3743
        %v4369 = vpop.f32.mrb[0].mxu0
        %v4370 = vadd.f32 0.0, %v4369
        %v4371 = vpop.f32.mrb[0].mxu0
        %4372 = vmatprep.mubr.f32.mxu0 0.0
        %4373 = vmatmul.mubr.f32.gmra.mrb[0].mxu0 %v3745
        %v4374 = vpop.f32.mrb[0].mxu0
        %v4375 = vadd.f32 0.0, %v4374
        %v4376 = vpop.f32.mrb[0].mxu0
        %4377 = vmatprep.mubr.f32.mxu0 0.0
        %4378 = vmatmul.mubr.f32.gmra.mrb[0].mxu0 %v3747
        %v4379 = vpop.f32.mrb[0].mxu0
        %v4380 = vpop.f32.mrb[0].mxu0
        %4381 = vmatprep.mubr.f32.mxu0 0.0
        %4382 = vmatmul.mubr.f32.gmra.mrb[0].mxu0 %v3749
        %v4383 = vpop.f32.mrb[0].mxu0
        %v4384 = vadd.f32 0.0, %v4383
        %v4385 = vpop.f32.mrb[0].mxu0
        %4386 = vmatprep.mubr.f32.mxu0 0.0
        %4387 = vmatmul.mubr.f32.gmra.mrb[0].mxu0 %v3751
        %v4388 = vpop.f32.mrb[0].mxu0
        %v4389 = vadd.f32 0.0, %v4388
        %v4390 = vpop.f32.mrb[0].mxu0
        %4391 = vmatprep.mubr.f32.mxu0 0.0
        %4392 = vmatmul.mubr.f32.gmra.mrb[0].mxu0 %v3753
        %v4393 = vpop.f32.mrb[0].mxu0
        %v4394 = vpop.f32.mrb[0].mxu0
        %4395 = vmatprep.mubr.f32.mxu0 0.0
        %4396 = vmatmul.mubr.f32.gmra.mrb[0].mxu0 %v3755
        %v4397 = vpop.f32.mrb[0].mxu0
        %v4398 = vadd.f32 0.0, %v4397
        %v4399 = vpop.f32.mrb[0].mxu0
        %4400 = vmatprep.mubr.f32.mxu0 0.0
        %4401 = vmatmul.mubr.f32.gmra.mrb[0].mxu0 %v3757
        %v4402 = vpop.f32.mrb[0].mxu0
        %v4403 = vadd.f32 0.0, %v4402
        %v4404 = vpop.f32.mrb[0].mxu0
        %4405 = vmatprep.mubr.f32.mxu0 0.0
        %4406 = vmatmul.mubr.f32.gmra.mrb[0].mxu0 %v3759
        %v4407 = vpop.f32.mrb[0].mxu0
        %v4408 = vpop.f32.mrb[0].mxu0
        %4409 = vmatprep.mubr.f32.mxu0 0.0
        %4410 = vmatmul.mubr.f32.gmra.mrb[0].mxu0 %v3761
        %v4411 = vpop.f32.mrb[0].mxu0
        %v4412 = vadd.f32 0.0, %v4411
        %v4413 = vpop.f32.mrb[0].mxu0
        %4414 = vmatprep.mubr.f32.mxu0 0.0
        %4415 = vmatmul.mubr.f32.gmra.mrb[0].mxu0 %v3763
        %v4416 = vpop.f32.mrb[0].mxu0
        %v4417 = vadd.f32 0.0, %v4416
        %v4418 = vpop.f32.mrb[0].mxu0
        %4419 = vmatprep.mubr.f32.mxu0 0.0
        %4420 = vmatmul.mubr.f32.gmra.mrb[0].mxu0 %v3765
        %v4421 = vpop.f32.mrb[0].mxu0
        %v4422 = vpop.f32.mrb[0].mxu0
        %4423 = vmatprep.mubr.f32.mxu0 0.0
        %4424 = vmatmul.mubr.f32.gmra.mrb[0].mxu0 %v3767
        %v4425 = vpop.f32.mrb[0].mxu0
        %v4426 = vadd.f32 0.0, %v4425
        %v4427 = vpop.f32.mrb[0].mxu0
        %4428 = vmatprep.mubr.f32.mxu0 0.0
        %4429 = vmatmul.mubr.f32.gmra.mrb[0].mxu0 %v3769
        %v4430 = vpop.f32.mrb[0].mxu0
        %v4431 = vadd.f32 0.0, %v4430
        %v4432 = vpop.f32.mrb[0].mxu0
        %4433 = vmatprep.mubr.f32.mxu0 0.0
        %4434 = vmatmul.mubr.f32.gmra.mrb[0].mxu0 %v3771
        %v4435 = vpop.f32.mrb[0].mxu0
        %v4436 = vpop.f32.mrb[0].mxu0
        %4437 = vmatprep.mubr.f32.mxu0 0.0
        %4438 = vmatmul.mubr.f32.gmra.mrb[0].mxu0 %v3773
        %v4439 = vpop.f32.mrb[0].mxu0
        %v4440 = vadd.f32 0.0, %v4439
        %v4441 = vpop.f32.mrb[0].mxu0
        %4442 = vmatprep.mubr.f32.mxu0 0.0
        %4443 = vmatmul.mubr.f32.gmra.mrb[0].mxu0 %v3775
        %v4444 = vpop.f32.mrb[0].mxu0
        %v4445 = vadd.f32 0.0, %v4444
        %v4446 = vpop.f32.mrb[0].mxu0
        %4447 = vmatprep.mubr.f32.mxu0 0.0
        %4448 = vmatmul.mubr.f32.gmra.mrb[0].mxu0 %v3777
        %v4449 = vpop.f32.mrb[0].mxu0
        %v4450 = vpop.f32.mrb[0].mxu0
        %4451 = vmatprep.mubr.f32.mxu0 0.0
        %4452 = vmatmul.mubr.f32.gmra.mrb[0].mxu0 %v4281
        %v4453 = vpop.f32.mrb[0].mxu0
        %v4454 = vadd.f32 0.0, %v4453
        %v4455 = vpop.f32.mrb[0].mxu0
        %4456 = vmatprep.mubr.f32.mxu0 0.0
        %4457 = vmatmul.mubr.f32.gmra.mrb[0].mxu0 %v4283
        %v4458 = vpop.f32.mrb[0].mxu0
        %v4459 = vadd.f32 0.0, %v4458
        %v4460 = vpop.f32.mrb[0].mxu0
        %4461 = vmatprep.mubr.f32.mxu0 0.0
        %4462 = vmatmul.mubr.f32.gmra.mrb[0].mxu0 %v4285
        %v4463 = vpop.f32.mrb[0].mxu0
        %v4464 = vpop.f32.mrb[0].mxu0
        %4465 = vdwg.mxu0
        %v4466 = vadd.f32 %v4246, %v4356
        %v4467 = vadd.f32 %v4247, %v4361
        %v4468 = vadd.f32 %v4248, %v4370
        %v4469 = vadd.f32 %v4249, %v4375
        %v4470 = vadd.f32 %v4250, %v4384
        %v4471 = vadd.f32 %v4251, %v4389
        %v4472 = vadd.f32 %v4252, %v4398
        %v4473 = vadd.f32 %v4253, %v4403
        %v4474 = vadd.f32 %v4254, %v4412
        %v4475 = vadd.f32 %v4255, %v4417
        %v4476 = vadd.f32 %v4256, %v4426
        %v4477 = vadd.f32 %v4257, %v4431
        %v4478 = vadd.f32 %v4258, %v4440
        %v4479 = vadd.f32 %v4259, %v4445
        %v4480 = vadd.f32 %v4260, %v4454
        %v4481 = vadd.f32 %v4261, %v4459
        %v4482 = vld [vmem:[#allocation16 + $0x200] sm:$0xff]
        %v4483 = vld [vmem:[#allocation16 + $0x208] sm:$0xff]
        %v4484 = vld [vmem:[#allocation16 + $0x210] sm:$0xff]
        %v4485 = vld [vmem:[#allocation16 + $0x218] sm:$0xff]
        %v4486 = vld [vmem:[#allocation16 + $0x220] sm:$0xff]
        %v4487 = vld [vmem:[#allocation16 + $0x228] sm:$0xff]
        %v4488 = vld [vmem:[#allocation16 + $0x230] sm:$0xff]
        %v4489 = vld [vmem:[#allocation16 + $0x238] sm:$0xff]
        %v4490 = vld [vmem:[#allocation16 + $0x240] sm:$0xff]
        %v4491 = vld [vmem:[#allocation16 + $0x248] sm:$0xff]
        %v4492 = vld [vmem:[#allocation16 + $0x250] sm:$0xff]
        %v4493 = vld [vmem:[#allocation16 + $0x258] sm:$0xff]
        %v4494 = vld [vmem:[#allocation16 + $0x260] sm:$0xff]
        %v4495 = vld [vmem:[#allocation16 + $0x268] sm:$0xff]
        %v4496 = vld [vmem:[#allocation16 + $0x270] sm:$0xff]
        %v4497 = vld [vmem:[#allocation16 + $0x278] sm:$0xff]
        %4498 = vmatprep.subr.mxu0 0.0
        %4499 = vmatpush1.msra.mxu0 %v4482
        %4500 = vmatprep.subr.mxu0 0.0
        %4501 = vmatpush1.msra.mxu0 %v4483
        %4502 = vmatprep.subr.mxu0 0.0
        %4503 = vmatpush1.msra.mxu0 %v4484
        %4504 = vmatprep.subr.mxu0 0.0
        %4505 = vmatpush1.msra.mxu0 %v4485
        %4506 = vmatprep.subr.mxu0 0.0
        %4507 = vmatpush1.msra.mxu0 %v4486
        %4508 = vmatprep.subr.mxu0 0.0
        %4509 = vmatpush1.msra.mxu0 %v4487
        %4510 = vmatprep.subr.mxu0 0.0
        %4511 = vmatpush1.msra.mxu0 %v4488
        %4512 = vmatprep.subr.mxu0 0.0
        %4513 = vmatpush1.msra.mxu0 %v4489
        %4514 = vmatprep.subr.mxu0 0.0
        %4515 = vmatpush1.msra.mxu0 %v4490
        %4516 = vmatprep.subr.mxu0 0.0
        %4517 = vmatpush1.msra.mxu0 %v4491
        %4518 = vmatprep.subr.mxu0 0.0
        %4519 = vmatpush1.msra.mxu0 %v4492
        %4520 = vmatprep.subr.mxu0 0.0
        %4521 = vmatpush1.msra.mxu0 %v4493
        %4522 = vmatprep.subr.mxu0 0.0
        %4523 = vmatpush1.msra.mxu0 %v4494
        %4524 = vmatprep.subr.mxu0 0.0
        %4525 = vmatpush1.msra.mxu0 %v4495
        %4526 = vmatprep.subr.mxu0 0.0
        %4527 = vmatpush1.msra.mxu0 %v4496
        %4528 = vmatprep.subr.mxu0 0.0
        %4529 = vmatpush1.msra.mxu0 %v4497
        %4530 = vmatprep.subr.mxu0 0.0
        %4531 = vmatpush1.msra.mxu0 0.0
        %4532 = vmatprep.subr.mxu0 0.0
        %4533 = vmatpush1.msra.mxu0 0.0
        %4534 = vmatprep.subr.mxu0 0.0
        %4535 = vmatpush1.msra.mxu0 0.0
        %4536 = vmatprep.subr.mxu0 0.0
        %4537 = vmatpush1.msra.mxu0 0.0
        %4538 = vmatprep.subr.mxu0 0.0
        %4539 = vmatpush1.msra.mxu0 0.0
        %4540 = vmatprep.subr.mxu0 0.0
        %4541 = vmatpush1.msra.mxu0 0.0
        %4542 = vmatprep.subr.mxu0 0.0
        %4543 = vmatpush1.msra.mxu0 0.0
        %4544 = vmatprep.subr.mxu0 0.0
        %4545 = vmatpush1.msra.mxu0 0.0
        %4546 = vmatprep.subr.mxu0 0.0
        %4547 = vmatpush1.msra.mxu0 0.0
        %4548 = vmatprep.subr.mxu0 0.0
        %4549 = vmatpush1.msra.mxu0 0.0
        %4550 = vmatprep.subr.mxu0 0.0
        %4551 = vmatpush1.msra.mxu0 0.0
        %4552 = vmatprep.subr.mxu0 0.0
        %4553 = vmatpush1.msra.mxu0 0.0
        %4554 = vmatprep.subr.mxu0 0.0
        %4555 = vmatpush1.msra.mxu0 0.0
        %4556 = vmatprep.subr.mxu0 0.0
        %4557 = vmatpush1.msra.mxu0 0.0
        %4558 = vmatprep.subr.mxu0 0.0
        %4559 = vmatpush1.msra.mxu0 0.0
        %4560 = vmatprep.subr.mxu0 0.0
        %4561 = vmatpush1.msra.mxu0 0.0
        %4562 = vmatprep.mubr.f32.mxu0 0.0
        %4563 = vmatmul.mubr.f32.gmra.mrb[0].mxu0 %v3467
        %v4564 = vpop.f32.mrb[0].mxu0
        %v4565 = vadd.f32 0.0, %v4564
        %v4566 = vpop.f32.mrb[0].mxu0
        %4567 = vmatprep.mubr.f32.mxu0 0.0
        %4568 = vmatmul.mubr.f32.gmra.mrb[0].mxu0 %v3468
        %v4569 = vpop.f32.mrb[0].mxu0
        %v4570 = vadd.f32 0.0, %v4569
        %v4571 = vpop.f32.mrb[0].mxu0
        %4572 = vmatprep.mubr.f32.mxu0 0.0
        %4573 = vmatmul.mubr.f32.gmra.mrb[0].mxu0 %v3469
        %v4574 = vpop.f32.mrb[0].mxu0
        %v4575 = vpop.f32.mrb[0].mxu0
        %4576 = vmatprep.mubr.f32.mxu0 0.0
        %4577 = vmatmul.mubr.f32.gmra.mrb[0].mxu0 %v3470
        %v4578 = vpop.f32.mrb[0].mxu0
        %v4579 = vadd.f32 0.0, %v4578
        %v4580 = vpop.f32.mrb[0].mxu0
        %4581 = vmatprep.mubr.f32.mxu0 0.0
        %4582 = vmatmul.mubr.f32.gmra.mrb[0].mxu0 %v3471
        %v4583 = vpop.f32.mrb[0].mxu0
        %v4584 = vadd.f32 0.0, %v4583
        %v4585 = vpop.f32.mrb[0].mxu0
        %4586 = vmatprep.mubr.f32.mxu0 0.0
        %4587 = vmatmul.mubr.f32.gmra.mrb[0].mxu0 %v3472
        %v4588 = vpop.f32.mrb[0].mxu0
        %v4589 = vpop.f32.mrb[0].mxu0
        %4590 = vmatprep.mubr.f32.mxu0 0.0
        %4591 = vmatmul.mubr.f32.gmra.mrb[0].mxu0 %v3473
        %v4592 = vpop.f32.mrb[0].mxu0
        %v4593 = vadd.f32 0.0, %v4592
        %v4594 = vpop.f32.mrb[0].mxu0
        %4595 = vmatprep.mubr.f32.mxu0 0.0
        %4596 = vmatmul.mubr.f32.gmra.mrb[0].mxu0 %v3474
        %v4597 = vpop.f32.mrb[0].mxu0
        %v4598 = vadd.f32 0.0, %v4597
        %v4599 = vpop.f32.mrb[0].mxu0
        %4600 = vmatprep.mubr.f32.mxu0 0.0
        %4601 = vmatmul.mubr.f32.gmra.mrb[0].mxu0 %v3475
        %v4602 = vpop.f32.mrb[0].mxu0
        %v4603 = vpop.f32.mrb[0].mxu0
        %4604 = vmatprep.mubr.f32.mxu0 0.0
        %4605 = vmatmul.mubr.f32.gmra.mrb[0].mxu0 %v3476
        %v4606 = vpop.f32.mrb[0].mxu0
        %v4607 = vadd.f32 0.0, %v4606
        %v4608 = vpop.f32.mrb[0].mxu0
        %4609 = vmatprep.mubr.f32.mxu0 0.0
        %4610 = vmatmul.mubr.f32.gmra.mrb[0].mxu0 %v3477
        %v4611 = vpop.f32.mrb[0].mxu0
        %v4612 = vadd.f32 0.0, %v4611
        %v4613 = vpop.f32.mrb[0].mxu0
        %4614 = vmatprep.mubr.f32.mxu0 0.0
        %4615 = vmatmul.mubr.f32.gmra.mrb[0].mxu0 %v3478
        %v4616 = vpop.f32.mrb[0].mxu0
        %v4617 = vpop.f32.mrb[0].mxu0
        %4618 = vmatprep.mubr.f32.mxu0 0.0
        %4619 = vmatmul.mubr.f32.gmra.mrb[0].mxu0 %v3479
        %v4620 = vpop.f32.mrb[0].mxu0
        %v4621 = vadd.f32 0.0, %v4620
        %v4622 = vpop.f32.mrb[0].mxu0
        %4623 = vmatprep.mubr.f32.mxu0 0.0
        %4624 = vmatmul.mubr.f32.gmra.mrb[0].mxu0 %v3480
        %v4625 = vpop.f32.mrb[0].mxu0
        %v4626 = vadd.f32 0.0, %v4625
        %v4627 = vpop.f32.mrb[0].mxu0
        %4628 = vmatprep.mubr.f32.mxu0 0.0
        %4629 = vmatmul.mubr.f32.gmra.mrb[0].mxu0 %v3481
        %v4630 = vpop.f32.mrb[0].mxu0
        %v4631 = vpop.f32.mrb[0].mxu0
        %4632 = vmatprep.mubr.f32.mxu0 0.0
        %4633 = vmatmul.mubr.f32.gmra.mrb[0].mxu0 %v3482
        %v4634 = vpop.f32.mrb[0].mxu0
        %v4635 = vadd.f32 0.0, %v4634
        %v4636 = vpop.f32.mrb[0].mxu0
        %4637 = vmatprep.mubr.f32.mxu0 0.0
        %4638 = vmatmul.mubr.f32.gmra.mrb[0].mxu0 %v3483
        %v4639 = vpop.f32.mrb[0].mxu0
        %v4640 = vadd.f32 0.0, %v4639
        %v4641 = vpop.f32.mrb[0].mxu0
        %4642 = vmatprep.mubr.f32.mxu0 0.0
        %4643 = vmatmul.mubr.f32.gmra.mrb[0].mxu0 %v3484
        %v4644 = vpop.f32.mrb[0].mxu0
        %v4645 = vpop.f32.mrb[0].mxu0
        %4646 = vmatprep.mubr.f32.mxu0 0.0
        %4647 = vmatmul.mubr.f32.gmra.mrb[0].mxu0 %v3485
        %v4648 = vpop.f32.mrb[0].mxu0
        %v4649 = vadd.f32 0.0, %v4648
        %v4650 = vpop.f32.mrb[0].mxu0
        %4651 = vmatprep.mubr.f32.mxu0 0.0
        %4652 = vmatmul.mubr.f32.gmra.mrb[0].mxu0 %v3486
        %v4653 = vpop.f32.mrb[0].mxu0
        %v4654 = vadd.f32 0.0, %v4653
        %v4655 = vpop.f32.mrb[0].mxu0
        %4656 = vmatprep.mubr.f32.mxu0 0.0
        %4657 = vmatmul.mubr.f32.gmra.mrb[0].mxu0 %v3487
        %v4658 = vpop.f32.mrb[0].mxu0
        %v4659 = vpop.f32.mrb[0].mxu0
        %4660 = vmatprep.mubr.f32.mxu0 0.0
        %4661 = vmatmul.mubr.f32.gmra.mrb[0].mxu0 %v3488
        %v4662 = vpop.f32.mrb[0].mxu0
        %v4663 = vadd.f32 0.0, %v4662
        %v4664 = vpop.f32.mrb[0].mxu0
        %4665 = vmatprep.mubr.f32.mxu0 0.0
        %4666 = vmatmul.mubr.f32.gmra.mrb[0].mxu0 %v3489
        %v4667 = vpop.f32.mrb[0].mxu0
        %v4668 = vadd.f32 0.0, %v4667
        %v4669 = vpop.f32.mrb[0].mxu0
        %4670 = vmatprep.mubr.f32.mxu0 0.0
        %4671 = vmatmul.mubr.f32.gmra.mrb[0].mxu0 %v3490
        %v4672 = vpop.f32.mrb[0].mxu0
        %v4673 = vpop.f32.mrb[0].mxu0
        %4674 = vdwg.mxu0
        %v4675 = vadd.f32 %v4466, %v4565
        %v4676 = vadd.f32 %v4467, %v4570
        %v4677 = vadd.f32 %v4468, %v4579
        %v4678 = vadd.f32 %v4469, %v4584
        %v4679 = vadd.f32 %v4470, %v4593
        %v4680 = vadd.f32 %v4471, %v4598
        %v4681 = vadd.f32 %v4472, %v4607
        %v4682 = vadd.f32 %v4473, %v4612
        %v4683 = vadd.f32 %v4474, %v4621
        %v4684 = vadd.f32 %v4475, %v4626
        %v4685 = vadd.f32 %v4476, %v4635
        %v4686 = vadd.f32 %v4477, %v4640
        %v4687 = vadd.f32 %v4478, %v4649
        %v4688 = vadd.f32 %v4479, %v4654
        %v4689 = vadd.f32 %v4480, %v4663
        %v4690 = vadd.f32 %v4481, %v4668
        %v4691 = vld [vmem:[#allocation16 + $0x280] sm:$0xff]
        %v4692 = vld [vmem:[#allocation16 + $0x288] sm:$0xff]
        %v4693 = vld [vmem:[#allocation16 + $0x290] sm:$0xff]
        %v4694 = vld [vmem:[#allocation16 + $0x298] sm:$0xff]
        %v4695 = vld [vmem:[#allocation16 + $0x2a0] sm:$0xff]
        %v4696 = vld [vmem:[#allocation16 + $0x2a8] sm:$0xff]
        %v4697 = vld [vmem:[#allocation16 + $0x2b0] sm:$0xff]
        %v4698 = vld [vmem:[#allocation16 + $0x2b8] sm:$0xff]
        %v4699 = vld [vmem:[#allocation16 + $0x2c0] sm:$0xff]
        %v4700 = vld [vmem:[#allocation16 + $0x2c8] sm:$0xff]
        %v4701 = vld [vmem:[#allocation16 + $0x2d0] sm:$0xff]
        %v4702 = vld [vmem:[#allocation16 + $0x2d8] sm:$0xff]
        %v4703 = vld [vmem:[#allocation16 + $0x2e0] sm:$0xff]
        %v4704 = vld [vmem:[#allocation16 + $0x2e8] sm:$0xff]
        %v4705 = vld [vmem:[#allocation16 + $0x2f0] sm:$0xff]
        %v4706 = vld [vmem:[#allocation16 + $0x2f8] sm:$0xff]
        %v4708 = vrot.slane %v3489, 1
        %v4709 = vsel %vm1397, %v4043, %v4708
        %v4710 = vrot.slane %v3490, 1
        %v4711 = vsel %vm1397, %v4708, %v4710
        %v4712 = vrot.slane %v3491, 1
        %v4713 = vsel %vm1397, %v4710, %v4712
        %4717 = vmatprep.subr.mxu0 0.0
        %4718 = vmatpush1.msra.mxu0 %v4691
        %4719 = vmatprep.subr.mxu0 0.0
        %4720 = vmatpush1.msra.mxu0 %v4692
        %4721 = vmatprep.subr.mxu0 0.0
        %4722 = vmatpush1.msra.mxu0 %v4693
        %4723 = vmatprep.subr.mxu0 0.0
        %4724 = vmatpush1.msra.mxu0 %v4694
        %4725 = vmatprep.subr.mxu0 0.0
        %4726 = vmatpush1.msra.mxu0 %v4695
        %4727 = vmatprep.subr.mxu0 0.0
        %4728 = vmatpush1.msra.mxu0 %v4696
        %4729 = vmatprep.subr.mxu0 0.0
        %4730 = vmatpush1.msra.mxu0 %v4697
        %4731 = vmatprep.subr.mxu0 0.0
        %4732 = vmatpush1.msra.mxu0 %v4698
        %4733 = vmatprep.subr.mxu0 0.0
        %4734 = vmatpush1.msra.mxu0 %v4699
        %4735 = vmatprep.subr.mxu0 0.0
        %4736 = vmatpush1.msra.mxu0 %v4700
        %4737 = vmatprep.subr.mxu0 0.0
        %4738 = vmatpush1.msra.mxu0 %v4701
        %4739 = vmatprep.subr.mxu0 0.0
        %4740 = vmatpush1.msra.mxu0 %v4702
        %4741 = vmatprep.subr.mxu0 0.0
        %4742 = vmatpush1.msra.mxu0 %v4703
        %4743 = vmatprep.subr.mxu0 0.0
        %4744 = vmatpush1.msra.mxu0 %v4704
        %4745 = vmatprep.subr.mxu0 0.0
        %4746 = vmatpush1.msra.mxu0 %v4705
        %4747 = vmatprep.subr.mxu0 0.0
        %4748 = vmatpush1.msra.mxu0 %v4706
        %4749 = vmatprep.subr.mxu0 0.0
        %4750 = vmatpush1.msra.mxu0 0.0
        %4751 = vmatprep.subr.mxu0 0.0
        %4752 = vmatpush1.msra.mxu0 0.0
        %4753 = vmatprep.subr.mxu0 0.0
        %4754 = vmatpush1.msra.mxu0 0.0
        %4755 = vmatprep.subr.mxu0 0.0
        %4756 = vmatpush1.msra.mxu0 0.0
        %4757 = vmatprep.subr.mxu0 0.0
        %4758 = vmatpush1.msra.mxu0 0.0
        %4759 = vmatprep.subr.mxu0 0.0
        %4760 = vmatpush1.msra.mxu0 0.0
        %4761 = vmatprep.subr.mxu0 0.0
        %4762 = vmatpush1.msra.mxu0 0.0
        %4763 = vmatprep.subr.mxu0 0.0
        %4764 = vmatpush1.msra.mxu0 0.0
        %4765 = vmatprep.subr.mxu0 0.0
        %4766 = vmatpush1.msra.mxu0 0.0
        %4767 = vmatprep.subr.mxu0 0.0
        %4768 = vmatpush1.msra.mxu0 0.0
        %4769 = vmatprep.subr.mxu0 0.0
        %4770 = vmatpush1.msra.mxu0 0.0
        %4771 = vmatprep.subr.mxu0 0.0
        %4772 = vmatpush1.msra.mxu0 0.0
        %4773 = vmatprep.subr.mxu0 0.0
        %4774 = vmatpush1.msra.mxu0 0.0
        %4775 = vmatprep.subr.mxu0 0.0
        %4776 = vmatpush1.msra.mxu0 0.0
        %4777 = vmatprep.subr.mxu0 0.0
        %4778 = vmatpush1.msra.mxu0 0.0
        %4779 = vmatprep.subr.mxu0 0.0
        %4780 = vmatpush1.msra.mxu0 0.0
        %4781 = vmatprep.mubr.f32.mxu0 0.0
        %4782 = vmatmul.mubr.f32.gmra.mrb[0].mxu0 %v4004
        %v4783 = vpop.f32.mrb[0].mxu0
        %v4784 = vadd.f32 0.0, %v4783
        %v4785 = vpop.f32.mrb[0].mxu0
        %4786 = vmatprep.mubr.f32.mxu0 0.0
        %4787 = vmatmul.mubr.f32.gmra.mrb[0].mxu0 %v4006
        %v4788 = vpop.f32.mrb[0].mxu0
        %v4789 = vadd.f32 0.0, %v4788
        %v4790 = vpop.f32.mrb[0].mxu0
        %4791 = vmatprep.mubr.f32.mxu0 0.0
        %4792 = vmatmul.mubr.f32.gmra.mrb[0].mxu0 %v4008
        %v4793 = vpop.f32.mrb[0].mxu0
        %v4794 = vpop.f32.mrb[0].mxu0
        %4795 = vmatprep.mubr.f32.mxu0 0.0
        %4796 = vmatmul.mubr.f32.gmra.mrb[0].mxu0 %v4010
        %v4797 = vpop.f32.mrb[0].mxu0
        %v4798 = vadd.f32 0.0, %v4797
        %v4799 = vpop.f32.mrb[0].mxu0
        %4800 = vmatprep.mubr.f32.mxu0 0.0
        %4801 = vmatmul.mubr.f32.gmra.mrb[0].mxu0 %v4012
        %v4802 = vpop.f32.mrb[0].mxu0
        %v4803 = vadd.f32 0.0, %v4802
        %v4804 = vpop.f32.mrb[0].mxu0
        %4805 = vmatprep.mubr.f32.mxu0 0.0
        %4806 = vmatmul.mubr.f32.gmra.mrb[0].mxu0 %v4014
        %v4807 = vpop.f32.mrb[0].mxu0
        %v4808 = vpop.f32.mrb[0].mxu0
        %4809 = vmatprep.mubr.f32.mxu0 0.0
        %4810 = vmatmul.mubr.f32.gmra.mrb[0].mxu0 %v4016
        %v4811 = vpop.f32.mrb[0].mxu0
        %v4812 = vadd.f32 0.0, %v4811
        %v4813 = vpop.f32.mrb[0].mxu0
        %4814 = vmatprep.mubr.f32.mxu0 0.0
        %4815 = vmatmul.mubr.f32.gmra.mrb[0].mxu0 %v4018
        %v4816 = vpop.f32.mrb[0].mxu0
        %v4817 = vadd.f32 0.0, %v4816
        %v4818 = vpop.f32.mrb[0].mxu0
        %4819 = vmatprep.mubr.f32.mxu0 0.0
        %4820 = vmatmul.mubr.f32.gmra.mrb[0].mxu0 %v4020
        %v4821 = vpop.f32.mrb[0].mxu0
        %v4822 = vpop.f32.mrb[0].mxu0
        %4823 = vmatprep.mubr.f32.mxu0 0.0
        %4824 = vmatmul.mubr.f32.gmra.mrb[0].mxu0 %v4022
        %v4825 = vpop.f32.mrb[0].mxu0
        %v4826 = vadd.f32 0.0, %v4825
        %v4827 = vpop.f32.mrb[0].mxu0
        %4828 = vmatprep.mubr.f32.mxu0 0.0
        %4829 = vmatmul.mubr.f32.gmra.mrb[0].mxu0 %v4024
        %v4830 = vpop.f32.mrb[0].mxu0
        %v4831 = vadd.f32 0.0, %v4830
        %v4832 = vpop.f32.mrb[0].mxu0
        %4833 = vmatprep.mubr.f32.mxu0 0.0
        %4834 = vmatmul.mubr.f32.gmra.mrb[0].mxu0 %v4026
        %v4835 = vpop.f32.mrb[0].mxu0
        %v4836 = vpop.f32.mrb[0].mxu0
        %4837 = vmatprep.mubr.f32.mxu0 0.0
        %4838 = vmatmul.mubr.f32.gmra.mrb[0].mxu0 %v4028
        %v4839 = vpop.f32.mrb[0].mxu0
        %v4840 = vadd.f32 0.0, %v4839
        %v4841 = vpop.f32.mrb[0].mxu0
        %4842 = vmatprep.mubr.f32.mxu0 0.0
        %4843 = vmatmul.mubr.f32.gmra.mrb[0].mxu0 %v4030
        %v4844 = vpop.f32.mrb[0].mxu0
        %v4845 = vadd.f32 0.0, %v4844
        %v4846 = vpop.f32.mrb[0].mxu0
        %4847 = vmatprep.mubr.f32.mxu0 0.0
        %4848 = vmatmul.mubr.f32.gmra.mrb[0].mxu0 %v4032
        %v4849 = vpop.f32.mrb[0].mxu0
        %v4850 = vpop.f32.mrb[0].mxu0
        %4851 = vmatprep.mubr.f32.mxu0 0.0
        %4852 = vmatmul.mubr.f32.gmra.mrb[0].mxu0 %v4034
        %v4853 = vpop.f32.mrb[0].mxu0
        %v4854 = vadd.f32 0.0, %v4853
        %v4855 = vpop.f32.mrb[0].mxu0
        %4856 = vmatprep.mubr.f32.mxu0 0.0
        %4857 = vmatmul.mubr.f32.gmra.mrb[0].mxu0 %v4036
        %v4858 = vpop.f32.mrb[0].mxu0
        %v4859 = vadd.f32 0.0, %v4858
        %v4860 = vpop.f32.mrb[0].mxu0
        %4861 = vmatprep.mubr.f32.mxu0 0.0
        %4862 = vmatmul.mubr.f32.gmra.mrb[0].mxu0 %v4038
        %v4863 = vpop.f32.mrb[0].mxu0
        %v4864 = vpop.f32.mrb[0].mxu0
        %4865 = vmatprep.mubr.f32.mxu0 0.0
        %4866 = vmatmul.mubr.f32.gmra.mrb[0].mxu0 %v4040
        %v4867 = vpop.f32.mrb[0].mxu0
        %v4868 = vadd.f32 0.0, %v4867
        %v4869 = vpop.f32.mrb[0].mxu0
        %4870 = vmatprep.mubr.f32.mxu0 0.0
        %4871 = vmatmul.mubr.f32.gmra.mrb[0].mxu0 %v4042
        %v4872 = vpop.f32.mrb[0].mxu0
        %v4873 = vadd.f32 0.0, %v4872
        %v4874 = vpop.f32.mrb[0].mxu0
        %4875 = vmatprep.mubr.f32.mxu0 0.0
        %4876 = vmatmul.mubr.f32.gmra.mrb[0].mxu0 %v4044
        %v4877 = vpop.f32.mrb[0].mxu0
        %v4878 = vpop.f32.mrb[0].mxu0
        %4879 = vmatprep.mubr.f32.mxu0 0.0
        %4880 = vmatmul.mubr.f32.gmra.mrb[0].mxu0 %v4709
        %v4881 = vpop.f32.mrb[0].mxu0
        %v4882 = vadd.f32 0.0, %v4881
        %v4883 = vpop.f32.mrb[0].mxu0
        %4884 = vmatprep.mubr.f32.mxu0 0.0
        %4885 = vmatmul.mubr.f32.gmra.mrb[0].mxu0 %v4711
        %v4886 = vpop.f32.mrb[0].mxu0
        %v4887 = vadd.f32 0.0, %v4886
        %v4888 = vpop.f32.mrb[0].mxu0
        %4889 = vmatprep.mubr.f32.mxu0 0.0
        %4890 = vmatmul.mubr.f32.gmra.mrb[0].mxu0 %v4713
        %v4891 = vpop.f32.mrb[0].mxu0
        %v4892 = vpop.f32.mrb[0].mxu0
        %4893 = vdwg.mxu0
        %v4894 = vadd.f32 %v4675, %v4784
        %v4895 = vadd.f32 %v4676, %v4789
        %v4896 = vadd.f32 %v4677, %v4798
        %v4897 = vadd.f32 %v4678, %v4803
        %v4898 = vadd.f32 %v4679, %v4812
        %v4899 = vadd.f32 %v4680, %v4817
        %v4900 = vadd.f32 %v4681, %v4826
        %v4901 = vadd.f32 %v4682, %v4831
        %v4902 = vadd.f32 %v4683, %v4840
        %v4903 = vadd.f32 %v4684, %v4845
        %v4904 = vadd.f32 %v4685, %v4854
        %v4905 = vadd.f32 %v4686, %v4859
        %v4906 = vadd.f32 %v4687, %v4868
        %v4907 = vadd.f32 %v4688, %v4873
        %v4908 = vadd.f32 %v4689, %v4882
        %v4909 = vadd.f32 %v4690, %v4887
        %v4910 = vld [vmem:[#allocation16 + $0x300] sm:$0xff]
        %v4911 = vld [vmem:[#allocation16 + $0x308] sm:$0xff]
        %v4912 = vld [vmem:[#allocation16 + $0x310] sm:$0xff]
        %v4913 = vld [vmem:[#allocation16 + $0x318] sm:$0xff]
        %v4914 = vld [vmem:[#allocation16 + $0x320] sm:$0xff]
        %v4915 = vld [vmem:[#allocation16 + $0x328] sm:$0xff]
        %v4916 = vld [vmem:[#allocation16 + $0x330] sm:$0xff]
        %v4917 = vld [vmem:[#allocation16 + $0x338] sm:$0xff]
        %v4918 = vld [vmem:[#allocation16 + $0x340] sm:$0xff]
        %v4919 = vld [vmem:[#allocation16 + $0x348] sm:$0xff]
        %v4920 = vld [vmem:[#allocation16 + $0x350] sm:$0xff]
        %v4921 = vld [vmem:[#allocation16 + $0x358] sm:$0xff]
        %v4922 = vld [vmem:[#allocation16 + $0x360] sm:$0xff]
        %v4923 = vld [vmem:[#allocation16 + $0x368] sm:$0xff]
        %v4924 = vld [vmem:[#allocation16 + $0x370] sm:$0xff]
        %v4925 = vld [vmem:[#allocation16 + $0x378] sm:$0xff]
        %v4928 = vrot.slane %v3491, 7
        %v4929 = vsel %vm1073, %v4284, %v4928
        %v4930 = vrot.slane %v3492, 7
        %v4931 = vsel %vm1073, %v4928, %v4930
        %v4932 = vrot.slane %v3493, 7
        %v4933 = vsel %vm1073, %v4930, %v4932
        %4937 = vmatprep.subr.mxu0 0.0
        %4938 = vmatpush1.msra.mxu0 %v4910
        %4939 = vmatprep.subr.mxu0 0.0
        %4940 = vmatpush1.msra.mxu0 %v4911
        %4941 = vmatprep.subr.mxu0 0.0
        %4942 = vmatpush1.msra.mxu0 %v4912
        %4943 = vmatprep.subr.mxu0 0.0
        %4944 = vmatpush1.msra.mxu0 %v4913
        %4945 = vmatprep.subr.mxu0 0.0
        %4946 = vmatpush1.msra.mxu0 %v4914
        %4947 = vmatprep.subr.mxu0 0.0
        %4948 = vmatpush1.msra.mxu0 %v4915
        %4949 = vmatprep.subr.mxu0 0.0
        %4950 = vmatpush1.msra.mxu0 %v4916
        %4951 = vmatprep.subr.mxu0 0.0
        %4952 = vmatpush1.msra.mxu0 %v4917
        %4953 = vmatprep.subr.mxu0 0.0
        %4954 = vmatpush1.msra.mxu0 %v4918
        %4955 = vmatprep.subr.mxu0 0.0
        %4956 = vmatpush1.msra.mxu0 %v4919
        %4957 = vmatprep.subr.mxu0 0.0
        %4958 = vmatpush1.msra.mxu0 %v4920
        %4959 = vmatprep.subr.mxu0 0.0
        %4960 = vmatpush1.msra.mxu0 %v4921
        %4961 = vmatprep.subr.mxu0 0.0
        %4962 = vmatpush1.msra.mxu0 %v4922
        %4963 = vmatprep.subr.mxu0 0.0
        %4964 = vmatpush1.msra.mxu0 %v4923
        %4965 = vmatprep.subr.mxu0 0.0
        %4966 = vmatpush1.msra.mxu0 %v4924
        %4967 = vmatprep.subr.mxu0 0.0
        %4968 = vmatpush1.msra.mxu0 %v4925
        %4969 = vmatprep.subr.mxu0 0.0
        %4970 = vmatpush1.msra.mxu0 0.0
        %4971 = vmatprep.subr.mxu0 0.0
        %4972 = vmatpush1.msra.mxu0 0.0
        %4973 = vmatprep.subr.mxu0 0.0
        %4974 = vmatpush1.msra.mxu0 0.0
        %4975 = vmatprep.subr.mxu0 0.0
        %4976 = vmatpush1.msra.mxu0 0.0
        %4977 = vmatprep.subr.mxu0 0.0
        %4978 = vmatpush1.msra.mxu0 0.0
        %4979 = vmatprep.subr.mxu0 0.0
        %4980 = vmatpush1.msra.mxu0 0.0
        %4981 = vmatprep.subr.mxu0 0.0
        %4982 = vmatpush1.msra.mxu0 0.0
        %4983 = vmatprep.subr.mxu0 0.0
        %4984 = vmatpush1.msra.mxu0 0.0
        %4985 = vmatprep.subr.mxu0 0.0
        %4986 = vmatpush1.msra.mxu0 0.0
        %4987 = vmatprep.subr.mxu0 0.0
        %4988 = vmatpush1.msra.mxu0 0.0
        %4989 = vmatprep.subr.mxu0 0.0
        %4990 = vmatpush1.msra.mxu0 0.0
        %4991 = vmatprep.subr.mxu0 0.0
        %4992 = vmatpush1.msra.mxu0 0.0
        %4993 = vmatprep.subr.mxu0 0.0
        %4994 = vmatpush1.msra.mxu0 0.0
        %4995 = vmatprep.subr.mxu0 0.0
        %4996 = vmatpush1.msra.mxu0 0.0
        %4997 = vmatprep.subr.mxu0 0.0
        %4998 = vmatpush1.msra.mxu0 0.0
        %4999 = vmatprep.subr.mxu0 0.0
        %5000 = vmatpush1.msra.mxu0 0.0
        %5001 = vmatprep.mubr.f32.mxu0 0.0
        %5002 = vmatmul.mubr.f32.gmra.mrb[0].mxu0 %v3743
        %v5003 = vpop.f32.mrb[0].mxu0
        %v5004 = vadd.f32 0.0, %v5003
        %v5005 = vpop.f32.mrb[0].mxu0
        %5006 = vmatprep.mubr.f32.mxu0 0.0
        %5007 = vmatmul.mubr.f32.gmra.mrb[0].mxu0 %v3745
        %v5008 = vpop.f32.mrb[0].mxu0
        %v5009 = vadd.f32 0.0, %v5008
        %v5010 = vpop.f32.mrb[0].mxu0
        %5011 = vmatprep.mubr.f32.mxu0 0.0
        %5012 = vmatmul.mubr.f32.gmra.mrb[0].mxu0 %v3747
        %v5013 = vpop.f32.mrb[0].mxu0
        %v5014 = vpop.f32.mrb[0].mxu0
        %5015 = vmatprep.mubr.f32.mxu0 0.0
        %5016 = vmatmul.mubr.f32.gmra.mrb[0].mxu0 %v3749
        %v5017 = vpop.f32.mrb[0].mxu0
        %v5018 = vadd.f32 0.0, %v5017
        %v5019 = vpop.f32.mrb[0].mxu0
        %5020 = vmatprep.mubr.f32.mxu0 0.0
        %5021 = vmatmul.mubr.f32.gmra.mrb[0].mxu0 %v3751
        %v5022 = vpop.f32.mrb[0].mxu0
        %v5023 = vadd.f32 0.0, %v5022
        %v5024 = vpop.f32.mrb[0].mxu0
        %5025 = vmatprep.mubr.f32.mxu0 0.0
        %5026 = vmatmul.mubr.f32.gmra.mrb[0].mxu0 %v3753
        %v5027 = vpop.f32.mrb[0].mxu0
        %v5028 = vpop.f32.mrb[0].mxu0
        %5029 = vmatprep.mubr.f32.mxu0 0.0
        %5030 = vmatmul.mubr.f32.gmra.mrb[0].mxu0 %v3755
        %v5031 = vpop.f32.mrb[0].mxu0
        %v5032 = vadd.f32 0.0, %v5031
        %v5033 = vpop.f32.mrb[0].mxu0
        %5034 = vmatprep.mubr.f32.mxu0 0.0
        %5035 = vmatmul.mubr.f32.gmra.mrb[0].mxu0 %v3757
        %v5036 = vpop.f32.mrb[0].mxu0
        %v5037 = vadd.f32 0.0, %v5036
        %v5038 = vpop.f32.mrb[0].mxu0
        %5039 = vmatprep.mubr.f32.mxu0 0.0
        %5040 = vmatmul.mubr.f32.gmra.mrb[0].mxu0 %v3759
        %v5041 = vpop.f32.mrb[0].mxu0
        %v5042 = vpop.f32.mrb[0].mxu0
        %5043 = vmatprep.mubr.f32.mxu0 0.0
        %5044 = vmatmul.mubr.f32.gmra.mrb[0].mxu0 %v3761
        %v5045 = vpop.f32.mrb[0].mxu0
        %v5046 = vadd.f32 0.0, %v5045
        %v5047 = vpop.f32.mrb[0].mxu0
        %5048 = vmatprep.mubr.f32.mxu0 0.0
        %5049 = vmatmul.mubr.f32.gmra.mrb[0].mxu0 %v3763
        %v5050 = vpop.f32.mrb[0].mxu0
        %v5051 = vadd.f32 0.0, %v5050
        %v5052 = vpop.f32.mrb[0].mxu0
        %5053 = vmatprep.mubr.f32.mxu0 0.0
        %5054 = vmatmul.mubr.f32.gmra.mrb[0].mxu0 %v3765
        %v5055 = vpop.f32.mrb[0].mxu0
        %v5056 = vpop.f32.mrb[0].mxu0
        %5057 = vmatprep.mubr.f32.mxu0 0.0
        %5058 = vmatmul.mubr.f32.gmra.mrb[0].mxu0 %v3767
        %v5059 = vpop.f32.mrb[0].mxu0
        %v5060 = vadd.f32 0.0, %v5059
        %v5061 = vpop.f32.mrb[0].mxu0
        %5062 = vmatprep.mubr.f32.mxu0 0.0
        %5063 = vmatmul.mubr.f32.gmra.mrb[0].mxu0 %v3769
        %v5064 = vpop.f32.mrb[0].mxu0
        %v5065 = vadd.f32 0.0, %v5064
        %v5066 = vpop.f32.mrb[0].mxu0
        %5067 = vmatprep.mubr.f32.mxu0 0.0
        %5068 = vmatmul.mubr.f32.gmra.mrb[0].mxu0 %v3771
        %v5069 = vpop.f32.mrb[0].mxu0
        %v5070 = vpop.f32.mrb[0].mxu0
        %5071 = vmatprep.mubr.f32.mxu0 0.0
        %5072 = vmatmul.mubr.f32.gmra.mrb[0].mxu0 %v3773
        %v5073 = vpop.f32.mrb[0].mxu0
        %v5074 = vadd.f32 0.0, %v5073
        %v5075 = vpop.f32.mrb[0].mxu0
        %5076 = vmatprep.mubr.f32.mxu0 0.0
        %5077 = vmatmul.mubr.f32.gmra.mrb[0].mxu0 %v3775
        %v5078 = vpop.f32.mrb[0].mxu0
        %v5079 = vadd.f32 0.0, %v5078
        %v5080 = vpop.f32.mrb[0].mxu0
        %5081 = vmatprep.mubr.f32.mxu0 0.0
        %5082 = vmatmul.mubr.f32.gmra.mrb[0].mxu0 %v3777
        %v5083 = vpop.f32.mrb[0].mxu0
        %v5084 = vpop.f32.mrb[0].mxu0
        %5085 = vmatprep.mubr.f32.mxu0 0.0
        %5086 = vmatmul.mubr.f32.gmra.mrb[0].mxu0 %v4281
        %v5087 = vpop.f32.mrb[0].mxu0
        %v5088 = vadd.f32 0.0, %v5087
        %v5089 = vpop.f32.mrb[0].mxu0
        %5090 = vmatprep.mubr.f32.mxu0 0.0
        %5091 = vmatmul.mubr.f32.gmra.mrb[0].mxu0 %v4283
        %v5092 = vpop.f32.mrb[0].mxu0
        %v5093 = vadd.f32 0.0, %v5092
        %v5094 = vpop.f32.mrb[0].mxu0
        %5095 = vmatprep.mubr.f32.mxu0 0.0
        %5096 = vmatmul.mubr.f32.gmra.mrb[0].mxu0 %v4285
        %v5097 = vpop.f32.mrb[0].mxu0
        %v5098 = vpop.f32.mrb[0].mxu0
        %5099 = vmatprep.mubr.f32.mxu0 0.0
        %5100 = vmatmul.mubr.f32.gmra.mrb[0].mxu0 %v4929
        %v5101 = vpop.f32.mrb[0].mxu0
        %v5102 = vadd.f32 0.0, %v5101
        %v5103 = vpop.f32.mrb[0].mxu0
        %5104 = vmatprep.mubr.f32.mxu0 0.0
        %5105 = vmatmul.mubr.f32.gmra.mrb[0].mxu0 %v4931
        %v5106 = vpop.f32.mrb[0].mxu0
        %v5107 = vadd.f32 0.0, %v5106
        %v5108 = vpop.f32.mrb[0].mxu0
        %5109 = vmatprep.mubr.f32.mxu0 0.0
        %5110 = vmatmul.mubr.f32.gmra.mrb[0].mxu0 %v4933
        %v5111 = vpop.f32.mrb[0].mxu0
        %v5112 = vpop.f32.mrb[0].mxu0
        %5113 = vdwg.mxu0
        %v5114 = vadd.f32 %v4894, %v5004
        %v5115 = vadd.f32 %v4895, %v5009
        %v5116 = vadd.f32 %v4896, %v5018
        %v5117 = vadd.f32 %v4897, %v5023
        %v5118 = vadd.f32 %v4898, %v5032
        %v5119 = vadd.f32 %v4899, %v5037
        %v5120 = vadd.f32 %v4900, %v5046
        %v5121 = vadd.f32 %v4901, %v5051
        %v5122 = vadd.f32 %v4902, %v5060
        %v5123 = vadd.f32 %v4903, %v5065
        %v5124 = vadd.f32 %v4904, %v5074
        %v5125 = vadd.f32 %v4905, %v5079
        %v5126 = vadd.f32 %v4906, %v5088
        %v5127 = vadd.f32 %v4907, %v5093
        %v5128 = vadd.f32 %v4908, %v5102
        %v5129 = vadd.f32 %v4909, %v5107
        %v5130 = vld [vmem:[#allocation16 + $0x380] sm:$0xff]
        %v5131 = vld [vmem:[#allocation16 + $0x388] sm:$0xff]
        %v5132 = vld [vmem:[#allocation16 + $0x390] sm:$0xff]
        %v5133 = vld [vmem:[#allocation16 + $0x398] sm:$0xff]
        %v5134 = vld [vmem:[#allocation16 + $0x3a0] sm:$0xff]
        %v5135 = vld [vmem:[#allocation16 + $0x3a8] sm:$0xff]
        %v5136 = vld [vmem:[#allocation16 + $0x3b0] sm:$0xff]
        %v5137 = vld [vmem:[#allocation16 + $0x3b8] sm:$0xff]
        %v5138 = vld [vmem:[#allocation16 + $0x3c0] sm:$0xff]
        %v5139 = vld [vmem:[#allocation16 + $0x3c8] sm:$0xff]
        %v5140 = vld [vmem:[#allocation16 + $0x3d0] sm:$0xff]
        %v5141 = vld [vmem:[#allocation16 + $0x3d8] sm:$0xff]
        %v5142 = vld [vmem:[#allocation16 + $0x3e0] sm:$0xff]
        %v5143 = vld [vmem:[#allocation16 + $0x3e8] sm:$0xff]
        %v5144 = vld [vmem:[#allocation16 + $0x3f0] sm:$0xff]
        %v5145 = vld [vmem:[#allocation16 + $0x3f8] sm:$0xff]
        %5146 = vmatprep.subr.mxu0 0.0
        %5147 = vmatpush1.msra.mxu0 %v5130
        %5148 = vmatprep.subr.mxu0 0.0
        %5149 = vmatpush1.msra.mxu0 %v5131
        %5150 = vmatprep.subr.mxu0 0.0
        %5151 = vmatpush1.msra.mxu0 %v5132
        %5152 = vmatprep.subr.mxu0 0.0
        %5153 = vmatpush1.msra.mxu0 %v5133
        %5154 = vmatprep.subr.mxu0 0.0
        %5155 = vmatpush1.msra.mxu0 %v5134
        %5156 = vmatprep.subr.mxu0 0.0
        %5157 = vmatpush1.msra.mxu0 %v5135
        %5158 = vmatprep.subr.mxu0 0.0
        %5159 = vmatpush1.msra.mxu0 %v5136
        %5160 = vmatprep.subr.mxu0 0.0
        %5161 = vmatpush1.msra.mxu0 %v5137
        %5162 = vmatprep.subr.mxu0 0.0
        %5163 = vmatpush1.msra.mxu0 %v5138
        %5164 = vmatprep.subr.mxu0 0.0
        %5165 = vmatpush1.msra.mxu0 %v5139
        %5166 = vmatprep.subr.mxu0 0.0
        %5167 = vmatpush1.msra.mxu0 %v5140
        %5168 = vmatprep.subr.mxu0 0.0
        %5169 = vmatpush1.msra.mxu0 %v5141
        %5170 = vmatprep.subr.mxu0 0.0
        %5171 = vmatpush1.msra.mxu0 %v5142
        %5172 = vmatprep.subr.mxu0 0.0
        %5173 = vmatpush1.msra.mxu0 %v5143
        %5174 = vmatprep.subr.mxu0 0.0
        %5175 = vmatpush1.msra.mxu0 %v5144
        %5176 = vmatprep.subr.mxu0 0.0
        %5177 = vmatpush1.msra.mxu0 %v5145
        %5178 = vmatprep.subr.mxu0 0.0
        %5179 = vmatpush1.msra.mxu0 0.0
        %5180 = vmatprep.subr.mxu0 0.0
        %5181 = vmatpush1.msra.mxu0 0.0
        %5182 = vmatprep.subr.mxu0 0.0
        %5183 = vmatpush1.msra.mxu0 0.0
        %5184 = vmatprep.subr.mxu0 0.0
        %5185 = vmatpush1.msra.mxu0 0.0
        %5186 = vmatprep.subr.mxu0 0.0
        %5187 = vmatpush1.msra.mxu0 0.0
        %5188 = vmatprep.subr.mxu0 0.0
        %5189 = vmatpush1.msra.mxu0 0.0
        %5190 = vmatprep.subr.mxu0 0.0
        %5191 = vmatpush1.msra.mxu0 0.0
        %5192 = vmatprep.subr.mxu0 0.0
        %5193 = vmatpush1.msra.mxu0 0.0
        %5194 = vmatprep.subr.mxu0 0.0
        %5195 = vmatpush1.msra.mxu0 0.0
        %5196 = vmatprep.subr.mxu0 0.0
        %5197 = vmatpush1.msra.mxu0 0.0
        %5198 = vmatprep.subr.mxu0 0.0
        %5199 = vmatpush1.msra.mxu0 0.0
        %5200 = vmatprep.subr.mxu0 0.0
        %5201 = vmatpush1.msra.mxu0 0.0
        %5202 = vmatprep.subr.mxu0 0.0
        %5203 = vmatpush1.msra.mxu0 0.0
        %5204 = vmatprep.subr.mxu0 0.0
        %5205 = vmatpush1.msra.mxu0 0.0
        %5206 = vmatprep.subr.mxu0 0.0
        %5207 = vmatpush1.msra.mxu0 0.0
        %5208 = vmatprep.subr.mxu0 0.0
        %5209 = vmatpush1.msra.mxu0 0.0
        %5210 = vmatprep.mubr.f32.mxu0 0.0
        %5211 = vmatmul.mubr.f32.gmra.mrb[0].mxu0 %v3470
        %v5212 = vpop.f32.mrb[0].mxu0
        %v5213 = vadd.f32 0.0, %v5212
        %v5214 = vpop.f32.mrb[0].mxu0
        %5215 = vmatprep.mubr.f32.mxu0 0.0
        %5216 = vmatmul.mubr.f32.gmra.mrb[0].mxu0 %v3471
        %v5217 = vpop.f32.mrb[0].mxu0
        %v5218 = vadd.f32 0.0, %v5217
        %v5219 = vpop.f32.mrb[0].mxu0
        %5220 = vmatprep.mubr.f32.mxu0 0.0
        %5221 = vmatmul.mubr.f32.gmra.mrb[0].mxu0 %v3472
        %v5222 = vpop.f32.mrb[0].mxu0
        %v5223 = vpop.f32.mrb[0].mxu0
        %5224 = vmatprep.mubr.f32.mxu0 0.0
        %5225 = vmatmul.mubr.f32.gmra.mrb[0].mxu0 %v3473
        %v5226 = vpop.f32.mrb[0].mxu0
        %v5227 = vadd.f32 0.0, %v5226
        %v5228 = vpop.f32.mrb[0].mxu0
        %5229 = vmatprep.mubr.f32.mxu0 0.0
        %5230 = vmatmul.mubr.f32.gmra.mrb[0].mxu0 %v3474
        %v5231 = vpop.f32.mrb[0].mxu0
        %v5232 = vadd.f32 0.0, %v5231
        %v5233 = vpop.f32.mrb[0].mxu0
        %5234 = vmatprep.mubr.f32.mxu0 0.0
        %5235 = vmatmul.mubr.f32.gmra.mrb[0].mxu0 %v3475
        %v5236 = vpop.f32.mrb[0].mxu0
        %v5237 = vpop.f32.mrb[0].mxu0
        %5238 = vmatprep.mubr.f32.mxu0 0.0
        %5239 = vmatmul.mubr.f32.gmra.mrb[0].mxu0 %v3476
        %v5240 = vpop.f32.mrb[0].mxu0
        %v5241 = vadd.f32 0.0, %v5240
        %v5242 = vpop.f32.mrb[0].mxu0
        %5243 = vmatprep.mubr.f32.mxu0 0.0
        %5244 = vmatmul.mubr.f32.gmra.mrb[0].mxu0 %v3477
        %v5245 = vpop.f32.mrb[0].mxu0
        %v5246 = vadd.f32 0.0, %v5245
        %v5247 = vpop.f32.mrb[0].mxu0
        %5248 = vmatprep.mubr.f32.mxu0 0.0
        %5249 = vmatmul.mubr.f32.gmra.mrb[0].mxu0 %v3478
        %v5250 = vpop.f32.mrb[0].mxu0
        %v5251 = vpop.f32.mrb[0].mxu0
        %5252 = vmatprep.mubr.f32.mxu0 0.0
        %5253 = vmatmul.mubr.f32.gmra.mrb[0].mxu0 %v3479
        %v5254 = vpop.f32.mrb[0].mxu0
        %v5255 = vadd.f32 0.0, %v5254
        %v5256 = vpop.f32.mrb[0].mxu0
        %5257 = vmatprep.mubr.f32.mxu0 0.0
        %5258 = vmatmul.mubr.f32.gmra.mrb[0].mxu0 %v3480
        %v5259 = vpop.f32.mrb[0].mxu0
        %v5260 = vadd.f32 0.0, %v5259
        %v5261 = vpop.f32.mrb[0].mxu0
        %5262 = vmatprep.mubr.f32.mxu0 0.0
        %5263 = vmatmul.mubr.f32.gmra.mrb[0].mxu0 %v3481
        %v5264 = vpop.f32.mrb[0].mxu0
        %v5265 = vpop.f32.mrb[0].mxu0
        %5266 = vmatprep.mubr.f32.mxu0 0.0
        %5267 = vmatmul.mubr.f32.gmra.mrb[0].mxu0 %v3482
        %v5268 = vpop.f32.mrb[0].mxu0
        %v5269 = vadd.f32 0.0, %v5268
        %v5270 = vpop.f32.mrb[0].mxu0
        %5271 = vmatprep.mubr.f32.mxu0 0.0
        %5272 = vmatmul.mubr.f32.gmra.mrb[0].mxu0 %v3483
        %v5273 = vpop.f32.mrb[0].mxu0
        %v5274 = vadd.f32 0.0, %v5273
        %v5275 = vpop.f32.mrb[0].mxu0
        %5276 = vmatprep.mubr.f32.mxu0 0.0
        %5277 = vmatmul.mubr.f32.gmra.mrb[0].mxu0 %v3484
        %v5278 = vpop.f32.mrb[0].mxu0
        %v5279 = vpop.f32.mrb[0].mxu0
        %5280 = vmatprep.mubr.f32.mxu0 0.0
        %5281 = vmatmul.mubr.f32.gmra.mrb[0].mxu0 %v3485
        %v5282 = vpop.f32.mrb[0].mxu0
        %v5283 = vadd.f32 0.0, %v5282
        %v5284 = vpop.f32.mrb[0].mxu0
        %5285 = vmatprep.mubr.f32.mxu0 0.0
        %5286 = vmatmul.mubr.f32.gmra.mrb[0].mxu0 %v3486
        %v5287 = vpop.f32.mrb[0].mxu0
        %v5288 = vadd.f32 0.0, %v5287
        %v5289 = vpop.f32.mrb[0].mxu0
        %5290 = vmatprep.mubr.f32.mxu0 0.0
        %5291 = vmatmul.mubr.f32.gmra.mrb[0].mxu0 %v3487
        %v5292 = vpop.f32.mrb[0].mxu0
        %v5293 = vpop.f32.mrb[0].mxu0
        %5294 = vmatprep.mubr.f32.mxu0 0.0
        %5295 = vmatmul.mubr.f32.gmra.mrb[0].mxu0 %v3488
        %v5296 = vpop.f32.mrb[0].mxu0
        %v5297 = vadd.f32 0.0, %v5296
        %v5298 = vpop.f32.mrb[0].mxu0
        %5299 = vmatprep.mubr.f32.mxu0 0.0
        %5300 = vmatmul.mubr.f32.gmra.mrb[0].mxu0 %v3489
        %v5301 = vpop.f32.mrb[0].mxu0
        %v5302 = vadd.f32 0.0, %v5301
        %v5303 = vpop.f32.mrb[0].mxu0
        %5304 = vmatprep.mubr.f32.mxu0 0.0
        %5305 = vmatmul.mubr.f32.gmra.mrb[0].mxu0 %v3490
        %v5306 = vpop.f32.mrb[0].mxu0
        %v5307 = vpop.f32.mrb[0].mxu0
        %5308 = vmatprep.mubr.f32.mxu0 0.0
        %5309 = vmatmul.mubr.f32.gmra.mrb[0].mxu0 %v3491
        %v5310 = vpop.f32.mrb[0].mxu0
        %v5311 = vadd.f32 0.0, %v5310
        %v5312 = vpop.f32.mrb[0].mxu0
        %5313 = vmatprep.mubr.f32.mxu0 0.0
        %5314 = vmatmul.mubr.f32.gmra.mrb[0].mxu0 %v3492
        %v5315 = vpop.f32.mrb[0].mxu0
        %v5316 = vadd.f32 0.0, %v5315
        %v5317 = vpop.f32.mrb[0].mxu0
        %5318 = vmatprep.mubr.f32.mxu0 0.0
        %5319 = vmatmul.mubr.f32.gmra.mrb[0].mxu0 %v3493
        %v5320 = vpop.f32.mrb[0].mxu0
        %v5321 = vpop.f32.mrb[0].mxu0
        %5322 = vdwg.mxu0
        %v5323 = vadd.f32 %v5114, %v5213
        %v5324 = vadd.f32 %v5115, %v5218
        %v5325 = vadd.f32 %v5116, %v5227
        %v5326 = vadd.f32 %v5117, %v5232
        %v5327 = vadd.f32 %v5118, %v5241
        %v5328 = vadd.f32 %v5119, %v5246
        %v5329 = vadd.f32 %v5120, %v5255
        %v5330 = vadd.f32 %v5121, %v5260
        %v5331 = vadd.f32 %v5122, %v5269
        %v5332 = vadd.f32 %v5123, %v5274
        %v5333 = vadd.f32 %v5124, %v5283
        %v5334 = vadd.f32 %v5125, %v5288
        %v5335 = vadd.f32 %v5126, %v5297
        %v5336 = vadd.f32 %v5127, %v5302
        %v5337 = vadd.f32 %v5128, %v5311
        %v5338 = vadd.f32 %v5129, %v5316
        %v5339 = vld [vmem:[#allocation16 + $0x400] sm:$0xff]
        %v5340 = vld [vmem:[#allocation16 + $0x408] sm:$0xff]
        %v5341 = vld [vmem:[#allocation16 + $0x410] sm:$0xff]
        %v5342 = vld [vmem:[#allocation16 + $0x418] sm:$0xff]
        %v5343 = vld [vmem:[#allocation16 + $0x420] sm:$0xff]
        %v5344 = vld [vmem:[#allocation16 + $0x428] sm:$0xff]
        %v5345 = vld [vmem:[#allocation16 + $0x430] sm:$0xff]
        %v5346 = vld [vmem:[#allocation16 + $0x438] sm:$0xff]
        %v5347 = vld [vmem:[#allocation16 + $0x440] sm:$0xff]
        %v5348 = vld [vmem:[#allocation16 + $0x448] sm:$0xff]
        %v5349 = vld [vmem:[#allocation16 + $0x450] sm:$0xff]
        %v5350 = vld [vmem:[#allocation16 + $0x458] sm:$0xff]
        %v5351 = vld [vmem:[#allocation16 + $0x460] sm:$0xff]
        %v5352 = vld [vmem:[#allocation16 + $0x468] sm:$0xff]
        %v5353 = vld [vmem:[#allocation16 + $0x470] sm:$0xff]
        %v5354 = vld [vmem:[#allocation16 + $0x478] sm:$0xff]
        %v5356 = vrot.slane %v3492, 1
        %v5357 = vsel %vm1397, %v4712, %v5356
        %v5358 = vrot.slane %v3493, 1
        %v5359 = vsel %vm1397, %v5356, %v5358
        %v5360 = vrot.slane %v3494, 1
        %v5361 = vsel %vm1397, %v5358, %v5360
        %5365 = vmatprep.subr.mxu0 0.0
        %5366 = vmatpush1.msra.mxu0 %v5339
        %5367 = vmatprep.subr.mxu0 0.0
        %5368 = vmatpush1.msra.mxu0 %v5340
        %5369 = vmatprep.subr.mxu0 0.0
        %5370 = vmatpush1.msra.mxu0 %v5341
        %5371 = vmatprep.subr.mxu0 0.0
        %5372 = vmatpush1.msra.mxu0 %v5342
        %5373 = vmatprep.subr.mxu0 0.0
        %5374 = vmatpush1.msra.mxu0 %v5343
        %5375 = vmatprep.subr.mxu0 0.0
        %5376 = vmatpush1.msra.mxu0 %v5344
        %5377 = vmatprep.subr.mxu0 0.0
        %5378 = vmatpush1.msra.mxu0 %v5345
        %5379 = vmatprep.subr.mxu0 0.0
        %5380 = vmatpush1.msra.mxu0 %v5346
        %5381 = vmatprep.subr.mxu0 0.0
        %5382 = vmatpush1.msra.mxu0 %v5347
        %5383 = vmatprep.subr.mxu0 0.0
        %5384 = vmatpush1.msra.mxu0 %v5348
        %5385 = vmatprep.subr.mxu0 0.0
        %5386 = vmatpush1.msra.mxu0 %v5349
        %5387 = vmatprep.subr.mxu0 0.0
        %5388 = vmatpush1.msra.mxu0 %v5350
        %5389 = vmatprep.subr.mxu0 0.0
        %5390 = vmatpush1.msra.mxu0 %v5351
        %5391 = vmatprep.subr.mxu0 0.0
        %5392 = vmatpush1.msra.mxu0 %v5352
        %5393 = vmatprep.subr.mxu0 0.0
        %5394 = vmatpush1.msra.mxu0 %v5353
        %5395 = vmatprep.subr.mxu0 0.0
        %5396 = vmatpush1.msra.mxu0 %v5354
        %5397 = vmatprep.subr.mxu0 0.0
        %5398 = vmatpush1.msra.mxu0 0.0
        %5399 = vmatprep.subr.mxu0 0.0
        %5400 = vmatpush1.msra.mxu0 0.0
        %5401 = vmatprep.subr.mxu0 0.0
        %5402 = vmatpush1.msra.mxu0 0.0
        %5403 = vmatprep.subr.mxu0 0.0
        %5404 = vmatpush1.msra.mxu0 0.0
        %5405 = vmatprep.subr.mxu0 0.0
        %5406 = vmatpush1.msra.mxu0 0.0
        %5407 = vmatprep.subr.mxu0 0.0
        %5408 = vmatpush1.msra.mxu0 0.0
        %5409 = vmatprep.subr.mxu0 0.0
        %5410 = vmatpush1.msra.mxu0 0.0
        %5411 = vmatprep.subr.mxu0 0.0
        %5412 = vmatpush1.msra.mxu0 0.0
        %5413 = vmatprep.subr.mxu0 0.0
        %5414 = vmatpush1.msra.mxu0 0.0
        %5415 = vmatprep.subr.mxu0 0.0
        %5416 = vmatpush1.msra.mxu0 0.0
        %5417 = vmatprep.subr.mxu0 0.0
        %5418 = vmatpush1.msra.mxu0 0.0
        %5419 = vmatprep.subr.mxu0 0.0
        %5420 = vmatpush1.msra.mxu0 0.0
        %5421 = vmatprep.subr.mxu0 0.0
        %5422 = vmatpush1.msra.mxu0 0.0
        %5423 = vmatprep.subr.mxu0 0.0
        %5424 = vmatpush1.msra.mxu0 0.0
        %5425 = vmatprep.subr.mxu0 0.0
        %5426 = vmatpush1.msra.mxu0 0.0
        %5427 = vmatprep.subr.mxu0 0.0
        %5428 = vmatpush1.msra.mxu0 0.0
        %5429 = vmatprep.mubr.f32.mxu0 0.0
        %5430 = vmatmul.mubr.f32.gmra.mrb[0].mxu0 %v4010
        %v5431 = vpop.f32.mrb[0].mxu0
        %v5432 = vadd.f32 0.0, %v5431
        %v5433 = vpop.f32.mrb[0].mxu0
        %5434 = vmatprep.mubr.f32.mxu0 0.0
        %5435 = vmatmul.mubr.f32.gmra.mrb[0].mxu0 %v4012
        %v5436 = vpop.f32.mrb[0].mxu0
        %v5437 = vadd.f32 0.0, %v5436
        %v5438 = vpop.f32.mrb[0].mxu0
        %5439 = vmatprep.mubr.f32.mxu0 0.0
        %5440 = vmatmul.mubr.f32.gmra.mrb[0].mxu0 %v4014
        %v5441 = vpop.f32.mrb[0].mxu0
        %v5442 = vpop.f32.mrb[0].mxu0
        %5443 = vmatprep.mubr.f32.mxu0 0.0
        %5444 = vmatmul.mubr.f32.gmra.mrb[0].mxu0 %v4016
        %v5445 = vpop.f32.mrb[0].mxu0
        %v5446 = vadd.f32 0.0, %v5445
        %v5447 = vpop.f32.mrb[0].mxu0
        %5448 = vmatprep.mubr.f32.mxu0 0.0
        %5449 = vmatmul.mubr.f32.gmra.mrb[0].mxu0 %v4018
        %v5450 = vpop.f32.mrb[0].mxu0
        %v5451 = vadd.f32 0.0, %v5450
        %v5452 = vpop.f32.mrb[0].mxu0
        %5453 = vmatprep.mubr.f32.mxu0 0.0
        %5454 = vmatmul.mubr.f32.gmra.mrb[0].mxu0 %v4020
        %v5455 = vpop.f32.mrb[0].mxu0
        %v5456 = vpop.f32.mrb[0].mxu0
        %5457 = vmatprep.mubr.f32.mxu0 0.0
        %5458 = vmatmul.mubr.f32.gmra.mrb[0].mxu0 %v4022
        %v5459 = vpop.f32.mrb[0].mxu0
        %v5460 = vadd.f32 0.0, %v5459
        %v5461 = vpop.f32.mrb[0].mxu0
        %5462 = vmatprep.mubr.f32.mxu0 0.0
        %5463 = vmatmul.mubr.f32.gmra.mrb[0].mxu0 %v4024
        %v5464 = vpop.f32.mrb[0].mxu0
        %v5465 = vadd.f32 0.0, %v5464
        %v5466 = vpop.f32.mrb[0].mxu0
        %5467 = vmatprep.mubr.f32.mxu0 0.0
        %5468 = vmatmul.mubr.f32.gmra.mrb[0].mxu0 %v4026
        %v5469 = vpop.f32.mrb[0].mxu0
        %v5470 = vpop.f32.mrb[0].mxu0
        %5471 = vmatprep.mubr.f32.mxu0 0.0
        %5472 = vmatmul.mubr.f32.gmra.mrb[0].mxu0 %v4028
        %v5473 = vpop.f32.mrb[0].mxu0
        %v5474 = vadd.f32 0.0, %v5473
        %v5475 = vpop.f32.mrb[0].mxu0
        %5476 = vmatprep.mubr.f32.mxu0 0.0
        %5477 = vmatmul.mubr.f32.gmra.mrb[0].mxu0 %v4030
        %v5478 = vpop.f32.mrb[0].mxu0
        %v5479 = vadd.f32 0.0, %v5478
        %v5480 = vpop.f32.mrb[0].mxu0
        %5481 = vmatprep.mubr.f32.mxu0 0.0
        %5482 = vmatmul.mubr.f32.gmra.mrb[0].mxu0 %v4032
        %v5483 = vpop.f32.mrb[0].mxu0
        %v5484 = vpop.f32.mrb[0].mxu0
        %5485 = vmatprep.mubr.f32.mxu0 0.0
        %5486 = vmatmul.mubr.f32.gmra.mrb[0].mxu0 %v4034
        %v5487 = vpop.f32.mrb[0].mxu0
        %v5488 = vadd.f32 0.0, %v5487
        %v5489 = vpop.f32.mrb[0].mxu0
        %5490 = vmatprep.mubr.f32.mxu0 0.0
        %5491 = vmatmul.mubr.f32.gmra.mrb[0].mxu0 %v4036
        %v5492 = vpop.f32.mrb[0].mxu0
        %v5493 = vadd.f32 0.0, %v5492
        %v5494 = vpop.f32.mrb[0].mxu0
        %5495 = vmatprep.mubr.f32.mxu0 0.0
        %5496 = vmatmul.mubr.f32.gmra.mrb[0].mxu0 %v4038
        %v5497 = vpop.f32.mrb[0].mxu0
        %v5498 = vpop.f32.mrb[0].mxu0
        %5499 = vmatprep.mubr.f32.mxu0 0.0
        %5500 = vmatmul.mubr.f32.gmra.mrb[0].mxu0 %v4040
        %v5501 = vpop.f32.mrb[0].mxu0
        %v5502 = vadd.f32 0.0, %v5501
        %v5503 = vpop.f32.mrb[0].mxu0
        %5504 = vmatprep.mubr.f32.mxu0 0.0
        %5505 = vmatmul.mubr.f32.gmra.mrb[0].mxu0 %v4042
        %v5506 = vpop.f32.mrb[0].mxu0
        %v5507 = vadd.f32 0.0, %v5506
        %v5508 = vpop.f32.mrb[0].mxu0
        %5509 = vmatprep.mubr.f32.mxu0 0.0
        %5510 = vmatmul.mubr.f32.gmra.mrb[0].mxu0 %v4044
        %v5511 = vpop.f32.mrb[0].mxu0
        %v5512 = vpop.f32.mrb[0].mxu0
        %5513 = vmatprep.mubr.f32.mxu0 0.0
        %5514 = vmatmul.mubr.f32.gmra.mrb[0].mxu0 %v4709
        %v5515 = vpop.f32.mrb[0].mxu0
        %v5516 = vadd.f32 0.0, %v5515
        %v5517 = vpop.f32.mrb[0].mxu0
        %5518 = vmatprep.mubr.f32.mxu0 0.0
        %5519 = vmatmul.mubr.f32.gmra.mrb[0].mxu0 %v4711
        %v5520 = vpop.f32.mrb[0].mxu0
        %v5521 = vadd.f32 0.0, %v5520
        %v5522 = vpop.f32.mrb[0].mxu0
        %5523 = vmatprep.mubr.f32.mxu0 0.0
        %5524 = vmatmul.mubr.f32.gmra.mrb[0].mxu0 %v4713
        %v5525 = vpop.f32.mrb[0].mxu0
        %v5526 = vpop.f32.mrb[0].mxu0
        %5527 = vmatprep.mubr.f32.mxu0 0.0
        %5528 = vmatmul.mubr.f32.gmra.mrb[0].mxu0 %v5357
        %v5529 = vpop.f32.mrb[0].mxu0
        %v5530 = vadd.f32 0.0, %v5529
        %v5531 = vpop.f32.mrb[0].mxu0
        %5532 = vmatprep.mubr.f32.mxu0 0.0
        %5533 = vmatmul.mubr.f32.gmra.mrb[0].mxu0 %v5359
        %v5534 = vpop.f32.mrb[0].mxu0
        %v5535 = vadd.f32 0.0, %v5534
        %v5536 = vpop.f32.mrb[0].mxu0
        %5537 = vmatprep.mubr.f32.mxu0 0.0
        %5538 = vmatmul.mubr.f32.gmra.mrb[0].mxu0 %v5361
        %v5539 = vpop.f32.mrb[0].mxu0
        %v5540 = vpop.f32.mrb[0].mxu0
        %5541 = vdwg.mxu0
        %v5542 = vadd.f32 %v5323, %v5432
        %v5543 = vadd.f32 %v5324, %v5437
        %v5544 = vadd.f32 %v5325, %v5446
        %v5545 = vadd.f32 %v5326, %v5451
        %v5546 = vadd.f32 %v5327, %v5460
        %v5547 = vadd.f32 %v5328, %v5465
        %v5548 = vadd.f32 %v5329, %v5474
        %v5549 = vadd.f32 %v5330, %v5479
        %v5550 = vadd.f32 %v5331, %v5488
        %v5551 = vadd.f32 %v5332, %v5493
        %v5552 = vadd.f32 %v5333, %v5502
        %v5553 = vadd.f32 %v5334, %v5507
        %v5554 = vadd.f32 %v5335, %v5516
        %v5555 = vadd.f32 %v5336, %v5521
        %v5556 = vadd.f32 %v5337, %v5530
        %v5557 = vadd.f32 %v5338, %v5535
        %v5558 = vld [vmem:[#allocation18] sm:$0x1]
        %v5560 = vlaneseq
        %v5561 = vshrl.u32 %v5560, 7
        %v5562 = vsub.s32 0, %v5561
        %v5563 = vrot.slane %v5558, %v5562
        %v5565 = vadd.f32 %v5542, %v5563
        %v5566 = vadd.f32 %v5543, %v5563
        %v5567 = vadd.f32 %v5544, %v5563
        %v5568 = vadd.f32 %v5545, %v5563
        %v5569 = vadd.f32 %v5546, %v5563
        %v5570 = vadd.f32 %v5547, %v5563
        %v5571 = vadd.f32 %v5548, %v5563
        %v5572 = vadd.f32 %v5549, %v5563
        %v5573 = vadd.f32 %v5550, %v5563
        %v5574 = vadd.f32 %v5551, %v5563
        %v5575 = vadd.f32 %v5552, %v5563
        %v5576 = vadd.f32 %v5553, %v5563
        %v5577 = vadd.f32 %v5554, %v5563
        %v5578 = vadd.f32 %v5555, %v5563
        %v5579 = vadd.f32 %v5556, %v5563
        %v5580 = vadd.f32 %v5557, %v5563
        %v5581 = vld [vmem:[%s538] sm:$0xff]
        %v5582 = vld [vmem:[%s538 + $0x8] sm:$0xff]
        %v5583 = vld [vmem:[%s538 + $0x10] sm:$0xff]
        %v5584 = vld [vmem:[%s538 + $0x18] sm:$0xff]
        %v5585 = vld [vmem:[%s538 + $0x20] sm:$0xff]
        %v5586 = vld [vmem:[%s538 + $0x28] sm:$0xff]
        %v5587 = vld [vmem:[%s538 + $0x30] sm:$0xff]
        %v5588 = vld [vmem:[%s538 + $0x38] sm:$0xff]
        %v5589 = vld [vmem:[%s538 + $0x40] sm:$0xff]
        %v5590 = vld [vmem:[%s538 + $0x48] sm:$0xff]
        %v5591 = vld [vmem:[%s538 + $0x50] sm:$0xff]
        %v5592 = vld [vmem:[%s538 + $0x58] sm:$0xff]
        %v5593 = vld [vmem:[%s538 + $0x60] sm:$0xff]
        %v5594 = vld [vmem:[%s538 + $0x68] sm:$0xff]
        %v5595 = vld [vmem:[%s538 + $0x70] sm:$0xff]
        %v5596 = vld [vmem:[%s538 + $0x78] sm:$0xff]
        %v5597 = vadd.f32 %v5565, %v5581
        %v5598 = vadd.f32 %v5566, %v5582
        %v5599 = vadd.f32 %v5567, %v5583
        %v5600 = vadd.f32 %v5568, %v5584
        %v5601 = vadd.f32 %v5569, %v5585
        %v5602 = vadd.f32 %v5570, %v5586
        %v5603 = vadd.f32 %v5571, %v5587
        %v5604 = vadd.f32 %v5572, %v5588
        %v5605 = vadd.f32 %v5573, %v5589
        %v5606 = vadd.f32 %v5574, %v5590
        %v5607 = vadd.f32 %v5575, %v5591
        %v5608 = vadd.f32 %v5576, %v5592
        %v5609 = vadd.f32 %v5577, %v5593
        %v5610 = vadd.f32 %v5578, %v5594
        %v5611 = vadd.f32 %v5579, %v5595
        %v5612 = vadd.f32 %v5580, %v5596
        %v5613 = vmax.f32 %v5597, 0.0
        %v5614 = vmax.f32 %v5598, 0.0
        %v5615 = vmax.f32 %v5599, 0.0
        %v5616 = vmax.f32 %v5600, 0.0
        %v5617 = vmax.f32 %v5601, 0.0
        %v5618 = vmax.f32 %v5602, 0.0
        %v5619 = vmax.f32 %v5603, 0.0
        %v5620 = vmax.f32 %v5604, 0.0
        %v5621 = vmax.f32 %v5605, 0.0
        %v5622 = vmax.f32 %v5606, 0.0
        %v5623 = vmax.f32 %v5607, 0.0
        %v5624 = vmax.f32 %v5608, 0.0
        %v5625 = vmax.f32 %v5609, 0.0
        %v5626 = vmax.f32 %v5610, 0.0
        %v5627 = vmax.f32 %v5611, 0.0
        %v5628 = vmax.f32 %v5612, 0.0
        %5629 = vst [vmem:[%s644] sm:$0xff] %v5613
        %5630 = vst [vmem:[%s644 + $0x8] sm:$0xff] %v5614
        %5631 = vst [vmem:[%s644 + $0x10] sm:$0xff] %v5615
        %5632 = vst [vmem:[%s644 + $0x18] sm:$0xff] %v5616
        %5633 = vst [vmem:[%s644 + $0x20] sm:$0xff] %v5617
        %5634 = vst [vmem:[%s644 + $0x28] sm:$0xff] %v5618
        %5635 = vst [vmem:[%s644 + $0x30] sm:$0xff] %v5619
        %5636 = vst [vmem:[%s644 + $0x38] sm:$0xff] %v5620
        %5637 = vst [vmem:[%s644 + $0x40] sm:$0xff] %v5621
        %5638 = vst [vmem:[%s644 + $0x48] sm:$0xff] %v5622
        %5639 = vst [vmem:[%s644 + $0x50] sm:$0xff] %v5623
        %5640 = vst [vmem:[%s644 + $0x58] sm:$0xff] %v5624
        %5641 = vst [vmem:[%s644 + $0x60] sm:$0xff] %v5625
        %5642 = vst [vmem:[%s644 + $0x68] sm:$0xff] %v5626
        %5643 = vst [vmem:[%s644 + $0x70] sm:$0xff] %v5627
        %5644 = vst [vmem:[%s644 + $0x78] sm:$0xff] %v5628
        %s5645 = sand.u32 %s314, 1
        %s5646 = scalar_lea.sflag [#allocation6], %s5645
        %s5647 = sand.u32 %s314, 1
        %s5648 = smul.addr %s5647, 128
        %s5649 = scalar_lea.vmem [#allocation19], %s5648
        // Predicated region
        $region117: #{tpu_custom_call.1} parent=55 // pred_check
          %p5650 = pneg %p324
        $region118: #{tpu_custom_call.1} parent=55 // pred_check_branch
          %5652 = sbr.rel (%p5650) target = $region120
        $region119: #{tpu_custom_call.1} parent=55 // pred_region
          %s5653 = smul.u32 8, %s39
          %s5655 = ssub.s32 2048, 2048
          %5656 = vsyncadd %s5646, %s5655
          %s5657 = smul.addr %s5653, 2
          %s5658 = smul.addr %s38, 32
          %s5659 = sadd.s32 %s5657, %s5658
          %s5660 = smul.addr %s5659, 128
          %s5661 = scalar_lea.hbm %s9, %s5660
          %s5662 = sshll.u32 %s5649, 4
          %s5663 = int_to_ptr.vmem [resolvable:$true] %s5662
          %5668 = dma.vmem_to_hbm [thread:$0]  %s5663, 2048, %s5661, %s5646, 128, 128, 8
        $region120: #{tpu_custom_call.1} parent=55 // pred_fallthru
          _
      $region56: #{tpu_custom_call.1} parent=5 // pred_fallthru
        _
      %p5669 = scmp.le.s32.totalorder 2, %s29
      // Predicated region
      $region121: #{tpu_custom_call.1} parent=5 // pred_check
        %p5670 = pneg %p5669
      $region122: #{tpu_custom_call.1} parent=5 // pred_check_branch
        %5672 = sbr.rel (%p5670) target = $region124
      $region123: #{tpu_custom_call.1} parent=5 // pred_region
        %s5673 = ssub.s32 %s29, 2
        // Predicated region
        $region125: #{tpu_custom_call.1} parent=123 // pred_check
          %p5674 = pneg %p330
        $region126: #{tpu_custom_call.1} parent=123 // pred_check_branch
          %5676 = sbr.rel (%p5674) target = $region128
        $region127: #{tpu_custom_call.1} parent=123 // pred_region
          %s5677 = sand.u32 %s315, 1
          %s5678 = scalar_lea.sflag [#allocation6], %s5677
          %s5679 = sand.u32 %s315, 1
          %s5680 = smul.addr %s5679, 128
          %s5681 = scalar_lea.vmem [#allocation19], %s5680
          %5682 = dma.done %s5678, 2048
        $region128: #{tpu_custom_call.1} parent=123 // pred_fallthru
          _
      $region124: #{tpu_custom_call.1} parent=5 // pred_fallthru
        _
    $region6: #{tpu_custom_call.1} parent=1 // loop_footer
      %s33 = sadd.s32 1, %s29
    $region7: #{tpu_custom_call.1} parent=1 // loop_footer_branch
      %28 = sbr.rel target = $region3
    $region8: #{tpu_custom_call.1} parent=1 // loop_exit
      _
    %5683 = vsyncpa [#allocation5], 1
    %s5684 = scalar_lea.sflag [#allocation5], 1
    %5685 = vsyncpa %s5684, 1
    %5686 = vsyncpa [#allocation8], 1
    %s5687 = scalar_lea.sflag [#allocation8], 1
    %5688 = vsyncpa %s5687, 1
    %5689 = vsyncpa [#allocation11], 1
    %s5690 = scalar_lea.sflag [#allocation11], 1
    %5691 = vsyncpa %s5690, 1
    %5692 = vsyncpa [#allocation14], 1
    %5693 = vsyncpa [#allocation17], 1
    %5694 = vsyncpa [#allocation6], 1
    %s5695 = scalar_lea.sflag [#allocation6], 1
    %5696 = vsyncpa %s5695, 1

</llo_original>
